<compile_context>
chip_gen: v7x
topology: tpu7x:2x2x1
jax: 0.10.0
libtpu: 0.0.40
codegen_flags: <defaults>
</compile_context>

<pallas_src>
import functools

import jax
import jax.numpy as jnp
from jax import lax
from jax.experimental import pallas as pl
from jax.experimental.pallas import tpu as pltpu

_VMEM_LIMIT_BYTES = 32 * 1024 * 1024


def _pick_tile(dim, preferred):
    """Largest 'nice' tile that divides `dim` (falls back to the full dim)."""
    for t in (preferred, 512, 256, 128):
        if t <= dim and dim % t == 0:
            return t
    return dim


# ----------------------------- linear (x @ W + b) ----------------------------

def _linear_bias_kernel(x_ref, w_ref, b_ref, o_ref, acc_ref):
    """One (tm, tn) output tile; contraction runs over grid axis 2."""
    @pl.when(pl.program_id(2) == 0)
    def _():
        acc_ref[...] = jnp.zeros_like(acc_ref)

    acc_ref[...] += jnp.dot(
        x_ref[...], w_ref[...], preferred_element_type=jnp.float32
    )

    @pl.when(pl.program_id(2) == pl.num_programs(2) - 1)
    def _():
        o_ref[...] = (acc_ref[...] + b_ref[...]).astype(o_ref.dtype)


def _linear(x2d, w, b, *, tm=256, tn=256, tk=256):
    M, K = x2d.shape
    Kw, Nout = w.shape
    assert K == Kw
    tm = _pick_tile(M, tm)
    tn = _pick_tile(Nout, tn)
    tk = _pick_tile(K, tk)
    return pl.pallas_call(
        _linear_bias_kernel,
        out_shape=jax.ShapeDtypeStruct((M, Nout), x2d.dtype),
        grid=(M // tm, Nout // tn, K // tk),
        in_specs=[
            pl.BlockSpec((tm, tk), lambda i, j, k: (i, k)),
            pl.BlockSpec((tk, tn), lambda i, j, k: (k, j)),
            pl.BlockSpec((1, tn), lambda i, j, k: (0, j)),
        ],
        out_specs=pl.BlockSpec((tm, tn), lambda i, j, k: (i, j)),
        scratch_shapes=[pltpu.VMEM((tm, tn), jnp.float32)],
        compiler_params=pltpu.CompilerParams(
            dimension_semantics=("parallel", "parallel", "arbitrary"),
            vmem_limit_bytes=_VMEM_LIMIT_BYTES,
        ),
    )(x2d, w, b.reshape(1, Nout))


# ------------------------- flash attention over KV tiles ---------------------

def _flash_attn_kernel(q_ref, k_ref, v_ref, o_ref, m_sc, l_sc, acc_sc, *,
                       scale, num_heads, head_dim):
    kv_i = pl.program_id(2)

    @pl.when(kv_i == 0)
    def _():
        m_sc[...] = jnp.full_like(m_sc, -jnp.inf)
        l_sc[...] = jnp.zeros_like(l_sc)
        acc_sc[...] = jnp.zeros_like(acc_sc)

    # Static unroll over heads: every op is a plain 2-D VPU/MXU op, no batched
    # dot_general or in-kernel transposes.
    for h in range(num_heads):
        lo, hi = h * head_dim, (h + 1) * head_dim
        q_h = q_ref[0, :, lo:hi] * scale            # (tq, Dh); scale folded in q
        k_h = k_ref[0, :, lo:hi]                    # (tkv, Dh)
        v_h = v_ref[0, :, lo:hi]                    # (tkv, Dh)

        # q @ k^T without materializing k^T: contract the Dh axes directly.
        s = lax.dot_general(
            q_h, k_h,
            dimension_numbers=(((1,), (1,)), ((), ())),
            preferred_element_type=jnp.float32,
        )                                           # (tq, tkv)

        m_prev = m_sc[h]                            # (tq, 1)
        m_new = jnp.maximum(m_prev, jnp.max(s, axis=-1, keepdims=True))
        alpha = jnp.exp(m_prev - m_new)
        p = jnp.exp(s - m_new)                      # (tq, tkv)

        l_sc[h] = alpha * l_sc[h] + jnp.sum(p, axis=-1, keepdims=True)
        acc_sc[h] = alpha * acc_sc[h] + jnp.dot(
            p.astype(v_h.dtype), v_h, preferred_element_type=jnp.float32
        )
        m_sc[h] = m_new

    @pl.when(kv_i == pl.num_programs(2) - 1)
    def _():
        for h in range(num_heads):
            lo, hi = h * head_dim, (h + 1) * head_dim
            inv_l = pl.reciprocal(l_sc[h], approx=True)   # EUP slot, ~free
            o_ref[0, :, lo:hi] = (acc_sc[h] * inv_l).astype(o_ref.dtype)


def _flash_attention(qkv, num_heads, scale, *, tq=256, tkv=256):
    B, N, three_c = qkv.shape
    C = three_c // 3
    Dh = C // num_heads
    # Lane-aligned column blocks (q at 0, k at C, v at 2C) require C % 128 == 0.
    assert C % 128 == 0, "fused head-slicing path assumes C is a multiple of 128"
    tq = _pick_tile(N, tq)
    tkv = _pick_tile(N, tkv)

    kernel = functools.partial(
        _flash_attn_kernel, scale=scale, num_heads=num_heads, head_dim=Dh)

    return pl.pallas_call(
        kernel,
        out_shape=jax.ShapeDtypeStruct((B, N, C), qkv.dtype),
        grid=(B, N // tq, N // tkv),
        in_specs=[
            # q / k / v are column blocks 0 / 1 / 2 of the same (B, N, 3C)
            # buffer: head split is done by the index_map, not a transpose.
            pl.BlockSpec((1, tq, C), lambda b, qi, ki: (b, qi, 0)),
            pl.BlockSpec((1, tkv, C), lambda b, qi, ki: (b, ki, 1)),
            pl.BlockSpec((1, tkv, C), lambda b, qi, ki: (b, ki, 2)),
        ],
        # Output already in (B, N, H*Dh) channel order; lane-dense block.
        out_specs=pl.BlockSpec((1, tq, C), lambda b, qi, ki: (b, qi, 0)),
        scratch_shapes=[
            pltpu.VMEM((num_heads, tq, 1), jnp.float32),   # running max
            pltpu.VMEM((num_heads, tq, 1), jnp.float32),   # running sum
            pltpu.VMEM((num_heads, tq, Dh), jnp.float32),  # running output
        ],
        compiler_params=pltpu.CompilerParams(
            dimension_semantics=("parallel", "parallel", "arbitrary"),
            vmem_limit_bytes=_VMEM_LIMIT_BYTES,
        ),
    )(qkv, qkv, qkv)


# ----------------------------- module forward --------------------------------

def init_attention_params(key, dim, qkv_bias=False, dtype=jnp.float32):
    """Deterministic parameter init (weights stored as (in, out), i.e. W^T)."""
    k1, k2, k3 = jax.random.split(key, 3)
    params = {
        "w_qkv": 0.02 * jax.random.normal(k1, (dim, 3 * dim), dtype=dtype),
        "w_proj": 0.02 * jax.random.normal(k2, (dim, dim), dtype=dtype),
        "b_proj": 0.02 * jax.random.normal(k3, (dim,), dtype=dtype),
    }
    if qkv_bias:
        params["b_qkv"] = jnp.zeros((3 * dim,), dtype=dtype)
    return params


def attention_forward(x, params, num_heads):
    """Pallas version of Attention.forward (dropout probs are 0 -> identity)."""
    B, N, C = x.shape
    Dh = C // num_heads
    scale = Dh ** (-0.5)

    # 1) fused qkv projection (PyTorch default qkv_bias=False -> zero bias)
    x2d = x.reshape(B * N, C)
    b_qkv = params.get("b_qkv")
    if b_qkv is None:
        b_qkv = jnp.zeros((3 * C,), dtype=x.dtype)
    qkv2d = _linear(x2d, params["w_qkv"], b_qkv)

    # 2) flash attention straight off the (B, N, 3C) buffer (free reshape,
    #    no head split/merge transposes through HBM)
    attn = _flash_attention(qkv2d.reshape(B, N, 3 * C), num_heads, scale)

    # 3) output projection (+bias); attn is already channel-ordered (B, N, C)
    out2d = _linear(attn.reshape(B * N, C), params["w_proj"], params["b_proj"])
    return out2d.reshape(B, N, C)


# -------------------------- pure-JAX reference --------------------------------

def attention_reference(x, params, num_heads):
    B, N, C = x.shape
    H = num_heads
    Dh = C // H
    scale = Dh ** (-0.5)
    qkv = x @ params["w_qkv"]
    if "b_qkv" in params:
        qkv = qkv + params["b_qkv"]
    qkv = qkv.reshape(B, N, 3, H, Dh).transpose(2, 0, 3, 1, 4)
    q, k, v = qkv[0], qkv[1], qkv[2]
    attn = jnp.einsum("bhnd,bhmd->bhnm", q, k) * scale
    attn = jax.nn.softmax(attn, axis=-1)
    y = jnp.einsum("bhnm,bhmd->bhnd", attn, v)
    y = y.transpose(0, 2, 1, 3).reshape(B, N, C)
    return y @ params["w_proj"] + params["b_proj"]


# ------------------------------- main -----------------------------------------

if __name__ == "__main__":
    # Small but lane-aligned shapes: B=2, seq N=128, dim C=128, 4 heads (Dh=32).
    B, N, C, H = 2, 128, 128, 4

    key = jax.random.PRNGKey(0)
    kx, kp = jax.random.split(key)
    x = jax.random.normal(kx, (B, N, C), dtype=jnp.float32)
    params = init_attention_params(kp, C, qkv_bias=False, dtype=jnp.float32)

    fwd = jax.jit(functools.partial(attention_forward, num_heads=H))
    out = jax.block_until_ready(fwd(x, params))

    ref = attention_reference(x, params, num_heads=H)
    assert out.shape == (B, N, C)
    max_err = float(jnp.max(jnp.abs(out - ref)))
    assert jnp.allclose(out, ref, atol=2e-2, rtol=2e-2), (
        f"mismatch vs reference (max abs err {max_err})")

    print("KERNEL_OK")
</pallas_src>

<mosaic_0001>
module attributes {stable_mosaic.version = 11 : i64} {
  func.func @_linear_bias_kernel(%arg0: i32, %arg1: i32, %arg2: i32, %arg3: memref<256x128xf32, #tpu.memory_space<vmem>>, %arg4: memref<128x128xf32, #tpu.memory_space<vmem>>, %arg5: memref<1x128xf32, #tpu.memory_space<vmem>>, %arg6: memref<256x128xf32, #tpu.memory_space<vmem>>, %arg7: memref<256x128xf32, #tpu.memory_space<vmem>>) attributes {dimension_semantics = [#tpu.dimension_semantics<parallel>, #tpu.dimension_semantics<parallel>, #tpu.dimension_semantics<arbitrary>], iteration_bounds = array<i64: 1, 1, 1>, scalar_prefetch = 0 : i64, scratch_operands = 1 : i64, tpu.core_type = #tpu.core_type<tc>, window_params = [{transform_indices = @transform_0, window_bounds = array<i64: 256, 128>}, {transform_indices = @transform_1, window_bounds = array<i64: 128, 128>}, {transform_indices = @transform_2, window_bounds = array<i64: 1, 128>}, {transform_indices = @transform_3, window_bounds = array<i64: 256, 128>}]} {
    %c0_i32 = arith.constant 0 : i32
    %0 = arith.cmpi eq, %arg2, %c0_i32 : i32
    %1 = arith.extui %0 : i1 to i32
    %c0_i32_0 = arith.constant 0 : i32
    %2 = arith.cmpi ne, %1, %c0_i32_0 : i32
    scf.if %2 {
      %cst_10 = arith.constant 0.000000e+00 : f32
      %12 = vector.broadcast %cst_10 : f32 to vector<256x128xf32>
      %c0_11 = arith.constant 0 : index
      %c0_12 = arith.constant 0 : index
      %13 = vector.load %arg7[%c0_11, %c0_12] : memref<256x128xf32, #tpu.memory_space<vmem>>, vector<256x128xf32>
      tpu.vector_store %arg7[%c0_11, %c0_12], %12 {strides = array<i32>} : memref<256x128xf32, #tpu.memory_space<vmem>>, vector<256x128xf32>,
    } else {
    }
    %c0 = arith.constant 0 : index
    %c0_1 = arith.constant 0 : index
    %3 = vector.load %arg7[%c0, %c0_1] : memref<256x128xf32, #tpu.memory_space<vmem>>, vector<256x128xf32>
    %c0_2 = arith.constant 0 : index
    %c0_3 = arith.constant 0 : index
    %4 = vector.load %arg3[%c0_2, %c0_3] : memref<256x128xf32, #tpu.memory_space<vmem>>, vector<256x128xf32>
    %c0_4 = arith.constant 0 : index
    %c0_5 = arith.constant 0 : index
    %5 = vector.load %arg4[%c0_4, %c0_5] : memref<128x128xf32, #tpu.memory_space<vmem>>, vector<128x128xf32>
    %cst = arith.constant dense<0.000000e+00> : vector<256x128xf32>
    %6 = tpu.matmul %4, %5, %cst {dimension_numbers = #tpu.dot_dimension_numbers<[1], [0], [0], [1], [0, 0, 1, 1], [], []>} : vector<256x128xf32>, vector<128x128xf32>, vector<256x128xf32> -> vector<256x128xf32>
    %7 = arith.addf %3, %6 : vector<256x128xf32>
    %c0_6 = arith.constant 0 : index
    %c0_7 = arith.constant 0 : index
    %8 = vector.load %arg7[%c0_6, %c0_7] : memref<256x128xf32, #tpu.memory_space<vmem>>, vector<256x128xf32>
    tpu.vector_store %arg7[%c0_6, %c0_7], %7 {strides = array<i32>} : memref<256x128xf32, #tpu.memory_space<vmem>>, vector<256x128xf32>,
    %c0_i32_8 = arith.constant 0 : i32
    %9 = arith.cmpi eq, %arg2, %c0_i32_8 : i32
    %10 = arith.extui %9 : i1 to i32
    %c0_i32_9 = arith.constant 0 : i32
    %11 = arith.cmpi ne, %10, %c0_i32_9 : i32
    scf.if %11 {
      %c0_10 = arith.constant 0 : index
      %c0_11 = arith.constant 0 : index
      %12 = vector.load %arg7[%c0_10, %c0_11] : memref<256x128xf32, #tpu.memory_space<vmem>>, vector<256x128xf32>
      %c0_12 = arith.constant 0 : index
      %c0_13 = arith.constant 0 : index
      %13 = vector.load %arg5[%c0_12, %c0_13] : memref<1x128xf32, #tpu.memory_space<vmem>>, vector<1x128xf32>
      %14 = vector.broadcast %13 : vector<1x128xf32> to vector<256x128xf32>
      %15 = arith.addf %12, %14 : vector<256x128xf32>
      %c0_14 = arith.constant 0 : index
      %c0_15 = arith.constant 0 : index
      %16 = vector.load %arg6[%c0_14, %c0_15] : memref<256x128xf32, #tpu.memory_space<vmem>>, vector<256x128xf32>
      tpu.vector_store %arg6[%c0_14, %c0_15], %15 {strides = array<i32>} : memref<256x128xf32, #tpu.memory_space<vmem>>, vector<256x128xf32>,
    } else {
    }
    return
  }
  func.func @transform_0(%arg0: i32, %arg1: i32, %arg2: i32) -> (i32, i32) {
    %c0_i32 = arith.constant 0 : i32
    return %arg0, %arg2 : i32, i32
  }
  func.func @transform_1(%arg0: i32, %arg1: i32, %arg2: i32) -> (i32, i32) {
    %c0_i32 = arith.constant 0 : i32
    return %arg2, %arg1 : i32, i32
  }
  func.func @transform_2(%arg0: i32, %arg1: i32, %arg2: i32) -> (i32, i32) {
    %c0_i32 = arith.constant 0 : i32
    %c0_i32_0 = arith.constant 0 : i32
    return %c0_i32, %arg1 : i32, i32
  }
  func.func @transform_3(%arg0: i32, %arg1: i32, %arg2: i32) -> (i32, i32) {
    %c0_i32 = arith.constant 0 : i32
    return %arg0, %arg1 : i32, i32
  }
}

module attributes {stable_mosaic.version = 11 : i64} {
  func.func @_linear_bias_kernel(%arg0: i32, %arg1: i32, %arg2: i32, %arg3: memref<256x128xf32, #tpu.memory_space<vmem>>, %arg4: memref<128x128xf32, #tpu.memory_space<vmem>>, %arg5: memref<1x128xf32, #tpu.memory_space<vmem>>, %arg6: memref<256x128xf32, #tpu.memory_space<vmem>>, %arg7: memref<256x128xf32, #tpu.memory_space<vmem>>) attributes {dimension_semantics = [#tpu.dimension_semantics<parallel>, #tpu.dimension_semantics<parallel>, #tpu.dimension_semantics<arbitrary>], iteration_bounds = array<i64: 1, 3, 1>, scalar_prefetch = 0 : i64, scratch_operands = 1 : i64, tpu.core_type = #tpu.core_type<tc>, window_params = [{transform_indices = @transform_0, window_bounds = array<i64: 256, 128>}, {transform_indices = @transform_1, window_bounds = array<i64: 128, 128>}, {transform_indices = @transform_2, window_bounds = array<i64: 1, 128>}, {transform_indices = @transform_3, window_bounds = array<i64: 256, 128>}]} {
    %c0_i32 = arith.constant 0 : i32
    %0 = arith.cmpi eq, %arg2, %c0_i32 : i32
    %1 = arith.extui %0 : i1 to i32
    %c0_i32_0 = arith.constant 0 : i32
    %2 = arith.cmpi ne, %1, %c0_i32_0 : i32
    scf.if %2 {
      %cst_10 = arith.constant 0.000000e+00 : f32
      %12 = vector.broadcast %cst_10 : f32 to vector<256x128xf32>
      %c0_11 = arith.constant 0 : index
      %c0_12 = arith.constant 0 : index
      %13 = vector.load %arg7[%c0_11, %c0_12] : memref<256x128xf32, #tpu.memory_space<vmem>>, vector<256x128xf32>
      tpu.vector_store %arg7[%c0_11, %c0_12], %12 {strides = array<i32>} : memref<256x128xf32, #tpu.memory_space<vmem>>, vector<256x128xf32>,
    } else {
    }
    %c0 = arith.constant 0 : index
    %c0_1 = arith.constant 0 : index
    %3 = vector.load %arg7[%c0, %c0_1] : memref<256x128xf32, #tpu.memory_space<vmem>>, vector<256x128xf32>
    %c0_2 = arith.constant 0 : index
    %c0_3 = arith.constant 0 : index
    %4 = vector.load %arg3[%c0_2, %c0_3] : memref<256x128xf32, #tpu.memory_space<vmem>>, vector<256x128xf32>
    %c0_4 = arith.constant 0 : index
    %c0_5 = arith.constant 0 : index
    %5 = vector.load %arg4[%c0_4, %c0_5] : memref<128x128xf32, #tpu.memory_space<vmem>>, vector<128x128xf32>
    %cst = arith.constant dense<0.000000e+00> : vector<256x128xf32>
    %6 = tpu.matmul %4, %5, %cst {dimension_numbers = #tpu.dot_dimension_numbers<[1], [0], [0], [1], [0, 0, 1, 1], [], []>} : vector<256x128xf32>, vector<128x128xf32>, vector<256x128xf32> -> vector<256x128xf32>
    %7 = arith.addf %3, %6 : vector<256x128xf32>
    %c0_6 = arith.constant 0 : index
    %c0_7 = arith.constant 0 : index
    %8 = vector.load %arg7[%c0_6, %c0_7] : memref<256x128xf32, #tpu.memory_space<vmem>>, vector<256x128xf32>
    tpu.vector_store %arg7[%c0_6, %c0_7], %7 {strides = array<i32>} : memref<256x128xf32, #tpu.memory_space<vmem>>, vector<256x128xf32>,
    %c0_i32_8 = arith.constant 0 : i32
    %9 = arith.cmpi eq, %arg2, %c0_i32_8 : i32
    %10 = arith.extui %9 : i1 to i32
    %c0_i32_9 = arith.constant 0 : i32
    %11 = arith.cmpi ne, %10, %c0_i32_9 : i32
    scf.if %11 {
      %c0_10 = arith.constant 0 : index
      %c0_11 = arith.constant 0 : index
      %12 = vector.load %arg7[%c0_10, %c0_11] : memref<256x128xf32, #tpu.memory_space<vmem>>, vector<256x128xf32>
      %c0_12 = arith.constant 0 : index
      %c0_13 = arith.constant 0 : index
      %13 = vector.load %arg5[%c0_12, %c0_13] : memref<1x128xf32, #tpu.memory_space<vmem>>, vector<1x128xf32>
      %14 = vector.broadcast %13 : vector<1x128xf32> to vector<256x128xf32>
      %15 = arith.addf %12, %14 : vector<256x128xf32>
      %c0_14 = arith.constant 0 : index
      %c0_15 = arith.constant 0 : index
      %16 = vector.load %arg6[%c0_14, %c0_15] : memref<256x128xf32, #tpu.memory_space<vmem>>, vector<256x128xf32>
      tpu.vector_store %arg6[%c0_14, %c0_15], %15 {strides = array<i32>} : memref<256x128xf32, #tpu.memory_space<vmem>>, vector<256x128xf32>,
    } else {
    }
    return
  }
  func.func @transform_0(%arg0: i32, %arg1: i32, %arg2: i32) -> (i32, i32) {
    %c0_i32 = arith.constant 0 : i32
    return %arg0, %arg2 : i32, i32
  }
  func.func @transform_1(%arg0: i32, %arg1: i32, %arg2: i32) -> (i32, i32) {
    %c0_i32 = arith.constant 0 : i32
    return %arg2, %arg1 : i32, i32
  }
  func.func @transform_2(%arg0: i32, %arg1: i32, %arg2: i32) -> (i32, i32) {
    %c0_i32 = arith.constant 0 : i32
    %c0_i32_0 = arith.constant 0 : i32
    return %c0_i32, %arg1 : i32, i32
  }
  func.func @transform_3(%arg0: i32, %arg1: i32, %arg2: i32) -> (i32, i32) {
    %c0_i32 = arith.constant 0 : i32
    return %arg0, %arg1 : i32, i32
  }
}

module attributes {stable_mosaic.version = 11 : i64} {
  func.func @_flash_attn_kernel(%arg0: i32, %arg1: i32, %arg2: i32, %arg3: memref<1x128x128xf32, #tpu.memory_space<vmem>>, %arg4: memref<1x128x128xf32, #tpu.memory_space<vmem>>, %arg5: memref<1x128x128xf32, #tpu.memory_space<vmem>>, %arg6: memref<1x128x128xf32, #tpu.memory_space<vmem>>, %arg7: memref<4x128x1xf32, #tpu.memory_space<vmem>>, %arg8: memref<4x128x1xf32, #tpu.memory_space<vmem>>, %arg9: memref<4x128x32xf32, #tpu.memory_space<vmem>>) attributes {dimension_semantics = [#tpu.dimension_semantics<parallel>, #tpu.dimension_semantics<parallel>, #tpu.dimension_semantics<arbitrary>], iteration_bounds = array<i64: 2, 1, 1>, scalar_prefetch = 0 : i64, scratch_operands = 3 : i64, tpu.core_type = #tpu.core_type<tc>, window_params = [{transform_indices = @transform_0, window_bounds = array<i64: 1, 128, 128>}, {transform_indices = @transform_1, window_bounds = array<i64: 1, 128, 128>}, {transform_indices = @transform_2, window_bounds = array<i64: 1, 128, 128>}, {transform_indices = @transform_3, window_bounds = array<i64: 1, 128, 128>}]} {
    %c0_i32 = arith.constant 0 : i32
    %0 = arith.cmpi eq, %arg2, %c0_i32 : i32
    %1 = arith.extui %0 : i1 to i32
    %c0_i32_0 = arith.constant 0 : i32
    %2 = arith.cmpi ne, %1, %c0_i32_0 : i32
    scf.if %2 {
      %cst_123 = arith.constant 0xFF800000 : f32
      %166 = vector.broadcast %cst_123 : f32 to vector<4x128x1xf32>
      %c0_124 = arith.constant 0 : index
      %c0_125 = arith.constant 0 : index
      %c0_126 = arith.constant 0 : index
      %167 = vector.load %arg7[%c0_124, %c0_125, %c0_126] : memref<4x128x1xf32, #tpu.memory_space<vmem>>, vector<4x128x1xf32>
      tpu.vector_store %arg7[%c0_124, %c0_125, %c0_126], %166 {strides = array<i32>} : memref<4x128x1xf32, #tpu.memory_space<vmem>>, vector<4x128x1xf32>,
      %cst_127 = arith.constant 0.000000e+00 : f32
      %168 = vector.broadcast %cst_127 : f32 to vector<4x128x1xf32>
      %c0_128 = arith.constant 0 : index
      %c0_129 = arith.constant 0 : index
      %c0_130 = arith.constant 0 : index
      %169 = vector.load %arg8[%c0_128, %c0_129, %c0_130] : memref<4x128x1xf32, #tpu.memory_space<vmem>>, vector<4x128x1xf32>
      tpu.vector_store %arg8[%c0_128, %c0_129, %c0_130], %168 {strides = array<i32>} : memref<4x128x1xf32, #tpu.memory_space<vmem>>, vector<4x128x1xf32>,
      %cst_131 = arith.constant 0.000000e+00 : f32
      %170 = vector.broadcast %cst_131 : f32 to vector<4x128x32xf32>
      %c0_132 = arith.constant 0 : index
      %c0_133 = arith.constant 0 : index
      %c0_134 = arith.constant 0 : index
      %171 = vector.load %arg9[%c0_132, %c0_133, %c0_134] : memref<4x128x32xf32, #tpu.memory_space<vmem>>, vector<4x128x32xf32>
      tpu.vector_store %arg9[%c0_132, %c0_133, %c0_134], %170 {strides = array<i32>} : memref<4x128x32xf32, #tpu.memory_space<vmem>>, vector<4x128x32xf32>,
    } else {
    }
    %c0 = arith.constant 0 : index
    %c0_1 = arith.constant 0 : index
    %c0_2 = arith.constant 0 : index
    %3 = vector.load %arg3[%c0, %c0_1, %c0_2] : memref<1x128x128xf32, #tpu.memory_space<vmem>>, vector<1x128x32xf32>
    %4 = vector.shape_cast %3 : vector<1x128x32xf32> to vector<128x32xf32>
    %cst = arith.constant 0.176776692 : f32
    %5 = vector.broadcast %cst : f32 to vector<128x32xf32>
    %6 = arith.mulf %4, %5 : vector<128x32xf32>
    %c0_3 = arith.constant 0 : index
    %c0_4 = arith.constant 0 : index
    %c0_5 = arith.constant 0 : index
    %7 = vector.load %arg4[%c0_3, %c0_4, %c0_5] : memref<1x128x128xf32, #tpu.memory_space<vmem>>, vector<1x128x32xf32>
    %8 = vector.shape_cast %7 : vector<1x128x32xf32> to vector<128x32xf32>
    %c0_6 = arith.constant 0 : index
    %c0_7 = arith.constant 0 : index
    %c0_8 = arith.constant 0 : index
    %9 = vector.load %arg5[%c0_6, %c0_7, %c0_8] : memref<1x128x128xf32, #tpu.memory_space<vmem>>, vector<1x128x32xf32>
    %10 = vector.shape_cast %9 : vector<1x128x32xf32> to vector<128x32xf32>
    %cst_9 = arith.constant dense<0.000000e+00> : vector<128x128xf32>
    %11 = tpu.matmul %6, %8, %cst_9 {dimension_numbers = #tpu.dot_dimension_numbers<[1], [1], [0], [0], [0, 0, 1, 0], [], []>} : vector<128x32xf32>, vector<128x32xf32>, vector<128x128xf32> -> vector<128x128xf32>
    %c0_10 = arith.constant 0 : index
    %c0_11 = arith.constant 0 : index
    %c0_12 = arith.constant 0 : index
    %12 = vector.load %arg7[%c0_10, %c0_11, %c0_12] : memref<4x128x1xf32, #tpu.memory_space<vmem>>, vector<1x128x1xf32>
    %13 = vector.shape_cast %12 : vector<1x128x1xf32> to vector<128x1xf32>
    %cst_13 = arith.constant dense<0xFF800000> : vector<128xf32>
    %14 = vector.multi_reduction <maximumf>, %11, %cst_13 [1] : vector<128x128xf32> to vector<128xf32>
    %15 = vector.shape_cast %14 : vector<128xf32> to vector<128x1xf32>
    %16 = arith.maximumf %13, %15 : vector<128x1xf32>
    %17 = arith.subf %13, %16 : vector<128x1xf32>
    %18 = math.exp %17 : vector<128x1xf32>
    %19 = vector.broadcast %16 : vector<128x1xf32> to vector<128x128xf32>
    %20 = arith.subf %11, %19 : vector<128x128xf32>
    %21 = math.exp %20 : vector<128x128xf32>
    %c0_14 = arith.constant 0 : index
    %c0_15 = arith.constant 0 : index
    %c0_16 = arith.constant 0 : index
    %22 = vector.load %arg8[%c0_14, %c0_15, %c0_16] : memref<4x128x1xf32, #tpu.memory_space<vmem>>, vector<1x128x1xf32>
    %23 = vector.shape_cast %22 : vector<1x128x1xf32> to vector<128x1xf32>
    %24 = arith.mulf %18, %23 : vector<128x1xf32>
    %cst_17 = arith.constant dense<0.000000e+00> : vector<128xf32>
    %25 = vector.multi_reduction <add>, %21, %cst_17 [1] : vector<128x128xf32> to vector<128xf32>
    %26 = vector.shape_cast %25 : vector<128xf32> to vector<128x1xf32>
    %27 = arith.addf %24, %26 : vector<128x1xf32>
    %c0_18 = arith.constant 0 : index
    %c0_19 = arith.constant 0 : index
    %c0_20 = arith.constant 0 : index
    %28 = vector.load %arg8[%c0_18, %c0_19, %c0_20] : memref<4x128x1xf32, #tpu.memory_space<vmem>>, vector<1x128x1xf32>
    %29 = vector.shape_cast %28 : vector<1x128x1xf32> to vector<128x1xf32>
    %30 = vector.shape_cast %27 : vector<128x1xf32> to vector<1x128x1xf32>
    tpu.vector_store %arg8[%c0_18, %c0_19, %c0_20], %30 {strides = array<i32>} : memref<4x128x1xf32, #tpu.memory_space<vmem>>, vector<1x128x1xf32>,
    %c0_21 = arith.constant 0 : index
    %c0_22 = arith.constant 0 : index
    %c0_23 = arith.constant 0 : index
    %31 = vector.load %arg9[%c0_21, %c0_22, %c0_23] : memref<4x128x32xf32, #tpu.memory_space<vmem>>, vector<1x128x32xf32>
    %32 = vector.shape_cast %31 : vector<1x128x32xf32> to vector<128x32xf32>
    %33 = vector.broadcast %18 : vector<128x1xf32> to vector<128x32xf32>
    %34 = arith.mulf %33, %32 : vector<128x32xf32>
    %cst_24 = arith.constant dense<0.000000e+00> : vector<128x32xf32>
    %35 = tpu.matmul %21, %10, %cst_24 {dimension_numbers = #tpu.dot_dimension_numbers<[1], [0], [0], [1], [0, 0, 1, 1], [], []>} : vector<128x128xf32>, vector<128x32xf32>, vector<128x32xf32> -> vector<128x32xf32>
    %36 = arith.addf %34, %35 : vector<128x32xf32>
    %c0_25 = arith.constant 0 : index
    %c0_26 = arith.constant 0 : index
    %c0_27 = arith.constant 0 : index
    %37 = vector.load %arg9[%c0_25, %c0_26, %c0_27] : memref<4x128x32xf32, #tpu.memory_space<vmem>>, vector<1x128x32xf32>
    %38 = vector.shape_cast %37 : vector<1x128x32xf32> to vector<128x32xf32>
    %39 = vector.shape_cast %36 : vector<128x32xf32> to vector<1x128x32xf32>
    tpu.vector_store %arg9[%c0_25, %c0_26, %c0_27], %39 {strides = array<i32>} : memref<4x128x32xf32, #tpu.memory_space<vmem>>, vector<1x128x32xf32>,
    %c0_28 = arith.constant 0 : index
    %c0_29 = arith.constant 0 : index
    %c0_30 = arith.constant 0 : index
    %40 = vector.load %arg7[%c0_28, %c0_29, %c0_30] : memref<4x128x1xf32, #tpu.memory_space<vmem>>, vector<1x128x1xf32>
    %41 = vector.shape_cast %40 : vector<1x128x1xf32> to vector<128x1xf32>
    %42 = vector.shape_cast %16 : vector<128x1xf32> to vector<1x128x1xf32>
    tpu.vector_store %arg7[%c0_28, %c0_29, %c0_30], %42 {strides = array<i32>} : memref<4x128x1xf32, #tpu.memory_space<vmem>>, vector<1x128x1xf32>,
    %c0_31 = arith.constant 0 : index
    %c0_32 = arith.constant 0 : index
    %c32 = arith.constant 32 : index
    %43 = vector.load %arg3[%c0_31, %c0_32, %c32] : memref<1x128x128xf32, #tpu.memory_space<vmem>>, vector<1x128x32xf32>
    %44 = vector.shape_cast %43 : vector<1x128x32xf32> to vector<128x32xf32>
    %cst_33 = arith.constant 0.176776692 : f32
    %45 = vector.broadcast %cst_33 : f32 to vector<128x32xf32>
    %46 = arith.mulf %44, %45 : vector<128x32xf32>
    %c0_34 = arith.constant 0 : index
    %c0_35 = arith.constant 0 : index
    %c32_36 = arith.constant 32 : index
    %47 = vector.load %arg4[%c0_34, %c0_35, %c32_36] : memref<1x128x128xf32, #tpu.memory_space<vmem>>, vector<1x128x32xf32>
    %48 = vector.shape_cast %47 : vector<1x128x32xf32> to vector<128x32xf32>
    %c0_37 = arith.constant 0 : index
    %c0_38 = arith.constant 0 : index
    %c32_39 = arith.constant 32 : index
    %49 = vector.load %arg5[%c0_37, %c0_38, %c32_39] : memref<1x128x128xf32, #tpu.memory_space<vmem>>, vector<1x128x32xf32>
    %50 = vector.shape_cast %49 : vector<1x128x32xf32> to vector<128x32xf32>
    %cst_40 = arith.constant dense<0.000000e+00> : vector<128x128xf32>
    %51 = tpu.matmul %46, %48, %cst_40 {dimension_numbers = #tpu.dot_dimension_numbers<[1], [1], [0], [0], [0, 0, 1, 0], [], []>} : vector<128x32xf32>, vector<128x32xf32>, vector<128x128xf32> -> vector<128x128xf32>
    %c1 = arith.constant 1 : index
    %c0_41 = arith.constant 0 : index
    %c0_42 = arith.constant 0 : index
    %52 = vector.load %arg7[%c1, %c0_41, %c0_42] : memref<4x128x1xf32, #tpu.memory_space<vmem>>, vector<1x128x1xf32>
    %53 = vector.shape_cast %52 : vector<1x128x1xf32> to vector<128x1xf32>
    %cst_43 = arith.constant dense<0xFF800000> : vector<128xf32>
    %54 = vector.multi_reduction <maximumf>, %51, %cst_43 [1] : vector<128x128xf32> to vector<128xf32>
    %55 = vector.shape_cast %54 : vector<128xf32> to vector<128x1xf32>
    %56 = arith.maximumf %53, %55 : vector<128x1xf32>
    %57 = arith.subf %53, %56 : vector<128x1xf32>
    %58 = math.exp %57 : vector<128x1xf32>
    %59 = vector.broadcast %56 : vector<128x1xf32> to vector<128x128xf32>
    %60 = arith.subf %51, %59 : vector<128x128xf32>
    %61 = math.exp %60 : vector<128x128xf32>
    %c1_44 = arith.constant 1 : index
    %c0_45 = arith.constant 0 : index
    %c0_46 = arith.constant 0 : index
    %62 = vector.load %arg8[%c1_44, %c0_45, %c0_46] : memref<4x128x1xf32, #tpu.memory_space<vmem>>, vector<1x128x1xf32>
    %63 = vector.shape_cast %62 : vector<1x128x1xf32> to vector<128x1xf32>
    %64 = arith.mulf %58, %63 : vector<128x1xf32>
    %cst_47 = arith.constant dense<0.000000e+00> : vector<128xf32>
    %65 = vector.multi_reduction <add>, %61, %cst_47 [1] : vector<128x128xf32> to vector<128xf32>
    %66 = vector.shape_cast %65 : vector<128xf32> to vector<128x1xf32>
    %67 = arith.addf %64, %66 : vector<128x1xf32>
    %c1_48 = arith.constant 1 : index
    %c0_49 = arith.constant 0 : index
    %c0_50 = arith.constant 0 : index
    %68 = vector.load %arg8[%c1_48, %c0_49, %c0_50] : memref<4x128x1xf32, #tpu.memory_space<vmem>>, vector<1x128x1xf32>
    %69 = vector.shape_cast %68 : vector<1x128x1xf32> to vector<128x1xf32>
    %70 = vector.shape_cast %67 : vector<128x1xf32> to vector<1x128x1xf32>
    tpu.vector_store %arg8[%c1_48, %c0_49, %c0_50], %70 {strides = array<i32>} : memref<4x128x1xf32, #tpu.memory_space<vmem>>, vector<1x128x1xf32>,
    %c1_51 = arith.constant 1 : index
    %c0_52 = arith.constant 0 : index
    %c0_53 = arith.constant 0 : index
    %71 = vector.load %arg9[%c1_51, %c0_52, %c0_53] : memref<4x128x32xf32, #tpu.memory_space<vmem>>, vector<1x128x32xf32>
    %72 = vector.shape_cast %71 : vector<1x128x32xf32> to vector<128x32xf32>
    %73 = vector.broadcast %58 : vector<128x1xf32> to vector<128x32xf32>
    %74 = arith.mulf %73, %72 : vector<128x32xf32>
    %cst_54 = arith.constant dense<0.000000e+00> : vector<128x32xf32>
    %75 = tpu.matmul %61, %50, %cst_54 {dimension_numbers = #tpu.dot_dimension_numbers<[1], [0], [0], [1], [0, 0, 1, 1], [], []>} : vector<128x128xf32>, vector<128x32xf32>, vector<128x32xf32> -> vector<128x32xf32>
    %76 = arith.addf %74, %75 : vector<128x32xf32>
    %c1_55 = arith.constant 1 : index
    %c0_56 = arith.constant 0 : index
    %c0_57 = arith.constant 0 : index
    %77 = vector.load %arg9[%c1_55, %c0_56, %c0_57] : memref<4x128x32xf32, #tpu.memory_space<vmem>>, vector<1x128x32xf32>
    %78 = vector.shape_cast %77 : vector<1x128x32xf32> to vector<128x32xf32>
    %79 = vector.shape_cast %76 : vector<128x32xf32> to vector<1x128x32xf32>
    tpu.vector_store %arg9[%c1_55, %c0_56, %c0_57], %79 {strides = array<i32>} : memref<4x128x32xf32, #tpu.memory_space<vmem>>, vector<1x128x32xf32>,
    %c1_58 = arith.constant 1 : index
    %c0_59 = arith.constant 0 : index
    %c0_60 = arith.constant 0 : index
    %80 = vector.load %arg7[%c1_58, %c0_59, %c0_60] : memref<4x128x1xf32, #tpu.memory_space<vmem>>, vector<1x128x1xf32>
    %81 = vector.shape_cast %80 : vector<1x128x1xf32> to vector<128x1xf32>
    %82 = vector.shape_cast %56 : vector<128x1xf32> to vector<1x128x1xf32>
    tpu.vector_store %arg7[%c1_58, %c0_59, %c0_60], %82 {strides = array<i32>} : memref<4x128x1xf32, #tpu.memory_space<vmem>>, vector<1x128x1xf32>,
    %c0_61 = arith.constant 0 : index
    %c0_62 = arith.constant 0 : index
    %c64 = arith.constant 64 : index
    %83 = vector.load %arg3[%c0_61, %c0_62, %c64] : memref<1x128x128xf32, #tpu.memory_space<vmem>>, vector<1x128x32xf32>
    %84 = vector.shape_cast %83 : vector<1x128x32xf32> to vector<128x32xf32>
    %cst_63 = arith.constant 0.176776692 : f32
    %85 = vector.broadcast %cst_63 : f32 to vector<128x32xf32>
    %86 = arith.mulf %84, %85 : vector<128x32xf32>
    %c0_64 = arith.constant 0 : index
    %c0_65 = arith.constant 0 : index
    %c64_66 = arith.constant 64 : index
    %87 = vector.load %arg4[%c0_64, %c0_65, %c64_66] : memref<1x128x128xf32, #tpu.memory_space<vmem>>, vector<1x128x32xf32>
    %88 = vector.shape_cast %87 : vector<1x128x32xf32> to vector<128x32xf32>
    %c0_67 = arith.constant 0 : index
    %c0_68 = arith.constant 0 : index
    %c64_69 = arith.constant 64 : index
    %89 = vector.load %arg5[%c0_67, %c0_68, %c64_69] : memref<1x128x128xf32, #tpu.memory_space<vmem>>, vector<1x128x32xf32>
    %90 = vector.shape_cast %89 : vector<1x128x32xf32> to vector<128x32xf32>
    %cst_70 = arith.constant dense<0.000000e+00> : vector<128x128xf32>
    %91 = tpu.matmul %86, %88, %cst_70 {dimension_numbers = #tpu.dot_dimension_numbers<[1], [1], [0], [0], [0, 0, 1, 0], [], []>} : vector<128x32xf32>, vector<128x32xf32>, vector<128x128xf32> -> vector<128x128xf32>
    %c2 = arith.constant 2 : index
    %c0_71 = arith.constant 0 : index
    %c0_72 = arith.constant 0 : index
    %92 = vector.load %arg7[%c2, %c0_71, %c0_72] : memref<4x128x1xf32, #tpu.memory_space<vmem>>, vector<1x128x1xf32>
    %93 = vector.shape_cast %92 : vector<1x128x1xf32> to vector<128x1xf32>
    %cst_73 = arith.constant dense<0xFF800000> : vector<128xf32>
    %94 = vector.multi_reduction <maximumf>, %91, %cst_73 [1] : vector<128x128xf32> to vector<128xf32>
    %95 = vector.shape_cast %94 : vector<128xf32> to vector<128x1xf32>
    %96 = arith.maximumf %93, %95 : vector<128x1xf32>
    %97 = arith.subf %93, %96 : vector<128x1xf32>
    %98 = math.exp %97 : vector<128x1xf32>
    %99 = vector.broadcast %96 : vector<128x1xf32> to vector<128x128xf32>
    %100 = arith.subf %91, %99 : vector<128x128xf32>
    %101 = math.exp %100 : vector<128x128xf32>
    %c2_74 = arith.constant 2 : index
    %c0_75 = arith.constant 0 : index
    %c0_76 = arith.constant 0 : index
    %102 = vector.load %arg8[%c2_74, %c0_75, %c0_76] : memref<4x128x1xf32, #tpu.memory_space<vmem>>, vector<1x128x1xf32>
    %103 = vector.shape_cast %102 : vector<1x128x1xf32> to vector<128x1xf32>
    %104 = arith.mulf %98, %103 : vector<128x1xf32>
    %cst_77 = arith.constant dense<0.000000e+00> : vector<128xf32>
    %105 = vector.multi_reduction <add>, %101, %cst_77 [1] : vector<128x128xf32> to vector<128xf32>
    %106 = vector.shape_cast %105 : vector<128xf32> to vector<128x1xf32>
    %107 = arith.addf %104, %106 : vector<128x1xf32>
    %c2_78 = arith.constant 2 : index
    %c0_79 = arith.constant 0 : index
    %c0_80 = arith.constant 0 : index
    %108 = vector.load %arg8[%c2_78, %c0_79, %c0_80] : memref<4x128x1xf32, #tpu.memory_space<vmem>>, vector<1x128x1xf32>
    %109 = vector.shape_cast %108 : vector<1x128x1xf32> to vector<128x1xf32>
    %110 = vector.shape_cast %107 : vector<128x1xf32> to vector<1x128x1xf32>
    tpu.vector_store %arg8[%c2_78, %c0_79, %c0_80], %110 {strides = array<i32>} : memref<4x128x1xf32, #tpu.memory_space<vmem>>, vector<1x128x1xf32>,
    %c2_81 = arith.constant 2 : index
    %c0_82 = arith.constant 0 : index
    %c0_83 = arith.constant 0 : index
    %111 = vector.load %arg9[%c2_81, %c0_82, %c0_83] : memref<4x128x32xf32, #tpu.memory_space<vmem>>, vector<1x128x32xf32>
    %112 = vector.shape_cast %111 : vector<1x128x32xf32> to vector<128x32xf32>
    %113 = vector.broadcast %98 : vector<128x1xf32> to vector<128x32xf32>
    %114 = arith.mulf %113, %112 : vector<128x32xf32>
    %cst_84 = arith.constant dense<0.000000e+00> : vector<128x32xf32>
    %115 = tpu.matmul %101, %90, %cst_84 {dimension_numbers = #tpu.dot_dimension_numbers<[1], [0], [0], [1], [0, 0, 1, 1], [], []>} : vector<128x128xf32>, vector<128x32xf32>, vector<128x32xf32> -> vector<128x32xf32>
    %116 = arith.addf %114, %115 : vector<128x32xf32>
    %c2_85 = arith.constant 2 : index
    %c0_86 = arith.constant 0 : index
    %c0_87 = arith.constant 0 : index
    %117 = vector.load %arg9[%c2_85, %c0_86, %c0_87] : memref<4x128x32xf32, #tpu.memory_space<vmem>>, vector<1x128x32xf32>
    %118 = vector.shape_cast %117 : vector<1x128x32xf32> to vector<128x32xf32>
    %119 = vector.shape_cast %116 : vector<128x32xf32> to vector<1x128x32xf32>
    tpu.vector_store %arg9[%c2_85, %c0_86, %c0_87], %119 {strides = array<i32>} : memref<4x128x32xf32, #tpu.memory_space<vmem>>, vector<1x128x32xf32>,
    %c2_88 = arith.constant 2 : index
    %c0_89 = arith.constant 0 : index
    %c0_90 = arith.constant 0 : index
    %120 = vector.load %arg7[%c2_88, %c0_89, %c0_90] : memref<4x128x1xf32, #tpu.memory_space<vmem>>, vector<1x128x1xf32>
    %121 = vector.shape_cast %120 : vector<1x128x1xf32> to vector<128x1xf32>
    %122 = vector.shape_cast %96 : vector<128x1xf32> to vector<1x128x1xf32>
    tpu.vector_store %arg7[%c2_88, %c0_89, %c0_90], %122 {strides = array<i32>} : memref<4x128x1xf32, #tpu.memory_space<vmem>>, vector<1x128x1xf32>,
    %c0_91 = arith.constant 0 : index
    %c0_92 = arith.constant 0 : index
    %c96 = arith.constant 96 : index
    %123 = vector.load %arg3[%c0_91, %c0_92, %c96] : memref<1x128x128xf32, #tpu.memory_space<vmem>>, vector<1x128x32xf32>
    %124 = vector.shape_cast %123 : vector<1x128x32xf32> to vector<128x32xf32>
    %cst_93 = arith.constant 0.176776692 : f32
    %125 = vector.broadcast %cst_93 : f32 to vector<128x32xf32>
    %126 = arith.mulf %124, %125 : vector<128x32xf32>
    %c0_94 = arith.constant 0 : index
    %c0_95 = arith.constant 0 : index
    %c96_96 = arith.constant 96 : index
    %127 = vector.load %arg4[%c0_94, %c0_95, %c96_96] : memref<1x128x128xf32, #tpu.memory_space<vmem>>, vector<1x128x32xf32>
    %128 = vector.shape_cast %127 : vector<1x128x32xf32> to vector<128x32xf32>
    %c0_97 = arith.constant 0 : index
    %c0_98 = arith.constant 0 : index
    %c96_99 = arith.constant 96 : index
    %129 = vector.load %arg5[%c0_97, %c0_98, %c96_99] : memref<1x128x128xf32, #tpu.memory_space<vmem>>, vector<1x128x32xf32>
    %130 = vector.shape_cast %129 : vector<1x128x32xf32> to vector<128x32xf32>
    %cst_100 = arith.constant dense<0.000000e+00> : vector<128x128xf32>
    %131 = tpu.matmul %126, %128, %cst_100 {dimension_numbers = #tpu.dot_dimension_numbers<[1], [1], [0], [0], [0, 0, 1, 0], [], []>} : vector<128x32xf32>, vector<128x32xf32>, vector<128x128xf32> -> vector<128x128xf32>
    %c3 = arith.constant 3 : index
    %c0_101 = arith.constant 0 : index
    %c0_102 = arith.constant 0 : index
    %132 = vector.load %arg7[%c3, %c0_101, %c0_102] : memref<4x128x1xf32, #tpu.memory_space<vmem>>, vector<1x128x1xf32>
    %133 = vector.shape_cast %132 : vector<1x128x1xf32> to vector<128x1xf32>
    %cst_103 = arith.constant dense<0xFF800000> : vector<128xf32>
    %134 = vector.multi_reduction <maximumf>, %131, %cst_103 [1] : vector<128x128xf32> to vector<128xf32>
    %135 = vector.shape_cast %134 : vector<128xf32> to vector<128x1xf32>
    %136 = arith.maximumf %133, %135 : vector<128x1xf32>
    %137 = arith.subf %133, %136 : vector<128x1xf32>
    %138 = math.exp %137 : vector<128x1xf32>
    %139 = vector.broadcast %136 : vector<128x1xf32> to vector<128x128xf32>
    %140 = arith.subf %131, %139 : vector<128x128xf32>
    %141 = math.exp %140 : vector<128x128xf32>
    %c3_104 = arith.constant 3 : index
    %c0_105 = arith.constant 0 : index
    %c0_106 = arith.constant 0 : index
    %142 = vector.load %arg8[%c3_104, %c0_105, %c0_106] : memref<4x128x1xf32, #tpu.memory_space<vmem>>, vector<1x128x1xf32>
    %143 = vector.shape_cast %142 : vector<1x128x1xf32> to vector<128x1xf32>
    %144 = arith.mulf %138, %143 : vector<128x1xf32>
    %cst_107 = arith.constant dense<0.000000e+00> : vector<128xf32>
    %145 = vector.multi_reduction <add>, %141, %cst_107 [1] : vector<128x128xf32> to vector<128xf32>
    %146 = vector.shape_cast %145 : vector<128xf32> to vector<128x1xf32>
    %147 = arith.addf %144, %146 : vector<128x1xf32>
    %c3_108 = arith.constant 3 : index
    %c0_109 = arith.constant 0 : index
    %c0_110 = arith.constant 0 : index
    %148 = vector.load %arg8[%c3_108, %c0_109, %c0_110] : memref<4x128x1xf32, #tpu.memory_space<vmem>>, vector<1x128x1xf32>
    %149 = vector.shape_cast %148 : vector<1x128x1xf32> to vector<128x1xf32>
    %150 = vector.shape_cast %147 : vector<128x1xf32> to vector<1x128x1xf32>
    tpu.vector_store %arg8[%c3_108, %c0_109, %c0_110], %150 {strides = array<i32>} : memref<4x128x1xf32, #tpu.memory_space<vmem>>, vector<1x128x1xf32>,
    %c3_111 = arith.constant 3 : index
    %c0_112 = arith.constant 0 : index
    %c0_113 = arith.constant 0 : index
    %151 = vector.load %arg9[%c3_111, %c0_112, %c0_113] : memref<4x128x32xf32, #tpu.memory_space<vmem>>, vector<1x128x32xf32>
    %152 = vector.shape_cast %151 : vector<1x128x32xf32> to vector<128x32xf32>
    %153 = vector.broadcast %138 : vector<128x1xf32> to vector<128x32xf32>
    %154 = arith.mulf %153, %152 : vector<128x32xf32>
    %cst_114 = arith.constant dense<0.000000e+00> : vector<128x32xf32>
    %155 = tpu.matmul %141, %130, %cst_114 {dimension_numbers = #tpu.dot_dimension_numbers<[1], [0], [0], [1], [0, 0, 1, 1], [], []>} : vector<128x128xf32>, vector<128x32xf32>, vector<128x32xf32> -> vector<128x32xf32>
    %156 = arith.addf %154, %155 : vector<128x32xf32>
    %c3_115 = arith.constant 3 : index
    %c0_116 = arith.constant 0 : index
    %c0_117 = arith.constant 0 : index
    %157 = vector.load %arg9[%c3_115, %c0_116, %c0_117] : memref<4x128x32xf32, #tpu.memory_space<vmem>>, vector<1x128x32xf32>
    %158 = vector.shape_cast %157 : vector<1x128x32xf32> to vector<128x32xf32>
    %159 = vector.shape_cast %156 : vector<128x32xf32> to vector<1x128x32xf32>
    tpu.vector_store %arg9[%c3_115, %c0_116, %c0_117], %159 {strides = array<i32>} : memref<4x128x32xf32, #tpu.memory_space<vmem>>, vector<1x128x32xf32>,
    %c3_118 = arith.constant 3 : index
    %c0_119 = arith.constant 0 : index
    %c0_120 = arith.constant 0 : index
    %160 = vector.load %arg7[%c3_118, %c0_119, %c0_120] : memref<4x128x1xf32, #tpu.memory_space<vmem>>, vector<1x128x1xf32>
    %161 = vector.shape_cast %160 : vector<1x128x1xf32> to vector<128x1xf32>
    %162 = vector.shape_cast %136 : vector<128x1xf32> to vector<1x128x1xf32>
    tpu.vector_store %arg7[%c3_118, %c0_119, %c0_120], %162 {strides = array<i32>} : memref<4x128x1xf32, #tpu.memory_space<vmem>>, vector<1x128x1xf32>,
    %c0_i32_121 = arith.constant 0 : i32
    %163 = arith.cmpi eq, %arg2, %c0_i32_121 : i32
    %164 = arith.extui %163 : i1 to i32
    %c0_i32_122 = arith.constant 0 : i32
    %165 = arith.cmpi ne, %164, %c0_i32_122 : i32
    scf.if %165 {
      %c0_123 = arith.constant 0 : index
      %c0_124 = arith.constant 0 : index
      %c0_125 = arith.constant 0 : index
      %166 = vector.load %arg8[%c0_123, %c0_124, %c0_125] : memref<4x128x1xf32, #tpu.memory_space<vmem>>, vector<1x128x1xf32>
      %167 = vector.shape_cast %166 : vector<1x128x1xf32> to vector<128x1xf32>
      %168 = tpu.reciprocal %167 {approx = true} : vector<128x1xf32> -> vector<128x1xf32>
      %c0_126 = arith.constant 0 : index
      %c0_127 = arith.constant 0 : index
      %c0_128 = arith.constant 0 : index
      %169 = vector.load %arg9[%c0_126, %c0_127, %c0_128] : memref<4x128x32xf32, #tpu.memory_space<vmem>>, vector<1x128x32xf32>
      %170 = vector.shape_cast %169 : vector<1x128x32xf32> to vector<128x32xf32>
      %171 = vector.broadcast %168 : vector<128x1xf32> to vector<128x32xf32>
      %172 = arith.mulf %170, %171 : vector<128x32xf32>
      %c0_129 = arith.constant 0 : index
      %c0_130 = arith.constant 0 : index
      %c0_131 = arith.constant 0 : index
      %173 = vector.load %arg6[%c0_129, %c0_130, %c0_131] : memref<1x128x128xf32, #tpu.memory_space<vmem>>, vector<1x128x32xf32>
      %174 = vector.shape_cast %173 : vector<1x128x32xf32> to vector<128x32xf32>
      %175 = vector.shape_cast %172 : vector<128x32xf32> to vector<1x128x32xf32>
      tpu.vector_store %arg6[%c0_129, %c0_130, %c0_131], %175 {strides = array<i32>} : memref<1x128x128xf32, #tpu.memory_space<vmem>>, vector<1x128x32xf32>,
      %c1_132 = arith.constant 1 : index
      %c0_133 = arith.constant 0 : index
      %c0_134 = arith.constant 0 : index
      %176 = vector.load %arg8[%c1_132, %c0_133, %c0_134] : memref<4x128x1xf32, #tpu.memory_space<vmem>>, vector<1x128x1xf32>
      %177 = vector.shape_cast %176 : vector<1x128x1xf32> to vector<128x1xf32>
      %178 = tpu.reciprocal %177 {approx = true} : vector<128x1xf32> -> vector<128x1xf32>
      %c1_135 = arith.constant 1 : index
      %c0_136 = arith.constant 0 : index
      %c0_137 = arith.constant 0 : index
      %179 = vector.load %arg9[%c1_135, %c0_136, %c0_137] : memref<4x128x32xf32, #tpu.memory_space<vmem>>, vector<1x128x32xf32>
      %180 = vector.shape_cast %179 : vector<1x128x32xf32> to vector<128x32xf32>
      %181 = vector.broadcast %178 : vector<128x1xf32> to vector<128x32xf32>
      %182 = arith.mulf %180, %181 : vector<128x32xf32>
      %c0_138 = arith.constant 0 : index
      %c0_139 = arith.constant 0 : index
      %c32_140 = arith.constant 32 : index
      %183 = vector.load %arg6[%c0_138, %c0_139, %c32_140] : memref<1x128x128xf32, #tpu.memory_space<vmem>>, vector<1x128x32xf32>
      %184 = vector.shape_cast %183 : vector<1x128x32xf32> to vector<128x32xf32>
      %185 = vector.shape_cast %182 : vector<128x32xf32> to vector<1x128x32xf32>
      tpu.vector_store %arg6[%c0_138, %c0_139, %c32_140], %185 {strides = array<i32>} : memref<1x128x128xf32, #tpu.memory_space<vmem>>, vector<1x128x32xf32>,
      %c2_141 = arith.constant 2 : index
      %c0_142 = arith.constant 0 : index
      %c0_143 = arith.constant 0 : index
      %186 = vector.load %arg8[%c2_141, %c0_142, %c0_143] : memref<4x128x1xf32, #tpu.memory_space<vmem>>, vector<1x128x1xf32>
      %187 = vector.shape_cast %186 : vector<1x128x1xf32> to vector<128x1xf32>
      %188 = tpu.reciprocal %187 {approx = true} : vector<128x1xf32> -> vector<128x1xf32>
      %c2_144 = arith.constant 2 : index
      %c0_145 = arith.constant 0 : index
      %c0_146 = arith.constant 0 : index
      %189 = vector.load %arg9[%c2_144, %c0_145, %c0_146] : memref<4x128x32xf32, #tpu.memory_space<vmem>>, vector<1x128x32xf32>
      %190 = vector.shape_cast %189 : vector<1x128x32xf32> to vector<128x32xf32>
      %191 = vector.broadcast %188 : vector<128x1xf32> to vector<128x32xf32>
      %192 = arith.mulf %190, %191 : vector<128x32xf32>
      %c0_147 = arith.constant 0 : index
      %c0_148 = arith.constant 0 : index
      %c64_149 = arith.constant 64 : index
      %193 = vector.load %arg6[%c0_147, %c0_148, %c64_149] : memref<1x128x128xf32, #tpu.memory_space<vmem>>, vector<1x128x32xf32>
      %194 = vector.shape_cast %193 : vector<1x128x32xf32> to vector<128x32xf32>
      %195 = vector.shape_cast %192 : vector<128x32xf32> to vector<1x128x32xf32>
      tpu.vector_store %arg6[%c0_147, %c0_148, %c64_149], %195 {strides = array<i32>} : memref<1x128x128xf32, #tpu.memory_space<vmem>>, vector<1x128x32xf32>,
      %c3_150 = arith.constant 3 : index
      %c0_151 = arith.constant 0 : index
      %c0_152 = arith.constant 0 : index
      %196 = vector.load %arg8[%c3_150, %c0_151, %c0_152] : memref<4x128x1xf32, #tpu.memory_space<vmem>>, vector<1x128x1xf32>
      %197 = vector.shape_cast %196 : vector<1x128x1xf32> to vector<128x1xf32>
      %198 = tpu.reciprocal %197 {approx = true} : vector<128x1xf32> -> vector<128x1xf32>
      %c3_153 = arith.constant 3 : index
      %c0_154 = arith.constant 0 : index
      %c0_155 = arith.constant 0 : index
      %199 = vector.load %arg9[%c3_153, %c0_154, %c0_155] : memref<4x128x32xf32, #tpu.memory_space<vmem>>, vector<1x128x32xf32>
      %200 = vector.shape_cast %199 : vector<1x128x32xf32> to vector<128x32xf32>
      %201 = vector.broadcast %198 : vector<128x1xf32> to vector<128x32xf32>
      %202 = arith.mulf %200, %201 : vector<128x32xf32>
      %c0_156 = arith.constant 0 : index
      %c0_157 = arith.constant 0 : index
      %c96_158 = arith.constant 96 : index
      %203 = vector.load %arg6[%c0_156, %c0_157, %c96_158] : memref<1x128x128xf32, #tpu.memory_space<vmem>>, vector<1x128x32xf32>
      %204 = vector.shape_cast %203 : vector<1x128x32xf32> to vector<128x32xf32>
      %205 = vector.shape_cast %202 : vector<128x32xf32> to vector<1x128x32xf32>
      tpu.vector_store %arg6[%c0_156, %c0_157, %c96_158], %205 {strides = array<i32>} : memref<1x128x128xf32, #tpu.memory_space<vmem>>, vector<1x128x32xf32>,
    } else {
    }
    return
  }
  func.func @transform_0(%arg0: i32, %arg1: i32, %arg2: i32) -> (i32, i32, i32) {
    %c0_i32 = arith.constant 0 : i32
    %c0_i32_0 = arith.constant 0 : i32
    return %arg0, %arg1, %c0_i32 : i32, i32, i32
  }
  func.func @transform_1(%arg0: i32, %arg1: i32, %arg2: i32) -> (i32, i32, i32) {
    %c1_i32 = arith.constant 1 : i32
    %c0_i32 = arith.constant 0 : i32
    return %arg0, %arg2, %c1_i32 : i32, i32, i32
  }
  func.func @transform_2(%arg0: i32, %arg1: i32, %arg2: i32) -> (i32, i32, i32) {
    %c2_i32 = arith.constant 2 : i32
    %c0_i32 = arith.constant 0 : i32
    return %arg0, %arg2, %c2_i32 : i32, i32, i32
  }
  func.func @transform_3(%arg0: i32, %arg1: i32, %arg2: i32) -> (i32, i32, i32) {
    %c0_i32 = arith.constant 0 : i32
    %c0_i32_0 = arith.constant 0 : i32
    return %arg0, %arg1, %c0_i32 : i32, i32, i32
  }
}

</mosaic_0001>

<llo_original>
// kernel: attention_forward.5
$region0: #{attention_forward.5}
  #allocation0 [shape = 'u32[]', space=smem, size = 0x4, offset = 0x4, fixed_abs, tag = 'smem constant byte address 0x4 - core index']
  #allocation1 [shape = 'u32[144,128]{1,0:T(1,128)}', space=vmem, size = 0x12000, scoped, tag = 'internal scratch']
  #allocation2 [shape = 'f32[256,128]{1,0:T(8,128)}', space=vmem, size = 0x20000, scoped, tag = 'scratch operand']
  %s0 = inlined_call_operand.vmem [shape: f32[256,128], index: 0, kind: input, shape index: {}]
  %s1 = inlined_call_operand.vmem [shape: f32[128,128], index: 1, kind: input, shape index: {}]
  %s2 = inlined_call_operand.vmem [shape: f32[1,128], index: 2, kind: input, shape index: {}]
  %s3 = inlined_call_operand.hbm [shape: f32[256,128], index: 3, kind: output, shape index: {}]
  %s4 = sld [smem:[#allocation0]]
  $region30: #{attention_forward.5} parent=0
    _
  %s6 = ssub.s32 1, %s4
  %s7 = scalar_select 0, %s6, %s4
  $region1: #{attention_forward.5} parent=0
    #allocation3 [shape = 'u8[131072]{0}', space=vmem, size = 0x20000, scoped, tag = 'output window, operand 0, single buffered']
    #allocation4 [shape = 's32[1]{0}', space=sflag, size = 0x4, scoped, tag = 'scoped memory for attention_forward.5']
    %8 = vsyncpa [#allocation4], 0
    // Predicated region
    $region2: #{attention_forward.5} parent=1 // pred_check
      _
    $region3: #{attention_forward.5} parent=1 // pred_check_branch
      %10 = sbr.rel (0) target = $region5
    $region4: #{attention_forward.5} parent=1 // pred_region
      _
    $region5: #{attention_forward.5} parent=1 // pred_fallthru
      _
    // Predicated region
    $region6: #{attention_forward.5} parent=1 // pred_check
      _
    $region7: #{attention_forward.5} parent=1 // pred_check_branch
      %12 = sbr.rel (0) target = $region9
    $region8: #{attention_forward.5} parent=1 // pred_region
      _
    $region9: #{attention_forward.5} parent=1 // pred_fallthru
      _
    // Predicated region
    $region10: #{attention_forward.5} parent=1 // pred_check
      _
    $region11: #{attention_forward.5} parent=1 // pred_check_branch
      %14 = sbr.rel (0) target = $region13
    $region12: #{attention_forward.5} parent=1 // pred_region
      _
    $region13: #{attention_forward.5} parent=1 // pred_fallthru
      _
    %p15 = scmp.eq.s32.totalorder 0, 0
    // Predicated region
    $region14: #{attention_forward.5} parent=1 // pred_check
      %p16 = pneg %p15
    $region15: #{attention_forward.5} parent=1 // pred_check_branch
      %18 = sbr.rel (%p16) target = $region17
    $region16: #{attention_forward.5} parent=1 // pred_region
      %19 = vst [vmem:[#allocation2] sm:$0xff] 0.0
      %20 = vst [vmem:[#allocation2 + $0x8] sm:$0xff] 0.0
      %21 = vst [vmem:[#allocation2 + $0x10] sm:$0xff] 0.0
      %22 = vst [vmem:[#allocation2 + $0x18] sm:$0xff] 0.0
      %23 = vst [vmem:[#allocation2 + $0x20] sm:$0xff] 0.0
      %24 = vst [vmem:[#allocation2 + $0x28] sm:$0xff] 0.0
      %25 = vst [vmem:[#allocation2 + $0x30] sm:$0xff] 0.0
      %26 = vst [vmem:[#allocation2 + $0x38] sm:$0xff] 0.0
      %27 = vst [vmem:[#allocation2 + $0x40] sm:$0xff] 0.0
      %28 = vst [vmem:[#allocation2 + $0x48] sm:$0xff] 0.0
      %29 = vst [vmem:[#allocation2 + $0x50] sm:$0xff] 0.0
      %30 = vst [vmem:[#allocation2 + $0x58] sm:$0xff] 0.0
      %31 = vst [vmem:[#allocation2 + $0x60] sm:$0xff] 0.0
      %32 = vst [vmem:[#allocation2 + $0x68] sm:$0xff] 0.0
      %33 = vst [vmem:[#allocation2 + $0x70] sm:$0xff] 0.0
      %34 = vst [vmem:[#allocation2 + $0x78] sm:$0xff] 0.0
      %35 = vst [vmem:[#allocation2 + $0x80] sm:$0xff] 0.0
      %36 = vst [vmem:[#allocation2 + $0x88] sm:$0xff] 0.0
      %37 = vst [vmem:[#allocation2 + $0x90] sm:$0xff] 0.0
      %38 = vst [vmem:[#allocation2 + $0x98] sm:$0xff] 0.0
      %39 = vst [vmem:[#allocation2 + $0xa0] sm:$0xff] 0.0
      %40 = vst [vmem:[#allocation2 + $0xa8] sm:$0xff] 0.0
      %41 = vst [vmem:[#allocation2 + $0xb0] sm:$0xff] 0.0
      %42 = vst [vmem:[#allocation2 + $0xb8] sm:$0xff] 0.0
      %43 = vst [vmem:[#allocation2 + $0xc0] sm:$0xff] 0.0
      %44 = vst [vmem:[#allocation2 + $0xc8] sm:$0xff] 0.0
      %45 = vst [vmem:[#allocation2 + $0xd0] sm:$0xff] 0.0
      %46 = vst [vmem:[#allocation2 + $0xd8] sm:$0xff] 0.0
      %47 = vst [vmem:[#allocation2 + $0xe0] sm:$0xff] 0.0
      %48 = vst [vmem:[#allocation2 + $0xe8] sm:$0xff] 0.0
      %49 = vst [vmem:[#allocation2 + $0xf0] sm:$0xff] 0.0
      %50 = vst [vmem:[#allocation2 + $0xf8] sm:$0xff] 0.0
    $region17: #{attention_forward.5} parent=1 // pred_fallthru
      _
    %v51 = vld [vmem:[#allocation2] sm:$0xff]
    %v52 = vld [vmem:[#allocation2 + $0x8] sm:$0xff]
    %v53 = vld [vmem:[#allocation2 + $0x10] sm:$0xff]
    %v54 = vld [vmem:[#allocation2 + $0x18] sm:$0xff]
    %v55 = vld [vmem:[#allocation2 + $0x20] sm:$0xff]
    %v56 = vld [vmem:[#allocation2 + $0x28] sm:$0xff]
    %v57 = vld [vmem:[#allocation2 + $0x30] sm:$0xff]
    %v58 = vld [vmem:[#allocation2 + $0x38] sm:$0xff]
    %v59 = vld [vmem:[#allocation2 + $0x40] sm:$0xff]
    %v60 = vld [vmem:[#allocation2 + $0x48] sm:$0xff]
    %v61 = vld [vmem:[#allocation2 + $0x50] sm:$0xff]
    %v62 = vld [vmem:[#allocation2 + $0x58] sm:$0xff]
    %v63 = vld [vmem:[#allocation2 + $0x60] sm:$0xff]
    %v64 = vld [vmem:[#allocation2 + $0x68] sm:$0xff]
    %v65 = vld [vmem:[#allocation2 + $0x70] sm:$0xff]
    %v66 = vld [vmem:[#allocation2 + $0x78] sm:$0xff]
    %v67 = vld [vmem:[#allocation2 + $0x80] sm:$0xff]
    %v68 = vld [vmem:[#allocation2 + $0x88] sm:$0xff]
    %v69 = vld [vmem:[#allocation2 + $0x90] sm:$0xff]
    %v70 = vld [vmem:[#allocation2 + $0x98] sm:$0xff]
    %v71 = vld [vmem:[#allocation2 + $0xa0] sm:$0xff]
    %v72 = vld [vmem:[#allocation2 + $0xa8] sm:$0xff]
    %v73 = vld [vmem:[#allocation2 + $0xb0] sm:$0xff]
    %v74 = vld [vmem:[#allocation2 + $0xb8] sm:$0xff]
    %v75 = vld [vmem:[#allocation2 + $0xc0] sm:$0xff]
    %v76 = vld [vmem:[#allocation2 + $0xc8] sm:$0xff]
    %v77 = vld [vmem:[#allocation2 + $0xd0] sm:$0xff]
    %v78 = vld [vmem:[#allocation2 + $0xd8] sm:$0xff]
    %v79 = vld [vmem:[#allocation2 + $0xe0] sm:$0xff]
    %v80 = vld [vmem:[#allocation2 + $0xe8] sm:$0xff]
    %v81 = vld [vmem:[#allocation2 + $0xf0] sm:$0xff]
    %v82 = vld [vmem:[#allocation2 + $0xf8] sm:$0xff]
    %v83 = vld [vmem:[%s0] sm:$0xff]
    %v84 = vld [vmem:[%s0 + $0x8] sm:$0xff]
    %v85 = vld [vmem:[%s0 + $0x10] sm:$0xff]
    %v86 = vld [vmem:[%s0 + $0x18] sm:$0xff]
    %v87 = vld [vmem:[%s0 + $0x20] sm:$0xff]
    %v88 = vld [vmem:[%s0 + $0x28] sm:$0xff]
    %v89 = vld [vmem:[%s0 + $0x30] sm:$0xff]
    %v90 = vld [vmem:[%s0 + $0x38] sm:$0xff]
    %v91 = vld [vmem:[%s0 + $0x40] sm:$0xff]
    %v92 = vld [vmem:[%s0 + $0x48] sm:$0xff]
    %v93 = vld [vmem:[%s0 + $0x50] sm:$0xff]
    %v94 = vld [vmem:[%s0 + $0x58] sm:$0xff]
    %v95 = vld [vmem:[%s0 + $0x60] sm:$0xff]
    %v96 = vld [vmem:[%s0 + $0x68] sm:$0xff]
    %v97 = vld [vmem:[%s0 + $0x70] sm:$0xff]
    %v98 = vld [vmem:[%s0 + $0x78] sm:$0xff]
    %v99 = vld [vmem:[%s0 + $0x80] sm:$0xff]
    %v100 = vld [vmem:[%s0 + $0x88] sm:$0xff]
    %v101 = vld [vmem:[%s0 + $0x90] sm:$0xff]
    %v102 = vld [vmem:[%s0 + $0x98] sm:$0xff]
    %v103 = vld [vmem:[%s0 + $0xa0] sm:$0xff]
    %v104 = vld [vmem:[%s0 + $0xa8] sm:$0xff]
    %v105 = vld [vmem:[%s0 + $0xb0] sm:$0xff]
    %v106 = vld [vmem:[%s0 + $0xb8] sm:$0xff]
    %v107 = vld [vmem:[%s0 + $0xc0] sm:$0xff]
    %v108 = vld [vmem:[%s0 + $0xc8] sm:$0xff]
    %v109 = vld [vmem:[%s0 + $0xd0] sm:$0xff]
    %v110 = vld [vmem:[%s0 + $0xd8] sm:$0xff]
    %v111 = vld [vmem:[%s0 + $0xe0] sm:$0xff]
    %v112 = vld [vmem:[%s0 + $0xe8] sm:$0xff]
    %v113 = vld [vmem:[%s0 + $0xf0] sm:$0xff]
    %v114 = vld [vmem:[%s0 + $0xf8] sm:$0xff]
    %v115 = vld [vmem:[%s1] sm:$0xff]
    %v116 = vld [vmem:[%s1 + $0x8] sm:$0xff]
    %v117 = vld [vmem:[%s1 + $0x10] sm:$0xff]
    %v118 = vld [vmem:[%s1 + $0x18] sm:$0xff]
    %v119 = vld [vmem:[%s1 + $0x20] sm:$0xff]
    %v120 = vld [vmem:[%s1 + $0x28] sm:$0xff]
    %v121 = vld [vmem:[%s1 + $0x30] sm:$0xff]
    %v122 = vld [vmem:[%s1 + $0x38] sm:$0xff]
    %v123 = vld [vmem:[%s1 + $0x40] sm:$0xff]
    %v124 = vld [vmem:[%s1 + $0x48] sm:$0xff]
    %v125 = vld [vmem:[%s1 + $0x50] sm:$0xff]
    %v126 = vld [vmem:[%s1 + $0x58] sm:$0xff]
    %v127 = vld [vmem:[%s1 + $0x60] sm:$0xff]
    %v128 = vld [vmem:[%s1 + $0x68] sm:$0xff]
    %v129 = vld [vmem:[%s1 + $0x70] sm:$0xff]
    %v130 = vld [vmem:[%s1 + $0x78] sm:$0xff]
    %131 = vmatprep.subr.mxu0 0.0
    %132 = vmatpush1.msra.mxu0 %v115
    %133 = vmatprep.subr.mxu0 0.0
    %134 = vmatpush1.msra.mxu0 %v116
    %135 = vmatprep.subr.mxu0 0.0
    %136 = vmatpush1.msra.mxu0 %v117
    %137 = vmatprep.subr.mxu0 0.0
    %138 = vmatpush1.msra.mxu0 %v118
    %139 = vmatprep.subr.mxu0 0.0
    %140 = vmatpush1.msra.mxu0 %v119
    %141 = vmatprep.subr.mxu0 0.0
    %142 = vmatpush1.msra.mxu0 %v120
    %143 = vmatprep.subr.mxu0 0.0
    %144 = vmatpush1.msra.mxu0 %v121
    %145 = vmatprep.subr.mxu0 0.0
    %146 = vmatpush1.msra.mxu0 %v122
    %147 = vmatprep.subr.mxu0 0.0
    %148 = vmatpush1.msra.mxu0 %v123
    %149 = vmatprep.subr.mxu0 0.0
    %150 = vmatpush1.msra.mxu0 %v124
    %151 = vmatprep.subr.mxu0 0.0
    %152 = vmatpush1.msra.mxu0 %v125
    %153 = vmatprep.subr.mxu0 0.0
    %154 = vmatpush1.msra.mxu0 %v126
    %155 = vmatprep.subr.mxu0 0.0
    %156 = vmatpush1.msra.mxu0 %v127
    %157 = vmatprep.subr.mxu0 0.0
    %158 = vmatpush1.msra.mxu0 %v128
    %159 = vmatprep.subr.mxu0 0.0
    %160 = vmatpush1.msra.mxu0 %v129
    %161 = vmatprep.subr.mxu0 0.0
    %162 = vmatpush1.msra.mxu0 %v130
    %163 = vmatprep.subr.mxu0 0.0
    %164 = vmatpush1.msra.mxu0 0.0
    %165 = vmatprep.subr.mxu0 0.0
    %166 = vmatpush1.msra.mxu0 0.0
    %167 = vmatprep.subr.mxu0 0.0
    %168 = vmatpush1.msra.mxu0 0.0
    %169 = vmatprep.subr.mxu0 0.0
    %170 = vmatpush1.msra.mxu0 0.0
    %171 = vmatprep.subr.mxu0 0.0
    %172 = vmatpush1.msra.mxu0 0.0
    %173 = vmatprep.subr.mxu0 0.0
    %174 = vmatpush1.msra.mxu0 0.0
    %175 = vmatprep.subr.mxu0 0.0
    %176 = vmatpush1.msra.mxu0 0.0
    %177 = vmatprep.subr.mxu0 0.0
    %178 = vmatpush1.msra.mxu0 0.0
    %179 = vmatprep.subr.mxu0 0.0
    %180 = vmatpush1.msra.mxu0 0.0
    %181 = vmatprep.subr.mxu0 0.0
    %182 = vmatpush1.msra.mxu0 0.0
    %183 = vmatprep.subr.mxu0 0.0
    %184 = vmatpush1.msra.mxu0 0.0
    %185 = vmatprep.subr.mxu0 0.0
    %186 = vmatpush1.msra.mxu0 0.0
    %187 = vmatprep.subr.mxu0 0.0
    %188 = vmatpush1.msra.mxu0 0.0
    %189 = vmatprep.subr.mxu0 0.0
    %190 = vmatpush1.msra.mxu0 0.0
    %191 = vmatprep.subr.mxu0 0.0
    %192 = vmatpush1.msra.mxu0 0.0
    %193 = vmatprep.subr.mxu0 0.0
    %194 = vmatpush1.msra.mxu0 0.0
    %195 = vmatprep.mubr.f32.mxu0 0.0
    %196 = vmatmul.mubr.f32.gmra.mrb[0].mxu0 %v83
    %v197 = vpop.f32.mrb[0].mxu0
    %v198 = vadd.f32 0.0, %v197
    %v199 = vpop.f32.mrb[0].mxu0
    %200 = vmatprep.mubr.f32.mxu0 0.0
    %201 = vmatmul.mubr.f32.gmra.mrb[0].mxu0 %v84
    %v202 = vpop.f32.mrb[0].mxu0
    %v203 = vadd.f32 0.0, %v202
    %v204 = vpop.f32.mrb[0].mxu0
    %205 = vmatprep.mubr.f32.mxu0 0.0
    %206 = vmatmul.mubr.f32.gmra.mrb[0].mxu0 %v85
    %v207 = vpop.f32.mrb[0].mxu0
    %v208 = vadd.f32 0.0, %v207
    %v209 = vpop.f32.mrb[0].mxu0
    %210 = vmatprep.mubr.f32.mxu0 0.0
    %211 = vmatmul.mubr.f32.gmra.mrb[0].mxu0 %v86
    %v212 = vpop.f32.mrb[0].mxu0
    %v213 = vadd.f32 0.0, %v212
    %v214 = vpop.f32.mrb[0].mxu0
    %215 = vmatprep.mubr.f32.mxu0 0.0
    %216 = vmatmul.mubr.f32.gmra.mrb[0].mxu0 %v87
    %v217 = vpop.f32.mrb[0].mxu0
    %v218 = vadd.f32 0.0, %v217
    %v219 = vpop.f32.mrb[0].mxu0
    %220 = vmatprep.mubr.f32.mxu0 0.0
    %221 = vmatmul.mubr.f32.gmra.mrb[0].mxu0 %v88
    %v222 = vpop.f32.mrb[0].mxu0
    %v223 = vadd.f32 0.0, %v222
    %v224 = vpop.f32.mrb[0].mxu0
    %225 = vmatprep.mubr.f32.mxu0 0.0
    %226 = vmatmul.mubr.f32.gmra.mrb[0].mxu0 %v89
    %v227 = vpop.f32.mrb[0].mxu0
    %v228 = vadd.f32 0.0, %v227
    %v229 = vpop.f32.mrb[0].mxu0
    %230 = vmatprep.mubr.f32.mxu0 0.0
    %231 = vmatmul.mubr.f32.gmra.mrb[0].mxu0 %v90
    %v232 = vpop.f32.mrb[0].mxu0
    %v233 = vadd.f32 0.0, %v232
    %v234 = vpop.f32.mrb[0].mxu0
    %235 = vmatprep.mubr.f32.mxu0 0.0
    %236 = vmatmul.mubr.f32.gmra.mrb[0].mxu0 %v91
    %v237 = vpop.f32.mrb[0].mxu0
    %v238 = vadd.f32 0.0, %v237
    %v239 = vpop.f32.mrb[0].mxu0
    %240 = vmatprep.mubr.f32.mxu0 0.0
    %241 = vmatmul.mubr.f32.gmra.mrb[0].mxu0 %v92
    %v242 = vpop.f32.mrb[0].mxu0
    %v243 = vadd.f32 0.0, %v242
    %v244 = vpop.f32.mrb[0].mxu0
    %245 = vmatprep.mubr.f32.mxu0 0.0
    %246 = vmatmul.mubr.f32.gmra.mrb[0].mxu0 %v93
    %v247 = vpop.f32.mrb[0].mxu0
    %v248 = vadd.f32 0.0, %v247
    %v249 = vpop.f32.mrb[0].mxu0
    %250 = vmatprep.mubr.f32.mxu0 0.0
    %251 = vmatmul.mubr.f32.gmra.mrb[0].mxu0 %v94
    %v252 = vpop.f32.mrb[0].mxu0
    %v253 = vadd.f32 0.0, %v252
    %v254 = vpop.f32.mrb[0].mxu0
    %255 = vmatprep.mubr.f32.mxu0 0.0
    %256 = vmatmul.mubr.f32.gmra.mrb[0].mxu0 %v95
    %v257 = vpop.f32.mrb[0].mxu0
    %v258 = vadd.f32 0.0, %v257
    %v259 = vpop.f32.mrb[0].mxu0
    %260 = vmatprep.mubr.f32.mxu0 0.0
    %261 = vmatmul.mubr.f32.gmra.mrb[0].mxu0 %v96
    %v262 = vpop.f32.mrb[0].mxu0
    %v263 = vadd.f32 0.0, %v262
    %v264 = vpop.f32.mrb[0].mxu0
    %265 = vmatprep.mubr.f32.mxu0 0.0
    %266 = vmatmul.mubr.f32.gmra.mrb[0].mxu0 %v97
    %v267 = vpop.f32.mrb[0].mxu0
    %v268 = vadd.f32 0.0, %v267
    %v269 = vpop.f32.mrb[0].mxu0
    %270 = vmatprep.mubr.f32.mxu0 0.0
    %271 = vmatmul.mubr.f32.gmra.mrb[0].mxu0 %v98
    %v272 = vpop.f32.mrb[0].mxu0
    %v273 = vadd.f32 0.0, %v272
    %v274 = vpop.f32.mrb[0].mxu0
    %275 = vmatprep.mubr.f32.mxu0 0.0
    %276 = vmatmul.mubr.f32.gmra.mrb[0].mxu0 %v99
    %v277 = vpop.f32.mrb[0].mxu0
    %v278 = vadd.f32 0.0, %v277
    %v279 = vpop.f32.mrb[0].mxu0
    %280 = vmatprep.mubr.f32.mxu0 0.0
    %281 = vmatmul.mubr.f32.gmra.mrb[0].mxu0 %v100
    %v282 = vpop.f32.mrb[0].mxu0
    %v283 = vadd.f32 0.0, %v282
    %v284 = vpop.f32.mrb[0].mxu0
    %285 = vmatprep.mubr.f32.mxu0 0.0
    %286 = vmatmul.mubr.f32.gmra.mrb[0].mxu0 %v101
    %v287 = vpop.f32.mrb[0].mxu0
    %v288 = vadd.f32 0.0, %v287
    %v289 = vpop.f32.mrb[0].mxu0
    %290 = vmatprep.mubr.f32.mxu0 0.0
    %291 = vmatmul.mubr.f32.gmra.mrb[0].mxu0 %v102
    %v292 = vpop.f32.mrb[0].mxu0
    %v293 = vadd.f32 0.0, %v292
    %v294 = vpop.f32.mrb[0].mxu0
    %295 = vmatprep.mubr.f32.mxu0 0.0
    %296 = vmatmul.mubr.f32.gmra.mrb[0].mxu0 %v103
    %v297 = vpop.f32.mrb[0].mxu0
    %v298 = vadd.f32 0.0, %v297
    %v299 = vpop.f32.mrb[0].mxu0
    %300 = vmatprep.mubr.f32.mxu0 0.0
    %301 = vmatmul.mubr.f32.gmra.mrb[0].mxu0 %v104
    %v302 = vpop.f32.mrb[0].mxu0
    %v303 = vadd.f32 0.0, %v302
    %v304 = vpop.f32.mrb[0].mxu0
    %305 = vmatprep.mubr.f32.mxu0 0.0
    %306 = vmatmul.mubr.f32.gmra.mrb[0].mxu0 %v105
    %v307 = vpop.f32.mrb[0].mxu0
    %v308 = vadd.f32 0.0, %v307
    %v309 = vpop.f32.mrb[0].mxu0
    %310 = vmatprep.mubr.f32.mxu0 0.0
    %311 = vmatmul.mubr.f32.gmra.mrb[0].mxu0 %v106
    %v312 = vpop.f32.mrb[0].mxu0
    %v313 = vadd.f32 0.0, %v312
    %v314 = vpop.f32.mrb[0].mxu0
    %315 = vmatprep.mubr.f32.mxu0 0.0
    %316 = vmatmul.mubr.f32.gmra.mrb[0].mxu0 %v107
    %v317 = vpop.f32.mrb[0].mxu0
    %v318 = vadd.f32 0.0, %v317
    %v319 = vpop.f32.mrb[0].mxu0
    %320 = vmatprep.mubr.f32.mxu0 0.0
    %321 = vmatmul.mubr.f32.gmra.mrb[0].mxu0 %v108
    %v322 = vpop.f32.mrb[0].mxu0
    %v323 = vadd.f32 0.0, %v322
    %v324 = vpop.f32.mrb[0].mxu0
    %325 = vmatprep.mubr.f32.mxu0 0.0
    %326 = vmatmul.mubr.f32.gmra.mrb[0].mxu0 %v109
    %v327 = vpop.f32.mrb[0].mxu0
    %v328 = vadd.f32 0.0, %v327
    %v329 = vpop.f32.mrb[0].mxu0
    %330 = vmatprep.mubr.f32.mxu0 0.0
    %331 = vmatmul.mubr.f32.gmra.mrb[0].mxu0 %v110
    %v332 = vpop.f32.mrb[0].mxu0
    %v333 = vadd.f32 0.0, %v332
    %v334 = vpop.f32.mrb[0].mxu0
    %335 = vmatprep.mubr.f32.mxu0 0.0
    %336 = vmatmul.mubr.f32.gmra.mrb[0].mxu0 %v111
    %v337 = vpop.f32.mrb[0].mxu0
    %v338 = vadd.f32 0.0, %v337
    %v339 = vpop.f32.mrb[0].mxu0
    %340 = vmatprep.mubr.f32.mxu0 0.0
    %341 = vmatmul.mubr.f32.gmra.mrb[0].mxu0 %v112
    %v342 = vpop.f32.mrb[0].mxu0
    %v343 = vadd.f32 0.0, %v342
    %v344 = vpop.f32.mrb[0].mxu0
    %345 = vmatprep.mubr.f32.mxu0 0.0
    %346 = vmatmul.mubr.f32.gmra.mrb[0].mxu0 %v113
    %v347 = vpop.f32.mrb[0].mxu0
    %v348 = vadd.f32 0.0, %v347
    %v349 = vpop.f32.mrb[0].mxu0
    %350 = vmatprep.mubr.f32.mxu0 0.0
    %351 = vmatmul.mubr.f32.gmra.mrb[0].mxu0 %v114
    %v352 = vpop.f32.mrb[0].mxu0
    %v353 = vadd.f32 0.0, %v352
    %v354 = vpop.f32.mrb[0].mxu0
    %355 = vdwg.mxu0
    %v356 = vadd.f32 %v51, %v198
    %v357 = vadd.f32 %v52, %v203
    %v358 = vadd.f32 %v53, %v208
    %v359 = vadd.f32 %v54, %v213
    %v360 = vadd.f32 %v55, %v218
    %v361 = vadd.f32 %v56, %v223
    %v362 = vadd.f32 %v57, %v228
    %v363 = vadd.f32 %v58, %v233
    %v364 = vadd.f32 %v59, %v238
    %v365 = vadd.f32 %v60, %v243
    %v366 = vadd.f32 %v61, %v248
    %v367 = vadd.f32 %v62, %v253
    %v368 = vadd.f32 %v63, %v258
    %v369 = vadd.f32 %v64, %v263
    %v370 = vadd.f32 %v65, %v268
    %v371 = vadd.f32 %v66, %v273
    %v372 = vadd.f32 %v67, %v278
    %v373 = vadd.f32 %v68, %v283
    %v374 = vadd.f32 %v69, %v288
    %v375 = vadd.f32 %v70, %v293
    %v376 = vadd.f32 %v71, %v298
    %v377 = vadd.f32 %v72, %v303
    %v378 = vadd.f32 %v73, %v308
    %v379 = vadd.f32 %v74, %v313
    %v380 = vadd.f32 %v75, %v318
    %v381 = vadd.f32 %v76, %v323
    %v382 = vadd.f32 %v77, %v328
    %v383 = vadd.f32 %v78, %v333
    %v384 = vadd.f32 %v79, %v338
    %v385 = vadd.f32 %v80, %v343
    %v386 = vadd.f32 %v81, %v348
    %v387 = vadd.f32 %v82, %v353
    %388 = vst [vmem:[#allocation2] sm:$0xff] %v356
    %389 = vst [vmem:[#allocation2 + $0x8] sm:$0xff] %v357
    %390 = vst [vmem:[#allocation2 + $0x10] sm:$0xff] %v358
    %391 = vst [vmem:[#allocation2 + $0x18] sm:$0xff] %v359
    %392 = vst [vmem:[#allocation2 + $0x20] sm:$0xff] %v360
    %393 = vst [vmem:[#allocation2 + $0x28] sm:$0xff] %v361
    %394 = vst [vmem:[#allocation2 + $0x30] sm:$0xff] %v362
    %395 = vst [vmem:[#allocation2 + $0x38] sm:$0xff] %v363
    %396 = vst [vmem:[#allocation2 + $0x40] sm:$0xff] %v364
    %397 = vst [vmem:[#allocation2 + $0x48] sm:$0xff] %v365
    %398 = vst [vmem:[#allocation2 + $0x50] sm:$0xff] %v366
    %399 = vst [vmem:[#allocation2 + $0x58] sm:$0xff] %v367
    %400 = vst [vmem:[#allocation2 + $0x60] sm:$0xff] %v368
    %401 = vst [vmem:[#allocation2 + $0x68] sm:$0xff] %v369
    %402 = vst [vmem:[#allocation2 + $0x70] sm:$0xff] %v370
    %403 = vst [vmem:[#allocation2 + $0x78] sm:$0xff] %v371
    %404 = vst [vmem:[#allocation2 + $0x80] sm:$0xff] %v372
    %405 = vst [vmem:[#allocation2 + $0x88] sm:$0xff] %v373
    %406 = vst [vmem:[#allocation2 + $0x90] sm:$0xff] %v374
    %407 = vst [vmem:[#allocation2 + $0x98] sm:$0xff] %v375
    %408 = vst [vmem:[#allocation2 + $0xa0] sm:$0xff] %v376
    %409 = vst [vmem:[#allocation2 + $0xa8] sm:$0xff] %v377
    %410 = vst [vmem:[#allocation2 + $0xb0] sm:$0xff] %v378
    %411 = vst [vmem:[#allocation2 + $0xb8] sm:$0xff] %v379
    %412 = vst [vmem:[#allocation2 + $0xc0] sm:$0xff] %v380
    %413 = vst [vmem:[#allocation2 + $0xc8] sm:$0xff] %v381
    %414 = vst [vmem:[#allocation2 + $0xd0] sm:$0xff] %v382
    %415 = vst [vmem:[#allocation2 + $0xd8] sm:$0xff] %v383
    %416 = vst [vmem:[#allocation2 + $0xe0] sm:$0xff] %v384
    %417 = vst [vmem:[#allocation2 + $0xe8] sm:$0xff] %v385
    %418 = vst [vmem:[#allocation2 + $0xf0] sm:$0xff] %v386
    %419 = vst [vmem:[#allocation2 + $0xf8] sm:$0xff] %v387
    // Predicated region
    $region18: #{attention_forward.5} parent=1 // pred_check
      %p420 = pneg %p15
    $region19: #{attention_forward.5} parent=1 // pred_check_branch
      %422 = sbr.rel (%p420) target = $region21
    $region20: #{attention_forward.5} parent=1 // pred_region
      %v423 = vld [vmem:[#allocation2] sm:$0xff]
      %v424 = vld [vmem:[#allocation2 + $0x8] sm:$0xff]
      %v425 = vld [vmem:[#allocation2 + $0x10] sm:$0xff]
      %v426 = vld [vmem:[#allocation2 + $0x18] sm:$0xff]
      %v427 = vld [vmem:[#allocation2 + $0x20] sm:$0xff]
      %v428 = vld [vmem:[#allocation2 + $0x28] sm:$0xff]
      %v429 = vld [vmem:[#allocation2 + $0x30] sm:$0xff]
      %v430 = vld [vmem:[#allocation2 + $0x38] sm:$0xff]
      %v431 = vld [vmem:[#allocation2 + $0x40] sm:$0xff]
      %v432 = vld [vmem:[#allocation2 + $0x48] sm:$0xff]
      %v433 = vld [vmem:[#allocation2 + $0x50] sm:$0xff]
      %v434 = vld [vmem:[#allocation2 + $0x58] sm:$0xff]
      %v435 = vld [vmem:[#allocation2 + $0x60] sm:$0xff]
      %v436 = vld [vmem:[#allocation2 + $0x68] sm:$0xff]
      %v437 = vld [vmem:[#allocation2 + $0x70] sm:$0xff]
      %v438 = vld [vmem:[#allocation2 + $0x78] sm:$0xff]
      %v439 = vld [vmem:[#allocation2 + $0x80] sm:$0xff]
      %v440 = vld [vmem:[#allocation2 + $0x88] sm:$0xff]
      %v441 = vld [vmem:[#allocation2 + $0x90] sm:$0xff]
      %v442 = vld [vmem:[#allocation2 + $0x98] sm:$0xff]
      %v443 = vld [vmem:[#allocation2 + $0xa0] sm:$0xff]
      %v444 = vld [vmem:[#allocation2 + $0xa8] sm:$0xff]
      %v445 = vld [vmem:[#allocation2 + $0xb0] sm:$0xff]
      %v446 = vld [vmem:[#allocation2 + $0xb8] sm:$0xff]
      %v447 = vld [vmem:[#allocation2 + $0xc0] sm:$0xff]
      %v448 = vld [vmem:[#allocation2 + $0xc8] sm:$0xff]
      %v449 = vld [vmem:[#allocation2 + $0xd0] sm:$0xff]
      %v450 = vld [vmem:[#allocation2 + $0xd8] sm:$0xff]
      %v451 = vld [vmem:[#allocation2 + $0xe0] sm:$0xff]
      %v452 = vld [vmem:[#allocation2 + $0xe8] sm:$0xff]
      %v453 = vld [vmem:[#allocation2 + $0xf0] sm:$0xff]
      %v454 = vld [vmem:[#allocation2 + $0xf8] sm:$0xff]
      %v455 = vld [vmem:[%s2] sm:$0x1]
      %v457 = vlaneseq
      %v458 = vshrl.u32 %v457, 7
      %v459 = vsub.s32 0, %v458
      %v460 = vrot.slane %v455, %v459
      %v462 = vadd.f32 %v423, %v460
      %v463 = vadd.f32 %v424, %v460
      %v464 = vadd.f32 %v425, %v460
      %v465 = vadd.f32 %v426, %v460
      %v466 = vadd.f32 %v427, %v460
      %v467 = vadd.f32 %v428, %v460
      %v468 = vadd.f32 %v429, %v460
      %v469 = vadd.f32 %v430, %v460
      %v470 = vadd.f32 %v431, %v460
      %v471 = vadd.f32 %v432, %v460
      %v472 = vadd.f32 %v433, %v460
      %v473 = vadd.f32 %v434, %v460
      %v474 = vadd.f32 %v435, %v460
      %v475 = vadd.f32 %v436, %v460
      %v476 = vadd.f32 %v437, %v460
      %v477 = vadd.f32 %v438, %v460
      %v478 = vadd.f32 %v439, %v460
      %v479 = vadd.f32 %v440, %v460
      %v480 = vadd.f32 %v441, %v460
      %v481 = vadd.f32 %v442, %v460
      %v482 = vadd.f32 %v443, %v460
      %v483 = vadd.f32 %v444, %v460
      %v484 = vadd.f32 %v445, %v460
      %v485 = vadd.f32 %v446, %v460
      %v486 = vadd.f32 %v447, %v460
      %v487 = vadd.f32 %v448, %v460
      %v488 = vadd.f32 %v449, %v460
      %v489 = vadd.f32 %v450, %v460
      %v490 = vadd.f32 %v451, %v460
      %v491 = vadd.f32 %v452, %v460
      %v492 = vadd.f32 %v453, %v460
      %v493 = vadd.f32 %v454, %v460
      %494 = vst [vmem:[#allocation3] sm:$0xff] %v462
      %495 = vst [vmem:[#allocation3 + $0x8] sm:$0xff] %v463
      %496 = vst [vmem:[#allocation3 + $0x10] sm:$0xff] %v464
      %497 = vst [vmem:[#allocation3 + $0x18] sm:$0xff] %v465
      %498 = vst [vmem:[#allocation3 + $0x20] sm:$0xff] %v466
      %499 = vst [vmem:[#allocation3 + $0x28] sm:$0xff] %v467
      %500 = vst [vmem:[#allocation3 + $0x30] sm:$0xff] %v468
      %501 = vst [vmem:[#allocation3 + $0x38] sm:$0xff] %v469
      %502 = vst [vmem:[#allocation3 + $0x40] sm:$0xff] %v470
      %503 = vst [vmem:[#allocation3 + $0x48] sm:$0xff] %v471
      %504 = vst [vmem:[#allocation3 + $0x50] sm:$0xff] %v472
      %505 = vst [vmem:[#allocation3 + $0x58] sm:$0xff] %v473
      %506 = vst [vmem:[#allocation3 + $0x60] sm:$0xff] %v474
      %507 = vst [vmem:[#allocation3 + $0x68] sm:$0xff] %v475
      %508 = vst [vmem:[#allocation3 + $0x70] sm:$0xff] %v476
      %509 = vst [vmem:[#allocation3 + $0x78] sm:$0xff] %v477
      %510 = vst [vmem:[#allocation3 + $0x80] sm:$0xff] %v478
      %511 = vst [vmem:[#allocation3 + $0x88] sm:$0xff] %v479
      %512 = vst [vmem:[#allocation3 + $0x90] sm:$0xff] %v480
      %513 = vst [vmem:[#allocation3 + $0x98] sm:$0xff] %v481
      %514 = vst [vmem:[#allocation3 + $0xa0] sm:$0xff] %v482
      %515 = vst [vmem:[#allocation3 + $0xa8] sm:$0xff] %v483
      %516 = vst [vmem:[#allocation3 + $0xb0] sm:$0xff] %v484
      %517 = vst [vmem:[#allocation3 + $0xb8] sm:$0xff] %v485
      %518 = vst [vmem:[#allocation3 + $0xc0] sm:$0xff] %v486
      %519 = vst [vmem:[#allocation3 + $0xc8] sm:$0xff] %v487
      %520 = vst [vmem:[#allocation3 + $0xd0] sm:$0xff] %v488
      %521 = vst [vmem:[#allocation3 + $0xd8] sm:$0xff] %v489
      %522 = vst [vmem:[#allocation3 + $0xe0] sm:$0xff] %v490
      %523 = vst [vmem:[#allocation3 + $0xe8] sm:$0xff] %v491
      %524 = vst [vmem:[#allocation3 + $0xf0] sm:$0xff] %v492
      %525 = vst [vmem:[#allocation3 + $0xf8] sm:$0xff] %v493
    $region21: #{attention_forward.5} parent=1 // pred_fallthru
      _
    // Predicated region
    $region22: #{attention_forward.5} parent=1 // pred_check
      _
    $region23: #{attention_forward.5} parent=1 // pred_check_branch
      %527 = sbr.rel (0) target = $region25
    $region24: #{attention_forward.5} parent=1 // pred_region
      %s529 = ssub.s32 4096, 4096
      %530 = vsyncadd [#allocation4], %s529
      %s531 = sshll.u32 [#allocation3], 4
      %s532 = int_to_ptr.vmem [resolvable:$true] %s531
      %537 = dma.vmem_to_hbm [thread:$0]  %s532, 4096, %s3, [#allocation4], 128, 128, 8
    $region25: #{attention_forward.5} parent=1 // pred_fallthru
      _
    // Predicated region
    $region26: #{attention_forward.5} parent=1 // pred_check
      _
    $region27: #{attention_forward.5} parent=1 // pred_check_branch
      %539 = sbr.rel (0) target = $region29
    $region28: #{attention_forward.5} parent=1 // pred_region
      %540 = dma.done [#allocation4], 4096
    $region29: #{attention_forward.5} parent=1 // pred_fallthru
      _
    %541 = vsyncpa [#allocation4], 1

// kernel: attention_forward.3
$region0: #{attention_forward.3}
  #allocation0 [shape = 'u32[]', space=smem, size = 0x4, offset = 0x4, fixed_abs, tag = 'smem constant byte address 0x4 - core index']
  #allocation1 [shape = 'u32[144,128]{1,0:T(1,128)}', space=vmem, size = 0x12000, scoped, tag = 'internal scratch']
  #allocation2 [shape = 'f32[256,128]{1,0:T(8,128)}', space=vmem, size = 0x20000, scoped, tag = 'scratch operand']
  %s0 = inlined_call_operand.hbm [shape: f32[256,128], index: 0, kind: input, shape index: {}]
  %s1 = inlined_call_operand.hbm [shape: f32[128,384], index: 1, kind: input, shape index: {}]
  %s2 = inlined_call_operand.vmem [shape: f32[1,384], index: 2, kind: input, shape index: {}]
  %s3 = inlined_call_operand.vmem [shape: f32[256,384], index: 3, kind: output, shape index: {}]
  %s4 = sld [smem:[#allocation0]]
  $region95: #{attention_forward.3} parent=0
    _
  %s6 = ssub.s32 1, %s4
  %s7 = scalar_select 0, %s6, %s4
  $region1: #{attention_forward.3} parent=0
    #allocation3 [shape = 'u8[131072]{0}', space=vmem, size = 0x20000, scoped, tag = 'input window, operand 0, single buffered']
    #allocation4 [shape = 's32[2]{0}', space=sflag, size = 0x8, scoped, tag = 'scoped memory for attention_forward.3']
    #allocation5 [shape = 'u8[131072]{0}', space=vmem, size = 0x20000, scoped, tag = 'input window, operand 1']
    #allocation6 [shape = 's32[2]{0}', space=sflag, size = 0x8, scoped, tag = 'scoped memory for attention_forward.3']
    #allocation7 [shape = 'u8[262144]{0}', space=vmem, size = 0x40000, scoped, tag = 'output window, operand 0']
    %8 = vsyncpa [#allocation4], 0
    %9 = vsyncpa [#allocation6], 0
    %s10 = scalar_lea.sflag [#allocation6], 1
    %11 = vsyncpa %s10, 0
    loop: start=0, step=1, limit=5
    $region2: #{attention_forward.3} parent=1 // loop_pre_header
      _
    $region3: #{attention_forward.3} parent=1 // loop_header
      %s13 = sphi 0, %s17
      %p14 = scmp.ge.s32.totalorder %s13, 5
      %s20 = sphi 0, %s39
      %s21 = sphi 0, %s35
      %s22 = sphi 0, %s31
      %s23 = sphi 0, %s20
      %s24 = sphi 0, %s21
      %s25 = sphi 0, %s22
      %s26 = sphi 0, %s23
      %s27 = sphi 0, %s24
      %s28 = sphi 0, %s25
      %s44 = sphi 0, %s46
      %s47 = sphi 0, %s44
      %s48 = sphi 0, %s47
      %s64 = sphi 0, %s48
      %s72 = sphi 0, %s74
      %s75 = sphi 0, %s72
      %s76 = sphi 0, %s75
      %s92 = sphi 0, %s76
      %s98 = sphi 0, %s100
      %s101 = sphi 0, %s98
      %s102 = sphi 0, %s101
      %s118 = sphi 0, %s102
      %s126 = sphi 0, %s128
      %s129 = sphi 0, %s126
      %s130 = sphi 0, %s129
      %s146 = sphi 0, %s130
    $region4: #{attention_forward.3} parent=1 // loop_header_branch
      %16 = sbr.rel (%p14) target = $region8
    $region5: #{attention_forward.3} parent=1 // loop_body
      %s18 = ssub.s32 %s13, 1
      %s19 = ssub.s32 %s13, 2
      %s29 = sadd.s32 1, %s22
      %p30 = scmp.ge.s32.totalorder %s29, 1
      %s31 = scalar_select %p30, 0, %s29
      %s32 = sadd.s32 1, %s21
      %s33 = scalar_select %p30, %s32, %s21
      %p34 = scmp.ge.s32.totalorder %s33, 3
      %s35 = scalar_select %p34, 0, %s33
      %s36 = sadd.s32 1, %s20
      %s37 = scalar_select %p34, %s36, %s20
      %p38 = scmp.ge.s32.totalorder %s37, 1
      %s39 = scalar_select %p38, 0, %s37
      %s40 = ssub.s32 %s20, %s39
      %s41 = ssub.s32 %s22, %s31
      %s42 = sor.u32 %s40, %s41
      %p43 = scmp.eq.s32.totalorder %s42, 0
      %s45 = sadd.s32 %s44, 1
      %s46 = scalar_select %p43, %s44, %s45
      %p49 = pneg %p43
      %p50 = scmp.eq.s32.totalorder %s13, 2
      %p51 = por %p49, %p50
      %p52 = scmp.ne.s32.totalorder %s44, %s47
      %p53 = scmp.eq.s32.totalorder %s13, 0
      %p54 = por %p52, %p53
      %p55 = scmp.ne.s32.totalorder %s44, %s47
      %p56 = scmp.eq.s32.totalorder %s18, 2
      %p57 = por %p55, %p56
      %p58 = scmp.ne.s32.totalorder %s47, %s48
      %p59 = scmp.eq.s32.totalorder %s18, 0
      %p60 = por %p58, %p59
      %p61 = scmp.ne.s32.totalorder %s47, %s48
      %p62 = scmp.eq.s32.totalorder %s19, 2
      %p63 = por %p61, %p62
      %p65 = scmp.ne.s32.totalorder %s48, %s64
      %p66 = scmp.eq.s32.totalorder %s19, 0
      %p67 = por %p65, %p66
      %s68 = ssub.s32 %s22, %s31
      %s69 = ssub.s32 %s21, %s35
      %s70 = sor.u32 %s68, %s69
      %p71 = scmp.eq.s32.totalorder %s70, 0
      %s73 = sadd.s32 %s72, 1
      %s74 = scalar_select %p71, %s72, %s73
      %p77 = pneg %p71
      %p78 = scmp.eq.s32.totalorder %s13, 2
      %p79 = por %p77, %p78
      %p80 = scmp.ne.s32.totalorder %s72, %s75
      %p81 = scmp.eq.s32.totalorder %s13, 0
      %p82 = por %p80, %p81
      %p83 = scmp.ne.s32.totalorder %s72, %s75
      %p84 = scmp.eq.s32.totalorder %s18, 2
      %p85 = por %p83, %p84
      %p86 = scmp.ne.s32.totalorder %s75, %s76
      %p87 = scmp.eq.s32.totalorder %s18, 0
      %p88 = por %p86, %p87
      %p89 = scmp.ne.s32.totalorder %s75, %s76
      %p90 = scmp.eq.s32.totalorder %s19, 2
      %p91 = por %p89, %p90
      %p93 = scmp.ne.s32.totalorder %s76, %s92
      %p94 = scmp.eq.s32.totalorder %s19, 0
      %p95 = por %p93, %p94
      %s96 = ssub.s32 %s21, %s35
      %p97 = scmp.eq.s32.totalorder %s96, 0
      %s99 = sadd.s32 %s98, 1
      %s100 = scalar_select %p97, %s98, %s99
      %p103 = pneg %p97
      %p104 = scmp.eq.s32.totalorder %s13, 2
      %p105 = por %p103, %p104
      %p106 = scmp.ne.s32.totalorder %s98, %s101
      %p107 = scmp.eq.s32.totalorder %s13, 0
      %p108 = por %p106, %p107
      %p109 = scmp.ne.s32.totalorder %s98, %s101
      %p110 = scmp.eq.s32.totalorder %s18, 2
      %p111 = por %p109, %p110
      %p112 = scmp.ne.s32.totalorder %s101, %s102
      %p113 = scmp.eq.s32.totalorder %s18, 0
      %p114 = por %p112, %p113
      %p115 = scmp.ne.s32.totalorder %s101, %s102
      %p116 = scmp.eq.s32.totalorder %s19, 2
      %p117 = por %p115, %p116
      %p119 = scmp.ne.s32.totalorder %s102, %s118
      %p120 = scmp.eq.s32.totalorder %s19, 0
      %p121 = por %p119, %p120
      %s122 = ssub.s32 %s20, %s39
      %s123 = ssub.s32 %s21, %s35
      %s124 = sor.u32 %s122, %s123
      %p125 = scmp.eq.s32.totalorder %s124, 0
      %s127 = sadd.s32 %s126, 1
      %s128 = scalar_select %p125, %s126, %s127
      %p131 = pneg %p125
      %p132 = scmp.eq.s32.totalorder %s13, 2
      %p133 = por %p131, %p132
      %p134 = scmp.ne.s32.totalorder %s126, %s129
      %p135 = scmp.eq.s32.totalorder %s13, 0
      %p136 = por %p134, %p135
      %p137 = scmp.ne.s32.totalorder %s126, %s129
      %p138 = scmp.eq.s32.totalorder %s18, 2
      %p139 = por %p137, %p138
      %p140 = scmp.ne.s32.totalorder %s129, %s130
      %p141 = scmp.eq.s32.totalorder %s18, 0
      %p142 = por %p140, %p141
      %p143 = scmp.ne.s32.totalorder %s129, %s130
      %p144 = scmp.eq.s32.totalorder %s19, 2
      %p145 = por %p143, %p144
      %p147 = scmp.ne.s32.totalorder %s130, %s146
      %p148 = scmp.eq.s32.totalorder %s19, 0
      %p149 = por %p147, %p148
      %p150 = scmp.le.s32.totalorder 1, %s13
      %p151 = scmp.lt.s32.totalorder %s13, 4
      %p152 = pnand %p150, %p151
      %p153 = pneg %p152
      // Predicated region
      $region9: #{attention_forward.3} parent=5 // pred_check
        _
      $region10: #{attention_forward.3} parent=5 // pred_check_branch
        %155 = sbr.rel (%p152) target = $region12
      $region11: #{attention_forward.3} parent=5 // pred_region
        %s156 = ssub.s32 %s13, 1
        // Predicated region
        $region13: #{attention_forward.3} parent=11 // pred_check
          %p157 = pneg %p60
        $region14: #{attention_forward.3} parent=11 // pred_check_branch
          %159 = sbr.rel (%p157) target = $region16
        $region15: #{attention_forward.3} parent=11 // pred_region
          %s160 = smul.u32 32, %s23
          %s162 = ssub.s32 4096, 4096
          %163 = vsyncadd [#allocation4], %s162
          %s164 = sadd.s32 %s25, %s160
          %s165 = smul.addr %s164, 128
          %s166 = scalar_lea.hbm %s0, %s165
          %s167 = sshll.u32 [#allocation3], 4
          %s168 = int_to_ptr.vmem [resolvable:$true] %s167
          %173 = dma.hbm_to_vmem [thread:$0]  %s166, 4096, %s168, [#allocation4], 128, 128, 8
        $region16: #{attention_forward.3} parent=11 // pred_fallthru
          _
      $region12: #{attention_forward.3} parent=5 // pred_fallthru
        _
      %p174 = scmp.lt.s32.totalorder %s13, 3
      // Predicated region
      $region17: #{attention_forward.3} parent=5 // pred_check
        %p175 = pneg %p174
      $region18: #{attention_forward.3} parent=5 // pred_check_branch
        %177 = sbr.rel (%p175) target = $region20
      $region19: #{attention_forward.3} parent=5 // pred_region
        // Predicated region
        $region21: #{attention_forward.3} parent=19 // pred_check
          %p178 = pneg %p82
        $region22: #{attention_forward.3} parent=19 // pred_check_branch
          %180 = sbr.rel (%p178) target = $region24
        $region23: #{attention_forward.3} parent=19 // pred_region
          %s181 = sand.u32 %s72, 1
          %s182 = scalar_lea.sflag [#allocation6], %s181
          %s183 = sand.u32 %s72, 1
          %s184 = smul.addr %s183, 128
          %s185 = scalar_lea.vmem [#allocation5], %s184
          %s186 = smul.u32 16, %s22
          %s188 = ssub.s32 2048, 2048
          %189 = vsyncadd %s182, %s188
          %s190 = smul.addr %s186, 3
          %s191 = sadd.s32 %s21, %s190
          %s192 = smul.addr %s191, 128
          %s193 = scalar_lea.hbm %s1, %s192
          %s194 = sshll.u32 %s185, 4
          %s195 = int_to_ptr.vmem [resolvable:$true] %s194
          %200 = dma.hbm_to_vmem [thread:$0]  %s193, 2048, %s195, %s182, 384, 128, 8
        $region24: #{attention_forward.3} parent=19 // pred_fallthru
          _
        // Predicated region
        $region25: #{attention_forward.3} parent=19 // pred_check
          %p201 = pneg %p108
        $region26: #{attention_forward.3} parent=19 // pred_check_branch
          %203 = sbr.rel (%p201) target = $region28
        $region27: #{attention_forward.3} parent=19 // pred_region
          %p204 = scmp.lt.s32.totalorder %s21, 2
          %s205 = scalar_select %p204, %s21, 2
          %s206 = scalar_lea.vmem %s2, %s205
        $region28: #{attention_forward.3} parent=19 // pred_fallthru
          _
      $region20: #{attention_forward.3} parent=5 // pred_fallthru
        _
      %p207 = scmp.le.s32.totalorder 1, %s13
      %p208 = scmp.lt.s32.totalorder %s13, 4
      %p209 = pnand %p207, %p208
      %p210 = pneg %p209
      // Predicated region
      $region29: #{attention_forward.3} parent=5 // pred_check
        _
      $region30: #{attention_forward.3} parent=5 // pred_check_branch
        %212 = sbr.rel (%p209) target = $region32
      $region31: #{attention_forward.3} parent=5 // pred_region
        %s213 = ssub.s32 %s13, 1
        // Predicated region
        $region33: #{attention_forward.3} parent=31 // pred_check
          %p214 = pneg %p60
        $region34: #{attention_forward.3} parent=31 // pred_check_branch
          %216 = sbr.rel (%p214) target = $region36
        $region35: #{attention_forward.3} parent=31 // pred_region
          %217 = dma.done [#allocation4], 4096
        $region36: #{attention_forward.3} parent=31 // pred_fallthru
          _
        %s218 = sand.u32 %s75, 1
        %s219 = scalar_lea.sflag [#allocation6], %s218
        %s220 = sand.u32 %s75, 1
        %s221 = smul.addr %s220, 128
        %s222 = scalar_lea.vmem [#allocation5], %s221
        // Predicated region
        $region37: #{attention_forward.3} parent=31 // pred_check
          %p223 = pneg %p88
        $region38: #{attention_forward.3} parent=31 // pred_check_branch
          %225 = sbr.rel (%p223) target = $region40
        $region39: #{attention_forward.3} parent=31 // pred_region
          %226 = dma.done %s219, 2048
        $region40: #{attention_forward.3} parent=31 // pred_fallthru
          _
        %p227 = pneg %p60
        %p228 = pneg %p57
        %s229 = sand.u32 %s75, 1
        %s230 = scalar_lea.sflag [#allocation6], %s229
        %s231 = sand.u32 %s75, 1
        %s232 = smul.addr %s231, 128
        %s233 = scalar_lea.vmem [#allocation5], %s232
        %p234 = pneg %p88
        %p235 = pneg %p85
        %p236 = scmp.lt.s32.totalorder %s24, 2
        %s237 = scalar_select %p236, %s24, 2
        %s238 = scalar_lea.vmem %s2, %s237
        %p239 = pneg %p114
        %p240 = pneg %p111
        %p241 = pneg %p142
        %p242 = pneg %p139
        %s243 = sand.u32 %s129, 1
        %s244 = sand.u32 %s129, 1
        %s245 = smul.addr %s244, 256
        %s246 = scalar_lea.vmem [#allocation7], %s245
        %s247 = smul.u32 32, %s23
        %s248 = smul.u32 16, %s25
        %p249 = scmp.lt.s32.totalorder %s24, 2
        %s250 = scalar_select %p249, %s24, 2
        %s251 = scalar_lea.vmem %s2, %s250
        %s252 = smul.u32 32, %s23
        %p253 = scmp.eq.s32.totalorder %s25, 0
        // Predicated region
        $region41: #{attention_forward.3} parent=31 // pred_check
          %p254 = pneg %p253
        $region42: #{attention_forward.3} parent=31 // pred_check_branch
          %256 = sbr.rel (%p254) target = $region44
        $region43: #{attention_forward.3} parent=31 // pred_region
          %257 = vst [vmem:[#allocation2] sm:$0xff] 0.0
          %258 = vst [vmem:[#allocation2 + $0x8] sm:$0xff] 0.0
          %259 = vst [vmem:[#allocation2 + $0x10] sm:$0xff] 0.0
          %260 = vst [vmem:[#allocation2 + $0x18] sm:$0xff] 0.0
          %261 = vst [vmem:[#allocation2 + $0x20] sm:$0xff] 0.0
          %262 = vst [vmem:[#allocation2 + $0x28] sm:$0xff] 0.0
          %263 = vst [vmem:[#allocation2 + $0x30] sm:$0xff] 0.0
          %264 = vst [vmem:[#allocation2 + $0x38] sm:$0xff] 0.0
          %265 = vst [vmem:[#allocation2 + $0x40] sm:$0xff] 0.0
          %266 = vst [vmem:[#allocation2 + $0x48] sm:$0xff] 0.0
          %267 = vst [vmem:[#allocation2 + $0x50] sm:$0xff] 0.0
          %268 = vst [vmem:[#allocation2 + $0x58] sm:$0xff] 0.0
          %269 = vst [vmem:[#allocation2 + $0x60] sm:$0xff] 0.0
          %270 = vst [vmem:[#allocation2 + $0x68] sm:$0xff] 0.0
          %271 = vst [vmem:[#allocation2 + $0x70] sm:$0xff] 0.0
          %272 = vst [vmem:[#allocation2 + $0x78] sm:$0xff] 0.0
          %273 = vst [vmem:[#allocation2 + $0x80] sm:$0xff] 0.0
          %274 = vst [vmem:[#allocation2 + $0x88] sm:$0xff] 0.0
          %275 = vst [vmem:[#allocation2 + $0x90] sm:$0xff] 0.0
          %276 = vst [vmem:[#allocation2 + $0x98] sm:$0xff] 0.0
          %277 = vst [vmem:[#allocation2 + $0xa0] sm:$0xff] 0.0
          %278 = vst [vmem:[#allocation2 + $0xa8] sm:$0xff] 0.0
          %279 = vst [vmem:[#allocation2 + $0xb0] sm:$0xff] 0.0
          %280 = vst [vmem:[#allocation2 + $0xb8] sm:$0xff] 0.0
          %281 = vst [vmem:[#allocation2 + $0xc0] sm:$0xff] 0.0
          %282 = vst [vmem:[#allocation2 + $0xc8] sm:$0xff] 0.0
          %283 = vst [vmem:[#allocation2 + $0xd0] sm:$0xff] 0.0
          %284 = vst [vmem:[#allocation2 + $0xd8] sm:$0xff] 0.0
          %285 = vst [vmem:[#allocation2 + $0xe0] sm:$0xff] 0.0
          %286 = vst [vmem:[#allocation2 + $0xe8] sm:$0xff] 0.0
          %287 = vst [vmem:[#allocation2 + $0xf0] sm:$0xff] 0.0
          %288 = vst [vmem:[#allocation2 + $0xf8] sm:$0xff] 0.0
        $region44: #{attention_forward.3} parent=31 // pred_fallthru
          _
        %v289 = vld [vmem:[#allocation2] sm:$0xff]
        %v290 = vld [vmem:[#allocation2 + $0x8] sm:$0xff]
        %v291 = vld [vmem:[#allocation2 + $0x10] sm:$0xff]
        %v292 = vld [vmem:[#allocation2 + $0x18] sm:$0xff]
        %v293 = vld [vmem:[#allocation2 + $0x20] sm:$0xff]
        %v294 = vld [vmem:[#allocation2 + $0x28] sm:$0xff]
        %v295 = vld [vmem:[#allocation2 + $0x30] sm:$0xff]
        %v296 = vld [vmem:[#allocation2 + $0x38] sm:$0xff]
        %v297 = vld [vmem:[#allocation2 + $0x40] sm:$0xff]
        %v298 = vld [vmem:[#allocation2 + $0x48] sm:$0xff]
        %v299 = vld [vmem:[#allocation2 + $0x50] sm:$0xff]
        %v300 = vld [vmem:[#allocation2 + $0x58] sm:$0xff]
        %v301 = vld [vmem:[#allocation2 + $0x60] sm:$0xff]
        %v302 = vld [vmem:[#allocation2 + $0x68] sm:$0xff]
        %v303 = vld [vmem:[#allocation2 + $0x70] sm:$0xff]
        %v304 = vld [vmem:[#allocation2 + $0x78] sm:$0xff]
        %v305 = vld [vmem:[#allocation2 + $0x80] sm:$0xff]
        %v306 = vld [vmem:[#allocation2 + $0x88] sm:$0xff]
        %v307 = vld [vmem:[#allocation2 + $0x90] sm:$0xff]
        %v308 = vld [vmem:[#allocation2 + $0x98] sm:$0xff]
        %v309 = vld [vmem:[#allocation2 + $0xa0] sm:$0xff]
        %v310 = vld [vmem:[#allocation2 + $0xa8] sm:$0xff]
        %v311 = vld [vmem:[#allocation2 + $0xb0] sm:$0xff]
        %v312 = vld [vmem:[#allocation2 + $0xb8] sm:$0xff]
        %v313 = vld [vmem:[#allocation2 + $0xc0] sm:$0xff]
        %v314 = vld [vmem:[#allocation2 + $0xc8] sm:$0xff]
        %v315 = vld [vmem:[#allocation2 + $0xd0] sm:$0xff]
        %v316 = vld [vmem:[#allocation2 + $0xd8] sm:$0xff]
        %v317 = vld [vmem:[#allocation2 + $0xe0] sm:$0xff]
        %v318 = vld [vmem:[#allocation2 + $0xe8] sm:$0xff]
        %v319 = vld [vmem:[#allocation2 + $0xf0] sm:$0xff]
        %v320 = vld [vmem:[#allocation2 + $0xf8] sm:$0xff]
        %v321 = vld [vmem:[#allocation3] sm:$0xff]
        %v322 = vld [vmem:[#allocation3 + $0x8] sm:$0xff]
        %v323 = vld [vmem:[#allocation3 + $0x10] sm:$0xff]
        %v324 = vld [vmem:[#allocation3 + $0x18] sm:$0xff]
        %v325 = vld [vmem:[#allocation3 + $0x20] sm:$0xff]
        %v326 = vld [vmem:[#allocation3 + $0x28] sm:$0xff]
        %v327 = vld [vmem:[#allocation3 + $0x30] sm:$0xff]
        %v328 = vld [vmem:[#allocation3 + $0x38] sm:$0xff]
        %v329 = vld [vmem:[#allocation3 + $0x40] sm:$0xff]
        %v330 = vld [vmem:[#allocation3 + $0x48] sm:$0xff]
        %v331 = vld [vmem:[#allocation3 + $0x50] sm:$0xff]
        %v332 = vld [vmem:[#allocation3 + $0x58] sm:$0xff]
        %v333 = vld [vmem:[#allocation3 + $0x60] sm:$0xff]
        %v334 = vld [vmem:[#allocation3 + $0x68] sm:$0xff]
        %v335 = vld [vmem:[#allocation3 + $0x70] sm:$0xff]
        %v336 = vld [vmem:[#allocation3 + $0x78] sm:$0xff]
        %v337 = vld [vmem:[#allocation3 + $0x80] sm:$0xff]
        %v338 = vld [vmem:[#allocation3 + $0x88] sm:$0xff]
        %v339 = vld [vmem:[#allocation3 + $0x90] sm:$0xff]
        %v340 = vld [vmem:[#allocation3 + $0x98] sm:$0xff]
        %v341 = vld [vmem:[#allocation3 + $0xa0] sm:$0xff]
        %v342 = vld [vmem:[#allocation3 + $0xa8] sm:$0xff]
        %v343 = vld [vmem:[#allocation3 + $0xb0] sm:$0xff]
        %v344 = vld [vmem:[#allocation3 + $0xb8] sm:$0xff]
        %v345 = vld [vmem:[#allocation3 + $0xc0] sm:$0xff]
        %v346 = vld [vmem:[#allocation3 + $0xc8] sm:$0xff]
        %v347 = vld [vmem:[#allocation3 + $0xd0] sm:$0xff]
        %v348 = vld [vmem:[#allocation3 + $0xd8] sm:$0xff]
        %v349 = vld [vmem:[#allocation3 + $0xe0] sm:$0xff]
        %v350 = vld [vmem:[#allocation3 + $0xe8] sm:$0xff]
        %v351 = vld [vmem:[#allocation3 + $0xf0] sm:$0xff]
        %v352 = vld [vmem:[#allocation3 + $0xf8] sm:$0xff]
        %v353 = vld [vmem:[%s222] sm:$0xff]
        %v354 = vld [vmem:[%s222 + $0x8] sm:$0xff]
        %v355 = vld [vmem:[%s222 + $0x10] sm:$0xff]
        %v356 = vld [vmem:[%s222 + $0x18] sm:$0xff]
        %v357 = vld [vmem:[%s222 + $0x20] sm:$0xff]
        %v358 = vld [vmem:[%s222 + $0x28] sm:$0xff]
        %v359 = vld [vmem:[%s222 + $0x30] sm:$0xff]
        %v360 = vld [vmem:[%s222 + $0x38] sm:$0xff]
        %v361 = vld [vmem:[%s222 + $0x40] sm:$0xff]
        %v362 = vld [vmem:[%s222 + $0x48] sm:$0xff]
        %v363 = vld [vmem:[%s222 + $0x50] sm:$0xff]
        %v364 = vld [vmem:[%s222 + $0x58] sm:$0xff]
        %v365 = vld [vmem:[%s222 + $0x60] sm:$0xff]
        %v366 = vld [vmem:[%s222 + $0x68] sm:$0xff]
        %v367 = vld [vmem:[%s222 + $0x70] sm:$0xff]
        %v368 = vld [vmem:[%s222 + $0x78] sm:$0xff]
        %369 = vmatprep.subr.mxu0 0.0
        %370 = vmatpush1.msra.mxu0 %v353
        %371 = vmatprep.subr.mxu0 0.0
        %372 = vmatpush1.msra.mxu0 %v354
        %373 = vmatprep.subr.mxu0 0.0
        %374 = vmatpush1.msra.mxu0 %v355
        %375 = vmatprep.subr.mxu0 0.0
        %376 = vmatpush1.msra.mxu0 %v356
        %377 = vmatprep.subr.mxu0 0.0
        %378 = vmatpush1.msra.mxu0 %v357
        %379 = vmatprep.subr.mxu0 0.0
        %380 = vmatpush1.msra.mxu0 %v358
        %381 = vmatprep.subr.mxu0 0.0
        %382 = vmatpush1.msra.mxu0 %v359
        %383 = vmatprep.subr.mxu0 0.0
        %384 = vmatpush1.msra.mxu0 %v360
        %385 = vmatprep.subr.mxu0 0.0
        %386 = vmatpush1.msra.mxu0 %v361
        %387 = vmatprep.subr.mxu0 0.0
        %388 = vmatpush1.msra.mxu0 %v362
        %389 = vmatprep.subr.mxu0 0.0
        %390 = vmatpush1.msra.mxu0 %v363
        %391 = vmatprep.subr.mxu0 0.0
        %392 = vmatpush1.msra.mxu0 %v364
        %393 = vmatprep.subr.mxu0 0.0
        %394 = vmatpush1.msra.mxu0 %v365
        %395 = vmatprep.subr.mxu0 0.0
        %396 = vmatpush1.msra.mxu0 %v366
        %397 = vmatprep.subr.mxu0 0.0
        %398 = vmatpush1.msra.mxu0 %v367
        %399 = vmatprep.subr.mxu0 0.0
        %400 = vmatpush1.msra.mxu0 %v368
        %401 = vmatprep.subr.mxu0 0.0
        %402 = vmatpush1.msra.mxu0 0.0
        %403 = vmatprep.subr.mxu0 0.0
        %404 = vmatpush1.msra.mxu0 0.0
        %405 = vmatprep.subr.mxu0 0.0
        %406 = vmatpush1.msra.mxu0 0.0
        %407 = vmatprep.subr.mxu0 0.0
        %408 = vmatpush1.msra.mxu0 0.0
        %409 = vmatprep.subr.mxu0 0.0
        %410 = vmatpush1.msra.mxu0 0.0
        %411 = vmatprep.subr.mxu0 0.0
        %412 = vmatpush1.msra.mxu0 0.0
        %413 = vmatprep.subr.mxu0 0.0
        %414 = vmatpush1.msra.mxu0 0.0
        %415 = vmatprep.subr.mxu0 0.0
        %416 = vmatpush1.msra.mxu0 0.0
        %417 = vmatprep.subr.mxu0 0.0
        %418 = vmatpush1.msra.mxu0 0.0
        %419 = vmatprep.subr.mxu0 0.0
        %420 = vmatpush1.msra.mxu0 0.0
        %421 = vmatprep.subr.mxu0 0.0
        %422 = vmatpush1.msra.mxu0 0.0
        %423 = vmatprep.subr.mxu0 0.0
        %424 = vmatpush1.msra.mxu0 0.0
        %425 = vmatprep.subr.mxu0 0.0
        %426 = vmatpush1.msra.mxu0 0.0
        %427 = vmatprep.subr.mxu0 0.0
        %428 = vmatpush1.msra.mxu0 0.0
        %429 = vmatprep.subr.mxu0 0.0
        %430 = vmatpush1.msra.mxu0 0.0
        %431 = vmatprep.subr.mxu0 0.0
        %432 = vmatpush1.msra.mxu0 0.0
        %433 = vmatprep.mubr.f32.mxu0 0.0
        %434 = vmatmul.mubr.f32.gmra.mrb[0].mxu0 %v321
        %v435 = vpop.f32.mrb[0].mxu0
        %v436 = vadd.f32 0.0, %v435
        %v437 = vpop.f32.mrb[0].mxu0
        %438 = vmatprep.mubr.f32.mxu0 0.0
        %439 = vmatmul.mubr.f32.gmra.mrb[0].mxu0 %v322
        %v440 = vpop.f32.mrb[0].mxu0
        %v441 = vadd.f32 0.0, %v440
        %v442 = vpop.f32.mrb[0].mxu0
        %443 = vmatprep.mubr.f32.mxu0 0.0
        %444 = vmatmul.mubr.f32.gmra.mrb[0].mxu0 %v323
        %v445 = vpop.f32.mrb[0].mxu0
        %v446 = vadd.f32 0.0, %v445
        %v447 = vpop.f32.mrb[0].mxu0
        %448 = vmatprep.mubr.f32.mxu0 0.0
        %449 = vmatmul.mubr.f32.gmra.mrb[0].mxu0 %v324
        %v450 = vpop.f32.mrb[0].mxu0
        %v451 = vadd.f32 0.0, %v450
        %v452 = vpop.f32.mrb[0].mxu0
        %453 = vmatprep.mubr.f32.mxu0 0.0
        %454 = vmatmul.mubr.f32.gmra.mrb[0].mxu0 %v325
        %v455 = vpop.f32.mrb[0].mxu0
        %v456 = vadd.f32 0.0, %v455
        %v457 = vpop.f32.mrb[0].mxu0
        %458 = vmatprep.mubr.f32.mxu0 0.0
        %459 = vmatmul.mubr.f32.gmra.mrb[0].mxu0 %v326
        %v460 = vpop.f32.mrb[0].mxu0
        %v461 = vadd.f32 0.0, %v460
        %v462 = vpop.f32.mrb[0].mxu0
        %463 = vmatprep.mubr.f32.mxu0 0.0
        %464 = vmatmul.mubr.f32.gmra.mrb[0].mxu0 %v327
        %v465 = vpop.f32.mrb[0].mxu0
        %v466 = vadd.f32 0.0, %v465
        %v467 = vpop.f32.mrb[0].mxu0
        %468 = vmatprep.mubr.f32.mxu0 0.0
        %469 = vmatmul.mubr.f32.gmra.mrb[0].mxu0 %v328
        %v470 = vpop.f32.mrb[0].mxu0
        %v471 = vadd.f32 0.0, %v470
        %v472 = vpop.f32.mrb[0].mxu0
        %473 = vmatprep.mubr.f32.mxu0 0.0
        %474 = vmatmul.mubr.f32.gmra.mrb[0].mxu0 %v329
        %v475 = vpop.f32.mrb[0].mxu0
        %v476 = vadd.f32 0.0, %v475
        %v477 = vpop.f32.mrb[0].mxu0
        %478 = vmatprep.mubr.f32.mxu0 0.0
        %479 = vmatmul.mubr.f32.gmra.mrb[0].mxu0 %v330
        %v480 = vpop.f32.mrb[0].mxu0
        %v481 = vadd.f32 0.0, %v480
        %v482 = vpop.f32.mrb[0].mxu0
        %483 = vmatprep.mubr.f32.mxu0 0.0
        %484 = vmatmul.mubr.f32.gmra.mrb[0].mxu0 %v331
        %v485 = vpop.f32.mrb[0].mxu0
        %v486 = vadd.f32 0.0, %v485
        %v487 = vpop.f32.mrb[0].mxu0
        %488 = vmatprep.mubr.f32.mxu0 0.0
        %489 = vmatmul.mubr.f32.gmra.mrb[0].mxu0 %v332
        %v490 = vpop.f32.mrb[0].mxu0
        %v491 = vadd.f32 0.0, %v490
        %v492 = vpop.f32.mrb[0].mxu0
        %493 = vmatprep.mubr.f32.mxu0 0.0
        %494 = vmatmul.mubr.f32.gmra.mrb[0].mxu0 %v333
        %v495 = vpop.f32.mrb[0].mxu0
        %v496 = vadd.f32 0.0, %v495
        %v497 = vpop.f32.mrb[0].mxu0
        %498 = vmatprep.mubr.f32.mxu0 0.0
        %499 = vmatmul.mubr.f32.gmra.mrb[0].mxu0 %v334
        %v500 = vpop.f32.mrb[0].mxu0
        %v501 = vadd.f32 0.0, %v500
        %v502 = vpop.f32.mrb[0].mxu0
        %503 = vmatprep.mubr.f32.mxu0 0.0
        %504 = vmatmul.mubr.f32.gmra.mrb[0].mxu0 %v335
        %v505 = vpop.f32.mrb[0].mxu0
        %v506 = vadd.f32 0.0, %v505
        %v507 = vpop.f32.mrb[0].mxu0
        %508 = vmatprep.mubr.f32.mxu0 0.0
        %509 = vmatmul.mubr.f32.gmra.mrb[0].mxu0 %v336
        %v510 = vpop.f32.mrb[0].mxu0
        %v511 = vadd.f32 0.0, %v510
        %v512 = vpop.f32.mrb[0].mxu0
        %513 = vmatprep.mubr.f32.mxu0 0.0
        %514 = vmatmul.mubr.f32.gmra.mrb[0].mxu0 %v337
        %v515 = vpop.f32.mrb[0].mxu0
        %v516 = vadd.f32 0.0, %v515
        %v517 = vpop.f32.mrb[0].mxu0
        %518 = vmatprep.mubr.f32.mxu0 0.0
        %519 = vmatmul.mubr.f32.gmra.mrb[0].mxu0 %v338
        %v520 = vpop.f32.mrb[0].mxu0
        %v521 = vadd.f32 0.0, %v520
        %v522 = vpop.f32.mrb[0].mxu0
        %523 = vmatprep.mubr.f32.mxu0 0.0
        %524 = vmatmul.mubr.f32.gmra.mrb[0].mxu0 %v339
        %v525 = vpop.f32.mrb[0].mxu0
        %v526 = vadd.f32 0.0, %v525
        %v527 = vpop.f32.mrb[0].mxu0
        %528 = vmatprep.mubr.f32.mxu0 0.0
        %529 = vmatmul.mubr.f32.gmra.mrb[0].mxu0 %v340
        %v530 = vpop.f32.mrb[0].mxu0
        %v531 = vadd.f32 0.0, %v530
        %v532 = vpop.f32.mrb[0].mxu0
        %533 = vmatprep.mubr.f32.mxu0 0.0
        %534 = vmatmul.mubr.f32.gmra.mrb[0].mxu0 %v341
        %v535 = vpop.f32.mrb[0].mxu0
        %v536 = vadd.f32 0.0, %v535
        %v537 = vpop.f32.mrb[0].mxu0
        %538 = vmatprep.mubr.f32.mxu0 0.0
        %539 = vmatmul.mubr.f32.gmra.mrb[0].mxu0 %v342
        %v540 = vpop.f32.mrb[0].mxu0
        %v541 = vadd.f32 0.0, %v540
        %v542 = vpop.f32.mrb[0].mxu0
        %543 = vmatprep.mubr.f32.mxu0 0.0
        %544 = vmatmul.mubr.f32.gmra.mrb[0].mxu0 %v343
        %v545 = vpop.f32.mrb[0].mxu0
        %v546 = vadd.f32 0.0, %v545
        %v547 = vpop.f32.mrb[0].mxu0
        %548 = vmatprep.mubr.f32.mxu0 0.0
        %549 = vmatmul.mubr.f32.gmra.mrb[0].mxu0 %v344
        %v550 = vpop.f32.mrb[0].mxu0
        %v551 = vadd.f32 0.0, %v550
        %v552 = vpop.f32.mrb[0].mxu0
        %553 = vmatprep.mubr.f32.mxu0 0.0
        %554 = vmatmul.mubr.f32.gmra.mrb[0].mxu0 %v345
        %v555 = vpop.f32.mrb[0].mxu0
        %v556 = vadd.f32 0.0, %v555
        %v557 = vpop.f32.mrb[0].mxu0
        %558 = vmatprep.mubr.f32.mxu0 0.0
        %559 = vmatmul.mubr.f32.gmra.mrb[0].mxu0 %v346
        %v560 = vpop.f32.mrb[0].mxu0
        %v561 = vadd.f32 0.0, %v560
        %v562 = vpop.f32.mrb[0].mxu0
        %563 = vmatprep.mubr.f32.mxu0 0.0
        %564 = vmatmul.mubr.f32.gmra.mrb[0].mxu0 %v347
        %v565 = vpop.f32.mrb[0].mxu0
        %v566 = vadd.f32 0.0, %v565
        %v567 = vpop.f32.mrb[0].mxu0
        %568 = vmatprep.mubr.f32.mxu0 0.0
        %569 = vmatmul.mubr.f32.gmra.mrb[0].mxu0 %v348
        %v570 = vpop.f32.mrb[0].mxu0
        %v571 = vadd.f32 0.0, %v570
        %v572 = vpop.f32.mrb[0].mxu0
        %573 = vmatprep.mubr.f32.mxu0 0.0
        %574 = vmatmul.mubr.f32.gmra.mrb[0].mxu0 %v349
        %v575 = vpop.f32.mrb[0].mxu0
        %v576 = vadd.f32 0.0, %v575
        %v577 = vpop.f32.mrb[0].mxu0
        %578 = vmatprep.mubr.f32.mxu0 0.0
        %579 = vmatmul.mubr.f32.gmra.mrb[0].mxu0 %v350
        %v580 = vpop.f32.mrb[0].mxu0
        %v581 = vadd.f32 0.0, %v580
        %v582 = vpop.f32.mrb[0].mxu0
        %583 = vmatprep.mubr.f32.mxu0 0.0
        %584 = vmatmul.mubr.f32.gmra.mrb[0].mxu0 %v351
        %v585 = vpop.f32.mrb[0].mxu0
        %v586 = vadd.f32 0.0, %v585
        %v587 = vpop.f32.mrb[0].mxu0
        %588 = vmatprep.mubr.f32.mxu0 0.0
        %589 = vmatmul.mubr.f32.gmra.mrb[0].mxu0 %v352
        %v590 = vpop.f32.mrb[0].mxu0
        %v591 = vadd.f32 0.0, %v590
        %v592 = vpop.f32.mrb[0].mxu0
        %593 = vdwg.mxu0
        %v594 = vadd.f32 %v289, %v436
        %v595 = vadd.f32 %v290, %v441
        %v596 = vadd.f32 %v291, %v446
        %v597 = vadd.f32 %v292, %v451
        %v598 = vadd.f32 %v293, %v456
        %v599 = vadd.f32 %v294, %v461
        %v600 = vadd.f32 %v295, %v466
        %v601 = vadd.f32 %v296, %v471
        %v602 = vadd.f32 %v297, %v476
        %v603 = vadd.f32 %v298, %v481
        %v604 = vadd.f32 %v299, %v486
        %v605 = vadd.f32 %v300, %v491
        %v606 = vadd.f32 %v301, %v496
        %v607 = vadd.f32 %v302, %v501
        %v608 = vadd.f32 %v303, %v506
        %v609 = vadd.f32 %v304, %v511
        %v610 = vadd.f32 %v305, %v516
        %v611 = vadd.f32 %v306, %v521
        %v612 = vadd.f32 %v307, %v526
        %v613 = vadd.f32 %v308, %v531
        %v614 = vadd.f32 %v309, %v536
        %v615 = vadd.f32 %v310, %v541
        %v616 = vadd.f32 %v311, %v546
        %v617 = vadd.f32 %v312, %v551
        %v618 = vadd.f32 %v313, %v556
        %v619 = vadd.f32 %v314, %v561
        %v620 = vadd.f32 %v315, %v566
        %v621 = vadd.f32 %v316, %v571
        %v622 = vadd.f32 %v317, %v576
        %v623 = vadd.f32 %v318, %v581
        %v624 = vadd.f32 %v319, %v586
        %v625 = vadd.f32 %v320, %v591
        %626 = vst [vmem:[#allocation2] sm:$0xff] %v594
        %627 = vst [vmem:[#allocation2 + $0x8] sm:$0xff] %v595
        %628 = vst [vmem:[#allocation2 + $0x10] sm:$0xff] %v596
        %629 = vst [vmem:[#allocation2 + $0x18] sm:$0xff] %v597
        %630 = vst [vmem:[#allocation2 + $0x20] sm:$0xff] %v598
        %631 = vst [vmem:[#allocation2 + $0x28] sm:$0xff] %v599
        %632 = vst [vmem:[#allocation2 + $0x30] sm:$0xff] %v600
        %633 = vst [vmem:[#allocation2 + $0x38] sm:$0xff] %v601
        %634 = vst [vmem:[#allocation2 + $0x40] sm:$0xff] %v602
        %635 = vst [vmem:[#allocation2 + $0x48] sm:$0xff] %v603
        %636 = vst [vmem:[#allocation2 + $0x50] sm:$0xff] %v604
        %637 = vst [vmem:[#allocation2 + $0x58] sm:$0xff] %v605
        %638 = vst [vmem:[#allocation2 + $0x60] sm:$0xff] %v606
        %639 = vst [vmem:[#allocation2 + $0x68] sm:$0xff] %v607
        %640 = vst [vmem:[#allocation2 + $0x70] sm:$0xff] %v608
        %641 = vst [vmem:[#allocation2 + $0x78] sm:$0xff] %v609
        %642 = vst [vmem:[#allocation2 + $0x80] sm:$0xff] %v610
        %643 = vst [vmem:[#allocation2 + $0x88] sm:$0xff] %v611
        %644 = vst [vmem:[#allocation2 + $0x90] sm:$0xff] %v612
        %645 = vst [vmem:[#allocation2 + $0x98] sm:$0xff] %v613
        %646 = vst [vmem:[#allocation2 + $0xa0] sm:$0xff] %v614
        %647 = vst [vmem:[#allocation2 + $0xa8] sm:$0xff] %v615
        %648 = vst [vmem:[#allocation2 + $0xb0] sm:$0xff] %v616
        %649 = vst [vmem:[#allocation2 + $0xb8] sm:$0xff] %v617
        %650 = vst [vmem:[#allocation2 + $0xc0] sm:$0xff] %v618
        %651 = vst [vmem:[#allocation2 + $0xc8] sm:$0xff] %v619
        %652 = vst [vmem:[#allocation2 + $0xd0] sm:$0xff] %v620
        %653 = vst [vmem:[#allocation2 + $0xd8] sm:$0xff] %v621
        %654 = vst [vmem:[#allocation2 + $0xe0] sm:$0xff] %v622
        %655 = vst [vmem:[#allocation2 + $0xe8] sm:$0xff] %v623
        %656 = vst [vmem:[#allocation2 + $0xf0] sm:$0xff] %v624
        %657 = vst [vmem:[#allocation2 + $0xf8] sm:$0xff] %v625
        // Predicated region
        $region45: #{attention_forward.3} parent=31 // pred_check
          %p658 = pneg %p253
        $region46: #{attention_forward.3} parent=31 // pred_check_branch
          %660 = sbr.rel (%p658) target = $region48
        $region47: #{attention_forward.3} parent=31 // pred_region
          %v661 = vld [vmem:[#allocation2] sm:$0xff]
          %v662 = vld [vmem:[#allocation2 + $0x8] sm:$0xff]
          %v663 = vld [vmem:[#allocation2 + $0x10] sm:$0xff]
          %v664 = vld [vmem:[#allocation2 + $0x18] sm:$0xff]
          %v665 = vld [vmem:[#allocation2 + $0x20] sm:$0xff]
          %v666 = vld [vmem:[#allocation2 + $0x28] sm:$0xff]
          %v667 = vld [vmem:[#allocation2 + $0x30] sm:$0xff]
          %v668 = vld [vmem:[#allocation2 + $0x38] sm:$0xff]
          %v669 = vld [vmem:[#allocation2 + $0x40] sm:$0xff]
          %v670 = vld [vmem:[#allocation2 + $0x48] sm:$0xff]
          %v671 = vld [vmem:[#allocation2 + $0x50] sm:$0xff]
          %v672 = vld [vmem:[#allocation2 + $0x58] sm:$0xff]
          %v673 = vld [vmem:[#allocation2 + $0x60] sm:$0xff]
          %v674 = vld [vmem:[#allocation2 + $0x68] sm:$0xff]
          %v675 = vld [vmem:[#allocation2 + $0x70] sm:$0xff]
          %v676 = vld [vmem:[#allocation2 + $0x78] sm:$0xff]
          %v677 = vld [vmem:[#allocation2 + $0x80] sm:$0xff]
          %v678 = vld [vmem:[#allocation2 + $0x88] sm:$0xff]
          %v679 = vld [vmem:[#allocation2 + $0x90] sm:$0xff]
          %v680 = vld [vmem:[#allocation2 + $0x98] sm:$0xff]
          %v681 = vld [vmem:[#allocation2 + $0xa0] sm:$0xff]
          %v682 = vld [vmem:[#allocation2 + $0xa8] sm:$0xff]
          %v683 = vld [vmem:[#allocation2 + $0xb0] sm:$0xff]
          %v684 = vld [vmem:[#allocation2 + $0xb8] sm:$0xff]
          %v685 = vld [vmem:[#allocation2 + $0xc0] sm:$0xff]
          %v686 = vld [vmem:[#allocation2 + $0xc8] sm:$0xff]
          %v687 = vld [vmem:[#allocation2 + $0xd0] sm:$0xff]
          %v688 = vld [vmem:[#allocation2 + $0xd8] sm:$0xff]
          %v689 = vld [vmem:[#allocation2 + $0xe0] sm:$0xff]
          %v690 = vld [vmem:[#allocation2 + $0xe8] sm:$0xff]
          %v691 = vld [vmem:[#allocation2 + $0xf0] sm:$0xff]
          %v692 = vld [vmem:[#allocation2 + $0xf8] sm:$0xff]
          %v693 = vld [vmem:[%s251] sm:$0x1]
          %v695 = vlaneseq
          %v696 = vshrl.u32 %v695, 7
          %v697 = vsub.s32 0, %v696
          %v698 = vrot.slane %v693, %v697
          %v700 = vadd.f32 %v661, %v698
          %v701 = vadd.f32 %v662, %v698
          %v702 = vadd.f32 %v663, %v698
          %v703 = vadd.f32 %v664, %v698
          %v704 = vadd.f32 %v665, %v698
          %v705 = vadd.f32 %v666, %v698
          %v706 = vadd.f32 %v667, %v698
          %v707 = vadd.f32 %v668, %v698
          %v708 = vadd.f32 %v669, %v698
          %v709 = vadd.f32 %v670, %v698
          %v710 = vadd.f32 %v671, %v698
          %v711 = vadd.f32 %v672, %v698
          %v712 = vadd.f32 %v673, %v698
          %v713 = vadd.f32 %v674, %v698
          %v714 = vadd.f32 %v675, %v698
          %v715 = vadd.f32 %v676, %v698
          %v716 = vadd.f32 %v677, %v698
          %v717 = vadd.f32 %v678, %v698
          %v718 = vadd.f32 %v679, %v698
          %v719 = vadd.f32 %v680, %v698
          %v720 = vadd.f32 %v681, %v698
          %v721 = vadd.f32 %v682, %v698
          %v722 = vadd.f32 %v683, %v698
          %v723 = vadd.f32 %v684, %v698
          %v724 = vadd.f32 %v685, %v698
          %v725 = vadd.f32 %v686, %v698
          %v726 = vadd.f32 %v687, %v698
          %v727 = vadd.f32 %v688, %v698
          %v728 = vadd.f32 %v689, %v698
          %v729 = vadd.f32 %v690, %v698
          %v730 = vadd.f32 %v691, %v698
          %v731 = vadd.f32 %v692, %v698
          %732 = vst [vmem:[%s246] sm:$0xff] %v700
          %733 = vst [vmem:[%s246 + $0x8] sm:$0xff] %v701
          %734 = vst [vmem:[%s246 + $0x10] sm:$0xff] %v702
          %735 = vst [vmem:[%s246 + $0x18] sm:$0xff] %v703
          %736 = vst [vmem:[%s246 + $0x20] sm:$0xff] %v704
          %737 = vst [vmem:[%s246 + $0x28] sm:$0xff] %v705
          %738 = vst [vmem:[%s246 + $0x30] sm:$0xff] %v706
          %739 = vst [vmem:[%s246 + $0x38] sm:$0xff] %v707
          %740 = vst [vmem:[%s246 + $0x40] sm:$0xff] %v708
          %741 = vst [vmem:[%s246 + $0x48] sm:$0xff] %v709
          %742 = vst [vmem:[%s246 + $0x50] sm:$0xff] %v710
          %743 = vst [vmem:[%s246 + $0x58] sm:$0xff] %v711
          %744 = vst [vmem:[%s246 + $0x60] sm:$0xff] %v712
          %745 = vst [vmem:[%s246 + $0x68] sm:$0xff] %v713
          %746 = vst [vmem:[%s246 + $0x70] sm:$0xff] %v714
          %747 = vst [vmem:[%s246 + $0x78] sm:$0xff] %v715
          %748 = vst [vmem:[%s246 + $0x80] sm:$0xff] %v716
          %749 = vst [vmem:[%s246 + $0x88] sm:$0xff] %v717
          %750 = vst [vmem:[%s246 + $0x90] sm:$0xff] %v718
          %751 = vst [vmem:[%s246 + $0x98] sm:$0xff] %v719
          %752 = vst [vmem:[%s246 + $0xa0] sm:$0xff] %v720
          %753 = vst [vmem:[%s246 + $0xa8] sm:$0xff] %v721
          %754 = vst [vmem:[%s246 + $0xb0] sm:$0xff] %v722
          %755 = vst [vmem:[%s246 + $0xb8] sm:$0xff] %v723
          %756 = vst [vmem:[%s246 + $0xc0] sm:$0xff] %v724
          %757 = vst [vmem:[%s246 + $0xc8] sm:$0xff] %v725
          %758 = vst [vmem:[%s246 + $0xd0] sm:$0xff] %v726
          %759 = vst [vmem:[%s246 + $0xd8] sm:$0xff] %v727
          %760 = vst [vmem:[%s246 + $0xe0] sm:$0xff] %v728
          %761 = vst [vmem:[%s246 + $0xe8] sm:$0xff] %v729
          %762 = vst [vmem:[%s246 + $0xf0] sm:$0xff] %v730
          %763 = vst [vmem:[%s246 + $0xf8] sm:$0xff] %v731
        $region48: #{attention_forward.3} parent=31 // pred_fallthru
          _
        %s764 = sand.u32 %s129, 1
        %s765 = sand.u32 %s129, 1
        %s766 = smul.addr %s765, 256
        %s767 = scalar_lea.vmem [#allocation7], %s766
        // Predicated region
        $region49: #{attention_forward.3} parent=31 // pred_check
          %p768 = pneg %p139
        $region50: #{attention_forward.3} parent=31 // pred_check_branch
          %770 = sbr.rel (%p768) target = $region52
        $region51: #{attention_forward.3} parent=31 // pred_region
          %s771 = smul.u32 32, %s23
          %s772 = smul.addr %s771, 3
          %s773 = sadd.s32 %s24, %s772
          %s774 = smul.addr %s773, 8
          %s775 = scalar_lea.vmem %s3, %s774
          // Predicated region
          $region53: #{attention_forward.3} parent=51 // pred_check
            _
          $region54: #{attention_forward.3} parent=51 // pred_check_branch
            %777 = sbr.rel (0) target = $region56
          $region55: #{attention_forward.3} parent=51 // pred_region
            // Predicated region
            $region57: #{attention_forward.3} parent=55 // pred_check
              _
            $region58: #{attention_forward.3} parent=55 // pred_check_branch
              %779 = sbr.rel (0) target = $region60
            $region59: #{attention_forward.3} parent=55 // pred_region
              // Predicated region
              $region72: #{attention_forward.3} parent=59 // pred_check
                _
              $region73: #{attention_forward.3} parent=59 // pred_check_branch
                %856 = sbr.rel (0) target = $region75
              $region74: #{attention_forward.3} parent=59 // pred_region
                loop: start=0, step=1, limit=1
                $region76: #{attention_forward.3} parent=74 // loop_pre_header
                  _
                $region77: #{attention_forward.3} parent=74 // loop_header
                  %s858 = sphi 0, %s862
                  %p859 = scmp.ge.s32.totalorder %s858, 1
                  %s863 = sphi %s767, %s767
                  %s864 = sphi %s775, %s775
                $region78: #{attention_forward.3} parent=74 // loop_header_branch
                  %861 = sbr.rel (%p859) target = $region82
                $region79: #{attention_forward.3} parent=74 // loop_body
                  %v865 = vld [vmem:[%s863] sm:$0xff]
                  %866 = vst [vmem:[%s864] sm:$0xff] %v865
                  %v867 = vld [vmem:[%s863 + $0x8] sm:$0xff]
                  %868 = vst [vmem:[%s864 + $0x18] sm:$0xff] %v867
                  %v869 = vld [vmem:[%s863 + $0x10] sm:$0xff]
                  %870 = vst [vmem:[%s864 + $0x30] sm:$0xff] %v869
                  %v871 = vld [vmem:[%s863 + $0x18] sm:$0xff]
                  %872 = vst [vmem:[%s864 + $0x48] sm:$0xff] %v871
                  %v873 = vld [vmem:[%s863 + $0x20] sm:$0xff]
                  %874 = vst [vmem:[%s864 + $0x60] sm:$0xff] %v873
                  %v875 = vld [vmem:[%s863 + $0x28] sm:$0xff]
                  %876 = vst [vmem:[%s864 + $0x78] sm:$0xff] %v875
                  %v877 = vld [vmem:[%s863 + $0x30] sm:$0xff]
                  %878 = vst [vmem:[%s864 + $0x90] sm:$0xff] %v877
                  %v879 = vld [vmem:[%s863 + $0x38] sm:$0xff]
                  %880 = vst [vmem:[%s864 + $0xa8] sm:$0xff] %v879
                  %v881 = vld [vmem:[%s863 + $0x40] sm:$0xff]
                  %882 = vst [vmem:[%s864 + $0xc0] sm:$0xff] %v881
                  %v883 = vld [vmem:[%s863 + $0x48] sm:$0xff]
                  %884 = vst [vmem:[%s864 + $0xd8] sm:$0xff] %v883
                  %v885 = vld [vmem:[%s863 + $0x50] sm:$0xff]
                  %886 = vst [vmem:[%s864 + $0xf0] sm:$0xff] %v885
                  %v887 = vld [vmem:[%s863 + $0x58] sm:$0xff]
                  %888 = vst [vmem:[%s864 + $0x108] sm:$0xff] %v887
                  %v889 = vld [vmem:[%s863 + $0x60] sm:$0xff]
                  %890 = vst [vmem:[%s864 + $0x120] sm:$0xff] %v889
                  %v891 = vld [vmem:[%s863 + $0x68] sm:$0xff]
                  %892 = vst [vmem:[%s864 + $0x138] sm:$0xff] %v891
                  %v893 = vld [vmem:[%s863 + $0x70] sm:$0xff]
                  %894 = vst [vmem:[%s864 + $0x150] sm:$0xff] %v893
                  %v895 = vld [vmem:[%s863 + $0x78] sm:$0xff]
                  %896 = vst [vmem:[%s864 + $0x168] sm:$0xff] %v895
                  %v897 = vld [vmem:[%s863 + $0x80] sm:$0xff]
                  %898 = vst [vmem:[%s864 + $0x180] sm:$0xff] %v897
                  %v899 = vld [vmem:[%s863 + $0x88] sm:$0xff]
                  %900 = vst [vmem:[%s864 + $0x198] sm:$0xff] %v899
                  %v901 = vld [vmem:[%s863 + $0x90] sm:$0xff]
                  %902 = vst [vmem:[%s864 + $0x1b0] sm:$0xff] %v901
                  %v903 = vld [vmem:[%s863 + $0x98] sm:$0xff]
                  %904 = vst [vmem:[%s864 + $0x1c8] sm:$0xff] %v903
                  %v905 = vld [vmem:[%s863 + $0xa0] sm:$0xff]
                  %906 = vst [vmem:[%s864 + $0x1e0] sm:$0xff] %v905
                  %v907 = vld [vmem:[%s863 + $0xa8] sm:$0xff]
                  %908 = vst [vmem:[%s864 + $0x1f8] sm:$0xff] %v907
                  %v909 = vld [vmem:[%s863 + $0xb0] sm:$0xff]
                  %910 = vst [vmem:[%s864 + $0x210] sm:$0xff] %v909
                  %v911 = vld [vmem:[%s863 + $0xb8] sm:$0xff]
                  %912 = vst [vmem:[%s864 + $0x228] sm:$0xff] %v911
                  %v913 = vld [vmem:[%s863 + $0xc0] sm:$0xff]
                  %914 = vst [vmem:[%s864 + $0x240] sm:$0xff] %v913
                  %v915 = vld [vmem:[%s863 + $0xc8] sm:$0xff]
                  %916 = vst [vmem:[%s864 + $0x258] sm:$0xff] %v915
                  %v917 = vld [vmem:[%s863 + $0xd0] sm:$0xff]
                  %918 = vst [vmem:[%s864 + $0x270] sm:$0xff] %v917
                  %v919 = vld [vmem:[%s863 + $0xd8] sm:$0xff]
                  %920 = vst [vmem:[%s864 + $0x288] sm:$0xff] %v919
                  %v921 = vld [vmem:[%s863 + $0xe0] sm:$0xff]
                  %922 = vst [vmem:[%s864 + $0x2a0] sm:$0xff] %v921
                  %v923 = vld [vmem:[%s863 + $0xe8] sm:$0xff]
                  %924 = vst [vmem:[%s864 + $0x2b8] sm:$0xff] %v923
                  %v925 = vld [vmem:[%s863 + $0xf0] sm:$0xff]
                  %926 = vst [vmem:[%s864 + $0x2d0] sm:$0xff] %v925
                  %v927 = vld [vmem:[%s863 + $0xf8] sm:$0xff]
                  %928 = vst [vmem:[%s864 + $0x2e8] sm:$0xff] %v927
                $region80: #{attention_forward.3} parent=74 // loop_footer
                  %s862 = sadd.s32 1, %s858
                $region81: #{attention_forward.3} parent=74 // loop_footer_branch
                  %857 = sbr.rel target = $region77
                $region82: #{attention_forward.3} parent=74 // loop_exit
                  _
              $region75: #{attention_forward.3} parent=59 // pred_fallthru
                _
              // Predicated region
              $region83: #{attention_forward.3} parent=59 // pred_check
                _
              $region84: #{attention_forward.3} parent=59 // pred_check_branch
                %930 = sbr.rel target = $region86
              $region85: #{attention_forward.3} parent=59 // pred_region
                _
              $region86: #{attention_forward.3} parent=59 // pred_fallthru
                _
            $region60: #{attention_forward.3} parent=55 // pred_fallthru
              _
            // Predicated region
            $region61: #{attention_forward.3} parent=55 // pred_check
              _
            $region62: #{attention_forward.3} parent=55 // pred_check_branch
              %781 = sbr.rel target = $region64
            $region63: #{attention_forward.3} parent=55 // pred_region
              loop: start=0, step=1, limit=1
              $region65: #{attention_forward.3} parent=63 // loop_pre_header
                _
              $region66: #{attention_forward.3} parent=63 // loop_header
                %s784 = sphi 0, %s788
                %p785 = scmp.ge.s32.totalorder %s784, 1
                %s789 = sphi %s767, %s767
                %s790 = sphi %s775, %s775
              $region67: #{attention_forward.3} parent=63 // loop_header_branch
                %787 = sbr.rel (%p785) target = $region71
              $region68: #{attention_forward.3} parent=63 // loop_body
                %v791 = vld [vmem:[%s789] sm:$0xff]
                %792 = vst [vmem:[%s790] sm:$0xff] %v791
                %v793 = vld [vmem:[%s789 + $0x8] sm:$0xff]
                %794 = vst [vmem:[%s790 + $0x18] sm:$0xff] %v793
                %v795 = vld [vmem:[%s789 + $0x10] sm:$0xff]
                %796 = vst [vmem:[%s790 + $0x30] sm:$0xff] %v795
                %v797 = vld [vmem:[%s789 + $0x18] sm:$0xff]
                %798 = vst [vmem:[%s790 + $0x48] sm:$0xff] %v797
                %v799 = vld [vmem:[%s789 + $0x20] sm:$0xff]
                %800 = vst [vmem:[%s790 + $0x60] sm:$0xff] %v799
                %v801 = vld [vmem:[%s789 + $0x28] sm:$0xff]
                %802 = vst [vmem:[%s790 + $0x78] sm:$0xff] %v801
                %v803 = vld [vmem:[%s789 + $0x30] sm:$0xff]
                %804 = vst [vmem:[%s790 + $0x90] sm:$0xff] %v803
                %v805 = vld [vmem:[%s789 + $0x38] sm:$0xff]
                %806 = vst [vmem:[%s790 + $0xa8] sm:$0xff] %v805
                %v807 = vld [vmem:[%s789 + $0x40] sm:$0xff]
                %808 = vst [vmem:[%s790 + $0xc0] sm:$0xff] %v807
                %v809 = vld [vmem:[%s789 + $0x48] sm:$0xff]
                %810 = vst [vmem:[%s790 + $0xd8] sm:$0xff] %v809
                %v811 = vld [vmem:[%s789 + $0x50] sm:$0xff]
                %812 = vst [vmem:[%s790 + $0xf0] sm:$0xff] %v811
                %v813 = vld [vmem:[%s789 + $0x58] sm:$0xff]
                %814 = vst [vmem:[%s790 + $0x108] sm:$0xff] %v813
                %v815 = vld [vmem:[%s789 + $0x60] sm:$0xff]
                %816 = vst [vmem:[%s790 + $0x120] sm:$0xff] %v815
                %v817 = vld [vmem:[%s789 + $0x68] sm:$0xff]
                %818 = vst [vmem:[%s790 + $0x138] sm:$0xff] %v817
                %v819 = vld [vmem:[%s789 + $0x70] sm:$0xff]
                %820 = vst [vmem:[%s790 + $0x150] sm:$0xff] %v819
                %v821 = vld [vmem:[%s789 + $0x78] sm:$0xff]
                %822 = vst [vmem:[%s790 + $0x168] sm:$0xff] %v821
                %v823 = vld [vmem:[%s789 + $0x80] sm:$0xff]
                %824 = vst [vmem:[%s790 + $0x180] sm:$0xff] %v823
                %v825 = vld [vmem:[%s789 + $0x88] sm:$0xff]
                %826 = vst [vmem:[%s790 + $0x198] sm:$0xff] %v825
                %v827 = vld [vmem:[%s789 + $0x90] sm:$0xff]
                %828 = vst [vmem:[%s790 + $0x1b0] sm:$0xff] %v827
                %v829 = vld [vmem:[%s789 + $0x98] sm:$0xff]
                %830 = vst [vmem:[%s790 + $0x1c8] sm:$0xff] %v829
                %v831 = vld [vmem:[%s789 + $0xa0] sm:$0xff]
                %832 = vst [vmem:[%s790 + $0x1e0] sm:$0xff] %v831
                %v833 = vld [vmem:[%s789 + $0xa8] sm:$0xff]
                %834 = vst [vmem:[%s790 + $0x1f8] sm:$0xff] %v833
                %v835 = vld [vmem:[%s789 + $0xb0] sm:$0xff]
                %836 = vst [vmem:[%s790 + $0x210] sm:$0xff] %v835
                %v837 = vld [vmem:[%s789 + $0xb8] sm:$0xff]
                %838 = vst [vmem:[%s790 + $0x228] sm:$0xff] %v837
                %v839 = vld [vmem:[%s789 + $0xc0] sm:$0xff]
                %840 = vst [vmem:[%s790 + $0x240] sm:$0xff] %v839
                %v841 = vld [vmem:[%s789 + $0xc8] sm:$0xff]
                %842 = vst [vmem:[%s790 + $0x258] sm:$0xff] %v841
                %v843 = vld [vmem:[%s789 + $0xd0] sm:$0xff]
                %844 = vst [vmem:[%s790 + $0x270] sm:$0xff] %v843
                %v845 = vld [vmem:[%s789 + $0xd8] sm:$0xff]
                %846 = vst [vmem:[%s790 + $0x288] sm:$0xff] %v845
                %v847 = vld [vmem:[%s789 + $0xe0] sm:$0xff]
                %848 = vst [vmem:[%s790 + $0x2a0] sm:$0xff] %v847
                %v849 = vld [vmem:[%s789 + $0xe8] sm:$0xff]
                %850 = vst [vmem:[%s790 + $0x2b8] sm:$0xff] %v849
                %v851 = vld [vmem:[%s789 + $0xf0] sm:$0xff]
                %852 = vst [vmem:[%s790 + $0x2d0] sm:$0xff] %v851
                %v853 = vld [vmem:[%s789 + $0xf8] sm:$0xff]
                %854 = vst [vmem:[%s790 + $0x2e8] sm:$0xff] %v853
              $region69: #{attention_forward.3} parent=63 // loop_footer
                %s788 = sadd.s32 1, %s784
              $region70: #{attention_forward.3} parent=63 // loop_footer_branch
                %783 = sbr.rel target = $region66
              $region71: #{attention_forward.3} parent=63 // loop_exit
                _
            $region64: #{attention_forward.3} parent=55 // pred_fallthru
              _
          $region56: #{attention_forward.3} parent=51 // pred_fallthru
            _
          %931 = vnop
        $region52: #{attention_forward.3} parent=31 // pred_fallthru
          _
      $region32: #{attention_forward.3} parent=5 // pred_fallthru
        _
      %p932 = scmp.le.s32.totalorder 2, %s13
      // Predicated region
      $region87: #{attention_forward.3} parent=5 // pred_check
        %p933 = pneg %p932
      $region88: #{attention_forward.3} parent=5 // pred_check_branch
        %935 = sbr.rel (%p933) target = $region90
      $region89: #{attention_forward.3} parent=5 // pred_region
        %s936 = ssub.s32 %s13, 2
        // Predicated region
        $region91: #{attention_forward.3} parent=89 // pred_check
          %p937 = pneg %p145
        $region92: #{attention_forward.3} parent=89 // pred_check_branch
          %939 = sbr.rel (%p937) target = $region94
        $region93: #{attention_forward.3} parent=89 // pred_region
          %s940 = sand.u32 %s130, 1
          %s941 = sand.u32 %s130, 1
          %s942 = smul.addr %s941, 256
          %s943 = scalar_lea.vmem [#allocation7], %s942
        $region94: #{attention_forward.3} parent=89 // pred_fallthru
          _
      $region90: #{attention_forward.3} parent=5 // pred_fallthru
        _
    $region6: #{attention_forward.3} parent=1 // loop_footer
      %s17 = sadd.s32 1, %s13
    $region7: #{attention_forward.3} parent=1 // loop_footer_branch
      %12 = sbr.rel target = $region3
    $region8: #{attention_forward.3} parent=1 // loop_exit
      _
    %944 = vsyncpa [#allocation4], 1
    %s945 = scalar_lea.sflag [#allocation4], 1
    %946 = vsyncpa %s945, 1
    %947 = vsyncpa [#allocation6], 1
    %s948 = scalar_lea.sflag [#allocation6], 1
    %949 = vsyncpa %s948, 1

// kernel: attention_forward.4
$region0: #{attention_forward.4}
  #allocation0 [shape = 'u32[]', space=smem, size = 0x4, offset = 0x4, fixed_abs, tag = 'smem constant byte address 0x4 - core index']
  #allocation1 [shape = 'u32[144,128]{1,0:T(1,128)}', space=vmem, size = 0x12000, scoped, tag = 'internal scratch']
  #allocation2 [shape = 'f32[4,128,1]{2,1,0:T(8,128)}', space=vmem, size = 0x40000, scoped, tag = 'scratch operand']
  #allocation3 [shape = 'f32[4,128,1]{2,1,0:T(8,128)}', space=vmem, size = 0x40000, scoped, tag = 'scratch operand']
  #allocation4 [shape = 'f32[4,128,32]{2,1,0:T(8,128)}', space=vmem, size = 0x40000, scoped, tag = 'scratch operand']
  %s0 = inlined_call_operand.vmem [shape: f32[2,128,384], index: 0, kind: input, shape index: {}, may-alias: {0,1,2}]
  %s1 = inlined_call_operand.vmem [shape: f32[2,128,384], index: 1, kind: input, shape index: {}, may-alias: {0,1,2}]
  %s2 = inlined_call_operand.vmem [shape: f32[2,128,384], index: 2, kind: input, shape index: {}, may-alias: {0,1,2}]
  %s3 = inlined_call_operand.vmem [shape: f32[2,128,128], index: 3, kind: output, shape index: {}]
  %s4 = sld [smem:[#allocation0]]
  $region167: #{attention_forward.4} parent=0
    _
  %s6 = ssub.s32 1, %s4
  %s7 = scalar_select 0, %s6, %s4
  $region1: #{attention_forward.4} parent=0
    #allocation5 [shape = 'u8[131072]{0}', space=vmem, size = 0x20000, scoped, tag = 'input window, operand 0']
    #allocation6 [shape = 'u8[131072]{0}', space=vmem, size = 0x20000, scoped, tag = 'input window, operand 1']
    #allocation7 [shape = 'u8[131072]{0}', space=vmem, size = 0x20000, scoped, tag = 'input window, operand 2']
    loop: start=0, step=1, limit=4
    $region2: #{attention_forward.4} parent=1 // loop_pre_header
      _
    $region3: #{attention_forward.4} parent=1 // loop_header
      %s9 = sphi 0, %s13
      %p10 = scmp.ge.s32.totalorder %s9, 4
      %s16 = sphi 0, %s35
      %s17 = sphi 0, %s31
      %s18 = sphi 0, %s27
      %s19 = sphi 0, %s16
      %s20 = sphi 0, %s17
      %s21 = sphi 0, %s18
      %s22 = sphi 0, %s19
      %s23 = sphi 0, %s20
      %s24 = sphi 0, %s21
      %s40 = sphi 0, %s42
      %s43 = sphi 0, %s40
      %s44 = sphi 0, %s43
      %s60 = sphi 0, %s44
      %s68 = sphi 0, %s70
      %s71 = sphi 0, %s68
      %s72 = sphi 0, %s71
      %s88 = sphi 0, %s72
      %s96 = sphi 0, %s98
      %s99 = sphi 0, %s96
      %s100 = sphi 0, %s99
      %s116 = sphi 0, %s100
      %s124 = sphi 0, %s126
      %s127 = sphi 0, %s124
      %s128 = sphi 0, %s127
      %s144 = sphi 0, %s128
    $region4: #{attention_forward.4} parent=1 // loop_header_branch
      %12 = sbr.rel (%p10) target = $region8
    $region5: #{attention_forward.4} parent=1 // loop_body
      %s14 = ssub.s32 %s9, 1
      %s15 = ssub.s32 %s9, 2
      %s25 = sadd.s32 1, %s18
      %p26 = scmp.ge.s32.totalorder %s25, 1
      %s27 = scalar_select %p26, 0, %s25
      %s28 = sadd.s32 1, %s17
      %s29 = scalar_select %p26, %s28, %s17
      %p30 = scmp.ge.s32.totalorder %s29, 1
      %s31 = scalar_select %p30, 0, %s29
      %s32 = sadd.s32 1, %s16
      %s33 = scalar_select %p30, %s32, %s16
      %p34 = scmp.ge.s32.totalorder %s33, 2
      %s35 = scalar_select %p34, 0, %s33
      %s36 = ssub.s32 %s16, %s35
      %s37 = ssub.s32 %s17, %s31
      %s38 = sor.u32 %s36, %s37
      %p39 = scmp.eq.s32.totalorder %s38, 0
      %s41 = sadd.s32 %s40, 1
      %s42 = scalar_select %p39, %s40, %s41
      %p45 = pneg %p39
      %p46 = scmp.eq.s32.totalorder %s9, 1
      %p47 = por %p45, %p46
      %p48 = scmp.ne.s32.totalorder %s40, %s43
      %p49 = scmp.eq.s32.totalorder %s9, 0
      %p50 = por %p48, %p49
      %p51 = scmp.ne.s32.totalorder %s40, %s43
      %p52 = scmp.eq.s32.totalorder %s14, 1
      %p53 = por %p51, %p52
      %p54 = scmp.ne.s32.totalorder %s43, %s44
      %p55 = scmp.eq.s32.totalorder %s14, 0
      %p56 = por %p54, %p55
      %p57 = scmp.ne.s32.totalorder %s43, %s44
      %p58 = scmp.eq.s32.totalorder %s15, 1
      %p59 = por %p57, %p58
      %p61 = scmp.ne.s32.totalorder %s44, %s60
      %p62 = scmp.eq.s32.totalorder %s15, 0
      %p63 = por %p61, %p62
      %s64 = ssub.s32 %s16, %s35
      %s65 = ssub.s32 %s18, %s27
      %s66 = sor.u32 %s64, %s65
      %p67 = scmp.eq.s32.totalorder %s66, 0
      %s69 = sadd.s32 %s68, 1
      %s70 = scalar_select %p67, %s68, %s69
      %p73 = pneg %p67
      %p74 = scmp.eq.s32.totalorder %s9, 1
      %p75 = por %p73, %p74
      %p76 = scmp.ne.s32.totalorder %s68, %s71
      %p77 = scmp.eq.s32.totalorder %s9, 0
      %p78 = por %p76, %p77
      %p79 = scmp.ne.s32.totalorder %s68, %s71
      %p80 = scmp.eq.s32.totalorder %s14, 1
      %p81 = por %p79, %p80
      %p82 = scmp.ne.s32.totalorder %s71, %s72
      %p83 = scmp.eq.s32.totalorder %s14, 0
      %p84 = por %p82, %p83
      %p85 = scmp.ne.s32.totalorder %s71, %s72
      %p86 = scmp.eq.s32.totalorder %s15, 1
      %p87 = por %p85, %p86
      %p89 = scmp.ne.s32.totalorder %s72, %s88
      %p90 = scmp.eq.s32.totalorder %s15, 0
      %p91 = por %p89, %p90
      %s92 = ssub.s32 %s16, %s35
      %s93 = ssub.s32 %s18, %s27
      %s94 = sor.u32 %s92, %s93
      %p95 = scmp.eq.s32.totalorder %s94, 0
      %s97 = sadd.s32 %s96, 1
      %s98 = scalar_select %p95, %s96, %s97
      %p101 = pneg %p95
      %p102 = scmp.eq.s32.totalorder %s9, 1
      %p103 = por %p101, %p102
      %p104 = scmp.ne.s32.totalorder %s96, %s99
      %p105 = scmp.eq.s32.totalorder %s9, 0
      %p106 = por %p104, %p105
      %p107 = scmp.ne.s32.totalorder %s96, %s99
      %p108 = scmp.eq.s32.totalorder %s14, 1
      %p109 = por %p107, %p108
      %p110 = scmp.ne.s32.totalorder %s99, %s100
      %p111 = scmp.eq.s32.totalorder %s14, 0
      %p112 = por %p110, %p111
      %p113 = scmp.ne.s32.totalorder %s99, %s100
      %p114 = scmp.eq.s32.totalorder %s15, 1
      %p115 = por %p113, %p114
      %p117 = scmp.ne.s32.totalorder %s100, %s116
      %p118 = scmp.eq.s32.totalorder %s15, 0
      %p119 = por %p117, %p118
      %s120 = ssub.s32 %s16, %s35
      %s121 = ssub.s32 %s17, %s31
      %s122 = sor.u32 %s120, %s121
      %p123 = scmp.eq.s32.totalorder %s122, 0
      %s125 = sadd.s32 %s124, 1
      %s126 = scalar_select %p123, %s124, %s125
      %p129 = pneg %p123
      %p130 = scmp.eq.s32.totalorder %s9, 1
      %p131 = por %p129, %p130
      %p132 = scmp.ne.s32.totalorder %s124, %s127
      %p133 = scmp.eq.s32.totalorder %s9, 0
      %p134 = por %p132, %p133
      %p135 = scmp.ne.s32.totalorder %s124, %s127
      %p136 = scmp.eq.s32.totalorder %s14, 1
      %p137 = por %p135, %p136
      %p138 = scmp.ne.s32.totalorder %s127, %s128
      %p139 = scmp.eq.s32.totalorder %s14, 0
      %p140 = por %p138, %p139
      %p141 = scmp.ne.s32.totalorder %s127, %s128
      %p142 = scmp.eq.s32.totalorder %s15, 1
      %p143 = por %p141, %p142
      %p145 = scmp.ne.s32.totalorder %s128, %s144
      %p146 = scmp.eq.s32.totalorder %s15, 0
      %p147 = por %p145, %p146
      %p148 = scmp.le.s32.totalorder 1, %s9
      %p149 = scmp.lt.s32.totalorder %s9, 3
      %p150 = pnand %p148, %p149
      %p151 = pneg %p150
      // Predicated region
      $region9: #{attention_forward.4} parent=5 // pred_check
        _
      $region10: #{attention_forward.4} parent=5 // pred_check_branch
        %153 = sbr.rel (%p150) target = $region12
      $region11: #{attention_forward.4} parent=5 // pred_region
        %s154 = ssub.s32 %s9, 1
      $region12: #{attention_forward.4} parent=5 // pred_fallthru
        _
      %p155 = scmp.lt.s32.totalorder %s9, 2
      // Predicated region
      $region13: #{attention_forward.4} parent=5 // pred_check
        %p156 = pneg %p155
      $region14: #{attention_forward.4} parent=5 // pred_check_branch
        %158 = sbr.rel (%p156) target = $region16
      $region15: #{attention_forward.4} parent=5 // pred_region
        // Predicated region
        $region17: #{attention_forward.4} parent=15 // pred_check
          %p159 = pneg %p50
        $region18: #{attention_forward.4} parent=15 // pred_check_branch
          %161 = sbr.rel (%p159) target = $region20
        $region19: #{attention_forward.4} parent=15 // pred_region
          %s162 = sand.u32 %s40, 1
          %s163 = sand.u32 %s40, 1
          %s164 = smul.addr %s163, 128
          %s165 = scalar_lea.vmem [#allocation5], %s164
          %s166 = smul.u32 16, %s17
          %s167 = smul.addr %s166, 3
          %s168 = smul.addr %s16, 48
          %s169 = sadd.s32 %s167, %s168
          %s170 = smul.addr %s169, 8
          %s171 = scalar_lea.vmem %s0, %s170
          // Predicated region
          $region21: #{attention_forward.4} parent=19 // pred_check
            _
          $region22: #{attention_forward.4} parent=19 // pred_check_branch
            %173 = sbr.rel (0) target = $region24
          $region23: #{attention_forward.4} parent=19 // pred_region
            // Predicated region
            $region25: #{attention_forward.4} parent=23 // pred_check
              _
            $region26: #{attention_forward.4} parent=23 // pred_check_branch
              %175 = sbr.rel (0) target = $region28
            $region27: #{attention_forward.4} parent=23 // pred_region
              // Predicated region
              $region40: #{attention_forward.4} parent=27 // pred_check
                _
              $region41: #{attention_forward.4} parent=27 // pred_check_branch
                %220 = sbr.rel (0) target = $region43
              $region42: #{attention_forward.4} parent=27 // pred_region
                loop: start=0, step=1, limit=1
                $region44: #{attention_forward.4} parent=42 // loop_pre_header
                  _
                $region45: #{attention_forward.4} parent=42 // loop_header
                  %s222 = sphi 0, %s226
                  %p223 = scmp.ge.s32.totalorder %s222, 1
                  %s227 = sphi %s171, %s171
                  %s228 = sphi %s165, %s165
                $region46: #{attention_forward.4} parent=42 // loop_header_branch
                  %225 = sbr.rel (%p223) target = $region50
                $region47: #{attention_forward.4} parent=42 // loop_body
                  %v229 = vld [vmem:[%s227] sm:$0xff]
                  %230 = vst [vmem:[%s228] sm:$0xff] %v229
                  %v231 = vld [vmem:[%s227 + $0x18] sm:$0xff]
                  %232 = vst [vmem:[%s228 + $0x8] sm:$0xff] %v231
                  %v233 = vld [vmem:[%s227 + $0x30] sm:$0xff]
                  %234 = vst [vmem:[%s228 + $0x10] sm:$0xff] %v233
                  %v235 = vld [vmem:[%s227 + $0x48] sm:$0xff]
                  %236 = vst [vmem:[%s228 + $0x18] sm:$0xff] %v235
                  %v237 = vld [vmem:[%s227 + $0x60] sm:$0xff]
                  %238 = vst [vmem:[%s228 + $0x20] sm:$0xff] %v237
                  %v239 = vld [vmem:[%s227 + $0x78] sm:$0xff]
                  %240 = vst [vmem:[%s228 + $0x28] sm:$0xff] %v239
                  %v241 = vld [vmem:[%s227 + $0x90] sm:$0xff]
                  %242 = vst [vmem:[%s228 + $0x30] sm:$0xff] %v241
                  %v243 = vld [vmem:[%s227 + $0xa8] sm:$0xff]
                  %244 = vst [vmem:[%s228 + $0x38] sm:$0xff] %v243
                  %v245 = vld [vmem:[%s227 + $0xc0] sm:$0xff]
                  %246 = vst [vmem:[%s228 + $0x40] sm:$0xff] %v245
                  %v247 = vld [vmem:[%s227 + $0xd8] sm:$0xff]
                  %248 = vst [vmem:[%s228 + $0x48] sm:$0xff] %v247
                  %v249 = vld [vmem:[%s227 + $0xf0] sm:$0xff]
                  %250 = vst [vmem:[%s228 + $0x50] sm:$0xff] %v249
                  %v251 = vld [vmem:[%s227 + $0x108] sm:$0xff]
                  %252 = vst [vmem:[%s228 + $0x58] sm:$0xff] %v251
                  %v253 = vld [vmem:[%s227 + $0x120] sm:$0xff]
                  %254 = vst [vmem:[%s228 + $0x60] sm:$0xff] %v253
                  %v255 = vld [vmem:[%s227 + $0x138] sm:$0xff]
                  %256 = vst [vmem:[%s228 + $0x68] sm:$0xff] %v255
                  %v257 = vld [vmem:[%s227 + $0x150] sm:$0xff]
                  %258 = vst [vmem:[%s228 + $0x70] sm:$0xff] %v257
                  %v259 = vld [vmem:[%s227 + $0x168] sm:$0xff]
                  %260 = vst [vmem:[%s228 + $0x78] sm:$0xff] %v259
                $region48: #{attention_forward.4} parent=42 // loop_footer
                  %s226 = sadd.s32 1, %s222
                $region49: #{attention_forward.4} parent=42 // loop_footer_branch
                  %221 = sbr.rel target = $region45
                $region50: #{attention_forward.4} parent=42 // loop_exit
                  _
              $region43: #{attention_forward.4} parent=27 // pred_fallthru
                _
              // Predicated region
              $region51: #{attention_forward.4} parent=27 // pred_check
                _
              $region52: #{attention_forward.4} parent=27 // pred_check_branch
                %262 = sbr.rel target = $region54
              $region53: #{attention_forward.4} parent=27 // pred_region
                _
              $region54: #{attention_forward.4} parent=27 // pred_fallthru
                _
            $region28: #{attention_forward.4} parent=23 // pred_fallthru
              _
            // Predicated region
            $region29: #{attention_forward.4} parent=23 // pred_check
              _
            $region30: #{attention_forward.4} parent=23 // pred_check_branch
              %177 = sbr.rel target = $region32
            $region31: #{attention_forward.4} parent=23 // pred_region
              loop: start=0, step=1, limit=1
              $region33: #{attention_forward.4} parent=31 // loop_pre_header
                _
              $region34: #{attention_forward.4} parent=31 // loop_header
                %s180 = sphi 0, %s184
                %p181 = scmp.ge.s32.totalorder %s180, 1
                %s185 = sphi %s171, %s171
                %s186 = sphi %s165, %s165
              $region35: #{attention_forward.4} parent=31 // loop_header_branch
                %183 = sbr.rel (%p181) target = $region39
              $region36: #{attention_forward.4} parent=31 // loop_body
                %v187 = vld [vmem:[%s185] sm:$0xff]
                %188 = vst [vmem:[%s186] sm:$0xff] %v187
                %v189 = vld [vmem:[%s185 + $0x18] sm:$0xff]
                %190 = vst [vmem:[%s186 + $0x8] sm:$0xff] %v189
                %v191 = vld [vmem:[%s185 + $0x30] sm:$0xff]
                %192 = vst [vmem:[%s186 + $0x10] sm:$0xff] %v191
                %v193 = vld [vmem:[%s185 + $0x48] sm:$0xff]
                %194 = vst [vmem:[%s186 + $0x18] sm:$0xff] %v193
                %v195 = vld [vmem:[%s185 + $0x60] sm:$0xff]
                %196 = vst [vmem:[%s186 + $0x20] sm:$0xff] %v195
                %v197 = vld [vmem:[%s185 + $0x78] sm:$0xff]
                %198 = vst [vmem:[%s186 + $0x28] sm:$0xff] %v197
                %v199 = vld [vmem:[%s185 + $0x90] sm:$0xff]
                %200 = vst [vmem:[%s186 + $0x30] sm:$0xff] %v199
                %v201 = vld [vmem:[%s185 + $0xa8] sm:$0xff]
                %202 = vst [vmem:[%s186 + $0x38] sm:$0xff] %v201
                %v203 = vld [vmem:[%s185 + $0xc0] sm:$0xff]
                %204 = vst [vmem:[%s186 + $0x40] sm:$0xff] %v203
                %v205 = vld [vmem:[%s185 + $0xd8] sm:$0xff]
                %206 = vst [vmem:[%s186 + $0x48] sm:$0xff] %v205
                %v207 = vld [vmem:[%s185 + $0xf0] sm:$0xff]
                %208 = vst [vmem:[%s186 + $0x50] sm:$0xff] %v207
                %v209 = vld [vmem:[%s185 + $0x108] sm:$0xff]
                %210 = vst [vmem:[%s186 + $0x58] sm:$0xff] %v209
                %v211 = vld [vmem:[%s185 + $0x120] sm:$0xff]
                %212 = vst [vmem:[%s186 + $0x60] sm:$0xff] %v211
                %v213 = vld [vmem:[%s185 + $0x138] sm:$0xff]
                %214 = vst [vmem:[%s186 + $0x68] sm:$0xff] %v213
                %v215 = vld [vmem:[%s185 + $0x150] sm:$0xff]
                %216 = vst [vmem:[%s186 + $0x70] sm:$0xff] %v215
                %v217 = vld [vmem:[%s185 + $0x168] sm:$0xff]
                %218 = vst [vmem:[%s186 + $0x78] sm:$0xff] %v217
              $region37: #{attention_forward.4} parent=31 // loop_footer
                %s184 = sadd.s32 1, %s180
              $region38: #{attention_forward.4} parent=31 // loop_footer_branch
                %179 = sbr.rel target = $region34
              $region39: #{attention_forward.4} parent=31 // loop_exit
                _
            $region32: #{attention_forward.4} parent=23 // pred_fallthru
              _
          $region24: #{attention_forward.4} parent=19 // pred_fallthru
            _
          %263 = vnop
        $region20: #{attention_forward.4} parent=15 // pred_fallthru
          _
        // Predicated region
        $region55: #{attention_forward.4} parent=15 // pred_check
          %p264 = pneg %p78
        $region56: #{attention_forward.4} parent=15 // pred_check_branch
          %266 = sbr.rel (%p264) target = $region58
        $region57: #{attention_forward.4} parent=15 // pred_region
          %s267 = sand.u32 %s68, 1
          %s268 = sand.u32 %s68, 1
          %s269 = smul.addr %s268, 128
          %s270 = scalar_lea.vmem [#allocation6], %s269
          %s271 = smul.u32 16, %s18
          %s272 = smul.addr %s271, 3
          %s273 = sadd.s32 1, %s272
          %s274 = smul.addr %s16, 48
          %s275 = sadd.s32 %s273, %s274
          %s276 = smul.addr %s275, 8
          %s277 = scalar_lea.vmem %s1, %s276
          // Predicated region
          $region59: #{attention_forward.4} parent=57 // pred_check
            _
          $region60: #{attention_forward.4} parent=57 // pred_check_branch
            %279 = sbr.rel (0) target = $region62
          $region61: #{attention_forward.4} parent=57 // pred_region
            // Predicated region
            $region63: #{attention_forward.4} parent=61 // pred_check
              _
            $region64: #{attention_forward.4} parent=61 // pred_check_branch
              %281 = sbr.rel (0) target = $region66
            $region65: #{attention_forward.4} parent=61 // pred_region
              // Predicated region
              $region78: #{attention_forward.4} parent=65 // pred_check
                _
              $region79: #{attention_forward.4} parent=65 // pred_check_branch
                %326 = sbr.rel (0) target = $region81
              $region80: #{attention_forward.4} parent=65 // pred_region
                loop: start=0, step=1, limit=1
                $region82: #{attention_forward.4} parent=80 // loop_pre_header
                  _
                $region83: #{attention_forward.4} parent=80 // loop_header
                  %s328 = sphi 0, %s332
                  %p329 = scmp.ge.s32.totalorder %s328, 1
                  %s333 = sphi %s277, %s277
                  %s334 = sphi %s270, %s270
                $region84: #{attention_forward.4} parent=80 // loop_header_branch
                  %331 = sbr.rel (%p329) target = $region88
                $region85: #{attention_forward.4} parent=80 // loop_body
                  %v335 = vld [vmem:[%s333] sm:$0xff]
                  %336 = vst [vmem:[%s334] sm:$0xff] %v335
                  %v337 = vld [vmem:[%s333 + $0x18] sm:$0xff]
                  %338 = vst [vmem:[%s334 + $0x8] sm:$0xff] %v337
                  %v339 = vld [vmem:[%s333 + $0x30] sm:$0xff]
                  %340 = vst [vmem:[%s334 + $0x10] sm:$0xff] %v339
                  %v341 = vld [vmem:[%s333 + $0x48] sm:$0xff]
                  %342 = vst [vmem:[%s334 + $0x18] sm:$0xff] %v341
                  %v343 = vld [vmem:[%s333 + $0x60] sm:$0xff]
                  %344 = vst [vmem:[%s334 + $0x20] sm:$0xff] %v343
                  %v345 = vld [vmem:[%s333 + $0x78] sm:$0xff]
                  %346 = vst [vmem:[%s334 + $0x28] sm:$0xff] %v345
                  %v347 = vld [vmem:[%s333 + $0x90] sm:$0xff]
                  %348 = vst [vmem:[%s334 + $0x30] sm:$0xff] %v347
                  %v349 = vld [vmem:[%s333 + $0xa8] sm:$0xff]
                  %350 = vst [vmem:[%s334 + $0x38] sm:$0xff] %v349
                  %v351 = vld [vmem:[%s333 + $0xc0] sm:$0xff]
                  %352 = vst [vmem:[%s334 + $0x40] sm:$0xff] %v351
                  %v353 = vld [vmem:[%s333 + $0xd8] sm:$0xff]
                  %354 = vst [vmem:[%s334 + $0x48] sm:$0xff] %v353
                  %v355 = vld [vmem:[%s333 + $0xf0] sm:$0xff]
                  %356 = vst [vmem:[%s334 + $0x50] sm:$0xff] %v355
                  %v357 = vld [vmem:[%s333 + $0x108] sm:$0xff]
                  %358 = vst [vmem:[%s334 + $0x58] sm:$0xff] %v357
                  %v359 = vld [vmem:[%s333 + $0x120] sm:$0xff]
                  %360 = vst [vmem:[%s334 + $0x60] sm:$0xff] %v359
                  %v361 = vld [vmem:[%s333 + $0x138] sm:$0xff]
                  %362 = vst [vmem:[%s334 + $0x68] sm:$0xff] %v361
                  %v363 = vld [vmem:[%s333 + $0x150] sm:$0xff]
                  %364 = vst [vmem:[%s334 + $0x70] sm:$0xff] %v363
                  %v365 = vld [vmem:[%s333 + $0x168] sm:$0xff]
                  %366 = vst [vmem:[%s334 + $0x78] sm:$0xff] %v365
                $region86: #{attention_forward.4} parent=80 // loop_footer
                  %s332 = sadd.s32 1, %s328
                $region87: #{attention_forward.4} parent=80 // loop_footer_branch
                  %327 = sbr.rel target = $region83
                $region88: #{attention_forward.4} parent=80 // loop_exit
                  _
              $region81: #{attention_forward.4} parent=65 // pred_fallthru
                _
              // Predicated region
              $region89: #{attention_forward.4} parent=65 // pred_check
                _
              $region90: #{attention_forward.4} parent=65 // pred_check_branch
                %368 = sbr.rel target = $region92
              $region91: #{attention_forward.4} parent=65 // pred_region
                _
              $region92: #{attention_forward.4} parent=65 // pred_fallthru
                _
            $region66: #{attention_forward.4} parent=61 // pred_fallthru
              _
            // Predicated region
            $region67: #{attention_forward.4} parent=61 // pred_check
              _
            $region68: #{attention_forward.4} parent=61 // pred_check_branch
              %283 = sbr.rel target = $region70
            $region69: #{attention_forward.4} parent=61 // pred_region
              loop: start=0, step=1, limit=1
              $region71: #{attention_forward.4} parent=69 // loop_pre_header
                _
              $region72: #{attention_forward.4} parent=69 // loop_header
                %s286 = sphi 0, %s290
                %p287 = scmp.ge.s32.totalorder %s286, 1
                %s291 = sphi %s277, %s277
                %s292 = sphi %s270, %s270
              $region73: #{attention_forward.4} parent=69 // loop_header_branch
                %289 = sbr.rel (%p287) target = $region77
              $region74: #{attention_forward.4} parent=69 // loop_body
                %v293 = vld [vmem:[%s291] sm:$0xff]
                %294 = vst [vmem:[%s292] sm:$0xff] %v293
                %v295 = vld [vmem:[%s291 + $0x18] sm:$0xff]
                %296 = vst [vmem:[%s292 + $0x8] sm:$0xff] %v295
                %v297 = vld [vmem:[%s291 + $0x30] sm:$0xff]
                %298 = vst [vmem:[%s292 + $0x10] sm:$0xff] %v297
                %v299 = vld [vmem:[%s291 + $0x48] sm:$0xff]
                %300 = vst [vmem:[%s292 + $0x18] sm:$0xff] %v299
                %v301 = vld [vmem:[%s291 + $0x60] sm:$0xff]
                %302 = vst [vmem:[%s292 + $0x20] sm:$0xff] %v301
                %v303 = vld [vmem:[%s291 + $0x78] sm:$0xff]
                %304 = vst [vmem:[%s292 + $0x28] sm:$0xff] %v303
                %v305 = vld [vmem:[%s291 + $0x90] sm:$0xff]
                %306 = vst [vmem:[%s292 + $0x30] sm:$0xff] %v305
                %v307 = vld [vmem:[%s291 + $0xa8] sm:$0xff]
                %308 = vst [vmem:[%s292 + $0x38] sm:$0xff] %v307
                %v309 = vld [vmem:[%s291 + $0xc0] sm:$0xff]
                %310 = vst [vmem:[%s292 + $0x40] sm:$0xff] %v309
                %v311 = vld [vmem:[%s291 + $0xd8] sm:$0xff]
                %312 = vst [vmem:[%s292 + $0x48] sm:$0xff] %v311
                %v313 = vld [vmem:[%s291 + $0xf0] sm:$0xff]
                %314 = vst [vmem:[%s292 + $0x50] sm:$0xff] %v313
                %v315 = vld [vmem:[%s291 + $0x108] sm:$0xff]
                %316 = vst [vmem:[%s292 + $0x58] sm:$0xff] %v315
                %v317 = vld [vmem:[%s291 + $0x120] sm:$0xff]
                %318 = vst [vmem:[%s292 + $0x60] sm:$0xff] %v317
                %v319 = vld [vmem:[%s291 + $0x138] sm:$0xff]
                %320 = vst [vmem:[%s292 + $0x68] sm:$0xff] %v319
                %v321 = vld [vmem:[%s291 + $0x150] sm:$0xff]
                %322 = vst [vmem:[%s292 + $0x70] sm:$0xff] %v321
                %v323 = vld [vmem:[%s291 + $0x168] sm:$0xff]
                %324 = vst [vmem:[%s292 + $0x78] sm:$0xff] %v323
              $region75: #{attention_forward.4} parent=69 // loop_footer
                %s290 = sadd.s32 1, %s286
              $region76: #{attention_forward.4} parent=69 // loop_footer_branch
                %285 = sbr.rel target = $region72
              $region77: #{attention_forward.4} parent=69 // loop_exit
                _
            $region70: #{attention_forward.4} parent=61 // pred_fallthru
              _
          $region62: #{attention_forward.4} parent=57 // pred_fallthru
            _
          %369 = vnop
        $region58: #{attention_forward.4} parent=15 // pred_fallthru
          _
        // Predicated region
        $region93: #{attention_forward.4} parent=15 // pred_check
          %p370 = pneg %p106
        $region94: #{attention_forward.4} parent=15 // pred_check_branch
          %372 = sbr.rel (%p370) target = $region96
        $region95: #{attention_forward.4} parent=15 // pred_region
          %s373 = sand.u32 %s96, 1
          %s374 = sand.u32 %s96, 1
          %s375 = smul.addr %s374, 128
          %s376 = scalar_lea.vmem [#allocation7], %s375
          %s377 = smul.u32 16, %s18
          %s378 = smul.addr %s377, 3
          %s379 = sadd.s32 2, %s378
          %s380 = smul.addr %s16, 48
          %s381 = sadd.s32 %s379, %s380
          %s382 = smul.addr %s381, 8
          %s383 = scalar_lea.vmem %s2, %s382
          // Predicated region
          $region97: #{attention_forward.4} parent=95 // pred_check
            _
          $region98: #{attention_forward.4} parent=95 // pred_check_branch
            %385 = sbr.rel (0) target = $region100
          $region99: #{attention_forward.4} parent=95 // pred_region
            // Predicated region
            $region101: #{attention_forward.4} parent=99 // pred_check
              _
            $region102: #{attention_forward.4} parent=99 // pred_check_branch
              %387 = sbr.rel (0) target = $region104
            $region103: #{attention_forward.4} parent=99 // pred_region
              // Predicated region
              $region116: #{attention_forward.4} parent=103 // pred_check
                _
              $region117: #{attention_forward.4} parent=103 // pred_check_branch
                %432 = sbr.rel (0) target = $region119
              $region118: #{attention_forward.4} parent=103 // pred_region
                loop: start=0, step=1, limit=1
                $region120: #{attention_forward.4} parent=118 // loop_pre_header
                  _
                $region121: #{attention_forward.4} parent=118 // loop_header
                  %s434 = sphi 0, %s438
                  %p435 = scmp.ge.s32.totalorder %s434, 1
                  %s439 = sphi %s383, %s383
                  %s440 = sphi %s376, %s376
                $region122: #{attention_forward.4} parent=118 // loop_header_branch
                  %437 = sbr.rel (%p435) target = $region126
                $region123: #{attention_forward.4} parent=118 // loop_body
                  %v441 = vld [vmem:[%s439] sm:$0xff]
                  %442 = vst [vmem:[%s440] sm:$0xff] %v441
                  %v443 = vld [vmem:[%s439 + $0x18] sm:$0xff]
                  %444 = vst [vmem:[%s440 + $0x8] sm:$0xff] %v443
                  %v445 = vld [vmem:[%s439 + $0x30] sm:$0xff]
                  %446 = vst [vmem:[%s440 + $0x10] sm:$0xff] %v445
                  %v447 = vld [vmem:[%s439 + $0x48] sm:$0xff]
                  %448 = vst [vmem:[%s440 + $0x18] sm:$0xff] %v447
                  %v449 = vld [vmem:[%s439 + $0x60] sm:$0xff]
                  %450 = vst [vmem:[%s440 + $0x20] sm:$0xff] %v449
                  %v451 = vld [vmem:[%s439 + $0x78] sm:$0xff]
                  %452 = vst [vmem:[%s440 + $0x28] sm:$0xff] %v451
                  %v453 = vld [vmem:[%s439 + $0x90] sm:$0xff]
                  %454 = vst [vmem:[%s440 + $0x30] sm:$0xff] %v453
                  %v455 = vld [vmem:[%s439 + $0xa8] sm:$0xff]
                  %456 = vst [vmem:[%s440 + $0x38] sm:$0xff] %v455
                  %v457 = vld [vmem:[%s439 + $0xc0] sm:$0xff]
                  %458 = vst [vmem:[%s440 + $0x40] sm:$0xff] %v457
                  %v459 = vld [vmem:[%s439 + $0xd8] sm:$0xff]
                  %460 = vst [vmem:[%s440 + $0x48] sm:$0xff] %v459
                  %v461 = vld [vmem:[%s439 + $0xf0] sm:$0xff]
                  %462 = vst [vmem:[%s440 + $0x50] sm:$0xff] %v461
                  %v463 = vld [vmem:[%s439 + $0x108] sm:$0xff]
                  %464 = vst [vmem:[%s440 + $0x58] sm:$0xff] %v463
                  %v465 = vld [vmem:[%s439 + $0x120] sm:$0xff]
                  %466 = vst [vmem:[%s440 + $0x60] sm:$0xff] %v465
                  %v467 = vld [vmem:[%s439 + $0x138] sm:$0xff]
                  %468 = vst [vmem:[%s440 + $0x68] sm:$0xff] %v467
                  %v469 = vld [vmem:[%s439 + $0x150] sm:$0xff]
                  %470 = vst [vmem:[%s440 + $0x70] sm:$0xff] %v469
                  %v471 = vld [vmem:[%s439 + $0x168] sm:$0xff]
                  %472 = vst [vmem:[%s440 + $0x78] sm:$0xff] %v471
                $region124: #{attention_forward.4} parent=118 // loop_footer
                  %s438 = sadd.s32 1, %s434
                $region125: #{attention_forward.4} parent=118 // loop_footer_branch
                  %433 = sbr.rel target = $region121
                $region126: #{attention_forward.4} parent=118 // loop_exit
                  _
              $region119: #{attention_forward.4} parent=103 // pred_fallthru
                _
              // Predicated region
              $region127: #{attention_forward.4} parent=103 // pred_check
                _
              $region128: #{attention_forward.4} parent=103 // pred_check_branch
                %474 = sbr.rel target = $region130
              $region129: #{attention_forward.4} parent=103 // pred_region
                _
              $region130: #{attention_forward.4} parent=103 // pred_fallthru
                _
            $region104: #{attention_forward.4} parent=99 // pred_fallthru
              _
            // Predicated region
            $region105: #{attention_forward.4} parent=99 // pred_check
              _
            $region106: #{attention_forward.4} parent=99 // pred_check_branch
              %389 = sbr.rel target = $region108
            $region107: #{attention_forward.4} parent=99 // pred_region
              loop: start=0, step=1, limit=1
              $region109: #{attention_forward.4} parent=107 // loop_pre_header
                _
              $region110: #{attention_forward.4} parent=107 // loop_header
                %s392 = sphi 0, %s396
                %p393 = scmp.ge.s32.totalorder %s392, 1
                %s397 = sphi %s383, %s383
                %s398 = sphi %s376, %s376
              $region111: #{attention_forward.4} parent=107 // loop_header_branch
                %395 = sbr.rel (%p393) target = $region115
              $region112: #{attention_forward.4} parent=107 // loop_body
                %v399 = vld [vmem:[%s397] sm:$0xff]
                %400 = vst [vmem:[%s398] sm:$0xff] %v399
                %v401 = vld [vmem:[%s397 + $0x18] sm:$0xff]
                %402 = vst [vmem:[%s398 + $0x8] sm:$0xff] %v401
                %v403 = vld [vmem:[%s397 + $0x30] sm:$0xff]
                %404 = vst [vmem:[%s398 + $0x10] sm:$0xff] %v403
                %v405 = vld [vmem:[%s397 + $0x48] sm:$0xff]
                %406 = vst [vmem:[%s398 + $0x18] sm:$0xff] %v405
                %v407 = vld [vmem:[%s397 + $0x60] sm:$0xff]
                %408 = vst [vmem:[%s398 + $0x20] sm:$0xff] %v407
                %v409 = vld [vmem:[%s397 + $0x78] sm:$0xff]
                %410 = vst [vmem:[%s398 + $0x28] sm:$0xff] %v409
                %v411 = vld [vmem:[%s397 + $0x90] sm:$0xff]
                %412 = vst [vmem:[%s398 + $0x30] sm:$0xff] %v411
                %v413 = vld [vmem:[%s397 + $0xa8] sm:$0xff]
                %414 = vst [vmem:[%s398 + $0x38] sm:$0xff] %v413
                %v415 = vld [vmem:[%s397 + $0xc0] sm:$0xff]
                %416 = vst [vmem:[%s398 + $0x40] sm:$0xff] %v415
                %v417 = vld [vmem:[%s397 + $0xd8] sm:$0xff]
                %418 = vst [vmem:[%s398 + $0x48] sm:$0xff] %v417
                %v419 = vld [vmem:[%s397 + $0xf0] sm:$0xff]
                %420 = vst [vmem:[%s398 + $0x50] sm:$0xff] %v419
                %v421 = vld [vmem:[%s397 + $0x108] sm:$0xff]
                %422 = vst [vmem:[%s398 + $0x58] sm:$0xff] %v421
                %v423 = vld [vmem:[%s397 + $0x120] sm:$0xff]
                %424 = vst [vmem:[%s398 + $0x60] sm:$0xff] %v423
                %v425 = vld [vmem:[%s397 + $0x138] sm:$0xff]
                %426 = vst [vmem:[%s398 + $0x68] sm:$0xff] %v425
                %v427 = vld [vmem:[%s397 + $0x150] sm:$0xff]
                %428 = vst [vmem:[%s398 + $0x70] sm:$0xff] %v427
                %v429 = vld [vmem:[%s397 + $0x168] sm:$0xff]
                %430 = vst [vmem:[%s398 + $0x78] sm:$0xff] %v429
              $region113: #{attention_forward.4} parent=107 // loop_footer
                %s396 = sadd.s32 1, %s392
              $region114: #{attention_forward.4} parent=107 // loop_footer_branch
                %391 = sbr.rel target = $region110
              $region115: #{attention_forward.4} parent=107 // loop_exit
                _
            $region108: #{attention_forward.4} parent=99 // pred_fallthru
              _
          $region100: #{attention_forward.4} parent=95 // pred_fallthru
            _
          %475 = vnop
        $region96: #{attention_forward.4} parent=15 // pred_fallthru
          _
      $region16: #{attention_forward.4} parent=5 // pred_fallthru
        _
      %p476 = scmp.le.s32.totalorder 1, %s9
      %p477 = scmp.lt.s32.totalorder %s9, 3
      %p478 = pnand %p476, %p477
      %p479 = pneg %p478
      // Predicated region
      $region131: #{attention_forward.4} parent=5 // pred_check
        _
      $region132: #{attention_forward.4} parent=5 // pred_check_branch
        %481 = sbr.rel (%p478) target = $region134
      $region133: #{attention_forward.4} parent=5 // pred_region
        %s482 = ssub.s32 %s9, 1
        %s483 = sand.u32 %s43, 1
        %s484 = sand.u32 %s43, 1
        %s485 = smul.addr %s484, 128
        %s486 = scalar_lea.vmem [#allocation5], %s485
        // Predicated region
        $region135: #{attention_forward.4} parent=133 // pred_check
          %p487 = pneg %p56
        $region136: #{attention_forward.4} parent=133 // pred_check_branch
          %489 = sbr.rel (%p487) target = $region138
        $region137: #{attention_forward.4} parent=133 // pred_region
          _
        $region138: #{attention_forward.4} parent=133 // pred_fallthru
          _
        %s490 = sand.u32 %s71, 1
        %s491 = sand.u32 %s71, 1
        %s492 = smul.addr %s491, 128
        %s493 = scalar_lea.vmem [#allocation6], %s492
        // Predicated region
        $region139: #{attention_forward.4} parent=133 // pred_check
          %p494 = pneg %p84
        $region140: #{attention_forward.4} parent=133 // pred_check_branch
          %496 = sbr.rel (%p494) target = $region142
        $region141: #{attention_forward.4} parent=133 // pred_region
          _
        $region142: #{attention_forward.4} parent=133 // pred_fallthru
          _
        %s497 = sand.u32 %s99, 1
        %s498 = sand.u32 %s99, 1
        %s499 = smul.addr %s498, 128
        %s500 = scalar_lea.vmem [#allocation7], %s499
        // Predicated region
        $region143: #{attention_forward.4} parent=133 // pred_check
          %p501 = pneg %p112
        $region144: #{attention_forward.4} parent=133 // pred_check_branch
          %503 = sbr.rel (%p501) target = $region146
        $region145: #{attention_forward.4} parent=133 // pred_region
          _
        $region146: #{attention_forward.4} parent=133 // pred_fallthru
          _
        %s504 = sand.u32 %s43, 1
        %s505 = sand.u32 %s43, 1
        %s506 = smul.addr %s505, 128
        %s507 = scalar_lea.vmem [#allocation5], %s506
        %p508 = pneg %p56
        %p509 = pneg %p53
        %s510 = sand.u32 %s71, 1
        %s511 = sand.u32 %s71, 1
        %s512 = smul.addr %s511, 128
        %s513 = scalar_lea.vmem [#allocation6], %s512
        %p514 = pneg %p84
        %p515 = pneg %p81
        %s516 = sand.u32 %s99, 1
        %s517 = sand.u32 %s99, 1
        %s518 = smul.addr %s517, 128
        %s519 = scalar_lea.vmem [#allocation7], %s518
        %p520 = pneg %p112
        %p521 = pneg %p109
        %p522 = pneg %p140
        %p523 = pneg %p137
        %s524 = smul.u32 16, %s20
        %p525 = scmp.lt.s32.totalorder %s19, 1
        %s526 = scalar_select %p525, %s19, 1
        %p527 = scmp.lt.s32.totalorder %s524, 15
        %s528 = scalar_select %p527, %s524, 15
        %s529 = smul.addr %s526, 16
        %s530 = sadd.s32 %s528, %s529
        %s531 = smul.addr %s530, 8
        %s532 = scalar_lea.vmem %s3, %s531
        %s533 = smul.u32 16, %s20
        %s534 = smul.u32 16, %s21
        %s535 = smul.u32 16, %s21
        %s536 = smul.u32 16, %s20
        %p537 = scmp.lt.s32.totalorder %s19, 1
        %s538 = scalar_select %p537, %s19, 1
        %p539 = scmp.lt.s32.totalorder %s536, 15
        %s540 = scalar_select %p539, %s536, 15
        %s541 = smul.addr %s538, 16
        %s542 = sadd.s32 %s540, %s541
        %s543 = smul.addr %s542, 8
        %s544 = scalar_lea.vmem %s3, %s543
        %s545 = smul.u32 16, %s20
        %p546 = scmp.eq.s32.totalorder %s21, 0
        // Predicated region
        $region147: #{attention_forward.4} parent=133 // pred_check
          %p547 = pneg %p546
        $region148: #{attention_forward.4} parent=133 // pred_check_branch
          %549 = sbr.rel (%p547) target = $region150
        $region149: #{attention_forward.4} parent=133 // pred_region
          %vm550 = vcmask 7168
          %551 = vst.msk [vmem:[#allocation2] sm:$0xff] %vm550, -inf
          %552 = vst.msk [vmem:[#allocation2 + $0x8] sm:$0xff] %vm550, -inf
          %553 = vst.msk [vmem:[#allocation2 + $0x10] sm:$0xff] %vm550, -inf
          %554 = vst.msk [vmem:[#allocation2 + $0x18] sm:$0xff] %vm550, -inf
          %555 = vst.msk [vmem:[#allocation2 + $0x20] sm:$0xff] %vm550, -inf
          %556 = vst.msk [vmem:[#allocation2 + $0x28] sm:$0xff] %vm550, -inf
          %557 = vst.msk [vmem:[#allocation2 + $0x30] sm:$0xff] %vm550, -inf
          %558 = vst.msk [vmem:[#allocation2 + $0x38] sm:$0xff] %vm550, -inf
          %559 = vst.msk [vmem:[#allocation2 + $0x40] sm:$0xff] %vm550, -inf
          %560 = vst.msk [vmem:[#allocation2 + $0x48] sm:$0xff] %vm550, -inf
          %561 = vst.msk [vmem:[#allocation2 + $0x50] sm:$0xff] %vm550, -inf
          %562 = vst.msk [vmem:[#allocation2 + $0x58] sm:$0xff] %vm550, -inf
          %563 = vst.msk [vmem:[#allocation2 + $0x60] sm:$0xff] %vm550, -inf
          %564 = vst.msk [vmem:[#allocation2 + $0x68] sm:$0xff] %vm550, -inf
          %565 = vst.msk [vmem:[#allocation2 + $0x70] sm:$0xff] %vm550, -inf
          %566 = vst.msk [vmem:[#allocation2 + $0x78] sm:$0xff] %vm550, -inf
          %567 = vst.msk [vmem:[#allocation2 + $0x80] sm:$0xff] %vm550, -inf
          %568 = vst.msk [vmem:[#allocation2 + $0x88] sm:$0xff] %vm550, -inf
          %569 = vst.msk [vmem:[#allocation2 + $0x90] sm:$0xff] %vm550, -inf
          %570 = vst.msk [vmem:[#allocation2 + $0x98] sm:$0xff] %vm550, -inf
          %571 = vst.msk [vmem:[#allocation2 + $0xa0] sm:$0xff] %vm550, -inf
          %572 = vst.msk [vmem:[#allocation2 + $0xa8] sm:$0xff] %vm550, -inf
          %573 = vst.msk [vmem:[#allocation2 + $0xb0] sm:$0xff] %vm550, -inf
          %574 = vst.msk [vmem:[#allocation2 + $0xb8] sm:$0xff] %vm550, -inf
          %575 = vst.msk [vmem:[#allocation2 + $0xc0] sm:$0xff] %vm550, -inf
          %576 = vst.msk [vmem:[#allocation2 + $0xc8] sm:$0xff] %vm550, -inf
          %577 = vst.msk [vmem:[#allocation2 + $0xd0] sm:$0xff] %vm550, -inf
          %578 = vst.msk [vmem:[#allocation2 + $0xd8] sm:$0xff] %vm550, -inf
          %579 = vst.msk [vmem:[#allocation2 + $0xe0] sm:$0xff] %vm550, -inf
          %580 = vst.msk [vmem:[#allocation2 + $0xe8] sm:$0xff] %vm550, -inf
          %581 = vst.msk [vmem:[#allocation2 + $0xf0] sm:$0xff] %vm550, -inf
          %582 = vst.msk [vmem:[#allocation2 + $0xf8] sm:$0xff] %vm550, -inf
          %583 = vst.msk [vmem:[#allocation2 + $0x100] sm:$0xff] %vm550, -inf
          %584 = vst.msk [vmem:[#allocation2 + $0x108] sm:$0xff] %vm550, -inf
          %585 = vst.msk [vmem:[#allocation2 + $0x110] sm:$0xff] %vm550, -inf
          %586 = vst.msk [vmem:[#allocation2 + $0x118] sm:$0xff] %vm550, -inf
          %587 = vst.msk [vmem:[#allocation2 + $0x120] sm:$0xff] %vm550, -inf
          %588 = vst.msk [vmem:[#allocation2 + $0x128] sm:$0xff] %vm550, -inf
          %589 = vst.msk [vmem:[#allocation2 + $0x130] sm:$0xff] %vm550, -inf
          %590 = vst.msk [vmem:[#allocation2 + $0x138] sm:$0xff] %vm550, -inf
          %591 = vst.msk [vmem:[#allocation2 + $0x140] sm:$0xff] %vm550, -inf
          %592 = vst.msk [vmem:[#allocation2 + $0x148] sm:$0xff] %vm550, -inf
          %593 = vst.msk [vmem:[#allocation2 + $0x150] sm:$0xff] %vm550, -inf
          %594 = vst.msk [vmem:[#allocation2 + $0x158] sm:$0xff] %vm550, -inf
          %595 = vst.msk [vmem:[#allocation2 + $0x160] sm:$0xff] %vm550, -inf
          %596 = vst.msk [vmem:[#allocation2 + $0x168] sm:$0xff] %vm550, -inf
          %597 = vst.msk [vmem:[#allocation2 + $0x170] sm:$0xff] %vm550, -inf
          %598 = vst.msk [vmem:[#allocation2 + $0x178] sm:$0xff] %vm550, -inf
          %599 = vst.msk [vmem:[#allocation2 + $0x180] sm:$0xff] %vm550, -inf
          %600 = vst.msk [vmem:[#allocation2 + $0x188] sm:$0xff] %vm550, -inf
          %601 = vst.msk [vmem:[#allocation2 + $0x190] sm:$0xff] %vm550, -inf
          %602 = vst.msk [vmem:[#allocation2 + $0x198] sm:$0xff] %vm550, -inf
          %603 = vst.msk [vmem:[#allocation2 + $0x1a0] sm:$0xff] %vm550, -inf
          %604 = vst.msk [vmem:[#allocation2 + $0x1a8] sm:$0xff] %vm550, -inf
          %605 = vst.msk [vmem:[#allocation2 + $0x1b0] sm:$0xff] %vm550, -inf
          %606 = vst.msk [vmem:[#allocation2 + $0x1b8] sm:$0xff] %vm550, -inf
          %607 = vst.msk [vmem:[#allocation2 + $0x1c0] sm:$0xff] %vm550, -inf
          %608 = vst.msk [vmem:[#allocation2 + $0x1c8] sm:$0xff] %vm550, -inf
          %609 = vst.msk [vmem:[#allocation2 + $0x1d0] sm:$0xff] %vm550, -inf
          %610 = vst.msk [vmem:[#allocation2 + $0x1d8] sm:$0xff] %vm550, -inf
          %611 = vst.msk [vmem:[#allocation2 + $0x1e0] sm:$0xff] %vm550, -inf
          %612 = vst.msk [vmem:[#allocation2 + $0x1e8] sm:$0xff] %vm550, -inf
          %613 = vst.msk [vmem:[#allocation2 + $0x1f0] sm:$0xff] %vm550, -inf
          %614 = vst.msk [vmem:[#allocation2 + $0x1f8] sm:$0xff] %vm550, -inf
          %615 = vst.msk [vmem:[#allocation3] sm:$0xff] %vm550, 0.0
          %616 = vst.msk [vmem:[#allocation3 + $0x8] sm:$0xff] %vm550, 0.0
          %617 = vst.msk [vmem:[#allocation3 + $0x10] sm:$0xff] %vm550, 0.0
          %618 = vst.msk [vmem:[#allocation3 + $0x18] sm:$0xff] %vm550, 0.0
          %619 = vst.msk [vmem:[#allocation3 + $0x20] sm:$0xff] %vm550, 0.0
          %620 = vst.msk [vmem:[#allocation3 + $0x28] sm:$0xff] %vm550, 0.0
          %621 = vst.msk [vmem:[#allocation3 + $0x30] sm:$0xff] %vm550, 0.0
          %622 = vst.msk [vmem:[#allocation3 + $0x38] sm:$0xff] %vm550, 0.0
          %623 = vst.msk [vmem:[#allocation3 + $0x40] sm:$0xff] %vm550, 0.0
          %624 = vst.msk [vmem:[#allocation3 + $0x48] sm:$0xff] %vm550, 0.0
          %625 = vst.msk [vmem:[#allocation3 + $0x50] sm:$0xff] %vm550, 0.0
          %626 = vst.msk [vmem:[#allocation3 + $0x58] sm:$0xff] %vm550, 0.0
          %627 = vst.msk [vmem:[#allocation3 + $0x60] sm:$0xff] %vm550, 0.0
          %628 = vst.msk [vmem:[#allocation3 + $0x68] sm:$0xff] %vm550, 0.0
          %629 = vst.msk [vmem:[#allocation3 + $0x70] sm:$0xff] %vm550, 0.0
          %630 = vst.msk [vmem:[#allocation3 + $0x78] sm:$0xff] %vm550, 0.0
          %631 = vst.msk [vmem:[#allocation3 + $0x80] sm:$0xff] %vm550, 0.0
          %632 = vst.msk [vmem:[#allocation3 + $0x88] sm:$0xff] %vm550, 0.0
          %633 = vst.msk [vmem:[#allocation3 + $0x90] sm:$0xff] %vm550, 0.0
          %634 = vst.msk [vmem:[#allocation3 + $0x98] sm:$0xff] %vm550, 0.0
          %635 = vst.msk [vmem:[#allocation3 + $0xa0] sm:$0xff] %vm550, 0.0
          %636 = vst.msk [vmem:[#allocation3 + $0xa8] sm:$0xff] %vm550, 0.0
          %637 = vst.msk [vmem:[#allocation3 + $0xb0] sm:$0xff] %vm550, 0.0
          %638 = vst.msk [vmem:[#allocation3 + $0xb8] sm:$0xff] %vm550, 0.0
          %639 = vst.msk [vmem:[#allocation3 + $0xc0] sm:$0xff] %vm550, 0.0
          %640 = vst.msk [vmem:[#allocation3 + $0xc8] sm:$0xff] %vm550, 0.0
          %641 = vst.msk [vmem:[#allocation3 + $0xd0] sm:$0xff] %vm550, 0.0
          %642 = vst.msk [vmem:[#allocation3 + $0xd8] sm:$0xff] %vm550, 0.0
          %643 = vst.msk [vmem:[#allocation3 + $0xe0] sm:$0xff] %vm550, 0.0
          %644 = vst.msk [vmem:[#allocation3 + $0xe8] sm:$0xff] %vm550, 0.0
          %645 = vst.msk [vmem:[#allocation3 + $0xf0] sm:$0xff] %vm550, 0.0
          %646 = vst.msk [vmem:[#allocation3 + $0xf8] sm:$0xff] %vm550, 0.0
          %647 = vst.msk [vmem:[#allocation3 + $0x100] sm:$0xff] %vm550, 0.0
          %648 = vst.msk [vmem:[#allocation3 + $0x108] sm:$0xff] %vm550, 0.0
          %649 = vst.msk [vmem:[#allocation3 + $0x110] sm:$0xff] %vm550, 0.0
          %650 = vst.msk [vmem:[#allocation3 + $0x118] sm:$0xff] %vm550, 0.0
          %651 = vst.msk [vmem:[#allocation3 + $0x120] sm:$0xff] %vm550, 0.0
          %652 = vst.msk [vmem:[#allocation3 + $0x128] sm:$0xff] %vm550, 0.0
          %653 = vst.msk [vmem:[#allocation3 + $0x130] sm:$0xff] %vm550, 0.0
          %654 = vst.msk [vmem:[#allocation3 + $0x138] sm:$0xff] %vm550, 0.0
          %655 = vst.msk [vmem:[#allocation3 + $0x140] sm:$0xff] %vm550, 0.0
          %656 = vst.msk [vmem:[#allocation3 + $0x148] sm:$0xff] %vm550, 0.0
          %657 = vst.msk [vmem:[#allocation3 + $0x150] sm:$0xff] %vm550, 0.0
          %658 = vst.msk [vmem:[#allocation3 + $0x158] sm:$0xff] %vm550, 0.0
          %659 = vst.msk [vmem:[#allocation3 + $0x160] sm:$0xff] %vm550, 0.0
          %660 = vst.msk [vmem:[#allocation3 + $0x168] sm:$0xff] %vm550, 0.0
          %661 = vst.msk [vmem:[#allocation3 + $0x170] sm:$0xff] %vm550, 0.0
          %662 = vst.msk [vmem:[#allocation3 + $0x178] sm:$0xff] %vm550, 0.0
          %663 = vst.msk [vmem:[#allocation3 + $0x180] sm:$0xff] %vm550, 0.0
          %664 = vst.msk [vmem:[#allocation3 + $0x188] sm:$0xff] %vm550, 0.0
          %665 = vst.msk [vmem:[#allocation3 + $0x190] sm:$0xff] %vm550, 0.0
          %666 = vst.msk [vmem:[#allocation3 + $0x198] sm:$0xff] %vm550, 0.0
          %667 = vst.msk [vmem:[#allocation3 + $0x1a0] sm:$0xff] %vm550, 0.0
          %668 = vst.msk [vmem:[#allocation3 + $0x1a8] sm:$0xff] %vm550, 0.0
          %669 = vst.msk [vmem:[#allocation3 + $0x1b0] sm:$0xff] %vm550, 0.0
          %670 = vst.msk [vmem:[#allocation3 + $0x1b8] sm:$0xff] %vm550, 0.0
          %671 = vst.msk [vmem:[#allocation3 + $0x1c0] sm:$0xff] %vm550, 0.0
          %672 = vst.msk [vmem:[#allocation3 + $0x1c8] sm:$0xff] %vm550, 0.0
          %673 = vst.msk [vmem:[#allocation3 + $0x1d0] sm:$0xff] %vm550, 0.0
          %674 = vst.msk [vmem:[#allocation3 + $0x1d8] sm:$0xff] %vm550, 0.0
          %675 = vst.msk [vmem:[#allocation3 + $0x1e0] sm:$0xff] %vm550, 0.0
          %676 = vst.msk [vmem:[#allocation3 + $0x1e8] sm:$0xff] %vm550, 0.0
          %677 = vst.msk [vmem:[#allocation3 + $0x1f0] sm:$0xff] %vm550, 0.0
          %678 = vst.msk [vmem:[#allocation3 + $0x1f8] sm:$0xff] %vm550, 0.0
          %vm679 = vcmask 261120
          %680 = vst.msk [vmem:[#allocation4] sm:$0xff] %vm679, 0.0
          %681 = vst.msk [vmem:[#allocation4 + $0x8] sm:$0xff] %vm679, 0.0
          %682 = vst.msk [vmem:[#allocation4 + $0x10] sm:$0xff] %vm679, 0.0
          %683 = vst.msk [vmem:[#allocation4 + $0x18] sm:$0xff] %vm679, 0.0
          %684 = vst.msk [vmem:[#allocation4 + $0x20] sm:$0xff] %vm679, 0.0
          %685 = vst.msk [vmem:[#allocation4 + $0x28] sm:$0xff] %vm679, 0.0
          %686 = vst.msk [vmem:[#allocation4 + $0x30] sm:$0xff] %vm679, 0.0
          %687 = vst.msk [vmem:[#allocation4 + $0x38] sm:$0xff] %vm679, 0.0
          %688 = vst.msk [vmem:[#allocation4 + $0x40] sm:$0xff] %vm679, 0.0
          %689 = vst.msk [vmem:[#allocation4 + $0x48] sm:$0xff] %vm679, 0.0
          %690 = vst.msk [vmem:[#allocation4 + $0x50] sm:$0xff] %vm679, 0.0
          %691 = vst.msk [vmem:[#allocation4 + $0x58] sm:$0xff] %vm679, 0.0
          %692 = vst.msk [vmem:[#allocation4 + $0x60] sm:$0xff] %vm679, 0.0
          %693 = vst.msk [vmem:[#allocation4 + $0x68] sm:$0xff] %vm679, 0.0
          %694 = vst.msk [vmem:[#allocation4 + $0x70] sm:$0xff] %vm679, 0.0
          %695 = vst.msk [vmem:[#allocation4 + $0x78] sm:$0xff] %vm679, 0.0
          %696 = vst.msk [vmem:[#allocation4 + $0x80] sm:$0xff] %vm679, 0.0
          %697 = vst.msk [vmem:[#allocation4 + $0x88] sm:$0xff] %vm679, 0.0
          %698 = vst.msk [vmem:[#allocation4 + $0x90] sm:$0xff] %vm679, 0.0
          %699 = vst.msk [vmem:[#allocation4 + $0x98] sm:$0xff] %vm679, 0.0
          %700 = vst.msk [vmem:[#allocation4 + $0xa0] sm:$0xff] %vm679, 0.0
          %701 = vst.msk [vmem:[#allocation4 + $0xa8] sm:$0xff] %vm679, 0.0
          %702 = vst.msk [vmem:[#allocation4 + $0xb0] sm:$0xff] %vm679, 0.0
          %703 = vst.msk [vmem:[#allocation4 + $0xb8] sm:$0xff] %vm679, 0.0
          %704 = vst.msk [vmem:[#allocation4 + $0xc0] sm:$0xff] %vm679, 0.0
          %705 = vst.msk [vmem:[#allocation4 + $0xc8] sm:$0xff] %vm679, 0.0
          %706 = vst.msk [vmem:[#allocation4 + $0xd0] sm:$0xff] %vm679, 0.0
          %707 = vst.msk [vmem:[#allocation4 + $0xd8] sm:$0xff] %vm679, 0.0
          %708 = vst.msk [vmem:[#allocation4 + $0xe0] sm:$0xff] %vm679, 0.0
          %709 = vst.msk [vmem:[#allocation4 + $0xe8] sm:$0xff] %vm679, 0.0
          %710 = vst.msk [vmem:[#allocation4 + $0xf0] sm:$0xff] %vm679, 0.0
          %711 = vst.msk [vmem:[#allocation4 + $0xf8] sm:$0xff] %vm679, 0.0
          %712 = vst.msk [vmem:[#allocation4 + $0x100] sm:$0xff] %vm679, 0.0
          %713 = vst.msk [vmem:[#allocation4 + $0x108] sm:$0xff] %vm679, 0.0
          %714 = vst.msk [vmem:[#allocation4 + $0x110] sm:$0xff] %vm679, 0.0
          %715 = vst.msk [vmem:[#allocation4 + $0x118] sm:$0xff] %vm679, 0.0
          %716 = vst.msk [vmem:[#allocation4 + $0x120] sm:$0xff] %vm679, 0.0
          %717 = vst.msk [vmem:[#allocation4 + $0x128] sm:$0xff] %vm679, 0.0
          %718 = vst.msk [vmem:[#allocation4 + $0x130] sm:$0xff] %vm679, 0.0
          %719 = vst.msk [vmem:[#allocation4 + $0x138] sm:$0xff] %vm679, 0.0
          %720 = vst.msk [vmem:[#allocation4 + $0x140] sm:$0xff] %vm679, 0.0
          %721 = vst.msk [vmem:[#allocation4 + $0x148] sm:$0xff] %vm679, 0.0
          %722 = vst.msk [vmem:[#allocation4 + $0x150] sm:$0xff] %vm679, 0.0
          %723 = vst.msk [vmem:[#allocation4 + $0x158] sm:$0xff] %vm679, 0.0
          %724 = vst.msk [vmem:[#allocation4 + $0x160] sm:$0xff] %vm679, 0.0
          %725 = vst.msk [vmem:[#allocation4 + $0x168] sm:$0xff] %vm679, 0.0
          %726 = vst.msk [vmem:[#allocation4 + $0x170] sm:$0xff] %vm679, 0.0
          %727 = vst.msk [vmem:[#allocation4 + $0x178] sm:$0xff] %vm679, 0.0
          %728 = vst.msk [vmem:[#allocation4 + $0x180] sm:$0xff] %vm679, 0.0
          %729 = vst.msk [vmem:[#allocation4 + $0x188] sm:$0xff] %vm679, 0.0
          %730 = vst.msk [vmem:[#allocation4 + $0x190] sm:$0xff] %vm679, 0.0
          %731 = vst.msk [vmem:[#allocation4 + $0x198] sm:$0xff] %vm679, 0.0
          %732 = vst.msk [vmem:[#allocation4 + $0x1a0] sm:$0xff] %vm679, 0.0
          %733 = vst.msk [vmem:[#allocation4 + $0x1a8] sm:$0xff] %vm679, 0.0
          %734 = vst.msk [vmem:[#allocation4 + $0x1b0] sm:$0xff] %vm679, 0.0
          %735 = vst.msk [vmem:[#allocation4 + $0x1b8] sm:$0xff] %vm679, 0.0
          %736 = vst.msk [vmem:[#allocation4 + $0x1c0] sm:$0xff] %vm679, 0.0
          %737 = vst.msk [vmem:[#allocation4 + $0x1c8] sm:$0xff] %vm679, 0.0
          %738 = vst.msk [vmem:[#allocation4 + $0x1d0] sm:$0xff] %vm679, 0.0
          %739 = vst.msk [vmem:[#allocation4 + $0x1d8] sm:$0xff] %vm679, 0.0
          %740 = vst.msk [vmem:[#allocation4 + $0x1e0] sm:$0xff] %vm679, 0.0
          %741 = vst.msk [vmem:[#allocation4 + $0x1e8] sm:$0xff] %vm679, 0.0
          %742 = vst.msk [vmem:[#allocation4 + $0x1f0] sm:$0xff] %vm679, 0.0
          %743 = vst.msk [vmem:[#allocation4 + $0x1f8] sm:$0xff] %vm679, 0.0
        $region150: #{attention_forward.4} parent=133 // pred_fallthru
          _
        %v744 = vld [vmem:[%s486] sm:$0xff]
        %v745 = vld [vmem:[%s486 + $0x8] sm:$0xff]
        %v746 = vld [vmem:[%s486 + $0x10] sm:$0xff]
        %v747 = vld [vmem:[%s486 + $0x18] sm:$0xff]
        %v748 = vld [vmem:[%s486 + $0x20] sm:$0xff]
        %v749 = vld [vmem:[%s486 + $0x28] sm:$0xff]
        %v750 = vld [vmem:[%s486 + $0x30] sm:$0xff]
        %v751 = vld [vmem:[%s486 + $0x38] sm:$0xff]
        %v752 = vld [vmem:[%s486 + $0x40] sm:$0xff]
        %v753 = vld [vmem:[%s486 + $0x48] sm:$0xff]
        %v754 = vld [vmem:[%s486 + $0x50] sm:$0xff]
        %v755 = vld [vmem:[%s486 + $0x58] sm:$0xff]
        %v756 = vld [vmem:[%s486 + $0x60] sm:$0xff]
        %v757 = vld [vmem:[%s486 + $0x68] sm:$0xff]
        %v758 = vld [vmem:[%s486 + $0x70] sm:$0xff]
        %v759 = vld [vmem:[%s486 + $0x78] sm:$0xff]
        %v760 = vmul.f32 %v744, 0.17677669
        %v761 = vmul.f32 %v745, 0.17677669
        %v762 = vmul.f32 %v746, 0.17677669
        %v763 = vmul.f32 %v747, 0.17677669
        %v764 = vmul.f32 %v748, 0.17677669
        %v765 = vmul.f32 %v749, 0.17677669
        %v766 = vmul.f32 %v750, 0.17677669
        %v767 = vmul.f32 %v751, 0.17677669
        %v768 = vmul.f32 %v752, 0.17677669
        %v769 = vmul.f32 %v753, 0.17677669
        %v770 = vmul.f32 %v754, 0.17677669
        %v771 = vmul.f32 %v755, 0.17677669
        %v772 = vmul.f32 %v756, 0.17677669
        %v773 = vmul.f32 %v757, 0.17677669
        %v774 = vmul.f32 %v758, 0.17677669
        %v775 = vmul.f32 %v759, 0.17677669
        %v776 = vld [vmem:[%s493] sm:$0xff]
        %v777 = vld [vmem:[%s493 + $0x8] sm:$0xff]
        %v778 = vld [vmem:[%s493 + $0x10] sm:$0xff]
        %v779 = vld [vmem:[%s493 + $0x18] sm:$0xff]
        %v780 = vld [vmem:[%s493 + $0x20] sm:$0xff]
        %v781 = vld [vmem:[%s493 + $0x28] sm:$0xff]
        %v782 = vld [vmem:[%s493 + $0x30] sm:$0xff]
        %v783 = vld [vmem:[%s493 + $0x38] sm:$0xff]
        %v784 = vld [vmem:[%s493 + $0x40] sm:$0xff]
        %v785 = vld [vmem:[%s493 + $0x48] sm:$0xff]
        %v786 = vld [vmem:[%s493 + $0x50] sm:$0xff]
        %v787 = vld [vmem:[%s493 + $0x58] sm:$0xff]
        %v788 = vld [vmem:[%s493 + $0x60] sm:$0xff]
        %v789 = vld [vmem:[%s493 + $0x68] sm:$0xff]
        %v790 = vld [vmem:[%s493 + $0x70] sm:$0xff]
        %v791 = vld [vmem:[%s493 + $0x78] sm:$0xff]
        %v792 = vld [vmem:[%s500] sm:$0xff]
        %v793 = vld [vmem:[%s500 + $0x8] sm:$0xff]
        %v794 = vld [vmem:[%s500 + $0x10] sm:$0xff]
        %v795 = vld [vmem:[%s500 + $0x18] sm:$0xff]
        %v796 = vld [vmem:[%s500 + $0x20] sm:$0xff]
        %v797 = vld [vmem:[%s500 + $0x28] sm:$0xff]
        %v798 = vld [vmem:[%s500 + $0x30] sm:$0xff]
        %v799 = vld [vmem:[%s500 + $0x38] sm:$0xff]
        %v800 = vld [vmem:[%s500 + $0x40] sm:$0xff]
        %v801 = vld [vmem:[%s500 + $0x48] sm:$0xff]
        %v802 = vld [vmem:[%s500 + $0x50] sm:$0xff]
        %v803 = vld [vmem:[%s500 + $0x58] sm:$0xff]
        %v804 = vld [vmem:[%s500 + $0x60] sm:$0xff]
        %v805 = vld [vmem:[%s500 + $0x68] sm:$0xff]
        %v806 = vld [vmem:[%s500 + $0x70] sm:$0xff]
        %v807 = vld [vmem:[%s500 + $0x78] sm:$0xff]
        %vm808 = vcmask 261120
        %v810 = vsel %vm808, %v760, 0
        %v813 = vsel %vm808, %v761, 0
        %v816 = vsel %vm808, %v762, 0
        %v819 = vsel %vm808, %v763, 0
        %v822 = vsel %vm808, %v764, 0
        %v825 = vsel %vm808, %v765, 0
        %v828 = vsel %vm808, %v766, 0
        %v831 = vsel %vm808, %v767, 0
        %v834 = vsel %vm808, %v768, 0
        %v837 = vsel %vm808, %v769, 0
        %v840 = vsel %vm808, %v770, 0
        %v843 = vsel %vm808, %v771, 0
        %v846 = vsel %vm808, %v772, 0
        %v849 = vsel %vm808, %v773, 0
        %v852 = vsel %vm808, %v774, 0
        %v855 = vsel %vm808, %v775, 0
        %v858 = vsel %vm808, %v776, 0
        %v861 = vsel %vm808, %v777, 0
        %v864 = vsel %vm808, %v778, 0
        %v867 = vsel %vm808, %v779, 0
        %v870 = vsel %vm808, %v780, 0
        %v873 = vsel %vm808, %v781, 0
        %v876 = vsel %vm808, %v782, 0
        %v879 = vsel %vm808, %v783, 0
        %v882 = vsel %vm808, %v784, 0
        %v885 = vsel %vm808, %v785, 0
        %v888 = vsel %vm808, %v786, 0
        %v891 = vsel %vm808, %v787, 0
        %v894 = vsel %vm808, %v788, 0
        %v897 = vsel %vm808, %v789, 0
        %v900 = vsel %vm808, %v790, 0
        %v903 = vsel %vm808, %v791, 0
        %905 = vmatprep.subr.mxu0 0.0
        %906 = vmatpush1.xpose.msra.mxu0 %v858
        %907 = vmatprep.subr.mxu0 0.0
        %908 = vmatpush1.xpose.msra.mxu0 %v861
        %909 = vmatprep.subr.mxu0 0.0
        %910 = vmatpush1.xpose.msra.mxu0 %v864
        %911 = vmatprep.subr.mxu0 0.0
        %912 = vmatpush1.xpose.msra.mxu0 %v867
        %913 = vmatprep.subr.mxu0 0.0
        %914 = vmatpush1.xpose.msra.mxu0 %v870
        %915 = vmatprep.subr.mxu0 0.0
        %916 = vmatpush1.xpose.msra.mxu0 %v873
        %917 = vmatprep.subr.mxu0 0.0
        %918 = vmatpush1.xpose.msra.mxu0 %v876
        %919 = vmatprep.subr.mxu0 0.0
        %920 = vmatpush1.xpose.msra.mxu0 %v879
        %921 = vmatprep.subr.mxu0 0.0
        %922 = vmatpush1.xpose.msra.mxu0 %v882
        %923 = vmatprep.subr.mxu0 0.0
        %924 = vmatpush1.xpose.msra.mxu0 %v885
        %925 = vmatprep.subr.mxu0 0.0
        %926 = vmatpush1.xpose.msra.mxu0 %v888
        %927 = vmatprep.subr.mxu0 0.0
        %928 = vmatpush1.xpose.msra.mxu0 %v891
        %929 = vmatprep.subr.mxu0 0.0
        %930 = vmatpush1.xpose.msra.mxu0 %v894
        %931 = vmatprep.subr.mxu0 0.0
        %932 = vmatpush1.xpose.msra.mxu0 %v897
        %933 = vmatprep.subr.mxu0 0.0
        %934 = vmatpush1.xpose.msra.mxu0 %v900
        %935 = vmatprep.subr.mxu0 0.0
        %936 = vmatpush1.xpose.msra.mxu0 %v903
        %937 = vmatprep.subr.mxu0 0.0
        %938 = vmatpush1.xpose.msra.mxu0 0.0
        %939 = vmatprep.subr.mxu0 0.0
        %940 = vmatpush1.xpose.msra.mxu0 0.0
        %941 = vmatprep.subr.mxu0 0.0
        %942 = vmatpush1.xpose.msra.mxu0 0.0
        %943 = vmatprep.subr.mxu0 0.0
        %944 = vmatpush1.xpose.msra.mxu0 0.0
        %945 = vmatprep.subr.mxu0 0.0
        %946 = vmatpush1.xpose.msra.mxu0 0.0
        %947 = vmatprep.subr.mxu0 0.0
        %948 = vmatpush1.xpose.msra.mxu0 0.0
        %949 = vmatprep.subr.mxu0 0.0
        %950 = vmatpush1.xpose.msra.mxu0 0.0
        %951 = vmatprep.subr.mxu0 0.0
        %952 = vmatpush1.xpose.msra.mxu0 0.0
        %953 = vmatprep.subr.mxu0 0.0
        %954 = vmatpush1.xpose.msra.mxu0 0.0
        %955 = vmatprep.subr.mxu0 0.0
        %956 = vmatpush1.xpose.msra.mxu0 0.0
        %957 = vmatprep.subr.mxu0 0.0
        %958 = vmatpush1.xpose.msra.mxu0 0.0
        %959 = vmatprep.subr.mxu0 0.0
        %960 = vmatpush1.xpose.msra.mxu0 0.0
        %961 = vmatprep.subr.mxu0 0.0
        %962 = vmatpush1.xpose.msra.mxu0 0.0
        %963 = vmatprep.subr.mxu0 0.0
        %964 = vmatpush1.xpose.msra.mxu0 0.0
        %965 = vmatprep.subr.mxu0 0.0
        %966 = vmatpush1.xpose.msra.mxu0 0.0
        %967 = vmatprep.subr.mxu0 0.0
        %968 = vmatpush1.xpose.msra.mxu0 0.0
        %969 = vmatprep.mubr.f32.mxu0 0.0
        %970 = vmatmul.mubr.f32.gmra.mrb[0].mxu0 %v810
        %v971 = vpop.f32.mrb[0].mxu0
        %v972 = vadd.f32 0.0, %v971
        %v973 = vpop.f32.mrb[0].mxu0
        %974 = vmatprep.mubr.f32.mxu0 0.0
        %975 = vmatmul.mubr.f32.gmra.mrb[0].mxu0 %v813
        %v976 = vpop.f32.mrb[0].mxu0
        %v977 = vadd.f32 0.0, %v976
        %v978 = vpop.f32.mrb[0].mxu0
        %979 = vmatprep.mubr.f32.mxu0 0.0
        %980 = vmatmul.mubr.f32.gmra.mrb[0].mxu0 %v816
        %v981 = vpop.f32.mrb[0].mxu0
        %v982 = vadd.f32 0.0, %v981
        %v983 = vpop.f32.mrb[0].mxu0
        %984 = vmatprep.mubr.f32.mxu0 0.0
        %985 = vmatmul.mubr.f32.gmra.mrb[0].mxu0 %v819
        %v986 = vpop.f32.mrb[0].mxu0
        %v987 = vadd.f32 0.0, %v986
        %v988 = vpop.f32.mrb[0].mxu0
        %989 = vmatprep.mubr.f32.mxu0 0.0
        %990 = vmatmul.mubr.f32.gmra.mrb[0].mxu0 %v822
        %v991 = vpop.f32.mrb[0].mxu0
        %v992 = vadd.f32 0.0, %v991
        %v993 = vpop.f32.mrb[0].mxu0
        %994 = vmatprep.mubr.f32.mxu0 0.0
        %995 = vmatmul.mubr.f32.gmra.mrb[0].mxu0 %v825
        %v996 = vpop.f32.mrb[0].mxu0
        %v997 = vadd.f32 0.0, %v996
        %v998 = vpop.f32.mrb[0].mxu0
        %999 = vmatprep.mubr.f32.mxu0 0.0
        %1000 = vmatmul.mubr.f32.gmra.mrb[0].mxu0 %v828
        %v1001 = vpop.f32.mrb[0].mxu0
        %v1002 = vadd.f32 0.0, %v1001
        %v1003 = vpop.f32.mrb[0].mxu0
        %1004 = vmatprep.mubr.f32.mxu0 0.0
        %1005 = vmatmul.mubr.f32.gmra.mrb[0].mxu0 %v831
        %v1006 = vpop.f32.mrb[0].mxu0
        %v1007 = vadd.f32 0.0, %v1006
        %v1008 = vpop.f32.mrb[0].mxu0
        %1009 = vmatprep.mubr.f32.mxu0 0.0
        %1010 = vmatmul.mubr.f32.gmra.mrb[0].mxu0 %v834
        %v1011 = vpop.f32.mrb[0].mxu0
        %v1012 = vadd.f32 0.0, %v1011
        %v1013 = vpop.f32.mrb[0].mxu0
        %1014 = vmatprep.mubr.f32.mxu0 0.0
        %1015 = vmatmul.mubr.f32.gmra.mrb[0].mxu0 %v837
        %v1016 = vpop.f32.mrb[0].mxu0
        %v1017 = vadd.f32 0.0, %v1016
        %v1018 = vpop.f32.mrb[0].mxu0
        %1019 = vmatprep.mubr.f32.mxu0 0.0
        %1020 = vmatmul.mubr.f32.gmra.mrb[0].mxu0 %v840
        %v1021 = vpop.f32.mrb[0].mxu0
        %v1022 = vadd.f32 0.0, %v1021
        %v1023 = vpop.f32.mrb[0].mxu0
        %1024 = vmatprep.mubr.f32.mxu0 0.0
        %1025 = vmatmul.mubr.f32.gmra.mrb[0].mxu0 %v843
        %v1026 = vpop.f32.mrb[0].mxu0
        %v1027 = vadd.f32 0.0, %v1026
        %v1028 = vpop.f32.mrb[0].mxu0
        %1029 = vmatprep.mubr.f32.mxu0 0.0
        %1030 = vmatmul.mubr.f32.gmra.mrb[0].mxu0 %v846
        %v1031 = vpop.f32.mrb[0].mxu0
        %v1032 = vadd.f32 0.0, %v1031
        %v1033 = vpop.f32.mrb[0].mxu0
        %1034 = vmatprep.mubr.f32.mxu0 0.0
        %1035 = vmatmul.mubr.f32.gmra.mrb[0].mxu0 %v849
        %v1036 = vpop.f32.mrb[0].mxu0
        %v1037 = vadd.f32 0.0, %v1036
        %v1038 = vpop.f32.mrb[0].mxu0
        %1039 = vmatprep.mubr.f32.mxu0 0.0
        %1040 = vmatmul.mubr.f32.gmra.mrb[0].mxu0 %v852
        %v1041 = vpop.f32.mrb[0].mxu0
        %v1042 = vadd.f32 0.0, %v1041
        %v1043 = vpop.f32.mrb[0].mxu0
        %1044 = vmatprep.mubr.f32.mxu0 0.0
        %1045 = vmatmul.mubr.f32.gmra.mrb[0].mxu0 %v855
        %v1046 = vpop.f32.mrb[0].mxu0
        %v1047 = vadd.f32 0.0, %v1046
        %v1048 = vpop.f32.mrb[0].mxu0
        %1049 = vdwg.mxu0
        %v1050 = vld [vmem:[#allocation2] sm:$0xff]
        %v1051 = vld [vmem:[#allocation2 + $0x8] sm:$0xff]
        %v1052 = vld [vmem:[#allocation2 + $0x10] sm:$0xff]
        %v1053 = vld [vmem:[#allocation2 + $0x18] sm:$0xff]
        %v1054 = vld [vmem:[#allocation2 + $0x20] sm:$0xff]
        %v1055 = vld [vmem:[#allocation2 + $0x28] sm:$0xff]
        %v1056 = vld [vmem:[#allocation2 + $0x30] sm:$0xff]
        %v1057 = vld [vmem:[#allocation2 + $0x38] sm:$0xff]
        %v1058 = vld [vmem:[#allocation2 + $0x40] sm:$0xff]
        %v1059 = vld [vmem:[#allocation2 + $0x48] sm:$0xff]
        %v1060 = vld [vmem:[#allocation2 + $0x50] sm:$0xff]
        %v1061 = vld [vmem:[#allocation2 + $0x58] sm:$0xff]
        %v1062 = vld [vmem:[#allocation2 + $0x60] sm:$0xff]
        %v1063 = vld [vmem:[#allocation2 + $0x68] sm:$0xff]
        %v1064 = vld [vmem:[#allocation2 + $0x70] sm:$0xff]
        %v1065 = vld [vmem:[#allocation2 + $0x78] sm:$0xff]
        %1066 = vmax.xlane.f32.xlu0 %v972
        %v1067 = vpop.xlane.xlu0 %1066
        %1068 = vmax.xlane.f32.xlu0 %v977
        %v1069 = vpop.xlane.xlu0 %1068
        %1070 = vmax.xlane.f32.xlu0 %v982
        %v1071 = vpop.xlane.xlu0 %1070
        %1072 = vmax.xlane.f32.xlu0 %v987
        %v1073 = vpop.xlane.xlu0 %1072
        %1074 = vmax.xlane.f32.xlu0 %v992
        %v1075 = vpop.xlane.xlu0 %1074
        %1076 = vmax.xlane.f32.xlu0 %v997
        %v1077 = vpop.xlane.xlu0 %1076
        %1078 = vmax.xlane.f32.xlu0 %v1002
        %v1079 = vpop.xlane.xlu0 %1078
        %1080 = vmax.xlane.f32.xlu0 %v1007
        %v1081 = vpop.xlane.xlu0 %1080
        %1082 = vmax.xlane.f32.xlu0 %v1012
        %v1083 = vpop.xlane.xlu0 %1082
        %1084 = vmax.xlane.f32.xlu0 %v1017
        %v1085 = vpop.xlane.xlu0 %1084
        %1086 = vmax.xlane.f32.xlu0 %v1022
        %v1087 = vpop.xlane.xlu0 %1086
        %1088 = vmax.xlane.f32.xlu0 %v1027
        %v1089 = vpop.xlane.xlu0 %1088
        %1090 = vmax.xlane.f32.xlu0 %v1032
        %v1091 = vpop.xlane.xlu0 %1090
        %1092 = vmax.xlane.f32.xlu0 %v1037
        %v1093 = vpop.xlane.xlu0 %1092
        %1094 = vmax.xlane.f32.xlu0 %v1042
        %v1095 = vpop.xlane.xlu0 %1094
        %1096 = vmax.xlane.f32.xlu0 %v1047
        %v1097 = vpop.xlane.xlu0 %1096
        %v1098 = vmax.f32 %v1050, %v1067
        %v1099 = vmax.f32 %v1051, %v1069
        %v1100 = vmax.f32 %v1052, %v1071
        %v1101 = vmax.f32 %v1053, %v1073
        %v1102 = vmax.f32 %v1054, %v1075
        %v1103 = vmax.f32 %v1055, %v1077
        %v1104 = vmax.f32 %v1056, %v1079
        %v1105 = vmax.f32 %v1057, %v1081
        %v1106 = vmax.f32 %v1058, %v1083
        %v1107 = vmax.f32 %v1059, %v1085
        %v1108 = vmax.f32 %v1060, %v1087
        %v1109 = vmax.f32 %v1061, %v1089
        %v1110 = vmax.f32 %v1062, %v1091
        %v1111 = vmax.f32 %v1063, %v1093
        %v1112 = vmax.f32 %v1064, %v1095
        %v1113 = vmax.f32 %v1065, %v1097
        %v1114 = vsub.f32 %v1050, %v1098
        %v1115 = vsub.f32 %v1051, %v1099
        %v1116 = vsub.f32 %v1052, %v1100
        %v1117 = vsub.f32 %v1053, %v1101
        %v1118 = vsub.f32 %v1054, %v1102
        %v1119 = vsub.f32 %v1055, %v1103
        %v1120 = vsub.f32 %v1056, %v1104
        %v1121 = vsub.f32 %v1057, %v1105
        %v1122 = vsub.f32 %v1058, %v1106
        %v1123 = vsub.f32 %v1059, %v1107
        %v1124 = vsub.f32 %v1060, %v1108
        %v1125 = vsub.f32 %v1061, %v1109
        %v1126 = vsub.f32 %v1062, %v1110
        %v1127 = vsub.f32 %v1063, %v1111
        %v1128 = vsub.f32 %v1064, %v1112
        %v1129 = vsub.f32 %v1065, %v1113
        %v1130 = vmul.f32 %v1114, 1.442695
        %v1131 = vpow.pop %v1130
        %v1132 = vmul.f32 %v1115, 1.442695
        %v1133 = vpow.pop %v1132
        %v1134 = vmul.f32 %v1116, 1.442695
        %v1135 = vpow.pop %v1134
        %v1136 = vmul.f32 %v1117, 1.442695
        %v1137 = vpow.pop %v1136
        %v1138 = vmul.f32 %v1118, 1.442695
        %v1139 = vpow.pop %v1138
        %v1140 = vmul.f32 %v1119, 1.442695
        %v1141 = vpow.pop %v1140
        %v1142 = vmul.f32 %v1120, 1.442695
        %v1143 = vpow.pop %v1142
        %v1144 = vmul.f32 %v1121, 1.442695
        %v1145 = vpow.pop %v1144
        %v1146 = vmul.f32 %v1122, 1.442695
        %v1147 = vpow.pop %v1146
        %v1148 = vmul.f32 %v1123, 1.442695
        %v1149 = vpow.pop %v1148
        %v1150 = vmul.f32 %v1124, 1.442695
        %v1151 = vpow.pop %v1150
        %v1152 = vmul.f32 %v1125, 1.442695
        %v1153 = vpow.pop %v1152
        %v1154 = vmul.f32 %v1126, 1.442695
        %v1155 = vpow.pop %v1154
        %v1156 = vmul.f32 %v1127, 1.442695
        %v1157 = vpow.pop %v1156
        %v1158 = vmul.f32 %v1128, 1.442695
        %v1159 = vpow.pop %v1158
        %v1160 = vmul.f32 %v1129, 1.442695
        %v1161 = vpow.pop %v1160
        %1163 = vset.pattern.permute.xlu0 0
        %1164 = vperm.xlu0 %1163, %v1098
        %v1165 = vpop.permute.xlu0 %1164
        %1168 = vset.pattern.permute.xlu0 0
        %1169 = vperm.xlu0 %1168, %v1099
        %v1170 = vpop.permute.xlu0 %1169
        %1173 = vset.pattern.permute.xlu0 0
        %1174 = vperm.xlu0 %1173, %v1100
        %v1175 = vpop.permute.xlu0 %1174
        %1178 = vset.pattern.permute.xlu0 0
        %1179 = vperm.xlu0 %1178, %v1101
        %v1180 = vpop.permute.xlu0 %1179
        %1183 = vset.pattern.permute.xlu0 0
        %1184 = vperm.xlu0 %1183, %v1102
        %v1185 = vpop.permute.xlu0 %1184
        %1188 = vset.pattern.permute.xlu0 0
        %1189 = vperm.xlu0 %1188, %v1103
        %v1190 = vpop.permute.xlu0 %1189
        %1193 = vset.pattern.permute.xlu0 0
        %1194 = vperm.xlu0 %1193, %v1104
        %v1195 = vpop.permute.xlu0 %1194
        %1198 = vset.pattern.permute.xlu0 0
        %1199 = vperm.xlu0 %1198, %v1105
        %v1200 = vpop.permute.xlu0 %1199
        %1203 = vset.pattern.permute.xlu0 0
        %1204 = vperm.xlu0 %1203, %v1106
        %v1205 = vpop.permute.xlu0 %1204
        %1208 = vset.pattern.permute.xlu0 0
        %1209 = vperm.xlu0 %1208, %v1107
        %v1210 = vpop.permute.xlu0 %1209
        %1213 = vset.pattern.permute.xlu0 0
        %1214 = vperm.xlu0 %1213, %v1108
        %v1215 = vpop.permute.xlu0 %1214
        %1218 = vset.pattern.permute.xlu0 0
        %1219 = vperm.xlu0 %1218, %v1109
        %v1220 = vpop.permute.xlu0 %1219
        %1223 = vset.pattern.permute.xlu0 0
        %1224 = vperm.xlu0 %1223, %v1110
        %v1225 = vpop.permute.xlu0 %1224
        %1228 = vset.pattern.permute.xlu0 0
        %1229 = vperm.xlu0 %1228, %v1111
        %v1230 = vpop.permute.xlu0 %1229
        %1233 = vset.pattern.permute.xlu0 0
        %1234 = vperm.xlu0 %1233, %v1112
        %v1235 = vpop.permute.xlu0 %1234
        %1238 = vset.pattern.permute.xlu0 0
        %1239 = vperm.xlu0 %1238, %v1113
        %v1240 = vpop.permute.xlu0 %1239
        %v1242 = vsub.f32 %v972, %v1165
        %v1243 = vsub.f32 %v977, %v1170
        %v1244 = vsub.f32 %v982, %v1175
        %v1245 = vsub.f32 %v987, %v1180
        %v1246 = vsub.f32 %v992, %v1185
        %v1247 = vsub.f32 %v997, %v1190
        %v1248 = vsub.f32 %v1002, %v1195
        %v1249 = vsub.f32 %v1007, %v1200
        %v1250 = vsub.f32 %v1012, %v1205
        %v1251 = vsub.f32 %v1017, %v1210
        %v1252 = vsub.f32 %v1022, %v1215
        %v1253 = vsub.f32 %v1027, %v1220
        %v1254 = vsub.f32 %v1032, %v1225
        %v1255 = vsub.f32 %v1037, %v1230
        %v1256 = vsub.f32 %v1042, %v1235
        %v1257 = vsub.f32 %v1047, %v1240
        %v1258 = vmul.f32 %v1242, 1.442695
        %v1259 = vpow.pop %v1258
        %v1260 = vmul.f32 %v1243, 1.442695
        %v1261 = vpow.pop %v1260
        %v1262 = vmul.f32 %v1244, 1.442695
        %v1263 = vpow.pop %v1262
        %v1264 = vmul.f32 %v1245, 1.442695
        %v1265 = vpow.pop %v1264
        %v1266 = vmul.f32 %v1246, 1.442695
        %v1267 = vpow.pop %v1266
        %v1268 = vmul.f32 %v1247, 1.442695
        %v1269 = vpow.pop %v1268
        %v1270 = vmul.f32 %v1248, 1.442695
        %v1271 = vpow.pop %v1270
        %v1272 = vmul.f32 %v1249, 1.442695
        %v1273 = vpow.pop %v1272
        %v1274 = vmul.f32 %v1250, 1.442695
        %v1275 = vpow.pop %v1274
        %v1276 = vmul.f32 %v1251, 1.442695
        %v1277 = vpow.pop %v1276
        %v1278 = vmul.f32 %v1252, 1.442695
        %v1279 = vpow.pop %v1278
        %v1280 = vmul.f32 %v1253, 1.442695
        %v1281 = vpow.pop %v1280
        %v1282 = vmul.f32 %v1254, 1.442695
        %v1283 = vpow.pop %v1282
        %v1284 = vmul.f32 %v1255, 1.442695
        %v1285 = vpow.pop %v1284
        %v1286 = vmul.f32 %v1256, 1.442695
        %v1287 = vpow.pop %v1286
        %v1288 = vmul.f32 %v1257, 1.442695
        %v1289 = vpow.pop %v1288
        %v1290 = vld [vmem:[#allocation3] sm:$0xff]
        %v1291 = vld [vmem:[#allocation3 + $0x8] sm:$0xff]
        %v1292 = vld [vmem:[#allocation3 + $0x10] sm:$0xff]
        %v1293 = vld [vmem:[#allocation3 + $0x18] sm:$0xff]
        %v1294 = vld [vmem:[#allocation3 + $0x20] sm:$0xff]
        %v1295 = vld [vmem:[#allocation3 + $0x28] sm:$0xff]
        %v1296 = vld [vmem:[#allocation3 + $0x30] sm:$0xff]
        %v1297 = vld [vmem:[#allocation3 + $0x38] sm:$0xff]
        %v1298 = vld [vmem:[#allocation3 + $0x40] sm:$0xff]
        %v1299 = vld [vmem:[#allocation3 + $0x48] sm:$0xff]
        %v1300 = vld [vmem:[#allocation3 + $0x50] sm:$0xff]
        %v1301 = vld [vmem:[#allocation3 + $0x58] sm:$0xff]
        %v1302 = vld [vmem:[#allocation3 + $0x60] sm:$0xff]
        %v1303 = vld [vmem:[#allocation3 + $0x68] sm:$0xff]
        %v1304 = vld [vmem:[#allocation3 + $0x70] sm:$0xff]
        %v1305 = vld [vmem:[#allocation3 + $0x78] sm:$0xff]
        %v1306 = vmul.f32 %v1131, %v1290
        %v1307 = vmul.f32 %v1133, %v1291
        %v1308 = vmul.f32 %v1135, %v1292
        %v1309 = vmul.f32 %v1137, %v1293
        %v1310 = vmul.f32 %v1139, %v1294
        %v1311 = vmul.f32 %v1141, %v1295
        %v1312 = vmul.f32 %v1143, %v1296
        %v1313 = vmul.f32 %v1145, %v1297
        %v1314 = vmul.f32 %v1147, %v1298
        %v1315 = vmul.f32 %v1149, %v1299
        %v1316 = vmul.f32 %v1151, %v1300
        %v1317 = vmul.f32 %v1153, %v1301
        %v1318 = vmul.f32 %v1155, %v1302
        %v1319 = vmul.f32 %v1157, %v1303
        %v1320 = vmul.f32 %v1159, %v1304
        %v1321 = vmul.f32 %v1161, %v1305
        %1322 = vadd.xlane.f32.xlu0 %v1259
        %v1323 = vpop.xlane.xlu0 %1322
        %1324 = vadd.xlane.f32.xlu0 %v1261
        %v1325 = vpop.xlane.xlu0 %1324
        %1326 = vadd.xlane.f32.xlu0 %v1263
        %v1327 = vpop.xlane.xlu0 %1326
        %1328 = vadd.xlane.f32.xlu0 %v1265
        %v1329 = vpop.xlane.xlu0 %1328
        %1330 = vadd.xlane.f32.xlu0 %v1267
        %v1331 = vpop.xlane.xlu0 %1330
        %1332 = vadd.xlane.f32.xlu0 %v1269
        %v1333 = vpop.xlane.xlu0 %1332
        %1334 = vadd.xlane.f32.xlu0 %v1271
        %v1335 = vpop.xlane.xlu0 %1334
        %1336 = vadd.xlane.f32.xlu0 %v1273
        %v1337 = vpop.xlane.xlu0 %1336
        %1338 = vadd.xlane.f32.xlu0 %v1275
        %v1339 = vpop.xlane.xlu0 %1338
        %1340 = vadd.xlane.f32.xlu0 %v1277
        %v1341 = vpop.xlane.xlu0 %1340
        %1342 = vadd.xlane.f32.xlu0 %v1279
        %v1343 = vpop.xlane.xlu0 %1342
        %1344 = vadd.xlane.f32.xlu0 %v1281
        %v1345 = vpop.xlane.xlu0 %1344
        %1346 = vadd.xlane.f32.xlu0 %v1283
        %v1347 = vpop.xlane.xlu0 %1346
        %1348 = vadd.xlane.f32.xlu0 %v1285
        %v1349 = vpop.xlane.xlu0 %1348
        %1350 = vadd.xlane.f32.xlu0 %v1287
        %v1351 = vpop.xlane.xlu0 %1350
        %1352 = vadd.xlane.f32.xlu0 %v1289
        %v1353 = vpop.xlane.xlu0 %1352
        %v1354 = vadd.f32 %v1306, %v1323
        %v1355 = vadd.f32 %v1307, %v1325
        %v1356 = vadd.f32 %v1308, %v1327
        %v1357 = vadd.f32 %v1309, %v1329
        %v1358 = vadd.f32 %v1310, %v1331
        %v1359 = vadd.f32 %v1311, %v1333
        %v1360 = vadd.f32 %v1312, %v1335
        %v1361 = vadd.f32 %v1313, %v1337
        %v1362 = vadd.f32 %v1314, %v1339
        %v1363 = vadd.f32 %v1315, %v1341
        %v1364 = vadd.f32 %v1316, %v1343
        %v1365 = vadd.f32 %v1317, %v1345
        %v1366 = vadd.f32 %v1318, %v1347
        %v1367 = vadd.f32 %v1319, %v1349
        %v1368 = vadd.f32 %v1320, %v1351
        %v1369 = vadd.f32 %v1321, %v1353
        %vm1370 = vcmask 7168
        %1371 = vst.msk [vmem:[#allocation3] sm:$0xff] %vm1370, %v1354
        %1372 = vst.msk [vmem:[#allocation3 + $0x8] sm:$0xff] %vm1370, %v1355
        %1373 = vst.msk [vmem:[#allocation3 + $0x10] sm:$0xff] %vm1370, %v1356
        %1374 = vst.msk [vmem:[#allocation3 + $0x18] sm:$0xff] %vm1370, %v1357
        %1375 = vst.msk [vmem:[#allocation3 + $0x20] sm:$0xff] %vm1370, %v1358
        %1376 = vst.msk [vmem:[#allocation3 + $0x28] sm:$0xff] %vm1370, %v1359
        %1377 = vst.msk [vmem:[#allocation3 + $0x30] sm:$0xff] %vm1370, %v1360
        %1378 = vst.msk [vmem:[#allocation3 + $0x38] sm:$0xff] %vm1370, %v1361
        %1379 = vst.msk [vmem:[#allocation3 + $0x40] sm:$0xff] %vm1370, %v1362
        %1380 = vst.msk [vmem:[#allocation3 + $0x48] sm:$0xff] %vm1370, %v1363
        %1381 = vst.msk [vmem:[#allocation3 + $0x50] sm:$0xff] %vm1370, %v1364
        %1382 = vst.msk [vmem:[#allocation3 + $0x58] sm:$0xff] %vm1370, %v1365
        %1383 = vst.msk [vmem:[#allocation3 + $0x60] sm:$0xff] %vm1370, %v1366
        %1384 = vst.msk [vmem:[#allocation3 + $0x68] sm:$0xff] %vm1370, %v1367
        %1385 = vst.msk [vmem:[#allocation3 + $0x70] sm:$0xff] %vm1370, %v1368
        %1386 = vst.msk [vmem:[#allocation3 + $0x78] sm:$0xff] %vm1370, %v1369
        %v1387 = vld [vmem:[#allocation4] sm:$0xff]
        %v1388 = vld [vmem:[#allocation4 + $0x8] sm:$0xff]
        %v1389 = vld [vmem:[#allocation4 + $0x10] sm:$0xff]
        %v1390 = vld [vmem:[#allocation4 + $0x18] sm:$0xff]
        %v1391 = vld [vmem:[#allocation4 + $0x20] sm:$0xff]
        %v1392 = vld [vmem:[#allocation4 + $0x28] sm:$0xff]
        %v1393 = vld [vmem:[#allocation4 + $0x30] sm:$0xff]
        %v1394 = vld [vmem:[#allocation4 + $0x38] sm:$0xff]
        %v1395 = vld [vmem:[#allocation4 + $0x40] sm:$0xff]
        %v1396 = vld [vmem:[#allocation4 + $0x48] sm:$0xff]
        %v1397 = vld [vmem:[#allocation4 + $0x50] sm:$0xff]
        %v1398 = vld [vmem:[#allocation4 + $0x58] sm:$0xff]
        %v1399 = vld [vmem:[#allocation4 + $0x60] sm:$0xff]
        %v1400 = vld [vmem:[#allocation4 + $0x68] sm:$0xff]
        %v1401 = vld [vmem:[#allocation4 + $0x70] sm:$0xff]
        %v1402 = vld [vmem:[#allocation4 + $0x78] sm:$0xff]
        %1404 = vset.pattern.permute.xlu0 0
        %1405 = vperm.xlu0 %1404, %v1131
        %v1406 = vpop.permute.xlu0 %1405
        %1409 = vset.pattern.permute.xlu0 0
        %1410 = vperm.xlu0 %1409, %v1133
        %v1411 = vpop.permute.xlu0 %1410
        %1414 = vset.pattern.permute.xlu0 0
        %1415 = vperm.xlu0 %1414, %v1135
        %v1416 = vpop.permute.xlu0 %1415
        %1419 = vset.pattern.permute.xlu0 0
        %1420 = vperm.xlu0 %1419, %v1137
        %v1421 = vpop.permute.xlu0 %1420
        %1424 = vset.pattern.permute.xlu0 0
        %1425 = vperm.xlu0 %1424, %v1139
        %v1426 = vpop.permute.xlu0 %1425
        %1429 = vset.pattern.permute.xlu0 0
        %1430 = vperm.xlu0 %1429, %v1141
        %v1431 = vpop.permute.xlu0 %1430
        %1434 = vset.pattern.permute.xlu0 0
        %1435 = vperm.xlu0 %1434, %v1143
        %v1436 = vpop.permute.xlu0 %1435
        %1439 = vset.pattern.permute.xlu0 0
        %1440 = vperm.xlu0 %1439, %v1145
        %v1441 = vpop.permute.xlu0 %1440
        %1444 = vset.pattern.permute.xlu0 0
        %1445 = vperm.xlu0 %1444, %v1147
        %v1446 = vpop.permute.xlu0 %1445
        %1449 = vset.pattern.permute.xlu0 0
        %1450 = vperm.xlu0 %1449, %v1149
        %v1451 = vpop.permute.xlu0 %1450
        %1454 = vset.pattern.permute.xlu0 0
        %1455 = vperm.xlu0 %1454, %v1151
        %v1456 = vpop.permute.xlu0 %1455
        %1459 = vset.pattern.permute.xlu0 0
        %1460 = vperm.xlu0 %1459, %v1153
        %v1461 = vpop.permute.xlu0 %1460
        %1464 = vset.pattern.permute.xlu0 0
        %1465 = vperm.xlu0 %1464, %v1155
        %v1466 = vpop.permute.xlu0 %1465
        %1469 = vset.pattern.permute.xlu0 0
        %1470 = vperm.xlu0 %1469, %v1157
        %v1471 = vpop.permute.xlu0 %1470
        %1474 = vset.pattern.permute.xlu0 0
        %1475 = vperm.xlu0 %1474, %v1159
        %v1476 = vpop.permute.xlu0 %1475
        %1479 = vset.pattern.permute.xlu0 0
        %1480 = vperm.xlu0 %1479, %v1161
        %v1481 = vpop.permute.xlu0 %1480
        %v1483 = vmul.f32 %v1406, %v1387
        %v1484 = vmul.f32 %v1411, %v1388
        %v1485 = vmul.f32 %v1416, %v1389
        %v1486 = vmul.f32 %v1421, %v1390
        %v1487 = vmul.f32 %v1426, %v1391
        %v1488 = vmul.f32 %v1431, %v1392
        %v1489 = vmul.f32 %v1436, %v1393
        %v1490 = vmul.f32 %v1441, %v1394
        %v1491 = vmul.f32 %v1446, %v1395
        %v1492 = vmul.f32 %v1451, %v1396
        %v1493 = vmul.f32 %v1456, %v1397
        %v1494 = vmul.f32 %v1461, %v1398
        %v1495 = vmul.f32 %v1466, %v1399
        %v1496 = vmul.f32 %v1471, %v1400
        %v1497 = vmul.f32 %v1476, %v1401
        %v1498 = vmul.f32 %v1481, %v1402
        %1499 = vmatprep.subr.mxu0 0.0
        %1500 = vmatpush1.msra.mxu0 %v792
        %1501 = vmatprep.subr.mxu0 0.0
        %1502 = vmatpush1.msra.mxu0 %v793
        %1503 = vmatprep.subr.mxu0 0.0
        %1504 = vmatpush1.msra.mxu0 %v794
        %1505 = vmatprep.subr.mxu0 0.0
        %1506 = vmatpush1.msra.mxu0 %v795
        %1507 = vmatprep.subr.mxu0 0.0
        %1508 = vmatpush1.msra.mxu0 %v796
        %1509 = vmatprep.subr.mxu0 0.0
        %1510 = vmatpush1.msra.mxu0 %v797
        %1511 = vmatprep.subr.mxu0 0.0
        %1512 = vmatpush1.msra.mxu0 %v798
        %1513 = vmatprep.subr.mxu0 0.0
        %1514 = vmatpush1.msra.mxu0 %v799
        %1515 = vmatprep.subr.mxu0 0.0
        %1516 = vmatpush1.msra.mxu0 %v800
        %1517 = vmatprep.subr.mxu0 0.0
        %1518 = vmatpush1.msra.mxu0 %v801
        %1519 = vmatprep.subr.mxu0 0.0
        %1520 = vmatpush1.msra.mxu0 %v802
        %1521 = vmatprep.subr.mxu0 0.0
        %1522 = vmatpush1.msra.mxu0 %v803
        %1523 = vmatprep.subr.mxu0 0.0
        %1524 = vmatpush1.msra.mxu0 %v804
        %1525 = vmatprep.subr.mxu0 0.0
        %1526 = vmatpush1.msra.mxu0 %v805
        %1527 = vmatprep.subr.mxu0 0.0
        %1528 = vmatpush1.msra.mxu0 %v806
        %1529 = vmatprep.subr.mxu0 0.0
        %1530 = vmatpush1.msra.mxu0 %v807
        %1531 = vmatprep.subr.mxu0 0.0
        %1532 = vmatpush1.msra.mxu0 0.0
        %1533 = vmatprep.subr.mxu0 0.0
        %1534 = vmatpush1.msra.mxu0 0.0
        %1535 = vmatprep.subr.mxu0 0.0
        %1536 = vmatpush1.msra.mxu0 0.0
        %1537 = vmatprep.subr.mxu0 0.0
        %1538 = vmatpush1.msra.mxu0 0.0
        %1539 = vmatprep.subr.mxu0 0.0
        %1540 = vmatpush1.msra.mxu0 0.0
        %1541 = vmatprep.subr.mxu0 0.0
        %1542 = vmatpush1.msra.mxu0 0.0
        %1543 = vmatprep.subr.mxu0 0.0
        %1544 = vmatpush1.msra.mxu0 0.0
        %1545 = vmatprep.subr.mxu0 0.0
        %1546 = vmatpush1.msra.mxu0 0.0
        %1547 = vmatprep.subr.mxu0 0.0
        %1548 = vmatpush1.msra.mxu0 0.0
        %1549 = vmatprep.subr.mxu0 0.0
        %1550 = vmatpush1.msra.mxu0 0.0
        %1551 = vmatprep.subr.mxu0 0.0
        %1552 = vmatpush1.msra.mxu0 0.0
        %1553 = vmatprep.subr.mxu0 0.0
        %1554 = vmatpush1.msra.mxu0 0.0
        %1555 = vmatprep.subr.mxu0 0.0
        %1556 = vmatpush1.msra.mxu0 0.0
        %1557 = vmatprep.subr.mxu0 0.0
        %1558 = vmatpush1.msra.mxu0 0.0
        %1559 = vmatprep.subr.mxu0 0.0
        %1560 = vmatpush1.msra.mxu0 0.0
        %1561 = vmatprep.subr.mxu0 0.0
        %1562 = vmatpush1.msra.mxu0 0.0
        %1563 = vmatprep.mubr.f32.mxu0 0.0
        %1564 = vmatmul.mubr.f32.gmra.mrb[0].mxu0 %v1259
        %v1565 = vpop.f32.mrb[0].mxu0
        %v1566 = vadd.f32 0.0, %v1565
        %v1567 = vpop.f32.mrb[0].mxu0
        %1568 = vmatprep.mubr.f32.mxu0 0.0
        %1569 = vmatmul.mubr.f32.gmra.mrb[0].mxu0 %v1261
        %v1570 = vpop.f32.mrb[0].mxu0
        %v1571 = vadd.f32 0.0, %v1570
        %v1572 = vpop.f32.mrb[0].mxu0
        %1573 = vmatprep.mubr.f32.mxu0 0.0
        %1574 = vmatmul.mubr.f32.gmra.mrb[0].mxu0 %v1263
        %v1575 = vpop.f32.mrb[0].mxu0
        %v1576 = vadd.f32 0.0, %v1575
        %v1577 = vpop.f32.mrb[0].mxu0
        %1578 = vmatprep.mubr.f32.mxu0 0.0
        %1579 = vmatmul.mubr.f32.gmra.mrb[0].mxu0 %v1265
        %v1580 = vpop.f32.mrb[0].mxu0
        %v1581 = vadd.f32 0.0, %v1580
        %v1582 = vpop.f32.mrb[0].mxu0
        %1583 = vmatprep.mubr.f32.mxu0 0.0
        %1584 = vmatmul.mubr.f32.gmra.mrb[0].mxu0 %v1267
        %v1585 = vpop.f32.mrb[0].mxu0
        %v1586 = vadd.f32 0.0, %v1585
        %v1587 = vpop.f32.mrb[0].mxu0
        %1588 = vmatprep.mubr.f32.mxu0 0.0
        %1589 = vmatmul.mubr.f32.gmra.mrb[0].mxu0 %v1269
        %v1590 = vpop.f32.mrb[0].mxu0
        %v1591 = vadd.f32 0.0, %v1590
        %v1592 = vpop.f32.mrb[0].mxu0
        %1593 = vmatprep.mubr.f32.mxu0 0.0
        %1594 = vmatmul.mubr.f32.gmra.mrb[0].mxu0 %v1271
        %v1595 = vpop.f32.mrb[0].mxu0
        %v1596 = vadd.f32 0.0, %v1595
        %v1597 = vpop.f32.mrb[0].mxu0
        %1598 = vmatprep.mubr.f32.mxu0 0.0
        %1599 = vmatmul.mubr.f32.gmra.mrb[0].mxu0 %v1273
        %v1600 = vpop.f32.mrb[0].mxu0
        %v1601 = vadd.f32 0.0, %v1600
        %v1602 = vpop.f32.mrb[0].mxu0
        %1603 = vmatprep.mubr.f32.mxu0 0.0
        %1604 = vmatmul.mubr.f32.gmra.mrb[0].mxu0 %v1275
        %v1605 = vpop.f32.mrb[0].mxu0
        %v1606 = vadd.f32 0.0, %v1605
        %v1607 = vpop.f32.mrb[0].mxu0
        %1608 = vmatprep.mubr.f32.mxu0 0.0
        %1609 = vmatmul.mubr.f32.gmra.mrb[0].mxu0 %v1277
        %v1610 = vpop.f32.mrb[0].mxu0
        %v1611 = vadd.f32 0.0, %v1610
        %v1612 = vpop.f32.mrb[0].mxu0
        %1613 = vmatprep.mubr.f32.mxu0 0.0
        %1614 = vmatmul.mubr.f32.gmra.mrb[0].mxu0 %v1279
        %v1615 = vpop.f32.mrb[0].mxu0
        %v1616 = vadd.f32 0.0, %v1615
        %v1617 = vpop.f32.mrb[0].mxu0
        %1618 = vmatprep.mubr.f32.mxu0 0.0
        %1619 = vmatmul.mubr.f32.gmra.mrb[0].mxu0 %v1281
        %v1620 = vpop.f32.mrb[0].mxu0
        %v1621 = vadd.f32 0.0, %v1620
        %v1622 = vpop.f32.mrb[0].mxu0
        %1623 = vmatprep.mubr.f32.mxu0 0.0
        %1624 = vmatmul.mubr.f32.gmra.mrb[0].mxu0 %v1283
        %v1625 = vpop.f32.mrb[0].mxu0
        %v1626 = vadd.f32 0.0, %v1625
        %v1627 = vpop.f32.mrb[0].mxu0
        %1628 = vmatprep.mubr.f32.mxu0 0.0
        %1629 = vmatmul.mubr.f32.gmra.mrb[0].mxu0 %v1285
        %v1630 = vpop.f32.mrb[0].mxu0
        %v1631 = vadd.f32 0.0, %v1630
        %v1632 = vpop.f32.mrb[0].mxu0
        %1633 = vmatprep.mubr.f32.mxu0 0.0
        %1634 = vmatmul.mubr.f32.gmra.mrb[0].mxu0 %v1287
        %v1635 = vpop.f32.mrb[0].mxu0
        %v1636 = vadd.f32 0.0, %v1635
        %v1637 = vpop.f32.mrb[0].mxu0
        %1638 = vmatprep.mubr.f32.mxu0 0.0
        %1639 = vmatmul.mubr.f32.gmra.mrb[0].mxu0 %v1289
        %v1640 = vpop.f32.mrb[0].mxu0
        %v1641 = vadd.f32 0.0, %v1640
        %v1642 = vpop.f32.mrb[0].mxu0
        %1643 = vdwg.mxu0
        %v1644 = vadd.f32 %v1483, %v1566
        %v1645 = vadd.f32 %v1484, %v1571
        %v1646 = vadd.f32 %v1485, %v1576
        %v1647 = vadd.f32 %v1486, %v1581
        %v1648 = vadd.f32 %v1487, %v1586
        %v1649 = vadd.f32 %v1488, %v1591
        %v1650 = vadd.f32 %v1489, %v1596
        %v1651 = vadd.f32 %v1490, %v1601
        %v1652 = vadd.f32 %v1491, %v1606
        %v1653 = vadd.f32 %v1492, %v1611
        %v1654 = vadd.f32 %v1493, %v1616
        %v1655 = vadd.f32 %v1494, %v1621
        %v1656 = vadd.f32 %v1495, %v1626
        %v1657 = vadd.f32 %v1496, %v1631
        %v1658 = vadd.f32 %v1497, %v1636
        %v1659 = vadd.f32 %v1498, %v1641
        %1660 = vst.msk [vmem:[#allocation4] sm:$0xff] %vm808, %v1644
        %1661 = vst.msk [vmem:[#allocation4 + $0x8] sm:$0xff] %vm808, %v1645
        %1662 = vst.msk [vmem:[#allocation4 + $0x10] sm:$0xff] %vm808, %v1646
        %1663 = vst.msk [vmem:[#allocation4 + $0x18] sm:$0xff] %vm808, %v1647
        %1664 = vst.msk [vmem:[#allocation4 + $0x20] sm:$0xff] %vm808, %v1648
        %1665 = vst.msk [vmem:[#allocation4 + $0x28] sm:$0xff] %vm808, %v1649
        %1666 = vst.msk [vmem:[#allocation4 + $0x30] sm:$0xff] %vm808, %v1650
        %1667 = vst.msk [vmem:[#allocation4 + $0x38] sm:$0xff] %vm808, %v1651
        %1668 = vst.msk [vmem:[#allocation4 + $0x40] sm:$0xff] %vm808, %v1652
        %1669 = vst.msk [vmem:[#allocation4 + $0x48] sm:$0xff] %vm808, %v1653
        %1670 = vst.msk [vmem:[#allocation4 + $0x50] sm:$0xff] %vm808, %v1654
        %1671 = vst.msk [vmem:[#allocation4 + $0x58] sm:$0xff] %vm808, %v1655
        %1672 = vst.msk [vmem:[#allocation4 + $0x60] sm:$0xff] %vm808, %v1656
        %1673 = vst.msk [vmem:[#allocation4 + $0x68] sm:$0xff] %vm808, %v1657
        %1674 = vst.msk [vmem:[#allocation4 + $0x70] sm:$0xff] %vm808, %v1658
        %1675 = vst.msk [vmem:[#allocation4 + $0x78] sm:$0xff] %vm808, %v1659
        %1676 = vst.msk [vmem:[#allocation2] sm:$0xff] %vm1370, %v1098
        %1677 = vst.msk [vmem:[#allocation2 + $0x8] sm:$0xff] %vm1370, %v1099
        %1678 = vst.msk [vmem:[#allocation2 + $0x10] sm:$0xff] %vm1370, %v1100
        %1679 = vst.msk [vmem:[#allocation2 + $0x18] sm:$0xff] %vm1370, %v1101
        %1680 = vst.msk [vmem:[#allocation2 + $0x20] sm:$0xff] %vm1370, %v1102
        %1681 = vst.msk [vmem:[#allocation2 + $0x28] sm:$0xff] %vm1370, %v1103
        %1682 = vst.msk [vmem:[#allocation2 + $0x30] sm:$0xff] %vm1370, %v1104
        %1683 = vst.msk [vmem:[#allocation2 + $0x38] sm:$0xff] %vm1370, %v1105
        %1684 = vst.msk [vmem:[#allocation2 + $0x40] sm:$0xff] %vm1370, %v1106
        %1685 = vst.msk [vmem:[#allocation2 + $0x48] sm:$0xff] %vm1370, %v1107
        %1686 = vst.msk [vmem:[#allocation2 + $0x50] sm:$0xff] %vm1370, %v1108
        %1687 = vst.msk [vmem:[#allocation2 + $0x58] sm:$0xff] %vm1370, %v1109
        %1688 = vst.msk [vmem:[#allocation2 + $0x60] sm:$0xff] %vm1370, %v1110
        %1689 = vst.msk [vmem:[#allocation2 + $0x68] sm:$0xff] %vm1370, %v1111
        %1690 = vst.msk [vmem:[#allocation2 + $0x70] sm:$0xff] %vm1370, %v1112
        %1691 = vst.msk [vmem:[#allocation2 + $0x78] sm:$0xff] %vm1370, %v1113
        %v1692 = vld [vmem:[%s486] sm:$0xff]
        %v1693 = vld [vmem:[%s486 + $0x8] sm:$0xff]
        %v1694 = vld [vmem:[%s486 + $0x10] sm:$0xff]
        %v1695 = vld [vmem:[%s486 + $0x18] sm:$0xff]
        %v1696 = vld [vmem:[%s486 + $0x20] sm:$0xff]
        %v1697 = vld [vmem:[%s486 + $0x28] sm:$0xff]
        %v1698 = vld [vmem:[%s486 + $0x30] sm:$0xff]
        %v1699 = vld [vmem:[%s486 + $0x38] sm:$0xff]
        %v1700 = vld [vmem:[%s486 + $0x40] sm:$0xff]
        %v1701 = vld [vmem:[%s486 + $0x48] sm:$0xff]
        %v1702 = vld [vmem:[%s486 + $0x50] sm:$0xff]
        %v1703 = vld [vmem:[%s486 + $0x58] sm:$0xff]
        %v1704 = vld [vmem:[%s486 + $0x60] sm:$0xff]
        %v1705 = vld [vmem:[%s486 + $0x68] sm:$0xff]
        %v1706 = vld [vmem:[%s486 + $0x70] sm:$0xff]
        %v1707 = vld [vmem:[%s486 + $0x78] sm:$0xff]
        %v1708 = vmul.f32 %v1692, 0.17677669
        %v1709 = vmul.f32 %v1693, 0.17677669
        %v1710 = vmul.f32 %v1694, 0.17677669
        %v1711 = vmul.f32 %v1695, 0.17677669
        %v1712 = vmul.f32 %v1696, 0.17677669
        %v1713 = vmul.f32 %v1697, 0.17677669
        %v1714 = vmul.f32 %v1698, 0.17677669
        %v1715 = vmul.f32 %v1699, 0.17677669
        %v1716 = vmul.f32 %v1700, 0.17677669
        %v1717 = vmul.f32 %v1701, 0.17677669
        %v1718 = vmul.f32 %v1702, 0.17677669
        %v1719 = vmul.f32 %v1703, 0.17677669
        %v1720 = vmul.f32 %v1704, 0.17677669
        %v1721 = vmul.f32 %v1705, 0.17677669
        %v1722 = vmul.f32 %v1706, 0.17677669
        %v1723 = vmul.f32 %v1707, 0.17677669
        %v1724 = vld [vmem:[%s493] sm:$0xff]
        %v1725 = vld [vmem:[%s493 + $0x8] sm:$0xff]
        %v1726 = vld [vmem:[%s493 + $0x10] sm:$0xff]
        %v1727 = vld [vmem:[%s493 + $0x18] sm:$0xff]
        %v1728 = vld [vmem:[%s493 + $0x20] sm:$0xff]
        %v1729 = vld [vmem:[%s493 + $0x28] sm:$0xff]
        %v1730 = vld [vmem:[%s493 + $0x30] sm:$0xff]
        %v1731 = vld [vmem:[%s493 + $0x38] sm:$0xff]
        %v1732 = vld [vmem:[%s493 + $0x40] sm:$0xff]
        %v1733 = vld [vmem:[%s493 + $0x48] sm:$0xff]
        %v1734 = vld [vmem:[%s493 + $0x50] sm:$0xff]
        %v1735 = vld [vmem:[%s493 + $0x58] sm:$0xff]
        %v1736 = vld [vmem:[%s493 + $0x60] sm:$0xff]
        %v1737 = vld [vmem:[%s493 + $0x68] sm:$0xff]
        %v1738 = vld [vmem:[%s493 + $0x70] sm:$0xff]
        %v1739 = vld [vmem:[%s493 + $0x78] sm:$0xff]
        %v1740 = vld [vmem:[%s500] sm:$0xff]
        %v1741 = vld [vmem:[%s500 + $0x8] sm:$0xff]
        %v1742 = vld [vmem:[%s500 + $0x10] sm:$0xff]
        %v1743 = vld [vmem:[%s500 + $0x18] sm:$0xff]
        %v1744 = vld [vmem:[%s500 + $0x20] sm:$0xff]
        %v1745 = vld [vmem:[%s500 + $0x28] sm:$0xff]
        %v1746 = vld [vmem:[%s500 + $0x30] sm:$0xff]
        %v1747 = vld [vmem:[%s500 + $0x38] sm:$0xff]
        %v1748 = vld [vmem:[%s500 + $0x40] sm:$0xff]
        %v1749 = vld [vmem:[%s500 + $0x48] sm:$0xff]
        %v1750 = vld [vmem:[%s500 + $0x50] sm:$0xff]
        %v1751 = vld [vmem:[%s500 + $0x58] sm:$0xff]
        %v1752 = vld [vmem:[%s500 + $0x60] sm:$0xff]
        %v1753 = vld [vmem:[%s500 + $0x68] sm:$0xff]
        %v1754 = vld [vmem:[%s500 + $0x70] sm:$0xff]
        %v1755 = vld [vmem:[%s500 + $0x78] sm:$0xff]
        %1772 = vrot.lane.b32.xlu0 %v1708, 96
        %v1773 = vpop.permute.xlu0 %1772
        %1774 = vrot.lane.b32.xlu0 %v1709, 96
        %v1775 = vpop.permute.xlu0 %1774
        %1776 = vrot.lane.b32.xlu0 %v1710, 96
        %v1777 = vpop.permute.xlu0 %1776
        %1778 = vrot.lane.b32.xlu0 %v1711, 96
        %v1779 = vpop.permute.xlu0 %1778
        %1780 = vrot.lane.b32.xlu0 %v1712, 96
        %v1781 = vpop.permute.xlu0 %1780
        %1782 = vrot.lane.b32.xlu0 %v1713, 96
        %v1783 = vpop.permute.xlu0 %1782
        %1784 = vrot.lane.b32.xlu0 %v1714, 96
        %v1785 = vpop.permute.xlu0 %1784
        %1786 = vrot.lane.b32.xlu0 %v1715, 96
        %v1787 = vpop.permute.xlu0 %1786
        %1788 = vrot.lane.b32.xlu0 %v1716, 96
        %v1789 = vpop.permute.xlu0 %1788
        %1790 = vrot.lane.b32.xlu0 %v1717, 96
        %v1791 = vpop.permute.xlu0 %1790
        %1792 = vrot.lane.b32.xlu0 %v1718, 96
        %v1793 = vpop.permute.xlu0 %1792
        %1794 = vrot.lane.b32.xlu0 %v1719, 96
        %v1795 = vpop.permute.xlu0 %1794
        %1796 = vrot.lane.b32.xlu0 %v1720, 96
        %v1797 = vpop.permute.xlu0 %1796
        %1798 = vrot.lane.b32.xlu0 %v1721, 96
        %v1799 = vpop.permute.xlu0 %1798
        %1800 = vrot.lane.b32.xlu0 %v1722, 96
        %v1801 = vpop.permute.xlu0 %1800
        %1802 = vrot.lane.b32.xlu0 %v1723, 96
        %v1803 = vpop.permute.xlu0 %1802
        %1820 = vrot.lane.b32.xlu0 %v1724, 96
        %v1821 = vpop.permute.xlu0 %1820
        %1822 = vrot.lane.b32.xlu0 %v1725, 96
        %v1823 = vpop.permute.xlu0 %1822
        %1824 = vrot.lane.b32.xlu0 %v1726, 96
        %v1825 = vpop.permute.xlu0 %1824
        %1826 = vrot.lane.b32.xlu0 %v1727, 96
        %v1827 = vpop.permute.xlu0 %1826
        %1828 = vrot.lane.b32.xlu0 %v1728, 96
        %v1829 = vpop.permute.xlu0 %1828
        %1830 = vrot.lane.b32.xlu0 %v1729, 96
        %v1831 = vpop.permute.xlu0 %1830
        %1832 = vrot.lane.b32.xlu0 %v1730, 96
        %v1833 = vpop.permute.xlu0 %1832
        %1834 = vrot.lane.b32.xlu0 %v1731, 96
        %v1835 = vpop.permute.xlu0 %1834
        %1836 = vrot.lane.b32.xlu0 %v1732, 96
        %v1837 = vpop.permute.xlu0 %1836
        %1838 = vrot.lane.b32.xlu0 %v1733, 96
        %v1839 = vpop.permute.xlu0 %1838
        %1840 = vrot.lane.b32.xlu0 %v1734, 96
        %v1841 = vpop.permute.xlu0 %1840
        %1842 = vrot.lane.b32.xlu0 %v1735, 96
        %v1843 = vpop.permute.xlu0 %1842
        %1844 = vrot.lane.b32.xlu0 %v1736, 96
        %v1845 = vpop.permute.xlu0 %1844
        %1846 = vrot.lane.b32.xlu0 %v1737, 96
        %v1847 = vpop.permute.xlu0 %1846
        %1848 = vrot.lane.b32.xlu0 %v1738, 96
        %v1849 = vpop.permute.xlu0 %1848
        %1850 = vrot.lane.b32.xlu0 %v1739, 96
        %v1851 = vpop.permute.xlu0 %1850
        %v1852 = vsel %vm808, %v1773, 0
        %v1854 = vsel %vm808, %v1775, 0
        %v1856 = vsel %vm808, %v1777, 0
        %v1858 = vsel %vm808, %v1779, 0
        %v1860 = vsel %vm808, %v1781, 0
        %v1862 = vsel %vm808, %v1783, 0
        %v1864 = vsel %vm808, %v1785, 0
        %v1866 = vsel %vm808, %v1787, 0
        %v1868 = vsel %vm808, %v1789, 0
        %v1870 = vsel %vm808, %v1791, 0
        %v1872 = vsel %vm808, %v1793, 0
        %v1874 = vsel %vm808, %v1795, 0
        %v1876 = vsel %vm808, %v1797, 0
        %v1878 = vsel %vm808, %v1799, 0
        %v1880 = vsel %vm808, %v1801, 0
        %v1882 = vsel %vm808, %v1803, 0
        %v1884 = vsel %vm808, %v1821, 0
        %v1886 = vsel %vm808, %v1823, 0
        %v1888 = vsel %vm808, %v1825, 0
        %v1890 = vsel %vm808, %v1827, 0
        %v1892 = vsel %vm808, %v1829, 0
        %v1894 = vsel %vm808, %v1831, 0
        %v1896 = vsel %vm808, %v1833, 0
        %v1898 = vsel %vm808, %v1835, 0
        %v1900 = vsel %vm808, %v1837, 0
        %v1902 = vsel %vm808, %v1839, 0
        %v1904 = vsel %vm808, %v1841, 0
        %v1906 = vsel %vm808, %v1843, 0
        %v1908 = vsel %vm808, %v1845, 0
        %v1910 = vsel %vm808, %v1847, 0
        %v1912 = vsel %vm808, %v1849, 0
        %v1914 = vsel %vm808, %v1851, 0
        %1916 = vmatprep.subr.mxu0 0.0
        %1917 = vmatpush1.xpose.msra.mxu0 %v1884
        %1918 = vmatprep.subr.mxu0 0.0
        %1919 = vmatpush1.xpose.msra.mxu0 %v1886
        %1920 = vmatprep.subr.mxu0 0.0
        %1921 = vmatpush1.xpose.msra.mxu0 %v1888
        %1922 = vmatprep.subr.mxu0 0.0
        %1923 = vmatpush1.xpose.msra.mxu0 %v1890
        %1924 = vmatprep.subr.mxu0 0.0
        %1925 = vmatpush1.xpose.msra.mxu0 %v1892
        %1926 = vmatprep.subr.mxu0 0.0
        %1927 = vmatpush1.xpose.msra.mxu0 %v1894
        %1928 = vmatprep.subr.mxu0 0.0
        %1929 = vmatpush1.xpose.msra.mxu0 %v1896
        %1930 = vmatprep.subr.mxu0 0.0
        %1931 = vmatpush1.xpose.msra.mxu0 %v1898
        %1932 = vmatprep.subr.mxu0 0.0
        %1933 = vmatpush1.xpose.msra.mxu0 %v1900
        %1934 = vmatprep.subr.mxu0 0.0
        %1935 = vmatpush1.xpose.msra.mxu0 %v1902
        %1936 = vmatprep.subr.mxu0 0.0
        %1937 = vmatpush1.xpose.msra.mxu0 %v1904
        %1938 = vmatprep.subr.mxu0 0.0
        %1939 = vmatpush1.xpose.msra.mxu0 %v1906
        %1940 = vmatprep.subr.mxu0 0.0
        %1941 = vmatpush1.xpose.msra.mxu0 %v1908
        %1942 = vmatprep.subr.mxu0 0.0
        %1943 = vmatpush1.xpose.msra.mxu0 %v1910
        %1944 = vmatprep.subr.mxu0 0.0
        %1945 = vmatpush1.xpose.msra.mxu0 %v1912
        %1946 = vmatprep.subr.mxu0 0.0
        %1947 = vmatpush1.xpose.msra.mxu0 %v1914
        %1948 = vmatprep.subr.mxu0 0.0
        %1949 = vmatpush1.xpose.msra.mxu0 0.0
        %1950 = vmatprep.subr.mxu0 0.0
        %1951 = vmatpush1.xpose.msra.mxu0 0.0
        %1952 = vmatprep.subr.mxu0 0.0
        %1953 = vmatpush1.xpose.msra.mxu0 0.0
        %1954 = vmatprep.subr.mxu0 0.0
        %1955 = vmatpush1.xpose.msra.mxu0 0.0
        %1956 = vmatprep.subr.mxu0 0.0
        %1957 = vmatpush1.xpose.msra.mxu0 0.0
        %1958 = vmatprep.subr.mxu0 0.0
        %1959 = vmatpush1.xpose.msra.mxu0 0.0
        %1960 = vmatprep.subr.mxu0 0.0
        %1961 = vmatpush1.xpose.msra.mxu0 0.0
        %1962 = vmatprep.subr.mxu0 0.0
        %1963 = vmatpush1.xpose.msra.mxu0 0.0
        %1964 = vmatprep.subr.mxu0 0.0
        %1965 = vmatpush1.xpose.msra.mxu0 0.0
        %1966 = vmatprep.subr.mxu0 0.0
        %1967 = vmatpush1.xpose.msra.mxu0 0.0
        %1968 = vmatprep.subr.mxu0 0.0
        %1969 = vmatpush1.xpose.msra.mxu0 0.0
        %1970 = vmatprep.subr.mxu0 0.0
        %1971 = vmatpush1.xpose.msra.mxu0 0.0
        %1972 = vmatprep.subr.mxu0 0.0
        %1973 = vmatpush1.xpose.msra.mxu0 0.0
        %1974 = vmatprep.subr.mxu0 0.0
        %1975 = vmatpush1.xpose.msra.mxu0 0.0
        %1976 = vmatprep.subr.mxu0 0.0
        %1977 = vmatpush1.xpose.msra.mxu0 0.0
        %1978 = vmatprep.subr.mxu0 0.0
        %1979 = vmatpush1.xpose.msra.mxu0 0.0
        %1980 = vmatprep.mubr.f32.mxu0 0.0
        %1981 = vmatmul.mubr.f32.gmra.mrb[0].mxu0 %v1852
        %v1982 = vpop.f32.mrb[0].mxu0
        %v1983 = vadd.f32 0.0, %v1982
        %v1984 = vpop.f32.mrb[0].mxu0
        %1985 = vmatprep.mubr.f32.mxu0 0.0
        %1986 = vmatmul.mubr.f32.gmra.mrb[0].mxu0 %v1854
        %v1987 = vpop.f32.mrb[0].mxu0
        %v1988 = vadd.f32 0.0, %v1987
        %v1989 = vpop.f32.mrb[0].mxu0
        %1990 = vmatprep.mubr.f32.mxu0 0.0
        %1991 = vmatmul.mubr.f32.gmra.mrb[0].mxu0 %v1856
        %v1992 = vpop.f32.mrb[0].mxu0
        %v1993 = vadd.f32 0.0, %v1992
        %v1994 = vpop.f32.mrb[0].mxu0
        %1995 = vmatprep.mubr.f32.mxu0 0.0
        %1996 = vmatmul.mubr.f32.gmra.mrb[0].mxu0 %v1858
        %v1997 = vpop.f32.mrb[0].mxu0
        %v1998 = vadd.f32 0.0, %v1997
        %v1999 = vpop.f32.mrb[0].mxu0
        %2000 = vmatprep.mubr.f32.mxu0 0.0
        %2001 = vmatmul.mubr.f32.gmra.mrb[0].mxu0 %v1860
        %v2002 = vpop.f32.mrb[0].mxu0
        %v2003 = vadd.f32 0.0, %v2002
        %v2004 = vpop.f32.mrb[0].mxu0
        %2005 = vmatprep.mubr.f32.mxu0 0.0
        %2006 = vmatmul.mubr.f32.gmra.mrb[0].mxu0 %v1862
        %v2007 = vpop.f32.mrb[0].mxu0
        %v2008 = vadd.f32 0.0, %v2007
        %v2009 = vpop.f32.mrb[0].mxu0
        %2010 = vmatprep.mubr.f32.mxu0 0.0
        %2011 = vmatmul.mubr.f32.gmra.mrb[0].mxu0 %v1864
        %v2012 = vpop.f32.mrb[0].mxu0
        %v2013 = vadd.f32 0.0, %v2012
        %v2014 = vpop.f32.mrb[0].mxu0
        %2015 = vmatprep.mubr.f32.mxu0 0.0
        %2016 = vmatmul.mubr.f32.gmra.mrb[0].mxu0 %v1866
        %v2017 = vpop.f32.mrb[0].mxu0
        %v2018 = vadd.f32 0.0, %v2017
        %v2019 = vpop.f32.mrb[0].mxu0
        %2020 = vmatprep.mubr.f32.mxu0 0.0
        %2021 = vmatmul.mubr.f32.gmra.mrb[0].mxu0 %v1868
        %v2022 = vpop.f32.mrb[0].mxu0
        %v2023 = vadd.f32 0.0, %v2022
        %v2024 = vpop.f32.mrb[0].mxu0
        %2025 = vmatprep.mubr.f32.mxu0 0.0
        %2026 = vmatmul.mubr.f32.gmra.mrb[0].mxu0 %v1870
        %v2027 = vpop.f32.mrb[0].mxu0
        %v2028 = vadd.f32 0.0, %v2027
        %v2029 = vpop.f32.mrb[0].mxu0
        %2030 = vmatprep.mubr.f32.mxu0 0.0
        %2031 = vmatmul.mubr.f32.gmra.mrb[0].mxu0 %v1872
        %v2032 = vpop.f32.mrb[0].mxu0
        %v2033 = vadd.f32 0.0, %v2032
        %v2034 = vpop.f32.mrb[0].mxu0
        %2035 = vmatprep.mubr.f32.mxu0 0.0
        %2036 = vmatmul.mubr.f32.gmra.mrb[0].mxu0 %v1874
        %v2037 = vpop.f32.mrb[0].mxu0
        %v2038 = vadd.f32 0.0, %v2037
        %v2039 = vpop.f32.mrb[0].mxu0
        %2040 = vmatprep.mubr.f32.mxu0 0.0
        %2041 = vmatmul.mubr.f32.gmra.mrb[0].mxu0 %v1876
        %v2042 = vpop.f32.mrb[0].mxu0
        %v2043 = vadd.f32 0.0, %v2042
        %v2044 = vpop.f32.mrb[0].mxu0
        %2045 = vmatprep.mubr.f32.mxu0 0.0
        %2046 = vmatmul.mubr.f32.gmra.mrb[0].mxu0 %v1878
        %v2047 = vpop.f32.mrb[0].mxu0
        %v2048 = vadd.f32 0.0, %v2047
        %v2049 = vpop.f32.mrb[0].mxu0
        %2050 = vmatprep.mubr.f32.mxu0 0.0
        %2051 = vmatmul.mubr.f32.gmra.mrb[0].mxu0 %v1880
        %v2052 = vpop.f32.mrb[0].mxu0
        %v2053 = vadd.f32 0.0, %v2052
        %v2054 = vpop.f32.mrb[0].mxu0
        %2055 = vmatprep.mubr.f32.mxu0 0.0
        %2056 = vmatmul.mubr.f32.gmra.mrb[0].mxu0 %v1882
        %v2057 = vpop.f32.mrb[0].mxu0
        %v2058 = vadd.f32 0.0, %v2057
        %v2059 = vpop.f32.mrb[0].mxu0
        %2060 = vdwg.mxu0
        %s2061 = scalar_lea.vmem [#allocation2], 128
        %v2062 = vld [vmem:[%s2061] sm:$0xff]
        %v2063 = vld [vmem:[%s2061 + $0x8] sm:$0xff]
        %v2064 = vld [vmem:[%s2061 + $0x10] sm:$0xff]
        %v2065 = vld [vmem:[%s2061 + $0x18] sm:$0xff]
        %v2066 = vld [vmem:[%s2061 + $0x20] sm:$0xff]
        %v2067 = vld [vmem:[%s2061 + $0x28] sm:$0xff]
        %v2068 = vld [vmem:[%s2061 + $0x30] sm:$0xff]
        %v2069 = vld [vmem:[%s2061 + $0x38] sm:$0xff]
        %v2070 = vld [vmem:[%s2061 + $0x40] sm:$0xff]
        %v2071 = vld [vmem:[%s2061 + $0x48] sm:$0xff]
        %v2072 = vld [vmem:[%s2061 + $0x50] sm:$0xff]
        %v2073 = vld [vmem:[%s2061 + $0x58] sm:$0xff]
        %v2074 = vld [vmem:[%s2061 + $0x60] sm:$0xff]
        %v2075 = vld [vmem:[%s2061 + $0x68] sm:$0xff]
        %v2076 = vld [vmem:[%s2061 + $0x70] sm:$0xff]
        %v2077 = vld [vmem:[%s2061 + $0x78] sm:$0xff]
        %2078 = vmax.xlane.f32.xlu0 %v1983
        %v2079 = vpop.xlane.xlu0 %2078
        %2080 = vmax.xlane.f32.xlu0 %v1988
        %v2081 = vpop.xlane.xlu0 %2080
        %2082 = vmax.xlane.f32.xlu0 %v1993
        %v2083 = vpop.xlane.xlu0 %2082
        %2084 = vmax.xlane.f32.xlu0 %v1998
        %v2085 = vpop.xlane.xlu0 %2084
        %2086 = vmax.xlane.f32.xlu0 %v2003
        %v2087 = vpop.xlane.xlu0 %2086
        %2088 = vmax.xlane.f32.xlu0 %v2008
        %v2089 = vpop.xlane.xlu0 %2088
        %2090 = vmax.xlane.f32.xlu0 %v2013
        %v2091 = vpop.xlane.xlu0 %2090
        %2092 = vmax.xlane.f32.xlu0 %v2018
        %v2093 = vpop.xlane.xlu0 %2092
        %2094 = vmax.xlane.f32.xlu0 %v2023
        %v2095 = vpop.xlane.xlu0 %2094
        %2096 = vmax.xlane.f32.xlu0 %v2028
        %v2097 = vpop.xlane.xlu0 %2096
        %2098 = vmax.xlane.f32.xlu0 %v2033
        %v2099 = vpop.xlane.xlu0 %2098
        %2100 = vmax.xlane.f32.xlu0 %v2038
        %v2101 = vpop.xlane.xlu0 %2100
        %2102 = vmax.xlane.f32.xlu0 %v2043
        %v2103 = vpop.xlane.xlu0 %2102
        %2104 = vmax.xlane.f32.xlu0 %v2048
        %v2105 = vpop.xlane.xlu0 %2104
        %2106 = vmax.xlane.f32.xlu0 %v2053
        %v2107 = vpop.xlane.xlu0 %2106
        %2108 = vmax.xlane.f32.xlu0 %v2058
        %v2109 = vpop.xlane.xlu0 %2108
        %v2110 = vmax.f32 %v2062, %v2079
        %v2111 = vmax.f32 %v2063, %v2081
        %v2112 = vmax.f32 %v2064, %v2083
        %v2113 = vmax.f32 %v2065, %v2085
        %v2114 = vmax.f32 %v2066, %v2087
        %v2115 = vmax.f32 %v2067, %v2089
        %v2116 = vmax.f32 %v2068, %v2091
        %v2117 = vmax.f32 %v2069, %v2093
        %v2118 = vmax.f32 %v2070, %v2095
        %v2119 = vmax.f32 %v2071, %v2097
        %v2120 = vmax.f32 %v2072, %v2099
        %v2121 = vmax.f32 %v2073, %v2101
        %v2122 = vmax.f32 %v2074, %v2103
        %v2123 = vmax.f32 %v2075, %v2105
        %v2124 = vmax.f32 %v2076, %v2107
        %v2125 = vmax.f32 %v2077, %v2109
        %v2126 = vsub.f32 %v2062, %v2110
        %v2127 = vsub.f32 %v2063, %v2111
        %v2128 = vsub.f32 %v2064, %v2112
        %v2129 = vsub.f32 %v2065, %v2113
        %v2130 = vsub.f32 %v2066, %v2114
        %v2131 = vsub.f32 %v2067, %v2115
        %v2132 = vsub.f32 %v2068, %v2116
        %v2133 = vsub.f32 %v2069, %v2117
        %v2134 = vsub.f32 %v2070, %v2118
        %v2135 = vsub.f32 %v2071, %v2119
        %v2136 = vsub.f32 %v2072, %v2120
        %v2137 = vsub.f32 %v2073, %v2121
        %v2138 = vsub.f32 %v2074, %v2122
        %v2139 = vsub.f32 %v2075, %v2123
        %v2140 = vsub.f32 %v2076, %v2124
        %v2141 = vsub.f32 %v2077, %v2125
        %v2142 = vmul.f32 %v2126, 1.442695
        %v2143 = vpow.pop %v2142
        %v2144 = vmul.f32 %v2127, 1.442695
        %v2145 = vpow.pop %v2144
        %v2146 = vmul.f32 %v2128, 1.442695
        %v2147 = vpow.pop %v2146
        %v2148 = vmul.f32 %v2129, 1.442695
        %v2149 = vpow.pop %v2148
        %v2150 = vmul.f32 %v2130, 1.442695
        %v2151 = vpow.pop %v2150
        %v2152 = vmul.f32 %v2131, 1.442695
        %v2153 = vpow.pop %v2152
        %v2154 = vmul.f32 %v2132, 1.442695
        %v2155 = vpow.pop %v2154
        %v2156 = vmul.f32 %v2133, 1.442695
        %v2157 = vpow.pop %v2156
        %v2158 = vmul.f32 %v2134, 1.442695
        %v2159 = vpow.pop %v2158
        %v2160 = vmul.f32 %v2135, 1.442695
        %v2161 = vpow.pop %v2160
        %v2162 = vmul.f32 %v2136, 1.442695
        %v2163 = vpow.pop %v2162
        %v2164 = vmul.f32 %v2137, 1.442695
        %v2165 = vpow.pop %v2164
        %v2166 = vmul.f32 %v2138, 1.442695
        %v2167 = vpow.pop %v2166
        %v2168 = vmul.f32 %v2139, 1.442695
        %v2169 = vpow.pop %v2168
        %v2170 = vmul.f32 %v2140, 1.442695
        %v2171 = vpow.pop %v2170
        %v2172 = vmul.f32 %v2141, 1.442695
        %v2173 = vpow.pop %v2172
        %2175 = vset.pattern.permute.xlu0 0
        %2176 = vperm.xlu0 %2175, %v2110
        %v2177 = vpop.permute.xlu0 %2176
        %2180 = vset.pattern.permute.xlu0 0
        %2181 = vperm.xlu0 %2180, %v2111
        %v2182 = vpop.permute.xlu0 %2181
        %2185 = vset.pattern.permute.xlu0 0
        %2186 = vperm.xlu0 %2185, %v2112
        %v2187 = vpop.permute.xlu0 %2186
        %2190 = vset.pattern.permute.xlu0 0
        %2191 = vperm.xlu0 %2190, %v2113
        %v2192 = vpop.permute.xlu0 %2191
        %2195 = vset.pattern.permute.xlu0 0
        %2196 = vperm.xlu0 %2195, %v2114
        %v2197 = vpop.permute.xlu0 %2196
        %2200 = vset.pattern.permute.xlu0 0
        %2201 = vperm.xlu0 %2200, %v2115
        %v2202 = vpop.permute.xlu0 %2201
        %2205 = vset.pattern.permute.xlu0 0
        %2206 = vperm.xlu0 %2205, %v2116
        %v2207 = vpop.permute.xlu0 %2206
        %2210 = vset.pattern.permute.xlu0 0
        %2211 = vperm.xlu0 %2210, %v2117
        %v2212 = vpop.permute.xlu0 %2211
        %2215 = vset.pattern.permute.xlu0 0
        %2216 = vperm.xlu0 %2215, %v2118
        %v2217 = vpop.permute.xlu0 %2216
        %2220 = vset.pattern.permute.xlu0 0
        %2221 = vperm.xlu0 %2220, %v2119
        %v2222 = vpop.permute.xlu0 %2221
        %2225 = vset.pattern.permute.xlu0 0
        %2226 = vperm.xlu0 %2225, %v2120
        %v2227 = vpop.permute.xlu0 %2226
        %2230 = vset.pattern.permute.xlu0 0
        %2231 = vperm.xlu0 %2230, %v2121
        %v2232 = vpop.permute.xlu0 %2231
        %2235 = vset.pattern.permute.xlu0 0
        %2236 = vperm.xlu0 %2235, %v2122
        %v2237 = vpop.permute.xlu0 %2236
        %2240 = vset.pattern.permute.xlu0 0
        %2241 = vperm.xlu0 %2240, %v2123
        %v2242 = vpop.permute.xlu0 %2241
        %2245 = vset.pattern.permute.xlu0 0
        %2246 = vperm.xlu0 %2245, %v2124
        %v2247 = vpop.permute.xlu0 %2246
        %2250 = vset.pattern.permute.xlu0 0
        %2251 = vperm.xlu0 %2250, %v2125
        %v2252 = vpop.permute.xlu0 %2251
        %v2254 = vsub.f32 %v1983, %v2177
        %v2255 = vsub.f32 %v1988, %v2182
        %v2256 = vsub.f32 %v1993, %v2187
        %v2257 = vsub.f32 %v1998, %v2192
        %v2258 = vsub.f32 %v2003, %v2197
        %v2259 = vsub.f32 %v2008, %v2202
        %v2260 = vsub.f32 %v2013, %v2207
        %v2261 = vsub.f32 %v2018, %v2212
        %v2262 = vsub.f32 %v2023, %v2217
        %v2263 = vsub.f32 %v2028, %v2222
        %v2264 = vsub.f32 %v2033, %v2227
        %v2265 = vsub.f32 %v2038, %v2232
        %v2266 = vsub.f32 %v2043, %v2237
        %v2267 = vsub.f32 %v2048, %v2242
        %v2268 = vsub.f32 %v2053, %v2247
        %v2269 = vsub.f32 %v2058, %v2252
        %v2270 = vmul.f32 %v2254, 1.442695
        %v2271 = vpow.pop %v2270
        %v2272 = vmul.f32 %v2255, 1.442695
        %v2273 = vpow.pop %v2272
        %v2274 = vmul.f32 %v2256, 1.442695
        %v2275 = vpow.pop %v2274
        %v2276 = vmul.f32 %v2257, 1.442695
        %v2277 = vpow.pop %v2276
        %v2278 = vmul.f32 %v2258, 1.442695
        %v2279 = vpow.pop %v2278
        %v2280 = vmul.f32 %v2259, 1.442695
        %v2281 = vpow.pop %v2280
        %v2282 = vmul.f32 %v2260, 1.442695
        %v2283 = vpow.pop %v2282
        %v2284 = vmul.f32 %v2261, 1.442695
        %v2285 = vpow.pop %v2284
        %v2286 = vmul.f32 %v2262, 1.442695
        %v2287 = vpow.pop %v2286
        %v2288 = vmul.f32 %v2263, 1.442695
        %v2289 = vpow.pop %v2288
        %v2290 = vmul.f32 %v2264, 1.442695
        %v2291 = vpow.pop %v2290
        %v2292 = vmul.f32 %v2265, 1.442695
        %v2293 = vpow.pop %v2292
        %v2294 = vmul.f32 %v2266, 1.442695
        %v2295 = vpow.pop %v2294
        %v2296 = vmul.f32 %v2267, 1.442695
        %v2297 = vpow.pop %v2296
        %v2298 = vmul.f32 %v2268, 1.442695
        %v2299 = vpow.pop %v2298
        %v2300 = vmul.f32 %v2269, 1.442695
        %v2301 = vpow.pop %v2300
        %s2302 = scalar_lea.vmem [#allocation3], 128
        %v2303 = vld [vmem:[%s2302] sm:$0xff]
        %v2304 = vld [vmem:[%s2302 + $0x8] sm:$0xff]
        %v2305 = vld [vmem:[%s2302 + $0x10] sm:$0xff]
        %v2306 = vld [vmem:[%s2302 + $0x18] sm:$0xff]
        %v2307 = vld [vmem:[%s2302 + $0x20] sm:$0xff]
        %v2308 = vld [vmem:[%s2302 + $0x28] sm:$0xff]
        %v2309 = vld [vmem:[%s2302 + $0x30] sm:$0xff]
        %v2310 = vld [vmem:[%s2302 + $0x38] sm:$0xff]
        %v2311 = vld [vmem:[%s2302 + $0x40] sm:$0xff]
        %v2312 = vld [vmem:[%s2302 + $0x48] sm:$0xff]
        %v2313 = vld [vmem:[%s2302 + $0x50] sm:$0xff]
        %v2314 = vld [vmem:[%s2302 + $0x58] sm:$0xff]
        %v2315 = vld [vmem:[%s2302 + $0x60] sm:$0xff]
        %v2316 = vld [vmem:[%s2302 + $0x68] sm:$0xff]
        %v2317 = vld [vmem:[%s2302 + $0x70] sm:$0xff]
        %v2318 = vld [vmem:[%s2302 + $0x78] sm:$0xff]
        %v2319 = vmul.f32 %v2143, %v2303
        %v2320 = vmul.f32 %v2145, %v2304
        %v2321 = vmul.f32 %v2147, %v2305
        %v2322 = vmul.f32 %v2149, %v2306
        %v2323 = vmul.f32 %v2151, %v2307
        %v2324 = vmul.f32 %v2153, %v2308
        %v2325 = vmul.f32 %v2155, %v2309
        %v2326 = vmul.f32 %v2157, %v2310
        %v2327 = vmul.f32 %v2159, %v2311
        %v2328 = vmul.f32 %v2161, %v2312
        %v2329 = vmul.f32 %v2163, %v2313
        %v2330 = vmul.f32 %v2165, %v2314
        %v2331 = vmul.f32 %v2167, %v2315
        %v2332 = vmul.f32 %v2169, %v2316
        %v2333 = vmul.f32 %v2171, %v2317
        %v2334 = vmul.f32 %v2173, %v2318
        %2335 = vadd.xlane.f32.xlu0 %v2271
        %v2336 = vpop.xlane.xlu0 %2335
        %2337 = vadd.xlane.f32.xlu0 %v2273
        %v2338 = vpop.xlane.xlu0 %2337
        %2339 = vadd.xlane.f32.xlu0 %v2275
        %v2340 = vpop.xlane.xlu0 %2339
        %2341 = vadd.xlane.f32.xlu0 %v2277
        %v2342 = vpop.xlane.xlu0 %2341
        %2343 = vadd.xlane.f32.xlu0 %v2279
        %v2344 = vpop.xlane.xlu0 %2343
        %2345 = vadd.xlane.f32.xlu0 %v2281
        %v2346 = vpop.xlane.xlu0 %2345
        %2347 = vadd.xlane.f32.xlu0 %v2283
        %v2348 = vpop.xlane.xlu0 %2347
        %2349 = vadd.xlane.f32.xlu0 %v2285
        %v2350 = vpop.xlane.xlu0 %2349
        %2351 = vadd.xlane.f32.xlu0 %v2287
        %v2352 = vpop.xlane.xlu0 %2351
        %2353 = vadd.xlane.f32.xlu0 %v2289
        %v2354 = vpop.xlane.xlu0 %2353
        %2355 = vadd.xlane.f32.xlu0 %v2291
        %v2356 = vpop.xlane.xlu0 %2355
        %2357 = vadd.xlane.f32.xlu0 %v2293
        %v2358 = vpop.xlane.xlu0 %2357
        %2359 = vadd.xlane.f32.xlu0 %v2295
        %v2360 = vpop.xlane.xlu0 %2359
        %2361 = vadd.xlane.f32.xlu0 %v2297
        %v2362 = vpop.xlane.xlu0 %2361
        %2363 = vadd.xlane.f32.xlu0 %v2299
        %v2364 = vpop.xlane.xlu0 %2363
        %2365 = vadd.xlane.f32.xlu0 %v2301
        %v2366 = vpop.xlane.xlu0 %2365
        %v2367 = vadd.f32 %v2319, %v2336
        %v2368 = vadd.f32 %v2320, %v2338
        %v2369 = vadd.f32 %v2321, %v2340
        %v2370 = vadd.f32 %v2322, %v2342
        %v2371 = vadd.f32 %v2323, %v2344
        %v2372 = vadd.f32 %v2324, %v2346
        %v2373 = vadd.f32 %v2325, %v2348
        %v2374 = vadd.f32 %v2326, %v2350
        %v2375 = vadd.f32 %v2327, %v2352
        %v2376 = vadd.f32 %v2328, %v2354
        %v2377 = vadd.f32 %v2329, %v2356
        %v2378 = vadd.f32 %v2330, %v2358
        %v2379 = vadd.f32 %v2331, %v2360
        %v2380 = vadd.f32 %v2332, %v2362
        %v2381 = vadd.f32 %v2333, %v2364
        %v2382 = vadd.f32 %v2334, %v2366
        %2383 = vst.msk [vmem:[%s2302] sm:$0xff] %vm1370, %v2367
        %2384 = vst.msk [vmem:[%s2302 + $0x8] sm:$0xff] %vm1370, %v2368
        %2385 = vst.msk [vmem:[%s2302 + $0x10] sm:$0xff] %vm1370, %v2369
        %2386 = vst.msk [vmem:[%s2302 + $0x18] sm:$0xff] %vm1370, %v2370
        %2387 = vst.msk [vmem:[%s2302 + $0x20] sm:$0xff] %vm1370, %v2371
        %2388 = vst.msk [vmem:[%s2302 + $0x28] sm:$0xff] %vm1370, %v2372
        %2389 = vst.msk [vmem:[%s2302 + $0x30] sm:$0xff] %vm1370, %v2373
        %2390 = vst.msk [vmem:[%s2302 + $0x38] sm:$0xff] %vm1370, %v2374
        %2391 = vst.msk [vmem:[%s2302 + $0x40] sm:$0xff] %vm1370, %v2375
        %2392 = vst.msk [vmem:[%s2302 + $0x48] sm:$0xff] %vm1370, %v2376
        %2393 = vst.msk [vmem:[%s2302 + $0x50] sm:$0xff] %vm1370, %v2377
        %2394 = vst.msk [vmem:[%s2302 + $0x58] sm:$0xff] %vm1370, %v2378
        %2395 = vst.msk [vmem:[%s2302 + $0x60] sm:$0xff] %vm1370, %v2379
        %2396 = vst.msk [vmem:[%s2302 + $0x68] sm:$0xff] %vm1370, %v2380
        %2397 = vst.msk [vmem:[%s2302 + $0x70] sm:$0xff] %vm1370, %v2381
        %2398 = vst.msk [vmem:[%s2302 + $0x78] sm:$0xff] %vm1370, %v2382
        %s2399 = scalar_lea.vmem [#allocation4], 128
        %v2400 = vld [vmem:[%s2399] sm:$0xff]
        %v2401 = vld [vmem:[%s2399 + $0x8] sm:$0xff]
        %v2402 = vld [vmem:[%s2399 + $0x10] sm:$0xff]
        %v2403 = vld [vmem:[%s2399 + $0x18] sm:$0xff]
        %v2404 = vld [vmem:[%s2399 + $0x20] sm:$0xff]
        %v2405 = vld [vmem:[%s2399 + $0x28] sm:$0xff]
        %v2406 = vld [vmem:[%s2399 + $0x30] sm:$0xff]
        %v2407 = vld [vmem:[%s2399 + $0x38] sm:$0xff]
        %v2408 = vld [vmem:[%s2399 + $0x40] sm:$0xff]
        %v2409 = vld [vmem:[%s2399 + $0x48] sm:$0xff]
        %v2410 = vld [vmem:[%s2399 + $0x50] sm:$0xff]
        %v2411 = vld [vmem:[%s2399 + $0x58] sm:$0xff]
        %v2412 = vld [vmem:[%s2399 + $0x60] sm:$0xff]
        %v2413 = vld [vmem:[%s2399 + $0x68] sm:$0xff]
        %v2414 = vld [vmem:[%s2399 + $0x70] sm:$0xff]
        %v2415 = vld [vmem:[%s2399 + $0x78] sm:$0xff]
        %2417 = vset.pattern.permute.xlu0 0
        %2418 = vperm.xlu0 %2417, %v2143
        %v2419 = vpop.permute.xlu0 %2418
        %2422 = vset.pattern.permute.xlu0 0
        %2423 = vperm.xlu0 %2422, %v2145
        %v2424 = vpop.permute.xlu0 %2423
        %2427 = vset.pattern.permute.xlu0 0
        %2428 = vperm.xlu0 %2427, %v2147
        %v2429 = vpop.permute.xlu0 %2428
        %2432 = vset.pattern.permute.xlu0 0
        %2433 = vperm.xlu0 %2432, %v2149
        %v2434 = vpop.permute.xlu0 %2433
        %2437 = vset.pattern.permute.xlu0 0
        %2438 = vperm.xlu0 %2437, %v2151
        %v2439 = vpop.permute.xlu0 %2438
        %2442 = vset.pattern.permute.xlu0 0
        %2443 = vperm.xlu0 %2442, %v2153
        %v2444 = vpop.permute.xlu0 %2443
        %2447 = vset.pattern.permute.xlu0 0
        %2448 = vperm.xlu0 %2447, %v2155
        %v2449 = vpop.permute.xlu0 %2448
        %2452 = vset.pattern.permute.xlu0 0
        %2453 = vperm.xlu0 %2452, %v2157
        %v2454 = vpop.permute.xlu0 %2453
        %2457 = vset.pattern.permute.xlu0 0
        %2458 = vperm.xlu0 %2457, %v2159
        %v2459 = vpop.permute.xlu0 %2458
        %2462 = vset.pattern.permute.xlu0 0
        %2463 = vperm.xlu0 %2462, %v2161
        %v2464 = vpop.permute.xlu0 %2463
        %2467 = vset.pattern.permute.xlu0 0
        %2468 = vperm.xlu0 %2467, %v2163
        %v2469 = vpop.permute.xlu0 %2468
        %2472 = vset.pattern.permute.xlu0 0
        %2473 = vperm.xlu0 %2472, %v2165
        %v2474 = vpop.permute.xlu0 %2473
        %2477 = vset.pattern.permute.xlu0 0
        %2478 = vperm.xlu0 %2477, %v2167
        %v2479 = vpop.permute.xlu0 %2478
        %2482 = vset.pattern.permute.xlu0 0
        %2483 = vperm.xlu0 %2482, %v2169
        %v2484 = vpop.permute.xlu0 %2483
        %2487 = vset.pattern.permute.xlu0 0
        %2488 = vperm.xlu0 %2487, %v2171
        %v2489 = vpop.permute.xlu0 %2488
        %2492 = vset.pattern.permute.xlu0 0
        %2493 = vperm.xlu0 %2492, %v2173
        %v2494 = vpop.permute.xlu0 %2493
        %v2496 = vmul.f32 %v2419, %v2400
        %v2497 = vmul.f32 %v2424, %v2401
        %v2498 = vmul.f32 %v2429, %v2402
        %v2499 = vmul.f32 %v2434, %v2403
        %v2500 = vmul.f32 %v2439, %v2404
        %v2501 = vmul.f32 %v2444, %v2405
        %v2502 = vmul.f32 %v2449, %v2406
        %v2503 = vmul.f32 %v2454, %v2407
        %v2504 = vmul.f32 %v2459, %v2408
        %v2505 = vmul.f32 %v2464, %v2409
        %v2506 = vmul.f32 %v2469, %v2410
        %v2507 = vmul.f32 %v2474, %v2411
        %v2508 = vmul.f32 %v2479, %v2412
        %v2509 = vmul.f32 %v2484, %v2413
        %v2510 = vmul.f32 %v2489, %v2414
        %v2511 = vmul.f32 %v2494, %v2415
        %2528 = vrot.lane.b32.xlu0 %v1740, 96
        %v2529 = vpop.permute.xlu0 %2528
        %2530 = vrot.lane.b32.xlu0 %v1741, 96
        %v2531 = vpop.permute.xlu0 %2530
        %2532 = vrot.lane.b32.xlu0 %v1742, 96
        %v2533 = vpop.permute.xlu0 %2532
        %2534 = vrot.lane.b32.xlu0 %v1743, 96
        %v2535 = vpop.permute.xlu0 %2534
        %2536 = vrot.lane.b32.xlu0 %v1744, 96
        %v2537 = vpop.permute.xlu0 %2536
        %2538 = vrot.lane.b32.xlu0 %v1745, 96
        %v2539 = vpop.permute.xlu0 %2538
        %2540 = vrot.lane.b32.xlu0 %v1746, 96
        %v2541 = vpop.permute.xlu0 %2540
        %2542 = vrot.lane.b32.xlu0 %v1747, 96
        %v2543 = vpop.permute.xlu0 %2542
        %2544 = vrot.lane.b32.xlu0 %v1748, 96
        %v2545 = vpop.permute.xlu0 %2544
        %2546 = vrot.lane.b32.xlu0 %v1749, 96
        %v2547 = vpop.permute.xlu0 %2546
        %2548 = vrot.lane.b32.xlu0 %v1750, 96
        %v2549 = vpop.permute.xlu0 %2548
        %2550 = vrot.lane.b32.xlu0 %v1751, 96
        %v2551 = vpop.permute.xlu0 %2550
        %2552 = vrot.lane.b32.xlu0 %v1752, 96
        %v2553 = vpop.permute.xlu0 %2552
        %2554 = vrot.lane.b32.xlu0 %v1753, 96
        %v2555 = vpop.permute.xlu0 %2554
        %2556 = vrot.lane.b32.xlu0 %v1754, 96
        %v2557 = vpop.permute.xlu0 %2556
        %2558 = vrot.lane.b32.xlu0 %v1755, 96
        %v2559 = vpop.permute.xlu0 %2558
        %2576 = vmatprep.subr.mxu0 0.0
        %2577 = vmatpush1.msra.mxu0 %v2529
        %2578 = vmatprep.subr.mxu0 0.0
        %2579 = vmatpush1.msra.mxu0 %v2531
        %2580 = vmatprep.subr.mxu0 0.0
        %2581 = vmatpush1.msra.mxu0 %v2533
        %2582 = vmatprep.subr.mxu0 0.0
        %2583 = vmatpush1.msra.mxu0 %v2535
        %2584 = vmatprep.subr.mxu0 0.0
        %2585 = vmatpush1.msra.mxu0 %v2537
        %2586 = vmatprep.subr.mxu0 0.0
        %2587 = vmatpush1.msra.mxu0 %v2539
        %2588 = vmatprep.subr.mxu0 0.0
        %2589 = vmatpush1.msra.mxu0 %v2541
        %2590 = vmatprep.subr.mxu0 0.0
        %2591 = vmatpush1.msra.mxu0 %v2543
        %2592 = vmatprep.subr.mxu0 0.0
        %2593 = vmatpush1.msra.mxu0 %v2545
        %2594 = vmatprep.subr.mxu0 0.0
        %2595 = vmatpush1.msra.mxu0 %v2547
        %2596 = vmatprep.subr.mxu0 0.0
        %2597 = vmatpush1.msra.mxu0 %v2549
        %2598 = vmatprep.subr.mxu0 0.0
        %2599 = vmatpush1.msra.mxu0 %v2551
        %2600 = vmatprep.subr.mxu0 0.0
        %2601 = vmatpush1.msra.mxu0 %v2553
        %2602 = vmatprep.subr.mxu0 0.0
        %2603 = vmatpush1.msra.mxu0 %v2555
        %2604 = vmatprep.subr.mxu0 0.0
        %2605 = vmatpush1.msra.mxu0 %v2557
        %2606 = vmatprep.subr.mxu0 0.0
        %2607 = vmatpush1.msra.mxu0 %v2559
        %2608 = vmatprep.subr.mxu0 0.0
        %2609 = vmatpush1.msra.mxu0 0.0
        %2610 = vmatprep.subr.mxu0 0.0
        %2611 = vmatpush1.msra.mxu0 0.0
        %2612 = vmatprep.subr.mxu0 0.0
        %2613 = vmatpush1.msra.mxu0 0.0
        %2614 = vmatprep.subr.mxu0 0.0
        %2615 = vmatpush1.msra.mxu0 0.0
        %2616 = vmatprep.subr.mxu0 0.0
        %2617 = vmatpush1.msra.mxu0 0.0
        %2618 = vmatprep.subr.mxu0 0.0
        %2619 = vmatpush1.msra.mxu0 0.0
        %2620 = vmatprep.subr.mxu0 0.0
        %2621 = vmatpush1.msra.mxu0 0.0
        %2622 = vmatprep.subr.mxu0 0.0
        %2623 = vmatpush1.msra.mxu0 0.0
        %2624 = vmatprep.subr.mxu0 0.0
        %2625 = vmatpush1.msra.mxu0 0.0
        %2626 = vmatprep.subr.mxu0 0.0
        %2627 = vmatpush1.msra.mxu0 0.0
        %2628 = vmatprep.subr.mxu0 0.0
        %2629 = vmatpush1.msra.mxu0 0.0
        %2630 = vmatprep.subr.mxu0 0.0
        %2631 = vmatpush1.msra.mxu0 0.0
        %2632 = vmatprep.subr.mxu0 0.0
        %2633 = vmatpush1.msra.mxu0 0.0
        %2634 = vmatprep.subr.mxu0 0.0
        %2635 = vmatpush1.msra.mxu0 0.0
        %2636 = vmatprep.subr.mxu0 0.0
        %2637 = vmatpush1.msra.mxu0 0.0
        %2638 = vmatprep.subr.mxu0 0.0
        %2639 = vmatpush1.msra.mxu0 0.0
        %2640 = vmatprep.mubr.f32.mxu0 0.0
        %2641 = vmatmul.mubr.f32.gmra.mrb[0].mxu0 %v2271
        %v2642 = vpop.f32.mrb[0].mxu0
        %v2643 = vadd.f32 0.0, %v2642
        %v2644 = vpop.f32.mrb[0].mxu0
        %2645 = vmatprep.mubr.f32.mxu0 0.0
        %2646 = vmatmul.mubr.f32.gmra.mrb[0].mxu0 %v2273
        %v2647 = vpop.f32.mrb[0].mxu0
        %v2648 = vadd.f32 0.0, %v2647
        %v2649 = vpop.f32.mrb[0].mxu0
        %2650 = vmatprep.mubr.f32.mxu0 0.0
        %2651 = vmatmul.mubr.f32.gmra.mrb[0].mxu0 %v2275
        %v2652 = vpop.f32.mrb[0].mxu0
        %v2653 = vadd.f32 0.0, %v2652
        %v2654 = vpop.f32.mrb[0].mxu0
        %2655 = vmatprep.mubr.f32.mxu0 0.0
        %2656 = vmatmul.mubr.f32.gmra.mrb[0].mxu0 %v2277
        %v2657 = vpop.f32.mrb[0].mxu0
        %v2658 = vadd.f32 0.0, %v2657
        %v2659 = vpop.f32.mrb[0].mxu0
        %2660 = vmatprep.mubr.f32.mxu0 0.0
        %2661 = vmatmul.mubr.f32.gmra.mrb[0].mxu0 %v2279
        %v2662 = vpop.f32.mrb[0].mxu0
        %v2663 = vadd.f32 0.0, %v2662
        %v2664 = vpop.f32.mrb[0].mxu0
        %2665 = vmatprep.mubr.f32.mxu0 0.0
        %2666 = vmatmul.mubr.f32.gmra.mrb[0].mxu0 %v2281
        %v2667 = vpop.f32.mrb[0].mxu0
        %v2668 = vadd.f32 0.0, %v2667
        %v2669 = vpop.f32.mrb[0].mxu0
        %2670 = vmatprep.mubr.f32.mxu0 0.0
        %2671 = vmatmul.mubr.f32.gmra.mrb[0].mxu0 %v2283
        %v2672 = vpop.f32.mrb[0].mxu0
        %v2673 = vadd.f32 0.0, %v2672
        %v2674 = vpop.f32.mrb[0].mxu0
        %2675 = vmatprep.mubr.f32.mxu0 0.0
        %2676 = vmatmul.mubr.f32.gmra.mrb[0].mxu0 %v2285
        %v2677 = vpop.f32.mrb[0].mxu0
        %v2678 = vadd.f32 0.0, %v2677
        %v2679 = vpop.f32.mrb[0].mxu0
        %2680 = vmatprep.mubr.f32.mxu0 0.0
        %2681 = vmatmul.mubr.f32.gmra.mrb[0].mxu0 %v2287
        %v2682 = vpop.f32.mrb[0].mxu0
        %v2683 = vadd.f32 0.0, %v2682
        %v2684 = vpop.f32.mrb[0].mxu0
        %2685 = vmatprep.mubr.f32.mxu0 0.0
        %2686 = vmatmul.mubr.f32.gmra.mrb[0].mxu0 %v2289
        %v2687 = vpop.f32.mrb[0].mxu0
        %v2688 = vadd.f32 0.0, %v2687
        %v2689 = vpop.f32.mrb[0].mxu0
        %2690 = vmatprep.mubr.f32.mxu0 0.0
        %2691 = vmatmul.mubr.f32.gmra.mrb[0].mxu0 %v2291
        %v2692 = vpop.f32.mrb[0].mxu0
        %v2693 = vadd.f32 0.0, %v2692
        %v2694 = vpop.f32.mrb[0].mxu0
        %2695 = vmatprep.mubr.f32.mxu0 0.0
        %2696 = vmatmul.mubr.f32.gmra.mrb[0].mxu0 %v2293
        %v2697 = vpop.f32.mrb[0].mxu0
        %v2698 = vadd.f32 0.0, %v2697
        %v2699 = vpop.f32.mrb[0].mxu0
        %2700 = vmatprep.mubr.f32.mxu0 0.0
        %2701 = vmatmul.mubr.f32.gmra.mrb[0].mxu0 %v2295
        %v2702 = vpop.f32.mrb[0].mxu0
        %v2703 = vadd.f32 0.0, %v2702
        %v2704 = vpop.f32.mrb[0].mxu0
        %2705 = vmatprep.mubr.f32.mxu0 0.0
        %2706 = vmatmul.mubr.f32.gmra.mrb[0].mxu0 %v2297
        %v2707 = vpop.f32.mrb[0].mxu0
        %v2708 = vadd.f32 0.0, %v2707
        %v2709 = vpop.f32.mrb[0].mxu0
        %2710 = vmatprep.mubr.f32.mxu0 0.0
        %2711 = vmatmul.mubr.f32.gmra.mrb[0].mxu0 %v2299
        %v2712 = vpop.f32.mrb[0].mxu0
        %v2713 = vadd.f32 0.0, %v2712
        %v2714 = vpop.f32.mrb[0].mxu0
        %2715 = vmatprep.mubr.f32.mxu0 0.0
        %2716 = vmatmul.mubr.f32.gmra.mrb[0].mxu0 %v2301
        %v2717 = vpop.f32.mrb[0].mxu0
        %v2718 = vadd.f32 0.0, %v2717
        %v2719 = vpop.f32.mrb[0].mxu0
        %2720 = vdwg.mxu0
        %v2721 = vadd.f32 %v2496, %v2643
        %v2722 = vadd.f32 %v2497, %v2648
        %v2723 = vadd.f32 %v2498, %v2653
        %v2724 = vadd.f32 %v2499, %v2658
        %v2725 = vadd.f32 %v2500, %v2663
        %v2726 = vadd.f32 %v2501, %v2668
        %v2727 = vadd.f32 %v2502, %v2673
        %v2728 = vadd.f32 %v2503, %v2678
        %v2729 = vadd.f32 %v2504, %v2683
        %v2730 = vadd.f32 %v2505, %v2688
        %v2731 = vadd.f32 %v2506, %v2693
        %v2732 = vadd.f32 %v2507, %v2698
        %v2733 = vadd.f32 %v2508, %v2703
        %v2734 = vadd.f32 %v2509, %v2708
        %v2735 = vadd.f32 %v2510, %v2713
        %v2736 = vadd.f32 %v2511, %v2718
        %2737 = vst.msk [vmem:[%s2399] sm:$0xff] %vm808, %v2721
        %2738 = vst.msk [vmem:[%s2399 + $0x8] sm:$0xff] %vm808, %v2722
        %2739 = vst.msk [vmem:[%s2399 + $0x10] sm:$0xff] %vm808, %v2723
        %2740 = vst.msk [vmem:[%s2399 + $0x18] sm:$0xff] %vm808, %v2724
        %2741 = vst.msk [vmem:[%s2399 + $0x20] sm:$0xff] %vm808, %v2725
        %2742 = vst.msk [vmem:[%s2399 + $0x28] sm:$0xff] %vm808, %v2726
        %2743 = vst.msk [vmem:[%s2399 + $0x30] sm:$0xff] %vm808, %v2727
        %2744 = vst.msk [vmem:[%s2399 + $0x38] sm:$0xff] %vm808, %v2728
        %2745 = vst.msk [vmem:[%s2399 + $0x40] sm:$0xff] %vm808, %v2729
        %2746 = vst.msk [vmem:[%s2399 + $0x48] sm:$0xff] %vm808, %v2730
        %2747 = vst.msk [vmem:[%s2399 + $0x50] sm:$0xff] %vm808, %v2731
        %2748 = vst.msk [vmem:[%s2399 + $0x58] sm:$0xff] %vm808, %v2732
        %2749 = vst.msk [vmem:[%s2399 + $0x60] sm:$0xff] %vm808, %v2733
        %2750 = vst.msk [vmem:[%s2399 + $0x68] sm:$0xff] %vm808, %v2734
        %2751 = vst.msk [vmem:[%s2399 + $0x70] sm:$0xff] %vm808, %v2735
        %2752 = vst.msk [vmem:[%s2399 + $0x78] sm:$0xff] %vm808, %v2736
        %2753 = vst.msk [vmem:[%s2061] sm:$0xff] %vm1370, %v2110
        %2754 = vst.msk [vmem:[%s2061 + $0x8] sm:$0xff] %vm1370, %v2111
        %2755 = vst.msk [vmem:[%s2061 + $0x10] sm:$0xff] %vm1370, %v2112
        %2756 = vst.msk [vmem:[%s2061 + $0x18] sm:$0xff] %vm1370, %v2113
        %2757 = vst.msk [vmem:[%s2061 + $0x20] sm:$0xff] %vm1370, %v2114
        %2758 = vst.msk [vmem:[%s2061 + $0x28] sm:$0xff] %vm1370, %v2115
        %2759 = vst.msk [vmem:[%s2061 + $0x30] sm:$0xff] %vm1370, %v2116
        %2760 = vst.msk [vmem:[%s2061 + $0x38] sm:$0xff] %vm1370, %v2117
        %2761 = vst.msk [vmem:[%s2061 + $0x40] sm:$0xff] %vm1370, %v2118
        %2762 = vst.msk [vmem:[%s2061 + $0x48] sm:$0xff] %vm1370, %v2119
        %2763 = vst.msk [vmem:[%s2061 + $0x50] sm:$0xff] %vm1370, %v2120
        %2764 = vst.msk [vmem:[%s2061 + $0x58] sm:$0xff] %vm1370, %v2121
        %2765 = vst.msk [vmem:[%s2061 + $0x60] sm:$0xff] %vm1370, %v2122
        %2766 = vst.msk [vmem:[%s2061 + $0x68] sm:$0xff] %vm1370, %v2123
        %2767 = vst.msk [vmem:[%s2061 + $0x70] sm:$0xff] %vm1370, %v2124
        %2768 = vst.msk [vmem:[%s2061 + $0x78] sm:$0xff] %vm1370, %v2125
        %v2769 = vld [vmem:[%s486] sm:$0xff]
        %v2770 = vld [vmem:[%s486 + $0x8] sm:$0xff]
        %v2771 = vld [vmem:[%s486 + $0x10] sm:$0xff]
        %v2772 = vld [vmem:[%s486 + $0x18] sm:$0xff]
        %v2773 = vld [vmem:[%s486 + $0x20] sm:$0xff]
        %v2774 = vld [vmem:[%s486 + $0x28] sm:$0xff]
        %v2775 = vld [vmem:[%s486 + $0x30] sm:$0xff]
        %v2776 = vld [vmem:[%s486 + $0x38] sm:$0xff]
        %v2777 = vld [vmem:[%s486 + $0x40] sm:$0xff]
        %v2778 = vld [vmem:[%s486 + $0x48] sm:$0xff]
        %v2779 = vld [vmem:[%s486 + $0x50] sm:$0xff]
        %v2780 = vld [vmem:[%s486 + $0x58] sm:$0xff]
        %v2781 = vld [vmem:[%s486 + $0x60] sm:$0xff]
        %v2782 = vld [vmem:[%s486 + $0x68] sm:$0xff]
        %v2783 = vld [vmem:[%s486 + $0x70] sm:$0xff]
        %v2784 = vld [vmem:[%s486 + $0x78] sm:$0xff]
        %v2785 = vmul.f32 %v2769, 0.17677669
        %v2786 = vmul.f32 %v2770, 0.17677669
        %v2787 = vmul.f32 %v2771, 0.17677669
        %v2788 = vmul.f32 %v2772, 0.17677669
        %v2789 = vmul.f32 %v2773, 0.17677669
        %v2790 = vmul.f32 %v2774, 0.17677669
        %v2791 = vmul.f32 %v2775, 0.17677669
        %v2792 = vmul.f32 %v2776, 0.17677669
        %v2793 = vmul.f32 %v2777, 0.17677669
        %v2794 = vmul.f32 %v2778, 0.17677669
        %v2795 = vmul.f32 %v2779, 0.17677669
        %v2796 = vmul.f32 %v2780, 0.17677669
        %v2797 = vmul.f32 %v2781, 0.17677669
        %v2798 = vmul.f32 %v2782, 0.17677669
        %v2799 = vmul.f32 %v2783, 0.17677669
        %v2800 = vmul.f32 %v2784, 0.17677669
        %v2801 = vld [vmem:[%s493] sm:$0xff]
        %v2802 = vld [vmem:[%s493 + $0x8] sm:$0xff]
        %v2803 = vld [vmem:[%s493 + $0x10] sm:$0xff]
        %v2804 = vld [vmem:[%s493 + $0x18] sm:$0xff]
        %v2805 = vld [vmem:[%s493 + $0x20] sm:$0xff]
        %v2806 = vld [vmem:[%s493 + $0x28] sm:$0xff]
        %v2807 = vld [vmem:[%s493 + $0x30] sm:$0xff]
        %v2808 = vld [vmem:[%s493 + $0x38] sm:$0xff]
        %v2809 = vld [vmem:[%s493 + $0x40] sm:$0xff]
        %v2810 = vld [vmem:[%s493 + $0x48] sm:$0xff]
        %v2811 = vld [vmem:[%s493 + $0x50] sm:$0xff]
        %v2812 = vld [vmem:[%s493 + $0x58] sm:$0xff]
        %v2813 = vld [vmem:[%s493 + $0x60] sm:$0xff]
        %v2814 = vld [vmem:[%s493 + $0x68] sm:$0xff]
        %v2815 = vld [vmem:[%s493 + $0x70] sm:$0xff]
        %v2816 = vld [vmem:[%s493 + $0x78] sm:$0xff]
        %v2817 = vld [vmem:[%s500] sm:$0xff]
        %v2818 = vld [vmem:[%s500 + $0x8] sm:$0xff]
        %v2819 = vld [vmem:[%s500 + $0x10] sm:$0xff]
        %v2820 = vld [vmem:[%s500 + $0x18] sm:$0xff]
        %v2821 = vld [vmem:[%s500 + $0x20] sm:$0xff]
        %v2822 = vld [vmem:[%s500 + $0x28] sm:$0xff]
        %v2823 = vld [vmem:[%s500 + $0x30] sm:$0xff]
        %v2824 = vld [vmem:[%s500 + $0x38] sm:$0xff]
        %v2825 = vld [vmem:[%s500 + $0x40] sm:$0xff]
        %v2826 = vld [vmem:[%s500 + $0x48] sm:$0xff]
        %v2827 = vld [vmem:[%s500 + $0x50] sm:$0xff]
        %v2828 = vld [vmem:[%s500 + $0x58] sm:$0xff]
        %v2829 = vld [vmem:[%s500 + $0x60] sm:$0xff]
        %v2830 = vld [vmem:[%s500 + $0x68] sm:$0xff]
        %v2831 = vld [vmem:[%s500 + $0x70] sm:$0xff]
        %v2832 = vld [vmem:[%s500 + $0x78] sm:$0xff]
        %2849 = vrot.lane.b32.xlu0 %v2785, 64
        %v2850 = vpop.permute.xlu0 %2849
        %2851 = vrot.lane.b32.xlu0 %v2786, 64
        %v2852 = vpop.permute.xlu0 %2851
        %2853 = vrot.lane.b32.xlu0 %v2787, 64
        %v2854 = vpop.permute.xlu0 %2853
        %2855 = vrot.lane.b32.xlu0 %v2788, 64
        %v2856 = vpop.permute.xlu0 %2855
        %2857 = vrot.lane.b32.xlu0 %v2789, 64
        %v2858 = vpop.permute.xlu0 %2857
        %2859 = vrot.lane.b32.xlu0 %v2790, 64
        %v2860 = vpop.permute.xlu0 %2859
        %2861 = vrot.lane.b32.xlu0 %v2791, 64
        %v2862 = vpop.permute.xlu0 %2861
        %2863 = vrot.lane.b32.xlu0 %v2792, 64
        %v2864 = vpop.permute.xlu0 %2863
        %2865 = vrot.lane.b32.xlu0 %v2793, 64
        %v2866 = vpop.permute.xlu0 %2865
        %2867 = vrot.lane.b32.xlu0 %v2794, 64
        %v2868 = vpop.permute.xlu0 %2867
        %2869 = vrot.lane.b32.xlu0 %v2795, 64
        %v2870 = vpop.permute.xlu0 %2869
        %2871 = vrot.lane.b32.xlu0 %v2796, 64
        %v2872 = vpop.permute.xlu0 %2871
        %2873 = vrot.lane.b32.xlu0 %v2797, 64
        %v2874 = vpop.permute.xlu0 %2873
        %2875 = vrot.lane.b32.xlu0 %v2798, 64
        %v2876 = vpop.permute.xlu0 %2875
        %2877 = vrot.lane.b32.xlu0 %v2799, 64
        %v2878 = vpop.permute.xlu0 %2877
        %2879 = vrot.lane.b32.xlu0 %v2800, 64
        %v2880 = vpop.permute.xlu0 %2879
        %2897 = vrot.lane.b32.xlu0 %v2801, 64
        %v2898 = vpop.permute.xlu0 %2897
        %2899 = vrot.lane.b32.xlu0 %v2802, 64
        %v2900 = vpop.permute.xlu0 %2899
        %2901 = vrot.lane.b32.xlu0 %v2803, 64
        %v2902 = vpop.permute.xlu0 %2901
        %2903 = vrot.lane.b32.xlu0 %v2804, 64
        %v2904 = vpop.permute.xlu0 %2903
        %2905 = vrot.lane.b32.xlu0 %v2805, 64
        %v2906 = vpop.permute.xlu0 %2905
        %2907 = vrot.lane.b32.xlu0 %v2806, 64
        %v2908 = vpop.permute.xlu0 %2907
        %2909 = vrot.lane.b32.xlu0 %v2807, 64
        %v2910 = vpop.permute.xlu0 %2909
        %2911 = vrot.lane.b32.xlu0 %v2808, 64
        %v2912 = vpop.permute.xlu0 %2911
        %2913 = vrot.lane.b32.xlu0 %v2809, 64
        %v2914 = vpop.permute.xlu0 %2913
        %2915 = vrot.lane.b32.xlu0 %v2810, 64
        %v2916 = vpop.permute.xlu0 %2915
        %2917 = vrot.lane.b32.xlu0 %v2811, 64
        %v2918 = vpop.permute.xlu0 %2917
        %2919 = vrot.lane.b32.xlu0 %v2812, 64
        %v2920 = vpop.permute.xlu0 %2919
        %2921 = vrot.lane.b32.xlu0 %v2813, 64
        %v2922 = vpop.permute.xlu0 %2921
        %2923 = vrot.lane.b32.xlu0 %v2814, 64
        %v2924 = vpop.permute.xlu0 %2923
        %2925 = vrot.lane.b32.xlu0 %v2815, 64
        %v2926 = vpop.permute.xlu0 %2925
        %2927 = vrot.lane.b32.xlu0 %v2816, 64
        %v2928 = vpop.permute.xlu0 %2927
        %v2929 = vsel %vm808, %v2850, 0
        %v2931 = vsel %vm808, %v2852, 0
        %v2933 = vsel %vm808, %v2854, 0
        %v2935 = vsel %vm808, %v2856, 0
        %v2937 = vsel %vm808, %v2858, 0
        %v2939 = vsel %vm808, %v2860, 0
        %v2941 = vsel %vm808, %v2862, 0
        %v2943 = vsel %vm808, %v2864, 0
        %v2945 = vsel %vm808, %v2866, 0
        %v2947 = vsel %vm808, %v2868, 0
        %v2949 = vsel %vm808, %v2870, 0
        %v2951 = vsel %vm808, %v2872, 0
        %v2953 = vsel %vm808, %v2874, 0
        %v2955 = vsel %vm808, %v2876, 0
        %v2957 = vsel %vm808, %v2878, 0
        %v2959 = vsel %vm808, %v2880, 0
        %v2961 = vsel %vm808, %v2898, 0
        %v2963 = vsel %vm808, %v2900, 0
        %v2965 = vsel %vm808, %v2902, 0
        %v2967 = vsel %vm808, %v2904, 0
        %v2969 = vsel %vm808, %v2906, 0
        %v2971 = vsel %vm808, %v2908, 0
        %v2973 = vsel %vm808, %v2910, 0
        %v2975 = vsel %vm808, %v2912, 0
        %v2977 = vsel %vm808, %v2914, 0
        %v2979 = vsel %vm808, %v2916, 0
        %v2981 = vsel %vm808, %v2918, 0
        %v2983 = vsel %vm808, %v2920, 0
        %v2985 = vsel %vm808, %v2922, 0
        %v2987 = vsel %vm808, %v2924, 0
        %v2989 = vsel %vm808, %v2926, 0
        %v2991 = vsel %vm808, %v2928, 0
        %2993 = vmatprep.subr.mxu0 0.0
        %2994 = vmatpush1.xpose.msra.mxu0 %v2961
        %2995 = vmatprep.subr.mxu0 0.0
        %2996 = vmatpush1.xpose.msra.mxu0 %v2963
        %2997 = vmatprep.subr.mxu0 0.0
        %2998 = vmatpush1.xpose.msra.mxu0 %v2965
        %2999 = vmatprep.subr.mxu0 0.0
        %3000 = vmatpush1.xpose.msra.mxu0 %v2967
        %3001 = vmatprep.subr.mxu0 0.0
        %3002 = vmatpush1.xpose.msra.mxu0 %v2969
        %3003 = vmatprep.subr.mxu0 0.0
        %3004 = vmatpush1.xpose.msra.mxu0 %v2971
        %3005 = vmatprep.subr.mxu0 0.0
        %3006 = vmatpush1.xpose.msra.mxu0 %v2973
        %3007 = vmatprep.subr.mxu0 0.0
        %3008 = vmatpush1.xpose.msra.mxu0 %v2975
        %3009 = vmatprep.subr.mxu0 0.0
        %3010 = vmatpush1.xpose.msra.mxu0 %v2977
        %3011 = vmatprep.subr.mxu0 0.0
        %3012 = vmatpush1.xpose.msra.mxu0 %v2979
        %3013 = vmatprep.subr.mxu0 0.0
        %3014 = vmatpush1.xpose.msra.mxu0 %v2981
        %3015 = vmatprep.subr.mxu0 0.0
        %3016 = vmatpush1.xpose.msra.mxu0 %v2983
        %3017 = vmatprep.subr.mxu0 0.0
        %3018 = vmatpush1.xpose.msra.mxu0 %v2985
        %3019 = vmatprep.subr.mxu0 0.0
        %3020 = vmatpush1.xpose.msra.mxu0 %v2987
        %3021 = vmatprep.subr.mxu0 0.0
        %3022 = vmatpush1.xpose.msra.mxu0 %v2989
        %3023 = vmatprep.subr.mxu0 0.0
        %3024 = vmatpush1.xpose.msra.mxu0 %v2991
        %3025 = vmatprep.subr.mxu0 0.0
        %3026 = vmatpush1.xpose.msra.mxu0 0.0
        %3027 = vmatprep.subr.mxu0 0.0
        %3028 = vmatpush1.xpose.msra.mxu0 0.0
        %3029 = vmatprep.subr.mxu0 0.0
        %3030 = vmatpush1.xpose.msra.mxu0 0.0
        %3031 = vmatprep.subr.mxu0 0.0
        %3032 = vmatpush1.xpose.msra.mxu0 0.0
        %3033 = vmatprep.subr.mxu0 0.0
        %3034 = vmatpush1.xpose.msra.mxu0 0.0
        %3035 = vmatprep.subr.mxu0 0.0
        %3036 = vmatpush1.xpose.msra.mxu0 0.0
        %3037 = vmatprep.subr.mxu0 0.0
        %3038 = vmatpush1.xpose.msra.mxu0 0.0
        %3039 = vmatprep.subr.mxu0 0.0
        %3040 = vmatpush1.xpose.msra.mxu0 0.0
        %3041 = vmatprep.subr.mxu0 0.0
        %3042 = vmatpush1.xpose.msra.mxu0 0.0
        %3043 = vmatprep.subr.mxu0 0.0
        %3044 = vmatpush1.xpose.msra.mxu0 0.0
        %3045 = vmatprep.subr.mxu0 0.0
        %3046 = vmatpush1.xpose.msra.mxu0 0.0
        %3047 = vmatprep.subr.mxu0 0.0
        %3048 = vmatpush1.xpose.msra.mxu0 0.0
        %3049 = vmatprep.subr.mxu0 0.0
        %3050 = vmatpush1.xpose.msra.mxu0 0.0
        %3051 = vmatprep.subr.mxu0 0.0
        %3052 = vmatpush1.xpose.msra.mxu0 0.0
        %3053 = vmatprep.subr.mxu0 0.0
        %3054 = vmatpush1.xpose.msra.mxu0 0.0
        %3055 = vmatprep.subr.mxu0 0.0
        %3056 = vmatpush1.xpose.msra.mxu0 0.0
        %3057 = vmatprep.mubr.f32.mxu0 0.0
        %3058 = vmatmul.mubr.f32.gmra.mrb[0].mxu0 %v2929
        %v3059 = vpop.f32.mrb[0].mxu0
        %v3060 = vadd.f32 0.0, %v3059
        %v3061 = vpop.f32.mrb[0].mxu0
        %3062 = vmatprep.mubr.f32.mxu0 0.0
        %3063 = vmatmul.mubr.f32.gmra.mrb[0].mxu0 %v2931
        %v3064 = vpop.f32.mrb[0].mxu0
        %v3065 = vadd.f32 0.0, %v3064
        %v3066 = vpop.f32.mrb[0].mxu0
        %3067 = vmatprep.mubr.f32.mxu0 0.0
        %3068 = vmatmul.mubr.f32.gmra.mrb[0].mxu0 %v2933
        %v3069 = vpop.f32.mrb[0].mxu0
        %v3070 = vadd.f32 0.0, %v3069
        %v3071 = vpop.f32.mrb[0].mxu0
        %3072 = vmatprep.mubr.f32.mxu0 0.0
        %3073 = vmatmul.mubr.f32.gmra.mrb[0].mxu0 %v2935
        %v3074 = vpop.f32.mrb[0].mxu0
        %v3075 = vadd.f32 0.0, %v3074
        %v3076 = vpop.f32.mrb[0].mxu0
        %3077 = vmatprep.mubr.f32.mxu0 0.0
        %3078 = vmatmul.mubr.f32.gmra.mrb[0].mxu0 %v2937
        %v3079 = vpop.f32.mrb[0].mxu0
        %v3080 = vadd.f32 0.0, %v3079
        %v3081 = vpop.f32.mrb[0].mxu0
        %3082 = vmatprep.mubr.f32.mxu0 0.0
        %3083 = vmatmul.mubr.f32.gmra.mrb[0].mxu0 %v2939
        %v3084 = vpop.f32.mrb[0].mxu0
        %v3085 = vadd.f32 0.0, %v3084
        %v3086 = vpop.f32.mrb[0].mxu0
        %3087 = vmatprep.mubr.f32.mxu0 0.0
        %3088 = vmatmul.mubr.f32.gmra.mrb[0].mxu0 %v2941
        %v3089 = vpop.f32.mrb[0].mxu0
        %v3090 = vadd.f32 0.0, %v3089
        %v3091 = vpop.f32.mrb[0].mxu0
        %3092 = vmatprep.mubr.f32.mxu0 0.0
        %3093 = vmatmul.mubr.f32.gmra.mrb[0].mxu0 %v2943
        %v3094 = vpop.f32.mrb[0].mxu0
        %v3095 = vadd.f32 0.0, %v3094
        %v3096 = vpop.f32.mrb[0].mxu0
        %3097 = vmatprep.mubr.f32.mxu0 0.0
        %3098 = vmatmul.mubr.f32.gmra.mrb[0].mxu0 %v2945
        %v3099 = vpop.f32.mrb[0].mxu0
        %v3100 = vadd.f32 0.0, %v3099
        %v3101 = vpop.f32.mrb[0].mxu0
        %3102 = vmatprep.mubr.f32.mxu0 0.0
        %3103 = vmatmul.mubr.f32.gmra.mrb[0].mxu0 %v2947
        %v3104 = vpop.f32.mrb[0].mxu0
        %v3105 = vadd.f32 0.0, %v3104
        %v3106 = vpop.f32.mrb[0].mxu0
        %3107 = vmatprep.mubr.f32.mxu0 0.0
        %3108 = vmatmul.mubr.f32.gmra.mrb[0].mxu0 %v2949
        %v3109 = vpop.f32.mrb[0].mxu0
        %v3110 = vadd.f32 0.0, %v3109
        %v3111 = vpop.f32.mrb[0].mxu0
        %3112 = vmatprep.mubr.f32.mxu0 0.0
        %3113 = vmatmul.mubr.f32.gmra.mrb[0].mxu0 %v2951
        %v3114 = vpop.f32.mrb[0].mxu0
        %v3115 = vadd.f32 0.0, %v3114
        %v3116 = vpop.f32.mrb[0].mxu0
        %3117 = vmatprep.mubr.f32.mxu0 0.0
        %3118 = vmatmul.mubr.f32.gmra.mrb[0].mxu0 %v2953
        %v3119 = vpop.f32.mrb[0].mxu0
        %v3120 = vadd.f32 0.0, %v3119
        %v3121 = vpop.f32.mrb[0].mxu0
        %3122 = vmatprep.mubr.f32.mxu0 0.0
        %3123 = vmatmul.mubr.f32.gmra.mrb[0].mxu0 %v2955
        %v3124 = vpop.f32.mrb[0].mxu0
        %v3125 = vadd.f32 0.0, %v3124
        %v3126 = vpop.f32.mrb[0].mxu0
        %3127 = vmatprep.mubr.f32.mxu0 0.0
        %3128 = vmatmul.mubr.f32.gmra.mrb[0].mxu0 %v2957
        %v3129 = vpop.f32.mrb[0].mxu0
        %v3130 = vadd.f32 0.0, %v3129
        %v3131 = vpop.f32.mrb[0].mxu0
        %3132 = vmatprep.mubr.f32.mxu0 0.0
        %3133 = vmatmul.mubr.f32.gmra.mrb[0].mxu0 %v2959
        %v3134 = vpop.f32.mrb[0].mxu0
        %v3135 = vadd.f32 0.0, %v3134
        %v3136 = vpop.f32.mrb[0].mxu0
        %3137 = vdwg.mxu0
        %s3138 = scalar_lea.vmem [#allocation2], 256
        %v3139 = vld [vmem:[%s3138] sm:$0xff]
        %v3140 = vld [vmem:[%s3138 + $0x8] sm:$0xff]
        %v3141 = vld [vmem:[%s3138 + $0x10] sm:$0xff]
        %v3142 = vld [vmem:[%s3138 + $0x18] sm:$0xff]
        %v3143 = vld [vmem:[%s3138 + $0x20] sm:$0xff]
        %v3144 = vld [vmem:[%s3138 + $0x28] sm:$0xff]
        %v3145 = vld [vmem:[%s3138 + $0x30] sm:$0xff]
        %v3146 = vld [vmem:[%s3138 + $0x38] sm:$0xff]
        %v3147 = vld [vmem:[%s3138 + $0x40] sm:$0xff]
        %v3148 = vld [vmem:[%s3138 + $0x48] sm:$0xff]
        %v3149 = vld [vmem:[%s3138 + $0x50] sm:$0xff]
        %v3150 = vld [vmem:[%s3138 + $0x58] sm:$0xff]
        %v3151 = vld [vmem:[%s3138 + $0x60] sm:$0xff]
        %v3152 = vld [vmem:[%s3138 + $0x68] sm:$0xff]
        %v3153 = vld [vmem:[%s3138 + $0x70] sm:$0xff]
        %v3154 = vld [vmem:[%s3138 + $0x78] sm:$0xff]
        %3155 = vmax.xlane.f32.xlu0 %v3060
        %v3156 = vpop.xlane.xlu0 %3155
        %3157 = vmax.xlane.f32.xlu0 %v3065
        %v3158 = vpop.xlane.xlu0 %3157
        %3159 = vmax.xlane.f32.xlu0 %v3070
        %v3160 = vpop.xlane.xlu0 %3159
        %3161 = vmax.xlane.f32.xlu0 %v3075
        %v3162 = vpop.xlane.xlu0 %3161
        %3163 = vmax.xlane.f32.xlu0 %v3080
        %v3164 = vpop.xlane.xlu0 %3163
        %3165 = vmax.xlane.f32.xlu0 %v3085
        %v3166 = vpop.xlane.xlu0 %3165
        %3167 = vmax.xlane.f32.xlu0 %v3090
        %v3168 = vpop.xlane.xlu0 %3167
        %3169 = vmax.xlane.f32.xlu0 %v3095
        %v3170 = vpop.xlane.xlu0 %3169
        %3171 = vmax.xlane.f32.xlu0 %v3100
        %v3172 = vpop.xlane.xlu0 %3171
        %3173 = vmax.xlane.f32.xlu0 %v3105
        %v3174 = vpop.xlane.xlu0 %3173
        %3175 = vmax.xlane.f32.xlu0 %v3110
        %v3176 = vpop.xlane.xlu0 %3175
        %3177 = vmax.xlane.f32.xlu0 %v3115
        %v3178 = vpop.xlane.xlu0 %3177
        %3179 = vmax.xlane.f32.xlu0 %v3120
        %v3180 = vpop.xlane.xlu0 %3179
        %3181 = vmax.xlane.f32.xlu0 %v3125
        %v3182 = vpop.xlane.xlu0 %3181
        %3183 = vmax.xlane.f32.xlu0 %v3130
        %v3184 = vpop.xlane.xlu0 %3183
        %3185 = vmax.xlane.f32.xlu0 %v3135
        %v3186 = vpop.xlane.xlu0 %3185
        %v3187 = vmax.f32 %v3139, %v3156
        %v3188 = vmax.f32 %v3140, %v3158
        %v3189 = vmax.f32 %v3141, %v3160
        %v3190 = vmax.f32 %v3142, %v3162
        %v3191 = vmax.f32 %v3143, %v3164
        %v3192 = vmax.f32 %v3144, %v3166
        %v3193 = vmax.f32 %v3145, %v3168
        %v3194 = vmax.f32 %v3146, %v3170
        %v3195 = vmax.f32 %v3147, %v3172
        %v3196 = vmax.f32 %v3148, %v3174
        %v3197 = vmax.f32 %v3149, %v3176
        %v3198 = vmax.f32 %v3150, %v3178
        %v3199 = vmax.f32 %v3151, %v3180
        %v3200 = vmax.f32 %v3152, %v3182
        %v3201 = vmax.f32 %v3153, %v3184
        %v3202 = vmax.f32 %v3154, %v3186
        %v3203 = vsub.f32 %v3139, %v3187
        %v3204 = vsub.f32 %v3140, %v3188
        %v3205 = vsub.f32 %v3141, %v3189
        %v3206 = vsub.f32 %v3142, %v3190
        %v3207 = vsub.f32 %v3143, %v3191
        %v3208 = vsub.f32 %v3144, %v3192
        %v3209 = vsub.f32 %v3145, %v3193
        %v3210 = vsub.f32 %v3146, %v3194
        %v3211 = vsub.f32 %v3147, %v3195
        %v3212 = vsub.f32 %v3148, %v3196
        %v3213 = vsub.f32 %v3149, %v3197
        %v3214 = vsub.f32 %v3150, %v3198
        %v3215 = vsub.f32 %v3151, %v3199
        %v3216 = vsub.f32 %v3152, %v3200
        %v3217 = vsub.f32 %v3153, %v3201
        %v3218 = vsub.f32 %v3154, %v3202
        %v3219 = vmul.f32 %v3203, 1.442695
        %v3220 = vpow.pop %v3219
        %v3221 = vmul.f32 %v3204, 1.442695
        %v3222 = vpow.pop %v3221
        %v3223 = vmul.f32 %v3205, 1.442695
        %v3224 = vpow.pop %v3223
        %v3225 = vmul.f32 %v3206, 1.442695
        %v3226 = vpow.pop %v3225
        %v3227 = vmul.f32 %v3207, 1.442695
        %v3228 = vpow.pop %v3227
        %v3229 = vmul.f32 %v3208, 1.442695
        %v3230 = vpow.pop %v3229
        %v3231 = vmul.f32 %v3209, 1.442695
        %v3232 = vpow.pop %v3231
        %v3233 = vmul.f32 %v3210, 1.442695
        %v3234 = vpow.pop %v3233
        %v3235 = vmul.f32 %v3211, 1.442695
        %v3236 = vpow.pop %v3235
        %v3237 = vmul.f32 %v3212, 1.442695
        %v3238 = vpow.pop %v3237
        %v3239 = vmul.f32 %v3213, 1.442695
        %v3240 = vpow.pop %v3239
        %v3241 = vmul.f32 %v3214, 1.442695
        %v3242 = vpow.pop %v3241
        %v3243 = vmul.f32 %v3215, 1.442695
        %v3244 = vpow.pop %v3243
        %v3245 = vmul.f32 %v3216, 1.442695
        %v3246 = vpow.pop %v3245
        %v3247 = vmul.f32 %v3217, 1.442695
        %v3248 = vpow.pop %v3247
        %v3249 = vmul.f32 %v3218, 1.442695
        %v3250 = vpow.pop %v3249
        %3252 = vset.pattern.permute.xlu0 0
        %3253 = vperm.xlu0 %3252, %v3187
        %v3254 = vpop.permute.xlu0 %3253
        %3257 = vset.pattern.permute.xlu0 0
        %3258 = vperm.xlu0 %3257, %v3188
        %v3259 = vpop.permute.xlu0 %3258
        %3262 = vset.pattern.permute.xlu0 0
        %3263 = vperm.xlu0 %3262, %v3189
        %v3264 = vpop.permute.xlu0 %3263
        %3267 = vset.pattern.permute.xlu0 0
        %3268 = vperm.xlu0 %3267, %v3190
        %v3269 = vpop.permute.xlu0 %3268
        %3272 = vset.pattern.permute.xlu0 0
        %3273 = vperm.xlu0 %3272, %v3191
        %v3274 = vpop.permute.xlu0 %3273
        %3277 = vset.pattern.permute.xlu0 0
        %3278 = vperm.xlu0 %3277, %v3192
        %v3279 = vpop.permute.xlu0 %3278
        %3282 = vset.pattern.permute.xlu0 0
        %3283 = vperm.xlu0 %3282, %v3193
        %v3284 = vpop.permute.xlu0 %3283
        %3287 = vset.pattern.permute.xlu0 0
        %3288 = vperm.xlu0 %3287, %v3194
        %v3289 = vpop.permute.xlu0 %3288
        %3292 = vset.pattern.permute.xlu0 0
        %3293 = vperm.xlu0 %3292, %v3195
        %v3294 = vpop.permute.xlu0 %3293
        %3297 = vset.pattern.permute.xlu0 0
        %3298 = vperm.xlu0 %3297, %v3196
        %v3299 = vpop.permute.xlu0 %3298
        %3302 = vset.pattern.permute.xlu0 0
        %3303 = vperm.xlu0 %3302, %v3197
        %v3304 = vpop.permute.xlu0 %3303
        %3307 = vset.pattern.permute.xlu0 0
        %3308 = vperm.xlu0 %3307, %v3198
        %v3309 = vpop.permute.xlu0 %3308
        %3312 = vset.pattern.permute.xlu0 0
        %3313 = vperm.xlu0 %3312, %v3199
        %v3314 = vpop.permute.xlu0 %3313
        %3317 = vset.pattern.permute.xlu0 0
        %3318 = vperm.xlu0 %3317, %v3200
        %v3319 = vpop.permute.xlu0 %3318
        %3322 = vset.pattern.permute.xlu0 0
        %3323 = vperm.xlu0 %3322, %v3201
        %v3324 = vpop.permute.xlu0 %3323
        %3327 = vset.pattern.permute.xlu0 0
        %3328 = vperm.xlu0 %3327, %v3202
        %v3329 = vpop.permute.xlu0 %3328
        %v3331 = vsub.f32 %v3060, %v3254
        %v3332 = vsub.f32 %v3065, %v3259
        %v3333 = vsub.f32 %v3070, %v3264
        %v3334 = vsub.f32 %v3075, %v3269
        %v3335 = vsub.f32 %v3080, %v3274
        %v3336 = vsub.f32 %v3085, %v3279
        %v3337 = vsub.f32 %v3090, %v3284
        %v3338 = vsub.f32 %v3095, %v3289
        %v3339 = vsub.f32 %v3100, %v3294
        %v3340 = vsub.f32 %v3105, %v3299
        %v3341 = vsub.f32 %v3110, %v3304
        %v3342 = vsub.f32 %v3115, %v3309
        %v3343 = vsub.f32 %v3120, %v3314
        %v3344 = vsub.f32 %v3125, %v3319
        %v3345 = vsub.f32 %v3130, %v3324
        %v3346 = vsub.f32 %v3135, %v3329
        %v3347 = vmul.f32 %v3331, 1.442695
        %v3348 = vpow.pop %v3347
        %v3349 = vmul.f32 %v3332, 1.442695
        %v3350 = vpow.pop %v3349
        %v3351 = vmul.f32 %v3333, 1.442695
        %v3352 = vpow.pop %v3351
        %v3353 = vmul.f32 %v3334, 1.442695
        %v3354 = vpow.pop %v3353
        %v3355 = vmul.f32 %v3335, 1.442695
        %v3356 = vpow.pop %v3355
        %v3357 = vmul.f32 %v3336, 1.442695
        %v3358 = vpow.pop %v3357
        %v3359 = vmul.f32 %v3337, 1.442695
        %v3360 = vpow.pop %v3359
        %v3361 = vmul.f32 %v3338, 1.442695
        %v3362 = vpow.pop %v3361
        %v3363 = vmul.f32 %v3339, 1.442695
        %v3364 = vpow.pop %v3363
        %v3365 = vmul.f32 %v3340, 1.442695
        %v3366 = vpow.pop %v3365
        %v3367 = vmul.f32 %v3341, 1.442695
        %v3368 = vpow.pop %v3367
        %v3369 = vmul.f32 %v3342, 1.442695
        %v3370 = vpow.pop %v3369
        %v3371 = vmul.f32 %v3343, 1.442695
        %v3372 = vpow.pop %v3371
        %v3373 = vmul.f32 %v3344, 1.442695
        %v3374 = vpow.pop %v3373
        %v3375 = vmul.f32 %v3345, 1.442695
        %v3376 = vpow.pop %v3375
        %v3377 = vmul.f32 %v3346, 1.442695
        %v3378 = vpow.pop %v3377
        %s3379 = scalar_lea.vmem [#allocation3], 256
        %v3380 = vld [vmem:[%s3379] sm:$0xff]
        %v3381 = vld [vmem:[%s3379 + $0x8] sm:$0xff]
        %v3382 = vld [vmem:[%s3379 + $0x10] sm:$0xff]
        %v3383 = vld [vmem:[%s3379 + $0x18] sm:$0xff]
        %v3384 = vld [vmem:[%s3379 + $0x20] sm:$0xff]
        %v3385 = vld [vmem:[%s3379 + $0x28] sm:$0xff]
        %v3386 = vld [vmem:[%s3379 + $0x30] sm:$0xff]
        %v3387 = vld [vmem:[%s3379 + $0x38] sm:$0xff]
        %v3388 = vld [vmem:[%s3379 + $0x40] sm:$0xff]
        %v3389 = vld [vmem:[%s3379 + $0x48] sm:$0xff]
        %v3390 = vld [vmem:[%s3379 + $0x50] sm:$0xff]
        %v3391 = vld [vmem:[%s3379 + $0x58] sm:$0xff]
        %v3392 = vld [vmem:[%s3379 + $0x60] sm:$0xff]
        %v3393 = vld [vmem:[%s3379 + $0x68] sm:$0xff]
        %v3394 = vld [vmem:[%s3379 + $0x70] sm:$0xff]
        %v3395 = vld [vmem:[%s3379 + $0x78] sm:$0xff]
        %v3396 = vmul.f32 %v3220, %v3380
        %v3397 = vmul.f32 %v3222, %v3381
        %v3398 = vmul.f32 %v3224, %v3382
        %v3399 = vmul.f32 %v3226, %v3383
        %v3400 = vmul.f32 %v3228, %v3384
        %v3401 = vmul.f32 %v3230, %v3385
        %v3402 = vmul.f32 %v3232, %v3386
        %v3403 = vmul.f32 %v3234, %v3387
        %v3404 = vmul.f32 %v3236, %v3388
        %v3405 = vmul.f32 %v3238, %v3389
        %v3406 = vmul.f32 %v3240, %v3390
        %v3407 = vmul.f32 %v3242, %v3391
        %v3408 = vmul.f32 %v3244, %v3392
        %v3409 = vmul.f32 %v3246, %v3393
        %v3410 = vmul.f32 %v3248, %v3394
        %v3411 = vmul.f32 %v3250, %v3395
        %3412 = vadd.xlane.f32.xlu0 %v3348
        %v3413 = vpop.xlane.xlu0 %3412
        %3414 = vadd.xlane.f32.xlu0 %v3350
        %v3415 = vpop.xlane.xlu0 %3414
        %3416 = vadd.xlane.f32.xlu0 %v3352
        %v3417 = vpop.xlane.xlu0 %3416
        %3418 = vadd.xlane.f32.xlu0 %v3354
        %v3419 = vpop.xlane.xlu0 %3418
        %3420 = vadd.xlane.f32.xlu0 %v3356
        %v3421 = vpop.xlane.xlu0 %3420
        %3422 = vadd.xlane.f32.xlu0 %v3358
        %v3423 = vpop.xlane.xlu0 %3422
        %3424 = vadd.xlane.f32.xlu0 %v3360
        %v3425 = vpop.xlane.xlu0 %3424
        %3426 = vadd.xlane.f32.xlu0 %v3362
        %v3427 = vpop.xlane.xlu0 %3426
        %3428 = vadd.xlane.f32.xlu0 %v3364
        %v3429 = vpop.xlane.xlu0 %3428
        %3430 = vadd.xlane.f32.xlu0 %v3366
        %v3431 = vpop.xlane.xlu0 %3430
        %3432 = vadd.xlane.f32.xlu0 %v3368
        %v3433 = vpop.xlane.xlu0 %3432
        %3434 = vadd.xlane.f32.xlu0 %v3370
        %v3435 = vpop.xlane.xlu0 %3434
        %3436 = vadd.xlane.f32.xlu0 %v3372
        %v3437 = vpop.xlane.xlu0 %3436
        %3438 = vadd.xlane.f32.xlu0 %v3374
        %v3439 = vpop.xlane.xlu0 %3438
        %3440 = vadd.xlane.f32.xlu0 %v3376
        %v3441 = vpop.xlane.xlu0 %3440
        %3442 = vadd.xlane.f32.xlu0 %v3378
        %v3443 = vpop.xlane.xlu0 %3442
        %v3444 = vadd.f32 %v3396, %v3413
        %v3445 = vadd.f32 %v3397, %v3415
        %v3446 = vadd.f32 %v3398, %v3417
        %v3447 = vadd.f32 %v3399, %v3419
        %v3448 = vadd.f32 %v3400, %v3421
        %v3449 = vadd.f32 %v3401, %v3423
        %v3450 = vadd.f32 %v3402, %v3425
        %v3451 = vadd.f32 %v3403, %v3427
        %v3452 = vadd.f32 %v3404, %v3429
        %v3453 = vadd.f32 %v3405, %v3431
        %v3454 = vadd.f32 %v3406, %v3433
        %v3455 = vadd.f32 %v3407, %v3435
        %v3456 = vadd.f32 %v3408, %v3437
        %v3457 = vadd.f32 %v3409, %v3439
        %v3458 = vadd.f32 %v3410, %v3441
        %v3459 = vadd.f32 %v3411, %v3443
        %3460 = vst.msk [vmem:[%s3379] sm:$0xff] %vm1370, %v3444
        %3461 = vst.msk [vmem:[%s3379 + $0x8] sm:$0xff] %vm1370, %v3445
        %3462 = vst.msk [vmem:[%s3379 + $0x10] sm:$0xff] %vm1370, %v3446
        %3463 = vst.msk [vmem:[%s3379 + $0x18] sm:$0xff] %vm1370, %v3447
        %3464 = vst.msk [vmem:[%s3379 + $0x20] sm:$0xff] %vm1370, %v3448
        %3465 = vst.msk [vmem:[%s3379 + $0x28] sm:$0xff] %vm1370, %v3449
        %3466 = vst.msk [vmem:[%s3379 + $0x30] sm:$0xff] %vm1370, %v3450
        %3467 = vst.msk [vmem:[%s3379 + $0x38] sm:$0xff] %vm1370, %v3451
        %3468 = vst.msk [vmem:[%s3379 + $0x40] sm:$0xff] %vm1370, %v3452
        %3469 = vst.msk [vmem:[%s3379 + $0x48] sm:$0xff] %vm1370, %v3453
        %3470 = vst.msk [vmem:[%s3379 + $0x50] sm:$0xff] %vm1370, %v3454
        %3471 = vst.msk [vmem:[%s3379 + $0x58] sm:$0xff] %vm1370, %v3455
        %3472 = vst.msk [vmem:[%s3379 + $0x60] sm:$0xff] %vm1370, %v3456
        %3473 = vst.msk [vmem:[%s3379 + $0x68] sm:$0xff] %vm1370, %v3457
        %3474 = vst.msk [vmem:[%s3379 + $0x70] sm:$0xff] %vm1370, %v3458
        %3475 = vst.msk [vmem:[%s3379 + $0x78] sm:$0xff] %vm1370, %v3459
        %s3476 = scalar_lea.vmem [#allocation4], 256
        %v3477 = vld [vmem:[%s3476] sm:$0xff]
        %v3478 = vld [vmem:[%s3476 + $0x8] sm:$0xff]
        %v3479 = vld [vmem:[%s3476 + $0x10] sm:$0xff]
        %v3480 = vld [vmem:[%s3476 + $0x18] sm:$0xff]
        %v3481 = vld [vmem:[%s3476 + $0x20] sm:$0xff]
        %v3482 = vld [vmem:[%s3476 + $0x28] sm:$0xff]
        %v3483 = vld [vmem:[%s3476 + $0x30] sm:$0xff]
        %v3484 = vld [vmem:[%s3476 + $0x38] sm:$0xff]
        %v3485 = vld [vmem:[%s3476 + $0x40] sm:$0xff]
        %v3486 = vld [vmem:[%s3476 + $0x48] sm:$0xff]
        %v3487 = vld [vmem:[%s3476 + $0x50] sm:$0xff]
        %v3488 = vld [vmem:[%s3476 + $0x58] sm:$0xff]
        %v3489 = vld [vmem:[%s3476 + $0x60] sm:$0xff]
        %v3490 = vld [vmem:[%s3476 + $0x68] sm:$0xff]
        %v3491 = vld [vmem:[%s3476 + $0x70] sm:$0xff]
        %v3492 = vld [vmem:[%s3476 + $0x78] sm:$0xff]
        %3494 = vset.pattern.permute.xlu0 0
        %3495 = vperm.xlu0 %3494, %v3220
        %v3496 = vpop.permute.xlu0 %3495
        %3499 = vset.pattern.permute.xlu0 0
        %3500 = vperm.xlu0 %3499, %v3222
        %v3501 = vpop.permute.xlu0 %3500
        %3504 = vset.pattern.permute.xlu0 0
        %3505 = vperm.xlu0 %3504, %v3224
        %v3506 = vpop.permute.xlu0 %3505
        %3509 = vset.pattern.permute.xlu0 0
        %3510 = vperm.xlu0 %3509, %v3226
        %v3511 = vpop.permute.xlu0 %3510
        %3514 = vset.pattern.permute.xlu0 0
        %3515 = vperm.xlu0 %3514, %v3228
        %v3516 = vpop.permute.xlu0 %3515
        %3519 = vset.pattern.permute.xlu0 0
        %3520 = vperm.xlu0 %3519, %v3230
        %v3521 = vpop.permute.xlu0 %3520
        %3524 = vset.pattern.permute.xlu0 0
        %3525 = vperm.xlu0 %3524, %v3232
        %v3526 = vpop.permute.xlu0 %3525
        %3529 = vset.pattern.permute.xlu0 0
        %3530 = vperm.xlu0 %3529, %v3234
        %v3531 = vpop.permute.xlu0 %3530
        %3534 = vset.pattern.permute.xlu0 0
        %3535 = vperm.xlu0 %3534, %v3236
        %v3536 = vpop.permute.xlu0 %3535
        %3539 = vset.pattern.permute.xlu0 0
        %3540 = vperm.xlu0 %3539, %v3238
        %v3541 = vpop.permute.xlu0 %3540
        %3544 = vset.pattern.permute.xlu0 0
        %3545 = vperm.xlu0 %3544, %v3240
        %v3546 = vpop.permute.xlu0 %3545
        %3549 = vset.pattern.permute.xlu0 0
        %3550 = vperm.xlu0 %3549, %v3242
        %v3551 = vpop.permute.xlu0 %3550
        %3554 = vset.pattern.permute.xlu0 0
        %3555 = vperm.xlu0 %3554, %v3244
        %v3556 = vpop.permute.xlu0 %3555
        %3559 = vset.pattern.permute.xlu0 0
        %3560 = vperm.xlu0 %3559, %v3246
        %v3561 = vpop.permute.xlu0 %3560
        %3564 = vset.pattern.permute.xlu0 0
        %3565 = vperm.xlu0 %3564, %v3248
        %v3566 = vpop.permute.xlu0 %3565
        %3569 = vset.pattern.permute.xlu0 0
        %3570 = vperm.xlu0 %3569, %v3250
        %v3571 = vpop.permute.xlu0 %3570
        %v3573 = vmul.f32 %v3496, %v3477
        %v3574 = vmul.f32 %v3501, %v3478
        %v3575 = vmul.f32 %v3506, %v3479
        %v3576 = vmul.f32 %v3511, %v3480
        %v3577 = vmul.f32 %v3516, %v3481
        %v3578 = vmul.f32 %v3521, %v3482
        %v3579 = vmul.f32 %v3526, %v3483
        %v3580 = vmul.f32 %v3531, %v3484
        %v3581 = vmul.f32 %v3536, %v3485
        %v3582 = vmul.f32 %v3541, %v3486
        %v3583 = vmul.f32 %v3546, %v3487
        %v3584 = vmul.f32 %v3551, %v3488
        %v3585 = vmul.f32 %v3556, %v3489
        %v3586 = vmul.f32 %v3561, %v3490
        %v3587 = vmul.f32 %v3566, %v3491
        %v3588 = vmul.f32 %v3571, %v3492
        %3605 = vrot.lane.b32.xlu0 %v2817, 64
        %v3606 = vpop.permute.xlu0 %3605
        %3607 = vrot.lane.b32.xlu0 %v2818, 64
        %v3608 = vpop.permute.xlu0 %3607
        %3609 = vrot.lane.b32.xlu0 %v2819, 64
        %v3610 = vpop.permute.xlu0 %3609
        %3611 = vrot.lane.b32.xlu0 %v2820, 64
        %v3612 = vpop.permute.xlu0 %3611
        %3613 = vrot.lane.b32.xlu0 %v2821, 64
        %v3614 = vpop.permute.xlu0 %3613
        %3615 = vrot.lane.b32.xlu0 %v2822, 64
        %v3616 = vpop.permute.xlu0 %3615
        %3617 = vrot.lane.b32.xlu0 %v2823, 64
        %v3618 = vpop.permute.xlu0 %3617
        %3619 = vrot.lane.b32.xlu0 %v2824, 64
        %v3620 = vpop.permute.xlu0 %3619
        %3621 = vrot.lane.b32.xlu0 %v2825, 64
        %v3622 = vpop.permute.xlu0 %3621
        %3623 = vrot.lane.b32.xlu0 %v2826, 64
        %v3624 = vpop.permute.xlu0 %3623
        %3625 = vrot.lane.b32.xlu0 %v2827, 64
        %v3626 = vpop.permute.xlu0 %3625
        %3627 = vrot.lane.b32.xlu0 %v2828, 64
        %v3628 = vpop.permute.xlu0 %3627
        %3629 = vrot.lane.b32.xlu0 %v2829, 64
        %v3630 = vpop.permute.xlu0 %3629
        %3631 = vrot.lane.b32.xlu0 %v2830, 64
        %v3632 = vpop.permute.xlu0 %3631
        %3633 = vrot.lane.b32.xlu0 %v2831, 64
        %v3634 = vpop.permute.xlu0 %3633
        %3635 = vrot.lane.b32.xlu0 %v2832, 64
        %v3636 = vpop.permute.xlu0 %3635
        %3653 = vmatprep.subr.mxu0 0.0
        %3654 = vmatpush1.msra.mxu0 %v3606
        %3655 = vmatprep.subr.mxu0 0.0
        %3656 = vmatpush1.msra.mxu0 %v3608
        %3657 = vmatprep.subr.mxu0 0.0
        %3658 = vmatpush1.msra.mxu0 %v3610
        %3659 = vmatprep.subr.mxu0 0.0
        %3660 = vmatpush1.msra.mxu0 %v3612
        %3661 = vmatprep.subr.mxu0 0.0
        %3662 = vmatpush1.msra.mxu0 %v3614
        %3663 = vmatprep.subr.mxu0 0.0
        %3664 = vmatpush1.msra.mxu0 %v3616
        %3665 = vmatprep.subr.mxu0 0.0
        %3666 = vmatpush1.msra.mxu0 %v3618
        %3667 = vmatprep.subr.mxu0 0.0
        %3668 = vmatpush1.msra.mxu0 %v3620
        %3669 = vmatprep.subr.mxu0 0.0
        %3670 = vmatpush1.msra.mxu0 %v3622
        %3671 = vmatprep.subr.mxu0 0.0
        %3672 = vmatpush1.msra.mxu0 %v3624
        %3673 = vmatprep.subr.mxu0 0.0
        %3674 = vmatpush1.msra.mxu0 %v3626
        %3675 = vmatprep.subr.mxu0 0.0
        %3676 = vmatpush1.msra.mxu0 %v3628
        %3677 = vmatprep.subr.mxu0 0.0
        %3678 = vmatpush1.msra.mxu0 %v3630
        %3679 = vmatprep.subr.mxu0 0.0
        %3680 = vmatpush1.msra.mxu0 %v3632
        %3681 = vmatprep.subr.mxu0 0.0
        %3682 = vmatpush1.msra.mxu0 %v3634
        %3683 = vmatprep.subr.mxu0 0.0
        %3684 = vmatpush1.msra.mxu0 %v3636
        %3685 = vmatprep.subr.mxu0 0.0
        %3686 = vmatpush1.msra.mxu0 0.0
        %3687 = vmatprep.subr.mxu0 0.0
        %3688 = vmatpush1.msra.mxu0 0.0
        %3689 = vmatprep.subr.mxu0 0.0
        %3690 = vmatpush1.msra.mxu0 0.0
        %3691 = vmatprep.subr.mxu0 0.0
        %3692 = vmatpush1.msra.mxu0 0.0
        %3693 = vmatprep.subr.mxu0 0.0
        %3694 = vmatpush1.msra.mxu0 0.0
        %3695 = vmatprep.subr.mxu0 0.0
        %3696 = vmatpush1.msra.mxu0 0.0
        %3697 = vmatprep.subr.mxu0 0.0
        %3698 = vmatpush1.msra.mxu0 0.0
        %3699 = vmatprep.subr.mxu0 0.0
        %3700 = vmatpush1.msra.mxu0 0.0
        %3701 = vmatprep.subr.mxu0 0.0
        %3702 = vmatpush1.msra.mxu0 0.0
        %3703 = vmatprep.subr.mxu0 0.0
        %3704 = vmatpush1.msra.mxu0 0.0
        %3705 = vmatprep.subr.mxu0 0.0
        %3706 = vmatpush1.msra.mxu0 0.0
        %3707 = vmatprep.subr.mxu0 0.0
        %3708 = vmatpush1.msra.mxu0 0.0
        %3709 = vmatprep.subr.mxu0 0.0
        %3710 = vmatpush1.msra.mxu0 0.0
        %3711 = vmatprep.subr.mxu0 0.0
        %3712 = vmatpush1.msra.mxu0 0.0
        %3713 = vmatprep.subr.mxu0 0.0
        %3714 = vmatpush1.msra.mxu0 0.0
        %3715 = vmatprep.subr.mxu0 0.0
        %3716 = vmatpush1.msra.mxu0 0.0
        %3717 = vmatprep.mubr.f32.mxu0 0.0
        %3718 = vmatmul.mubr.f32.gmra.mrb[0].mxu0 %v3348
        %v3719 = vpop.f32.mrb[0].mxu0
        %v3720 = vadd.f32 0.0, %v3719
        %v3721 = vpop.f32.mrb[0].mxu0
        %3722 = vmatprep.mubr.f32.mxu0 0.0
        %3723 = vmatmul.mubr.f32.gmra.mrb[0].mxu0 %v3350
        %v3724 = vpop.f32.mrb[0].mxu0
        %v3725 = vadd.f32 0.0, %v3724
        %v3726 = vpop.f32.mrb[0].mxu0
        %3727 = vmatprep.mubr.f32.mxu0 0.0
        %3728 = vmatmul.mubr.f32.gmra.mrb[0].mxu0 %v3352
        %v3729 = vpop.f32.mrb[0].mxu0
        %v3730 = vadd.f32 0.0, %v3729
        %v3731 = vpop.f32.mrb[0].mxu0
        %3732 = vmatprep.mubr.f32.mxu0 0.0
        %3733 = vmatmul.mubr.f32.gmra.mrb[0].mxu0 %v3354
        %v3734 = vpop.f32.mrb[0].mxu0
        %v3735 = vadd.f32 0.0, %v3734
        %v3736 = vpop.f32.mrb[0].mxu0
        %3737 = vmatprep.mubr.f32.mxu0 0.0
        %3738 = vmatmul.mubr.f32.gmra.mrb[0].mxu0 %v3356
        %v3739 = vpop.f32.mrb[0].mxu0
        %v3740 = vadd.f32 0.0, %v3739
        %v3741 = vpop.f32.mrb[0].mxu0
        %3742 = vmatprep.mubr.f32.mxu0 0.0
        %3743 = vmatmul.mubr.f32.gmra.mrb[0].mxu0 %v3358
        %v3744 = vpop.f32.mrb[0].mxu0
        %v3745 = vadd.f32 0.0, %v3744
        %v3746 = vpop.f32.mrb[0].mxu0
        %3747 = vmatprep.mubr.f32.mxu0 0.0
        %3748 = vmatmul.mubr.f32.gmra.mrb[0].mxu0 %v3360
        %v3749 = vpop.f32.mrb[0].mxu0
        %v3750 = vadd.f32 0.0, %v3749
        %v3751 = vpop.f32.mrb[0].mxu0
        %3752 = vmatprep.mubr.f32.mxu0 0.0
        %3753 = vmatmul.mubr.f32.gmra.mrb[0].mxu0 %v3362
        %v3754 = vpop.f32.mrb[0].mxu0
        %v3755 = vadd.f32 0.0, %v3754
        %v3756 = vpop.f32.mrb[0].mxu0
        %3757 = vmatprep.mubr.f32.mxu0 0.0
        %3758 = vmatmul.mubr.f32.gmra.mrb[0].mxu0 %v3364
        %v3759 = vpop.f32.mrb[0].mxu0
        %v3760 = vadd.f32 0.0, %v3759
        %v3761 = vpop.f32.mrb[0].mxu0
        %3762 = vmatprep.mubr.f32.mxu0 0.0
        %3763 = vmatmul.mubr.f32.gmra.mrb[0].mxu0 %v3366
        %v3764 = vpop.f32.mrb[0].mxu0
        %v3765 = vadd.f32 0.0, %v3764
        %v3766 = vpop.f32.mrb[0].mxu0
        %3767 = vmatprep.mubr.f32.mxu0 0.0
        %3768 = vmatmul.mubr.f32.gmra.mrb[0].mxu0 %v3368
        %v3769 = vpop.f32.mrb[0].mxu0
        %v3770 = vadd.f32 0.0, %v3769
        %v3771 = vpop.f32.mrb[0].mxu0
        %3772 = vmatprep.mubr.f32.mxu0 0.0
        %3773 = vmatmul.mubr.f32.gmra.mrb[0].mxu0 %v3370
        %v3774 = vpop.f32.mrb[0].mxu0
        %v3775 = vadd.f32 0.0, %v3774
        %v3776 = vpop.f32.mrb[0].mxu0
        %3777 = vmatprep.mubr.f32.mxu0 0.0
        %3778 = vmatmul.mubr.f32.gmra.mrb[0].mxu0 %v3372
        %v3779 = vpop.f32.mrb[0].mxu0
        %v3780 = vadd.f32 0.0, %v3779
        %v3781 = vpop.f32.mrb[0].mxu0
        %3782 = vmatprep.mubr.f32.mxu0 0.0
        %3783 = vmatmul.mubr.f32.gmra.mrb[0].mxu0 %v3374
        %v3784 = vpop.f32.mrb[0].mxu0
        %v3785 = vadd.f32 0.0, %v3784
        %v3786 = vpop.f32.mrb[0].mxu0
        %3787 = vmatprep.mubr.f32.mxu0 0.0
        %3788 = vmatmul.mubr.f32.gmra.mrb[0].mxu0 %v3376
        %v3789 = vpop.f32.mrb[0].mxu0
        %v3790 = vadd.f32 0.0, %v3789
        %v3791 = vpop.f32.mrb[0].mxu0
        %3792 = vmatprep.mubr.f32.mxu0 0.0
        %3793 = vmatmul.mubr.f32.gmra.mrb[0].mxu0 %v3378
        %v3794 = vpop.f32.mrb[0].mxu0
        %v3795 = vadd.f32 0.0, %v3794
        %v3796 = vpop.f32.mrb[0].mxu0
        %3797 = vdwg.mxu0
        %v3798 = vadd.f32 %v3573, %v3720
        %v3799 = vadd.f32 %v3574, %v3725
        %v3800 = vadd.f32 %v3575, %v3730
        %v3801 = vadd.f32 %v3576, %v3735
        %v3802 = vadd.f32 %v3577, %v3740
        %v3803 = vadd.f32 %v3578, %v3745
        %v3804 = vadd.f32 %v3579, %v3750
        %v3805 = vadd.f32 %v3580, %v3755
        %v3806 = vadd.f32 %v3581, %v3760
        %v3807 = vadd.f32 %v3582, %v3765
        %v3808 = vadd.f32 %v3583, %v3770
        %v3809 = vadd.f32 %v3584, %v3775
        %v3810 = vadd.f32 %v3585, %v3780
        %v3811 = vadd.f32 %v3586, %v3785
        %v3812 = vadd.f32 %v3587, %v3790
        %v3813 = vadd.f32 %v3588, %v3795
        %3814 = vst.msk [vmem:[%s3476] sm:$0xff] %vm808, %v3798
        %3815 = vst.msk [vmem:[%s3476 + $0x8] sm:$0xff] %vm808, %v3799
        %3816 = vst.msk [vmem:[%s3476 + $0x10] sm:$0xff] %vm808, %v3800
        %3817 = vst.msk [vmem:[%s3476 + $0x18] sm:$0xff] %vm808, %v3801
        %3818 = vst.msk [vmem:[%s3476 + $0x20] sm:$0xff] %vm808, %v3802
        %3819 = vst.msk [vmem:[%s3476 + $0x28] sm:$0xff] %vm808, %v3803
        %3820 = vst.msk [vmem:[%s3476 + $0x30] sm:$0xff] %vm808, %v3804
        %3821 = vst.msk [vmem:[%s3476 + $0x38] sm:$0xff] %vm808, %v3805
        %3822 = vst.msk [vmem:[%s3476 + $0x40] sm:$0xff] %vm808, %v3806
        %3823 = vst.msk [vmem:[%s3476 + $0x48] sm:$0xff] %vm808, %v3807
        %3824 = vst.msk [vmem:[%s3476 + $0x50] sm:$0xff] %vm808, %v3808
        %3825 = vst.msk [vmem:[%s3476 + $0x58] sm:$0xff] %vm808, %v3809
        %3826 = vst.msk [vmem:[%s3476 + $0x60] sm:$0xff] %vm808, %v3810
        %3827 = vst.msk [vmem:[%s3476 + $0x68] sm:$0xff] %vm808, %v3811
        %3828 = vst.msk [vmem:[%s3476 + $0x70] sm:$0xff] %vm808, %v3812
        %3829 = vst.msk [vmem:[%s3476 + $0x78] sm:$0xff] %vm808, %v3813
        %3830 = vst.msk [vmem:[%s3138] sm:$0xff] %vm1370, %v3187
        %3831 = vst.msk [vmem:[%s3138 + $0x8] sm:$0xff] %vm1370, %v3188
        %3832 = vst.msk [vmem:[%s3138 + $0x10] sm:$0xff] %vm1370, %v3189
        %3833 = vst.msk [vmem:[%s3138 + $0x18] sm:$0xff] %vm1370, %v3190
        %3834 = vst.msk [vmem:[%s3138 + $0x20] sm:$0xff] %vm1370, %v3191
        %3835 = vst.msk [vmem:[%s3138 + $0x28] sm:$0xff] %vm1370, %v3192
        %3836 = vst.msk [vmem:[%s3138 + $0x30] sm:$0xff] %vm1370, %v3193
        %3837 = vst.msk [vmem:[%s3138 + $0x38] sm:$0xff] %vm1370, %v3194
        %3838 = vst.msk [vmem:[%s3138 + $0x40] sm:$0xff] %vm1370, %v3195
        %3839 = vst.msk [vmem:[%s3138 + $0x48] sm:$0xff] %vm1370, %v3196
        %3840 = vst.msk [vmem:[%s3138 + $0x50] sm:$0xff] %vm1370, %v3197
        %3841 = vst.msk [vmem:[%s3138 + $0x58] sm:$0xff] %vm1370, %v3198
        %3842 = vst.msk [vmem:[%s3138 + $0x60] sm:$0xff] %vm1370, %v3199
        %3843 = vst.msk [vmem:[%s3138 + $0x68] sm:$0xff] %vm1370, %v3200
        %3844 = vst.msk [vmem:[%s3138 + $0x70] sm:$0xff] %vm1370, %v3201
        %3845 = vst.msk [vmem:[%s3138 + $0x78] sm:$0xff] %vm1370, %v3202
        %v3846 = vld [vmem:[%s486] sm:$0xff]
        %v3847 = vld [vmem:[%s486 + $0x8] sm:$0xff]
        %v3848 = vld [vmem:[%s486 + $0x10] sm:$0xff]
        %v3849 = vld [vmem:[%s486 + $0x18] sm:$0xff]
        %v3850 = vld [vmem:[%s486 + $0x20] sm:$0xff]
        %v3851 = vld [vmem:[%s486 + $0x28] sm:$0xff]
        %v3852 = vld [vmem:[%s486 + $0x30] sm:$0xff]
        %v3853 = vld [vmem:[%s486 + $0x38] sm:$0xff]
        %v3854 = vld [vmem:[%s486 + $0x40] sm:$0xff]
        %v3855 = vld [vmem:[%s486 + $0x48] sm:$0xff]
        %v3856 = vld [vmem:[%s486 + $0x50] sm:$0xff]
        %v3857 = vld [vmem:[%s486 + $0x58] sm:$0xff]
        %v3858 = vld [vmem:[%s486 + $0x60] sm:$0xff]
        %v3859 = vld [vmem:[%s486 + $0x68] sm:$0xff]
        %v3860 = vld [vmem:[%s486 + $0x70] sm:$0xff]
        %v3861 = vld [vmem:[%s486 + $0x78] sm:$0xff]
        %v3862 = vmul.f32 %v3846, 0.17677669
        %v3863 = vmul.f32 %v3847, 0.17677669
        %v3864 = vmul.f32 %v3848, 0.17677669
        %v3865 = vmul.f32 %v3849, 0.17677669
        %v3866 = vmul.f32 %v3850, 0.17677669
        %v3867 = vmul.f32 %v3851, 0.17677669
        %v3868 = vmul.f32 %v3852, 0.17677669
        %v3869 = vmul.f32 %v3853, 0.17677669
        %v3870 = vmul.f32 %v3854, 0.17677669
        %v3871 = vmul.f32 %v3855, 0.17677669
        %v3872 = vmul.f32 %v3856, 0.17677669
        %v3873 = vmul.f32 %v3857, 0.17677669
        %v3874 = vmul.f32 %v3858, 0.17677669
        %v3875 = vmul.f32 %v3859, 0.17677669
        %v3876 = vmul.f32 %v3860, 0.17677669
        %v3877 = vmul.f32 %v3861, 0.17677669
        %v3878 = vld [vmem:[%s493] sm:$0xff]
        %v3879 = vld [vmem:[%s493 + $0x8] sm:$0xff]
        %v3880 = vld [vmem:[%s493 + $0x10] sm:$0xff]
        %v3881 = vld [vmem:[%s493 + $0x18] sm:$0xff]
        %v3882 = vld [vmem:[%s493 + $0x20] sm:$0xff]
        %v3883 = vld [vmem:[%s493 + $0x28] sm:$0xff]
        %v3884 = vld [vmem:[%s493 + $0x30] sm:$0xff]
        %v3885 = vld [vmem:[%s493 + $0x38] sm:$0xff]
        %v3886 = vld [vmem:[%s493 + $0x40] sm:$0xff]
        %v3887 = vld [vmem:[%s493 + $0x48] sm:$0xff]
        %v3888 = vld [vmem:[%s493 + $0x50] sm:$0xff]
        %v3889 = vld [vmem:[%s493 + $0x58] sm:$0xff]
        %v3890 = vld [vmem:[%s493 + $0x60] sm:$0xff]
        %v3891 = vld [vmem:[%s493 + $0x68] sm:$0xff]
        %v3892 = vld [vmem:[%s493 + $0x70] sm:$0xff]
        %v3893 = vld [vmem:[%s493 + $0x78] sm:$0xff]
        %v3894 = vld [vmem:[%s500] sm:$0xff]
        %v3895 = vld [vmem:[%s500 + $0x8] sm:$0xff]
        %v3896 = vld [vmem:[%s500 + $0x10] sm:$0xff]
        %v3897 = vld [vmem:[%s500 + $0x18] sm:$0xff]
        %v3898 = vld [vmem:[%s500 + $0x20] sm:$0xff]
        %v3899 = vld [vmem:[%s500 + $0x28] sm:$0xff]
        %v3900 = vld [vmem:[%s500 + $0x30] sm:$0xff]
        %v3901 = vld [vmem:[%s500 + $0x38] sm:$0xff]
        %v3902 = vld [vmem:[%s500 + $0x40] sm:$0xff]
        %v3903 = vld [vmem:[%s500 + $0x48] sm:$0xff]
        %v3904 = vld [vmem:[%s500 + $0x50] sm:$0xff]
        %v3905 = vld [vmem:[%s500 + $0x58] sm:$0xff]
        %v3906 = vld [vmem:[%s500 + $0x60] sm:$0xff]
        %v3907 = vld [vmem:[%s500 + $0x68] sm:$0xff]
        %v3908 = vld [vmem:[%s500 + $0x70] sm:$0xff]
        %v3909 = vld [vmem:[%s500 + $0x78] sm:$0xff]
        %3926 = vrot.lane.b32.xlu0 %v3862, 32
        %v3927 = vpop.permute.xlu0 %3926
        %3928 = vrot.lane.b32.xlu0 %v3863, 32
        %v3929 = vpop.permute.xlu0 %3928
        %3930 = vrot.lane.b32.xlu0 %v3864, 32
        %v3931 = vpop.permute.xlu0 %3930
        %3932 = vrot.lane.b32.xlu0 %v3865, 32
        %v3933 = vpop.permute.xlu0 %3932
        %3934 = vrot.lane.b32.xlu0 %v3866, 32
        %v3935 = vpop.permute.xlu0 %3934
        %3936 = vrot.lane.b32.xlu0 %v3867, 32
        %v3937 = vpop.permute.xlu0 %3936
        %3938 = vrot.lane.b32.xlu0 %v3868, 32
        %v3939 = vpop.permute.xlu0 %3938
        %3940 = vrot.lane.b32.xlu0 %v3869, 32
        %v3941 = vpop.permute.xlu0 %3940
        %3942 = vrot.lane.b32.xlu0 %v3870, 32
        %v3943 = vpop.permute.xlu0 %3942
        %3944 = vrot.lane.b32.xlu0 %v3871, 32
        %v3945 = vpop.permute.xlu0 %3944
        %3946 = vrot.lane.b32.xlu0 %v3872, 32
        %v3947 = vpop.permute.xlu0 %3946
        %3948 = vrot.lane.b32.xlu0 %v3873, 32
        %v3949 = vpop.permute.xlu0 %3948
        %3950 = vrot.lane.b32.xlu0 %v3874, 32
        %v3951 = vpop.permute.xlu0 %3950
        %3952 = vrot.lane.b32.xlu0 %v3875, 32
        %v3953 = vpop.permute.xlu0 %3952
        %3954 = vrot.lane.b32.xlu0 %v3876, 32
        %v3955 = vpop.permute.xlu0 %3954
        %3956 = vrot.lane.b32.xlu0 %v3877, 32
        %v3957 = vpop.permute.xlu0 %3956
        %3974 = vrot.lane.b32.xlu0 %v3878, 32
        %v3975 = vpop.permute.xlu0 %3974
        %3976 = vrot.lane.b32.xlu0 %v3879, 32
        %v3977 = vpop.permute.xlu0 %3976
        %3978 = vrot.lane.b32.xlu0 %v3880, 32
        %v3979 = vpop.permute.xlu0 %3978
        %3980 = vrot.lane.b32.xlu0 %v3881, 32
        %v3981 = vpop.permute.xlu0 %3980
        %3982 = vrot.lane.b32.xlu0 %v3882, 32
        %v3983 = vpop.permute.xlu0 %3982
        %3984 = vrot.lane.b32.xlu0 %v3883, 32
        %v3985 = vpop.permute.xlu0 %3984
        %3986 = vrot.lane.b32.xlu0 %v3884, 32
        %v3987 = vpop.permute.xlu0 %3986
        %3988 = vrot.lane.b32.xlu0 %v3885, 32
        %v3989 = vpop.permute.xlu0 %3988
        %3990 = vrot.lane.b32.xlu0 %v3886, 32
        %v3991 = vpop.permute.xlu0 %3990
        %3992 = vrot.lane.b32.xlu0 %v3887, 32
        %v3993 = vpop.permute.xlu0 %3992
        %3994 = vrot.lane.b32.xlu0 %v3888, 32
        %v3995 = vpop.permute.xlu0 %3994
        %3996 = vrot.lane.b32.xlu0 %v3889, 32
        %v3997 = vpop.permute.xlu0 %3996
        %3998 = vrot.lane.b32.xlu0 %v3890, 32
        %v3999 = vpop.permute.xlu0 %3998
        %4000 = vrot.lane.b32.xlu0 %v3891, 32
        %v4001 = vpop.permute.xlu0 %4000
        %4002 = vrot.lane.b32.xlu0 %v3892, 32
        %v4003 = vpop.permute.xlu0 %4002
        %4004 = vrot.lane.b32.xlu0 %v3893, 32
        %v4005 = vpop.permute.xlu0 %4004
        %v4006 = vsel %vm808, %v3927, 0
        %v4008 = vsel %vm808, %v3929, 0
        %v4010 = vsel %vm808, %v3931, 0
        %v4012 = vsel %vm808, %v3933, 0
        %v4014 = vsel %vm808, %v3935, 0
        %v4016 = vsel %vm808, %v3937, 0
        %v4018 = vsel %vm808, %v3939, 0
        %v4020 = vsel %vm808, %v3941, 0
        %v4022 = vsel %vm808, %v3943, 0
        %v4024 = vsel %vm808, %v3945, 0
        %v4026 = vsel %vm808, %v3947, 0
        %v4028 = vsel %vm808, %v3949, 0
        %v4030 = vsel %vm808, %v3951, 0
        %v4032 = vsel %vm808, %v3953, 0
        %v4034 = vsel %vm808, %v3955, 0
        %v4036 = vsel %vm808, %v3957, 0
        %v4038 = vsel %vm808, %v3975, 0
        %v4040 = vsel %vm808, %v3977, 0
        %v4042 = vsel %vm808, %v3979, 0
        %v4044 = vsel %vm808, %v3981, 0
        %v4046 = vsel %vm808, %v3983, 0
        %v4048 = vsel %vm808, %v3985, 0
        %v4050 = vsel %vm808, %v3987, 0
        %v4052 = vsel %vm808, %v3989, 0
        %v4054 = vsel %vm808, %v3991, 0
        %v4056 = vsel %vm808, %v3993, 0
        %v4058 = vsel %vm808, %v3995, 0
        %v4060 = vsel %vm808, %v3997, 0
        %v4062 = vsel %vm808, %v3999, 0
        %v4064 = vsel %vm808, %v4001, 0
        %v4066 = vsel %vm808, %v4003, 0
        %v4068 = vsel %vm808, %v4005, 0
        %4070 = vmatprep.subr.mxu0 0.0
        %4071 = vmatpush1.xpose.msra.mxu0 %v4038
        %4072 = vmatprep.subr.mxu0 0.0
        %4073 = vmatpush1.xpose.msra.mxu0 %v4040
        %4074 = vmatprep.subr.mxu0 0.0
        %4075 = vmatpush1.xpose.msra.mxu0 %v4042
        %4076 = vmatprep.subr.mxu0 0.0
        %4077 = vmatpush1.xpose.msra.mxu0 %v4044
        %4078 = vmatprep.subr.mxu0 0.0
        %4079 = vmatpush1.xpose.msra.mxu0 %v4046
        %4080 = vmatprep.subr.mxu0 0.0
        %4081 = vmatpush1.xpose.msra.mxu0 %v4048
        %4082 = vmatprep.subr.mxu0 0.0
        %4083 = vmatpush1.xpose.msra.mxu0 %v4050
        %4084 = vmatprep.subr.mxu0 0.0
        %4085 = vmatpush1.xpose.msra.mxu0 %v4052
        %4086 = vmatprep.subr.mxu0 0.0
        %4087 = vmatpush1.xpose.msra.mxu0 %v4054
        %4088 = vmatprep.subr.mxu0 0.0
        %4089 = vmatpush1.xpose.msra.mxu0 %v4056
        %4090 = vmatprep.subr.mxu0 0.0
        %4091 = vmatpush1.xpose.msra.mxu0 %v4058
        %4092 = vmatprep.subr.mxu0 0.0
        %4093 = vmatpush1.xpose.msra.mxu0 %v4060
        %4094 = vmatprep.subr.mxu0 0.0
        %4095 = vmatpush1.xpose.msra.mxu0 %v4062
        %4096 = vmatprep.subr.mxu0 0.0
        %4097 = vmatpush1.xpose.msra.mxu0 %v4064
        %4098 = vmatprep.subr.mxu0 0.0
        %4099 = vmatpush1.xpose.msra.mxu0 %v4066
        %4100 = vmatprep.subr.mxu0 0.0
        %4101 = vmatpush1.xpose.msra.mxu0 %v4068
        %4102 = vmatprep.subr.mxu0 0.0
        %4103 = vmatpush1.xpose.msra.mxu0 0.0
        %4104 = vmatprep.subr.mxu0 0.0
        %4105 = vmatpush1.xpose.msra.mxu0 0.0
        %4106 = vmatprep.subr.mxu0 0.0
        %4107 = vmatpush1.xpose.msra.mxu0 0.0
        %4108 = vmatprep.subr.mxu0 0.0
        %4109 = vmatpush1.xpose.msra.mxu0 0.0
        %4110 = vmatprep.subr.mxu0 0.0
        %4111 = vmatpush1.xpose.msra.mxu0 0.0
        %4112 = vmatprep.subr.mxu0 0.0
        %4113 = vmatpush1.xpose.msra.mxu0 0.0
        %4114 = vmatprep.subr.mxu0 0.0
        %4115 = vmatpush1.xpose.msra.mxu0 0.0
        %4116 = vmatprep.subr.mxu0 0.0
        %4117 = vmatpush1.xpose.msra.mxu0 0.0
        %4118 = vmatprep.subr.mxu0 0.0
        %4119 = vmatpush1.xpose.msra.mxu0 0.0
        %4120 = vmatprep.subr.mxu0 0.0
        %4121 = vmatpush1.xpose.msra.mxu0 0.0
        %4122 = vmatprep.subr.mxu0 0.0
        %4123 = vmatpush1.xpose.msra.mxu0 0.0
        %4124 = vmatprep.subr.mxu0 0.0
        %4125 = vmatpush1.xpose.msra.mxu0 0.0
        %4126 = vmatprep.subr.mxu0 0.0
        %4127 = vmatpush1.xpose.msra.mxu0 0.0
        %4128 = vmatprep.subr.mxu0 0.0
        %4129 = vmatpush1.xpose.msra.mxu0 0.0
        %4130 = vmatprep.subr.mxu0 0.0
        %4131 = vmatpush1.xpose.msra.mxu0 0.0
        %4132 = vmatprep.subr.mxu0 0.0
        %4133 = vmatpush1.xpose.msra.mxu0 0.0
        %4134 = vmatprep.mubr.f32.mxu0 0.0
        %4135 = vmatmul.mubr.f32.gmra.mrb[0].mxu0 %v4006
        %v4136 = vpop.f32.mrb[0].mxu0
        %v4137 = vadd.f32 0.0, %v4136
        %v4138 = vpop.f32.mrb[0].mxu0
        %4139 = vmatprep.mubr.f32.mxu0 0.0
        %4140 = vmatmul.mubr.f32.gmra.mrb[0].mxu0 %v4008
        %v4141 = vpop.f32.mrb[0].mxu0
        %v4142 = vadd.f32 0.0, %v4141
        %v4143 = vpop.f32.mrb[0].mxu0
        %4144 = vmatprep.mubr.f32.mxu0 0.0
        %4145 = vmatmul.mubr.f32.gmra.mrb[0].mxu0 %v4010
        %v4146 = vpop.f32.mrb[0].mxu0
        %v4147 = vadd.f32 0.0, %v4146
        %v4148 = vpop.f32.mrb[0].mxu0
        %4149 = vmatprep.mubr.f32.mxu0 0.0
        %4150 = vmatmul.mubr.f32.gmra.mrb[0].mxu0 %v4012
        %v4151 = vpop.f32.mrb[0].mxu0
        %v4152 = vadd.f32 0.0, %v4151
        %v4153 = vpop.f32.mrb[0].mxu0
        %4154 = vmatprep.mubr.f32.mxu0 0.0
        %4155 = vmatmul.mubr.f32.gmra.mrb[0].mxu0 %v4014
        %v4156 = vpop.f32.mrb[0].mxu0
        %v4157 = vadd.f32 0.0, %v4156
        %v4158 = vpop.f32.mrb[0].mxu0
        %4159 = vmatprep.mubr.f32.mxu0 0.0
        %4160 = vmatmul.mubr.f32.gmra.mrb[0].mxu0 %v4016
        %v4161 = vpop.f32.mrb[0].mxu0
        %v4162 = vadd.f32 0.0, %v4161
        %v4163 = vpop.f32.mrb[0].mxu0
        %4164 = vmatprep.mubr.f32.mxu0 0.0
        %4165 = vmatmul.mubr.f32.gmra.mrb[0].mxu0 %v4018
        %v4166 = vpop.f32.mrb[0].mxu0
        %v4167 = vadd.f32 0.0, %v4166
        %v4168 = vpop.f32.mrb[0].mxu0
        %4169 = vmatprep.mubr.f32.mxu0 0.0
        %4170 = vmatmul.mubr.f32.gmra.mrb[0].mxu0 %v4020
        %v4171 = vpop.f32.mrb[0].mxu0
        %v4172 = vadd.f32 0.0, %v4171
        %v4173 = vpop.f32.mrb[0].mxu0
        %4174 = vmatprep.mubr.f32.mxu0 0.0
        %4175 = vmatmul.mubr.f32.gmra.mrb[0].mxu0 %v4022
        %v4176 = vpop.f32.mrb[0].mxu0
        %v4177 = vadd.f32 0.0, %v4176
        %v4178 = vpop.f32.mrb[0].mxu0
        %4179 = vmatprep.mubr.f32.mxu0 0.0
        %4180 = vmatmul.mubr.f32.gmra.mrb[0].mxu0 %v4024
        %v4181 = vpop.f32.mrb[0].mxu0
        %v4182 = vadd.f32 0.0, %v4181
        %v4183 = vpop.f32.mrb[0].mxu0
        %4184 = vmatprep.mubr.f32.mxu0 0.0
        %4185 = vmatmul.mubr.f32.gmra.mrb[0].mxu0 %v4026
        %v4186 = vpop.f32.mrb[0].mxu0
        %v4187 = vadd.f32 0.0, %v4186
        %v4188 = vpop.f32.mrb[0].mxu0
        %4189 = vmatprep.mubr.f32.mxu0 0.0
        %4190 = vmatmul.mubr.f32.gmra.mrb[0].mxu0 %v4028
        %v4191 = vpop.f32.mrb[0].mxu0
        %v4192 = vadd.f32 0.0, %v4191
        %v4193 = vpop.f32.mrb[0].mxu0
        %4194 = vmatprep.mubr.f32.mxu0 0.0
        %4195 = vmatmul.mubr.f32.gmra.mrb[0].mxu0 %v4030
        %v4196 = vpop.f32.mrb[0].mxu0
        %v4197 = vadd.f32 0.0, %v4196
        %v4198 = vpop.f32.mrb[0].mxu0
        %4199 = vmatprep.mubr.f32.mxu0 0.0
        %4200 = vmatmul.mubr.f32.gmra.mrb[0].mxu0 %v4032
        %v4201 = vpop.f32.mrb[0].mxu0
        %v4202 = vadd.f32 0.0, %v4201
        %v4203 = vpop.f32.mrb[0].mxu0
        %4204 = vmatprep.mubr.f32.mxu0 0.0
        %4205 = vmatmul.mubr.f32.gmra.mrb[0].mxu0 %v4034
        %v4206 = vpop.f32.mrb[0].mxu0
        %v4207 = vadd.f32 0.0, %v4206
        %v4208 = vpop.f32.mrb[0].mxu0
        %4209 = vmatprep.mubr.f32.mxu0 0.0
        %4210 = vmatmul.mubr.f32.gmra.mrb[0].mxu0 %v4036
        %v4211 = vpop.f32.mrb[0].mxu0
        %v4212 = vadd.f32 0.0, %v4211
        %v4213 = vpop.f32.mrb[0].mxu0
        %4214 = vdwg.mxu0
        %s4215 = scalar_lea.vmem [#allocation2], 384
        %v4216 = vld [vmem:[%s4215] sm:$0xff]
        %v4217 = vld [vmem:[%s4215 + $0x8] sm:$0xff]
        %v4218 = vld [vmem:[%s4215 + $0x10] sm:$0xff]
        %v4219 = vld [vmem:[%s4215 + $0x18] sm:$0xff]
        %v4220 = vld [vmem:[%s4215 + $0x20] sm:$0xff]
        %v4221 = vld [vmem:[%s4215 + $0x28] sm:$0xff]
        %v4222 = vld [vmem:[%s4215 + $0x30] sm:$0xff]
        %v4223 = vld [vmem:[%s4215 + $0x38] sm:$0xff]
        %v4224 = vld [vmem:[%s4215 + $0x40] sm:$0xff]
        %v4225 = vld [vmem:[%s4215 + $0x48] sm:$0xff]
        %v4226 = vld [vmem:[%s4215 + $0x50] sm:$0xff]
        %v4227 = vld [vmem:[%s4215 + $0x58] sm:$0xff]
        %v4228 = vld [vmem:[%s4215 + $0x60] sm:$0xff]
        %v4229 = vld [vmem:[%s4215 + $0x68] sm:$0xff]
        %v4230 = vld [vmem:[%s4215 + $0x70] sm:$0xff]
        %v4231 = vld [vmem:[%s4215 + $0x78] sm:$0xff]
        %4232 = vmax.xlane.f32.xlu0 %v4137
        %v4233 = vpop.xlane.xlu0 %4232
        %4234 = vmax.xlane.f32.xlu0 %v4142
        %v4235 = vpop.xlane.xlu0 %4234
        %4236 = vmax.xlane.f32.xlu0 %v4147
        %v4237 = vpop.xlane.xlu0 %4236
        %4238 = vmax.xlane.f32.xlu0 %v4152
        %v4239 = vpop.xlane.xlu0 %4238
        %4240 = vmax.xlane.f32.xlu0 %v4157
        %v4241 = vpop.xlane.xlu0 %4240
        %4242 = vmax.xlane.f32.xlu0 %v4162
        %v4243 = vpop.xlane.xlu0 %4242
        %4244 = vmax.xlane.f32.xlu0 %v4167
        %v4245 = vpop.xlane.xlu0 %4244
        %4246 = vmax.xlane.f32.xlu0 %v4172
        %v4247 = vpop.xlane.xlu0 %4246
        %4248 = vmax.xlane.f32.xlu0 %v4177
        %v4249 = vpop.xlane.xlu0 %4248
        %4250 = vmax.xlane.f32.xlu0 %v4182
        %v4251 = vpop.xlane.xlu0 %4250
        %4252 = vmax.xlane.f32.xlu0 %v4187
        %v4253 = vpop.xlane.xlu0 %4252
        %4254 = vmax.xlane.f32.xlu0 %v4192
        %v4255 = vpop.xlane.xlu0 %4254
        %4256 = vmax.xlane.f32.xlu0 %v4197
        %v4257 = vpop.xlane.xlu0 %4256
        %4258 = vmax.xlane.f32.xlu0 %v4202
        %v4259 = vpop.xlane.xlu0 %4258
        %4260 = vmax.xlane.f32.xlu0 %v4207
        %v4261 = vpop.xlane.xlu0 %4260
        %4262 = vmax.xlane.f32.xlu0 %v4212
        %v4263 = vpop.xlane.xlu0 %4262
        %v4264 = vmax.f32 %v4216, %v4233
        %v4265 = vmax.f32 %v4217, %v4235
        %v4266 = vmax.f32 %v4218, %v4237
        %v4267 = vmax.f32 %v4219, %v4239
        %v4268 = vmax.f32 %v4220, %v4241
        %v4269 = vmax.f32 %v4221, %v4243
        %v4270 = vmax.f32 %v4222, %v4245
        %v4271 = vmax.f32 %v4223, %v4247
        %v4272 = vmax.f32 %v4224, %v4249
        %v4273 = vmax.f32 %v4225, %v4251
        %v4274 = vmax.f32 %v4226, %v4253
        %v4275 = vmax.f32 %v4227, %v4255
        %v4276 = vmax.f32 %v4228, %v4257
        %v4277 = vmax.f32 %v4229, %v4259
        %v4278 = vmax.f32 %v4230, %v4261
        %v4279 = vmax.f32 %v4231, %v4263
        %v4280 = vsub.f32 %v4216, %v4264
        %v4281 = vsub.f32 %v4217, %v4265
        %v4282 = vsub.f32 %v4218, %v4266
        %v4283 = vsub.f32 %v4219, %v4267
        %v4284 = vsub.f32 %v4220, %v4268
        %v4285 = vsub.f32 %v4221, %v4269
        %v4286 = vsub.f32 %v4222, %v4270
        %v4287 = vsub.f32 %v4223, %v4271
        %v4288 = vsub.f32 %v4224, %v4272
        %v4289 = vsub.f32 %v4225, %v4273
        %v4290 = vsub.f32 %v4226, %v4274
        %v4291 = vsub.f32 %v4227, %v4275
        %v4292 = vsub.f32 %v4228, %v4276
        %v4293 = vsub.f32 %v4229, %v4277
        %v4294 = vsub.f32 %v4230, %v4278
        %v4295 = vsub.f32 %v4231, %v4279
        %v4296 = vmul.f32 %v4280, 1.442695
        %v4297 = vpow.pop %v4296
        %v4298 = vmul.f32 %v4281, 1.442695
        %v4299 = vpow.pop %v4298
        %v4300 = vmul.f32 %v4282, 1.442695
        %v4301 = vpow.pop %v4300
        %v4302 = vmul.f32 %v4283, 1.442695
        %v4303 = vpow.pop %v4302
        %v4304 = vmul.f32 %v4284, 1.442695
        %v4305 = vpow.pop %v4304
        %v4306 = vmul.f32 %v4285, 1.442695
        %v4307 = vpow.pop %v4306
        %v4308 = vmul.f32 %v4286, 1.442695
        %v4309 = vpow.pop %v4308
        %v4310 = vmul.f32 %v4287, 1.442695
        %v4311 = vpow.pop %v4310
        %v4312 = vmul.f32 %v4288, 1.442695
        %v4313 = vpow.pop %v4312
        %v4314 = vmul.f32 %v4289, 1.442695
        %v4315 = vpow.pop %v4314
        %v4316 = vmul.f32 %v4290, 1.442695
        %v4317 = vpow.pop %v4316
        %v4318 = vmul.f32 %v4291, 1.442695
        %v4319 = vpow.pop %v4318
        %v4320 = vmul.f32 %v4292, 1.442695
        %v4321 = vpow.pop %v4320
        %v4322 = vmul.f32 %v4293, 1.442695
        %v4323 = vpow.pop %v4322
        %v4324 = vmul.f32 %v4294, 1.442695
        %v4325 = vpow.pop %v4324
        %v4326 = vmul.f32 %v4295, 1.442695
        %v4327 = vpow.pop %v4326
        %4329 = vset.pattern.permute.xlu0 0
        %4330 = vperm.xlu0 %4329, %v4264
        %v4331 = vpop.permute.xlu0 %4330
        %4334 = vset.pattern.permute.xlu0 0
        %4335 = vperm.xlu0 %4334, %v4265
        %v4336 = vpop.permute.xlu0 %4335
        %4339 = vset.pattern.permute.xlu0 0
        %4340 = vperm.xlu0 %4339, %v4266
        %v4341 = vpop.permute.xlu0 %4340
        %4344 = vset.pattern.permute.xlu0 0
        %4345 = vperm.xlu0 %4344, %v4267
        %v4346 = vpop.permute.xlu0 %4345
        %4349 = vset.pattern.permute.xlu0 0
        %4350 = vperm.xlu0 %4349, %v4268
        %v4351 = vpop.permute.xlu0 %4350
        %4354 = vset.pattern.permute.xlu0 0
        %4355 = vperm.xlu0 %4354, %v4269
        %v4356 = vpop.permute.xlu0 %4355
        %4359 = vset.pattern.permute.xlu0 0
        %4360 = vperm.xlu0 %4359, %v4270
        %v4361 = vpop.permute.xlu0 %4360
        %4364 = vset.pattern.permute.xlu0 0
        %4365 = vperm.xlu0 %4364, %v4271
        %v4366 = vpop.permute.xlu0 %4365
        %4369 = vset.pattern.permute.xlu0 0
        %4370 = vperm.xlu0 %4369, %v4272
        %v4371 = vpop.permute.xlu0 %4370
        %4374 = vset.pattern.permute.xlu0 0
        %4375 = vperm.xlu0 %4374, %v4273
        %v4376 = vpop.permute.xlu0 %4375
        %4379 = vset.pattern.permute.xlu0 0
        %4380 = vperm.xlu0 %4379, %v4274
        %v4381 = vpop.permute.xlu0 %4380
        %4384 = vset.pattern.permute.xlu0 0
        %4385 = vperm.xlu0 %4384, %v4275
        %v4386 = vpop.permute.xlu0 %4385
        %4389 = vset.pattern.permute.xlu0 0
        %4390 = vperm.xlu0 %4389, %v4276
        %v4391 = vpop.permute.xlu0 %4390
        %4394 = vset.pattern.permute.xlu0 0
        %4395 = vperm.xlu0 %4394, %v4277
        %v4396 = vpop.permute.xlu0 %4395
        %4399 = vset.pattern.permute.xlu0 0
        %4400 = vperm.xlu0 %4399, %v4278
        %v4401 = vpop.permute.xlu0 %4400
        %4404 = vset.pattern.permute.xlu0 0
        %4405 = vperm.xlu0 %4404, %v4279
        %v4406 = vpop.permute.xlu0 %4405
        %v4408 = vsub.f32 %v4137, %v4331
        %v4409 = vsub.f32 %v4142, %v4336
        %v4410 = vsub.f32 %v4147, %v4341
        %v4411 = vsub.f32 %v4152, %v4346
        %v4412 = vsub.f32 %v4157, %v4351
        %v4413 = vsub.f32 %v4162, %v4356
        %v4414 = vsub.f32 %v4167, %v4361
        %v4415 = vsub.f32 %v4172, %v4366
        %v4416 = vsub.f32 %v4177, %v4371
        %v4417 = vsub.f32 %v4182, %v4376
        %v4418 = vsub.f32 %v4187, %v4381
        %v4419 = vsub.f32 %v4192, %v4386
        %v4420 = vsub.f32 %v4197, %v4391
        %v4421 = vsub.f32 %v4202, %v4396
        %v4422 = vsub.f32 %v4207, %v4401
        %v4423 = vsub.f32 %v4212, %v4406
        %v4424 = vmul.f32 %v4408, 1.442695
        %v4425 = vpow.pop %v4424
        %v4426 = vmul.f32 %v4409, 1.442695
        %v4427 = vpow.pop %v4426
        %v4428 = vmul.f32 %v4410, 1.442695
        %v4429 = vpow.pop %v4428
        %v4430 = vmul.f32 %v4411, 1.442695
        %v4431 = vpow.pop %v4430
        %v4432 = vmul.f32 %v4412, 1.442695
        %v4433 = vpow.pop %v4432
        %v4434 = vmul.f32 %v4413, 1.442695
        %v4435 = vpow.pop %v4434
        %v4436 = vmul.f32 %v4414, 1.442695
        %v4437 = vpow.pop %v4436
        %v4438 = vmul.f32 %v4415, 1.442695
        %v4439 = vpow.pop %v4438
        %v4440 = vmul.f32 %v4416, 1.442695
        %v4441 = vpow.pop %v4440
        %v4442 = vmul.f32 %v4417, 1.442695
        %v4443 = vpow.pop %v4442
        %v4444 = vmul.f32 %v4418, 1.442695
        %v4445 = vpow.pop %v4444
        %v4446 = vmul.f32 %v4419, 1.442695
        %v4447 = vpow.pop %v4446
        %v4448 = vmul.f32 %v4420, 1.442695
        %v4449 = vpow.pop %v4448
        %v4450 = vmul.f32 %v4421, 1.442695
        %v4451 = vpow.pop %v4450
        %v4452 = vmul.f32 %v4422, 1.442695
        %v4453 = vpow.pop %v4452
        %v4454 = vmul.f32 %v4423, 1.442695
        %v4455 = vpow.pop %v4454
        %s4456 = scalar_lea.vmem [#allocation3], 384
        %v4457 = vld [vmem:[%s4456] sm:$0xff]
        %v4458 = vld [vmem:[%s4456 + $0x8] sm:$0xff]
        %v4459 = vld [vmem:[%s4456 + $0x10] sm:$0xff]
        %v4460 = vld [vmem:[%s4456 + $0x18] sm:$0xff]
        %v4461 = vld [vmem:[%s4456 + $0x20] sm:$0xff]
        %v4462 = vld [vmem:[%s4456 + $0x28] sm:$0xff]
        %v4463 = vld [vmem:[%s4456 + $0x30] sm:$0xff]
        %v4464 = vld [vmem:[%s4456 + $0x38] sm:$0xff]
        %v4465 = vld [vmem:[%s4456 + $0x40] sm:$0xff]
        %v4466 = vld [vmem:[%s4456 + $0x48] sm:$0xff]
        %v4467 = vld [vmem:[%s4456 + $0x50] sm:$0xff]
        %v4468 = vld [vmem:[%s4456 + $0x58] sm:$0xff]
        %v4469 = vld [vmem:[%s4456 + $0x60] sm:$0xff]
        %v4470 = vld [vmem:[%s4456 + $0x68] sm:$0xff]
        %v4471 = vld [vmem:[%s4456 + $0x70] sm:$0xff]
        %v4472 = vld [vmem:[%s4456 + $0x78] sm:$0xff]
        %v4473 = vmul.f32 %v4297, %v4457
        %v4474 = vmul.f32 %v4299, %v4458
        %v4475 = vmul.f32 %v4301, %v4459
        %v4476 = vmul.f32 %v4303, %v4460
        %v4477 = vmul.f32 %v4305, %v4461
        %v4478 = vmul.f32 %v4307, %v4462
        %v4479 = vmul.f32 %v4309, %v4463
        %v4480 = vmul.f32 %v4311, %v4464
        %v4481 = vmul.f32 %v4313, %v4465
        %v4482 = vmul.f32 %v4315, %v4466
        %v4483 = vmul.f32 %v4317, %v4467
        %v4484 = vmul.f32 %v4319, %v4468
        %v4485 = vmul.f32 %v4321, %v4469
        %v4486 = vmul.f32 %v4323, %v4470
        %v4487 = vmul.f32 %v4325, %v4471
        %v4488 = vmul.f32 %v4327, %v4472
        %4489 = vadd.xlane.f32.xlu0 %v4425
        %v4490 = vpop.xlane.xlu0 %4489
        %4491 = vadd.xlane.f32.xlu0 %v4427
        %v4492 = vpop.xlane.xlu0 %4491
        %4493 = vadd.xlane.f32.xlu0 %v4429
        %v4494 = vpop.xlane.xlu0 %4493
        %4495 = vadd.xlane.f32.xlu0 %v4431
        %v4496 = vpop.xlane.xlu0 %4495
        %4497 = vadd.xlane.f32.xlu0 %v4433
        %v4498 = vpop.xlane.xlu0 %4497
        %4499 = vadd.xlane.f32.xlu0 %v4435
        %v4500 = vpop.xlane.xlu0 %4499
        %4501 = vadd.xlane.f32.xlu0 %v4437
        %v4502 = vpop.xlane.xlu0 %4501
        %4503 = vadd.xlane.f32.xlu0 %v4439
        %v4504 = vpop.xlane.xlu0 %4503
        %4505 = vadd.xlane.f32.xlu0 %v4441
        %v4506 = vpop.xlane.xlu0 %4505
        %4507 = vadd.xlane.f32.xlu0 %v4443
        %v4508 = vpop.xlane.xlu0 %4507
        %4509 = vadd.xlane.f32.xlu0 %v4445
        %v4510 = vpop.xlane.xlu0 %4509
        %4511 = vadd.xlane.f32.xlu0 %v4447
        %v4512 = vpop.xlane.xlu0 %4511
        %4513 = vadd.xlane.f32.xlu0 %v4449
        %v4514 = vpop.xlane.xlu0 %4513
        %4515 = vadd.xlane.f32.xlu0 %v4451
        %v4516 = vpop.xlane.xlu0 %4515
        %4517 = vadd.xlane.f32.xlu0 %v4453
        %v4518 = vpop.xlane.xlu0 %4517
        %4519 = vadd.xlane.f32.xlu0 %v4455
        %v4520 = vpop.xlane.xlu0 %4519
        %v4521 = vadd.f32 %v4473, %v4490
        %v4522 = vadd.f32 %v4474, %v4492
        %v4523 = vadd.f32 %v4475, %v4494
        %v4524 = vadd.f32 %v4476, %v4496
        %v4525 = vadd.f32 %v4477, %v4498
        %v4526 = vadd.f32 %v4478, %v4500
        %v4527 = vadd.f32 %v4479, %v4502
        %v4528 = vadd.f32 %v4480, %v4504
        %v4529 = vadd.f32 %v4481, %v4506
        %v4530 = vadd.f32 %v4482, %v4508
        %v4531 = vadd.f32 %v4483, %v4510
        %v4532 = vadd.f32 %v4484, %v4512
        %v4533 = vadd.f32 %v4485, %v4514
        %v4534 = vadd.f32 %v4486, %v4516
        %v4535 = vadd.f32 %v4487, %v4518
        %v4536 = vadd.f32 %v4488, %v4520
        %4537 = vst.msk [vmem:[%s4456] sm:$0xff] %vm1370, %v4521
        %4538 = vst.msk [vmem:[%s4456 + $0x8] sm:$0xff] %vm1370, %v4522
        %4539 = vst.msk [vmem:[%s4456 + $0x10] sm:$0xff] %vm1370, %v4523
        %4540 = vst.msk [vmem:[%s4456 + $0x18] sm:$0xff] %vm1370, %v4524
        %4541 = vst.msk [vmem:[%s4456 + $0x20] sm:$0xff] %vm1370, %v4525
        %4542 = vst.msk [vmem:[%s4456 + $0x28] sm:$0xff] %vm1370, %v4526
        %4543 = vst.msk [vmem:[%s4456 + $0x30] sm:$0xff] %vm1370, %v4527
        %4544 = vst.msk [vmem:[%s4456 + $0x38] sm:$0xff] %vm1370, %v4528
        %4545 = vst.msk [vmem:[%s4456 + $0x40] sm:$0xff] %vm1370, %v4529
        %4546 = vst.msk [vmem:[%s4456 + $0x48] sm:$0xff] %vm1370, %v4530
        %4547 = vst.msk [vmem:[%s4456 + $0x50] sm:$0xff] %vm1370, %v4531
        %4548 = vst.msk [vmem:[%s4456 + $0x58] sm:$0xff] %vm1370, %v4532
        %4549 = vst.msk [vmem:[%s4456 + $0x60] sm:$0xff] %vm1370, %v4533
        %4550 = vst.msk [vmem:[%s4456 + $0x68] sm:$0xff] %vm1370, %v4534
        %4551 = vst.msk [vmem:[%s4456 + $0x70] sm:$0xff] %vm1370, %v4535
        %4552 = vst.msk [vmem:[%s4456 + $0x78] sm:$0xff] %vm1370, %v4536
        %s4553 = scalar_lea.vmem [#allocation4], 384
        %v4554 = vld [vmem:[%s4553] sm:$0xff]
        %v4555 = vld [vmem:[%s4553 + $0x8] sm:$0xff]
        %v4556 = vld [vmem:[%s4553 + $0x10] sm:$0xff]
        %v4557 = vld [vmem:[%s4553 + $0x18] sm:$0xff]
        %v4558 = vld [vmem:[%s4553 + $0x20] sm:$0xff]
        %v4559 = vld [vmem:[%s4553 + $0x28] sm:$0xff]
        %v4560 = vld [vmem:[%s4553 + $0x30] sm:$0xff]
        %v4561 = vld [vmem:[%s4553 + $0x38] sm:$0xff]
        %v4562 = vld [vmem:[%s4553 + $0x40] sm:$0xff]
        %v4563 = vld [vmem:[%s4553 + $0x48] sm:$0xff]
        %v4564 = vld [vmem:[%s4553 + $0x50] sm:$0xff]
        %v4565 = vld [vmem:[%s4553 + $0x58] sm:$0xff]
        %v4566 = vld [vmem:[%s4553 + $0x60] sm:$0xff]
        %v4567 = vld [vmem:[%s4553 + $0x68] sm:$0xff]
        %v4568 = vld [vmem:[%s4553 + $0x70] sm:$0xff]
        %v4569 = vld [vmem:[%s4553 + $0x78] sm:$0xff]
        %4571 = vset.pattern.permute.xlu0 0
        %4572 = vperm.xlu0 %4571, %v4297
        %v4573 = vpop.permute.xlu0 %4572
        %4576 = vset.pattern.permute.xlu0 0
        %4577 = vperm.xlu0 %4576, %v4299
        %v4578 = vpop.permute.xlu0 %4577
        %4581 = vset.pattern.permute.xlu0 0
        %4582 = vperm.xlu0 %4581, %v4301
        %v4583 = vpop.permute.xlu0 %4582
        %4586 = vset.pattern.permute.xlu0 0
        %4587 = vperm.xlu0 %4586, %v4303
        %v4588 = vpop.permute.xlu0 %4587
        %4591 = vset.pattern.permute.xlu0 0
        %4592 = vperm.xlu0 %4591, %v4305
        %v4593 = vpop.permute.xlu0 %4592
        %4596 = vset.pattern.permute.xlu0 0
        %4597 = vperm.xlu0 %4596, %v4307
        %v4598 = vpop.permute.xlu0 %4597
        %4601 = vset.pattern.permute.xlu0 0
        %4602 = vperm.xlu0 %4601, %v4309
        %v4603 = vpop.permute.xlu0 %4602
        %4606 = vset.pattern.permute.xlu0 0
        %4607 = vperm.xlu0 %4606, %v4311
        %v4608 = vpop.permute.xlu0 %4607
        %4611 = vset.pattern.permute.xlu0 0
        %4612 = vperm.xlu0 %4611, %v4313
        %v4613 = vpop.permute.xlu0 %4612
        %4616 = vset.pattern.permute.xlu0 0
        %4617 = vperm.xlu0 %4616, %v4315
        %v4618 = vpop.permute.xlu0 %4617
        %4621 = vset.pattern.permute.xlu0 0
        %4622 = vperm.xlu0 %4621, %v4317
        %v4623 = vpop.permute.xlu0 %4622
        %4626 = vset.pattern.permute.xlu0 0
        %4627 = vperm.xlu0 %4626, %v4319
        %v4628 = vpop.permute.xlu0 %4627
        %4631 = vset.pattern.permute.xlu0 0
        %4632 = vperm.xlu0 %4631, %v4321
        %v4633 = vpop.permute.xlu0 %4632
        %4636 = vset.pattern.permute.xlu0 0
        %4637 = vperm.xlu0 %4636, %v4323
        %v4638 = vpop.permute.xlu0 %4637
        %4641 = vset.pattern.permute.xlu0 0
        %4642 = vperm.xlu0 %4641, %v4325
        %v4643 = vpop.permute.xlu0 %4642
        %4646 = vset.pattern.permute.xlu0 0
        %4647 = vperm.xlu0 %4646, %v4327
        %v4648 = vpop.permute.xlu0 %4647
        %v4650 = vmul.f32 %v4573, %v4554
        %v4651 = vmul.f32 %v4578, %v4555
        %v4652 = vmul.f32 %v4583, %v4556
        %v4653 = vmul.f32 %v4588, %v4557
        %v4654 = vmul.f32 %v4593, %v4558
        %v4655 = vmul.f32 %v4598, %v4559
        %v4656 = vmul.f32 %v4603, %v4560
        %v4657 = vmul.f32 %v4608, %v4561
        %v4658 = vmul.f32 %v4613, %v4562
        %v4659 = vmul.f32 %v4618, %v4563
        %v4660 = vmul.f32 %v4623, %v4564
        %v4661 = vmul.f32 %v4628, %v4565
        %v4662 = vmul.f32 %v4633, %v4566
        %v4663 = vmul.f32 %v4638, %v4567
        %v4664 = vmul.f32 %v4643, %v4568
        %v4665 = vmul.f32 %v4648, %v4569
        %4682 = vrot.lane.b32.xlu0 %v3894, 32
        %v4683 = vpop.permute.xlu0 %4682
        %4684 = vrot.lane.b32.xlu0 %v3895, 32
        %v4685 = vpop.permute.xlu0 %4684
        %4686 = vrot.lane.b32.xlu0 %v3896, 32
        %v4687 = vpop.permute.xlu0 %4686
        %4688 = vrot.lane.b32.xlu0 %v3897, 32
        %v4689 = vpop.permute.xlu0 %4688
        %4690 = vrot.lane.b32.xlu0 %v3898, 32
        %v4691 = vpop.permute.xlu0 %4690
        %4692 = vrot.lane.b32.xlu0 %v3899, 32
        %v4693 = vpop.permute.xlu0 %4692
        %4694 = vrot.lane.b32.xlu0 %v3900, 32
        %v4695 = vpop.permute.xlu0 %4694
        %4696 = vrot.lane.b32.xlu0 %v3901, 32
        %v4697 = vpop.permute.xlu0 %4696
        %4698 = vrot.lane.b32.xlu0 %v3902, 32
        %v4699 = vpop.permute.xlu0 %4698
        %4700 = vrot.lane.b32.xlu0 %v3903, 32
        %v4701 = vpop.permute.xlu0 %4700
        %4702 = vrot.lane.b32.xlu0 %v3904, 32
        %v4703 = vpop.permute.xlu0 %4702
        %4704 = vrot.lane.b32.xlu0 %v3905, 32
        %v4705 = vpop.permute.xlu0 %4704
        %4706 = vrot.lane.b32.xlu0 %v3906, 32
        %v4707 = vpop.permute.xlu0 %4706
        %4708 = vrot.lane.b32.xlu0 %v3907, 32
        %v4709 = vpop.permute.xlu0 %4708
        %4710 = vrot.lane.b32.xlu0 %v3908, 32
        %v4711 = vpop.permute.xlu0 %4710
        %4712 = vrot.lane.b32.xlu0 %v3909, 32
        %v4713 = vpop.permute.xlu0 %4712
        %4730 = vmatprep.subr.mxu0 0.0
        %4731 = vmatpush1.msra.mxu0 %v4683
        %4732 = vmatprep.subr.mxu0 0.0
        %4733 = vmatpush1.msra.mxu0 %v4685
        %4734 = vmatprep.subr.mxu0 0.0
        %4735 = vmatpush1.msra.mxu0 %v4687
        %4736 = vmatprep.subr.mxu0 0.0
        %4737 = vmatpush1.msra.mxu0 %v4689
        %4738 = vmatprep.subr.mxu0 0.0
        %4739 = vmatpush1.msra.mxu0 %v4691
        %4740 = vmatprep.subr.mxu0 0.0
        %4741 = vmatpush1.msra.mxu0 %v4693
        %4742 = vmatprep.subr.mxu0 0.0
        %4743 = vmatpush1.msra.mxu0 %v4695
        %4744 = vmatprep.subr.mxu0 0.0
        %4745 = vmatpush1.msra.mxu0 %v4697
        %4746 = vmatprep.subr.mxu0 0.0
        %4747 = vmatpush1.msra.mxu0 %v4699
        %4748 = vmatprep.subr.mxu0 0.0
        %4749 = vmatpush1.msra.mxu0 %v4701
        %4750 = vmatprep.subr.mxu0 0.0
        %4751 = vmatpush1.msra.mxu0 %v4703
        %4752 = vmatprep.subr.mxu0 0.0
        %4753 = vmatpush1.msra.mxu0 %v4705
        %4754 = vmatprep.subr.mxu0 0.0
        %4755 = vmatpush1.msra.mxu0 %v4707
        %4756 = vmatprep.subr.mxu0 0.0
        %4757 = vmatpush1.msra.mxu0 %v4709
        %4758 = vmatprep.subr.mxu0 0.0
        %4759 = vmatpush1.msra.mxu0 %v4711
        %4760 = vmatprep.subr.mxu0 0.0
        %4761 = vmatpush1.msra.mxu0 %v4713
        %4762 = vmatprep.subr.mxu0 0.0
        %4763 = vmatpush1.msra.mxu0 0.0
        %4764 = vmatprep.subr.mxu0 0.0
        %4765 = vmatpush1.msra.mxu0 0.0
        %4766 = vmatprep.subr.mxu0 0.0
        %4767 = vmatpush1.msra.mxu0 0.0
        %4768 = vmatprep.subr.mxu0 0.0
        %4769 = vmatpush1.msra.mxu0 0.0
        %4770 = vmatprep.subr.mxu0 0.0
        %4771 = vmatpush1.msra.mxu0 0.0
        %4772 = vmatprep.subr.mxu0 0.0
        %4773 = vmatpush1.msra.mxu0 0.0
        %4774 = vmatprep.subr.mxu0 0.0
        %4775 = vmatpush1.msra.mxu0 0.0
        %4776 = vmatprep.subr.mxu0 0.0
        %4777 = vmatpush1.msra.mxu0 0.0
        %4778 = vmatprep.subr.mxu0 0.0
        %4779 = vmatpush1.msra.mxu0 0.0
        %4780 = vmatprep.subr.mxu0 0.0
        %4781 = vmatpush1.msra.mxu0 0.0
        %4782 = vmatprep.subr.mxu0 0.0
        %4783 = vmatpush1.msra.mxu0 0.0
        %4784 = vmatprep.subr.mxu0 0.0
        %4785 = vmatpush1.msra.mxu0 0.0
        %4786 = vmatprep.subr.mxu0 0.0
        %4787 = vmatpush1.msra.mxu0 0.0
        %4788 = vmatprep.subr.mxu0 0.0
        %4789 = vmatpush1.msra.mxu0 0.0
        %4790 = vmatprep.subr.mxu0 0.0
        %4791 = vmatpush1.msra.mxu0 0.0
        %4792 = vmatprep.subr.mxu0 0.0
        %4793 = vmatpush1.msra.mxu0 0.0
        %4794 = vmatprep.mubr.f32.mxu0 0.0
        %4795 = vmatmul.mubr.f32.gmra.mrb[0].mxu0 %v4425
        %v4796 = vpop.f32.mrb[0].mxu0
        %v4797 = vadd.f32 0.0, %v4796
        %v4798 = vpop.f32.mrb[0].mxu0
        %4799 = vmatprep.mubr.f32.mxu0 0.0
        %4800 = vmatmul.mubr.f32.gmra.mrb[0].mxu0 %v4427
        %v4801 = vpop.f32.mrb[0].mxu0
        %v4802 = vadd.f32 0.0, %v4801
        %v4803 = vpop.f32.mrb[0].mxu0
        %4804 = vmatprep.mubr.f32.mxu0 0.0
        %4805 = vmatmul.mubr.f32.gmra.mrb[0].mxu0 %v4429
        %v4806 = vpop.f32.mrb[0].mxu0
        %v4807 = vadd.f32 0.0, %v4806
        %v4808 = vpop.f32.mrb[0].mxu0
        %4809 = vmatprep.mubr.f32.mxu0 0.0
        %4810 = vmatmul.mubr.f32.gmra.mrb[0].mxu0 %v4431
        %v4811 = vpop.f32.mrb[0].mxu0
        %v4812 = vadd.f32 0.0, %v4811
        %v4813 = vpop.f32.mrb[0].mxu0
        %4814 = vmatprep.mubr.f32.mxu0 0.0
        %4815 = vmatmul.mubr.f32.gmra.mrb[0].mxu0 %v4433
        %v4816 = vpop.f32.mrb[0].mxu0
        %v4817 = vadd.f32 0.0, %v4816
        %v4818 = vpop.f32.mrb[0].mxu0
        %4819 = vmatprep.mubr.f32.mxu0 0.0
        %4820 = vmatmul.mubr.f32.gmra.mrb[0].mxu0 %v4435
        %v4821 = vpop.f32.mrb[0].mxu0
        %v4822 = vadd.f32 0.0, %v4821
        %v4823 = vpop.f32.mrb[0].mxu0
        %4824 = vmatprep.mubr.f32.mxu0 0.0
        %4825 = vmatmul.mubr.f32.gmra.mrb[0].mxu0 %v4437
        %v4826 = vpop.f32.mrb[0].mxu0
        %v4827 = vadd.f32 0.0, %v4826
        %v4828 = vpop.f32.mrb[0].mxu0
        %4829 = vmatprep.mubr.f32.mxu0 0.0
        %4830 = vmatmul.mubr.f32.gmra.mrb[0].mxu0 %v4439
        %v4831 = vpop.f32.mrb[0].mxu0
        %v4832 = vadd.f32 0.0, %v4831
        %v4833 = vpop.f32.mrb[0].mxu0
        %4834 = vmatprep.mubr.f32.mxu0 0.0
        %4835 = vmatmul.mubr.f32.gmra.mrb[0].mxu0 %v4441
        %v4836 = vpop.f32.mrb[0].mxu0
        %v4837 = vadd.f32 0.0, %v4836
        %v4838 = vpop.f32.mrb[0].mxu0
        %4839 = vmatprep.mubr.f32.mxu0 0.0
        %4840 = vmatmul.mubr.f32.gmra.mrb[0].mxu0 %v4443
        %v4841 = vpop.f32.mrb[0].mxu0
        %v4842 = vadd.f32 0.0, %v4841
        %v4843 = vpop.f32.mrb[0].mxu0
        %4844 = vmatprep.mubr.f32.mxu0 0.0
        %4845 = vmatmul.mubr.f32.gmra.mrb[0].mxu0 %v4445
        %v4846 = vpop.f32.mrb[0].mxu0
        %v4847 = vadd.f32 0.0, %v4846
        %v4848 = vpop.f32.mrb[0].mxu0
        %4849 = vmatprep.mubr.f32.mxu0 0.0
        %4850 = vmatmul.mubr.f32.gmra.mrb[0].mxu0 %v4447
        %v4851 = vpop.f32.mrb[0].mxu0
        %v4852 = vadd.f32 0.0, %v4851
        %v4853 = vpop.f32.mrb[0].mxu0
        %4854 = vmatprep.mubr.f32.mxu0 0.0
        %4855 = vmatmul.mubr.f32.gmra.mrb[0].mxu0 %v4449
        %v4856 = vpop.f32.mrb[0].mxu0
        %v4857 = vadd.f32 0.0, %v4856
        %v4858 = vpop.f32.mrb[0].mxu0
        %4859 = vmatprep.mubr.f32.mxu0 0.0
        %4860 = vmatmul.mubr.f32.gmra.mrb[0].mxu0 %v4451
        %v4861 = vpop.f32.mrb[0].mxu0
        %v4862 = vadd.f32 0.0, %v4861
        %v4863 = vpop.f32.mrb[0].mxu0
        %4864 = vmatprep.mubr.f32.mxu0 0.0
        %4865 = vmatmul.mubr.f32.gmra.mrb[0].mxu0 %v4453
        %v4866 = vpop.f32.mrb[0].mxu0
        %v4867 = vadd.f32 0.0, %v4866
        %v4868 = vpop.f32.mrb[0].mxu0
        %4869 = vmatprep.mubr.f32.mxu0 0.0
        %4870 = vmatmul.mubr.f32.gmra.mrb[0].mxu0 %v4455
        %v4871 = vpop.f32.mrb[0].mxu0
        %v4872 = vadd.f32 0.0, %v4871
        %v4873 = vpop.f32.mrb[0].mxu0
        %4874 = vdwg.mxu0
        %v4875 = vadd.f32 %v4650, %v4797
        %v4876 = vadd.f32 %v4651, %v4802
        %v4877 = vadd.f32 %v4652, %v4807
        %v4878 = vadd.f32 %v4653, %v4812
        %v4879 = vadd.f32 %v4654, %v4817
        %v4880 = vadd.f32 %v4655, %v4822
        %v4881 = vadd.f32 %v4656, %v4827
        %v4882 = vadd.f32 %v4657, %v4832
        %v4883 = vadd.f32 %v4658, %v4837
        %v4884 = vadd.f32 %v4659, %v4842
        %v4885 = vadd.f32 %v4660, %v4847
        %v4886 = vadd.f32 %v4661, %v4852
        %v4887 = vadd.f32 %v4662, %v4857
        %v4888 = vadd.f32 %v4663, %v4862
        %v4889 = vadd.f32 %v4664, %v4867
        %v4890 = vadd.f32 %v4665, %v4872
        %4891 = vst.msk [vmem:[%s4553] sm:$0xff] %vm808, %v4875
        %4892 = vst.msk [vmem:[%s4553 + $0x8] sm:$0xff] %vm808, %v4876
        %4893 = vst.msk [vmem:[%s4553 + $0x10] sm:$0xff] %vm808, %v4877
        %4894 = vst.msk [vmem:[%s4553 + $0x18] sm:$0xff] %vm808, %v4878
        %4895 = vst.msk [vmem:[%s4553 + $0x20] sm:$0xff] %vm808, %v4879
        %4896 = vst.msk [vmem:[%s4553 + $0x28] sm:$0xff] %vm808, %v4880
        %4897 = vst.msk [vmem:[%s4553 + $0x30] sm:$0xff] %vm808, %v4881
        %4898 = vst.msk [vmem:[%s4553 + $0x38] sm:$0xff] %vm808, %v4882
        %4899 = vst.msk [vmem:[%s4553 + $0x40] sm:$0xff] %vm808, %v4883
        %4900 = vst.msk [vmem:[%s4553 + $0x48] sm:$0xff] %vm808, %v4884
        %4901 = vst.msk [vmem:[%s4553 + $0x50] sm:$0xff] %vm808, %v4885
        %4902 = vst.msk [vmem:[%s4553 + $0x58] sm:$0xff] %vm808, %v4886
        %4903 = vst.msk [vmem:[%s4553 + $0x60] sm:$0xff] %vm808, %v4887
        %4904 = vst.msk [vmem:[%s4553 + $0x68] sm:$0xff] %vm808, %v4888
        %4905 = vst.msk [vmem:[%s4553 + $0x70] sm:$0xff] %vm808, %v4889
        %4906 = vst.msk [vmem:[%s4553 + $0x78] sm:$0xff] %vm808, %v4890
        %4907 = vst.msk [vmem:[%s4215] sm:$0xff] %vm1370, %v4264
        %4908 = vst.msk [vmem:[%s4215 + $0x8] sm:$0xff] %vm1370, %v4265
        %4909 = vst.msk [vmem:[%s4215 + $0x10] sm:$0xff] %vm1370, %v4266
        %4910 = vst.msk [vmem:[%s4215 + $0x18] sm:$0xff] %vm1370, %v4267
        %4911 = vst.msk [vmem:[%s4215 + $0x20] sm:$0xff] %vm1370, %v4268
        %4912 = vst.msk [vmem:[%s4215 + $0x28] sm:$0xff] %vm1370, %v4269
        %4913 = vst.msk [vmem:[%s4215 + $0x30] sm:$0xff] %vm1370, %v4270
        %4914 = vst.msk [vmem:[%s4215 + $0x38] sm:$0xff] %vm1370, %v4271
        %4915 = vst.msk [vmem:[%s4215 + $0x40] sm:$0xff] %vm1370, %v4272
        %4916 = vst.msk [vmem:[%s4215 + $0x48] sm:$0xff] %vm1370, %v4273
        %4917 = vst.msk [vmem:[%s4215 + $0x50] sm:$0xff] %vm1370, %v4274
        %4918 = vst.msk [vmem:[%s4215 + $0x58] sm:$0xff] %vm1370, %v4275
        %4919 = vst.msk [vmem:[%s4215 + $0x60] sm:$0xff] %vm1370, %v4276
        %4920 = vst.msk [vmem:[%s4215 + $0x68] sm:$0xff] %vm1370, %v4277
        %4921 = vst.msk [vmem:[%s4215 + $0x70] sm:$0xff] %vm1370, %v4278
        %4922 = vst.msk [vmem:[%s4215 + $0x78] sm:$0xff] %vm1370, %v4279
        // Predicated region
        $region151: #{attention_forward.4} parent=133 // pred_check
          %p4923 = pneg %p546
        $region152: #{attention_forward.4} parent=133 // pred_check_branch
          %4925 = sbr.rel (%p4923) target = $region154
        $region153: #{attention_forward.4} parent=133 // pred_region
          %v4926 = vld [vmem:[#allocation3] sm:$0xff]
          %v4927 = vld [vmem:[#allocation3 + $0x8] sm:$0xff]
          %v4928 = vld [vmem:[#allocation3 + $0x10] sm:$0xff]
          %v4929 = vld [vmem:[#allocation3 + $0x18] sm:$0xff]
          %v4930 = vld [vmem:[#allocation3 + $0x20] sm:$0xff]
          %v4931 = vld [vmem:[#allocation3 + $0x28] sm:$0xff]
          %v4932 = vld [vmem:[#allocation3 + $0x30] sm:$0xff]
          %v4933 = vld [vmem:[#allocation3 + $0x38] sm:$0xff]
          %v4934 = vld [vmem:[#allocation3 + $0x40] sm:$0xff]
          %v4935 = vld [vmem:[#allocation3 + $0x48] sm:$0xff]
          %v4936 = vld [vmem:[#allocation3 + $0x50] sm:$0xff]
          %v4937 = vld [vmem:[#allocation3 + $0x58] sm:$0xff]
          %v4938 = vld [vmem:[#allocation3 + $0x60] sm:$0xff]
          %v4939 = vld [vmem:[#allocation3 + $0x68] sm:$0xff]
          %v4940 = vld [vmem:[#allocation3 + $0x70] sm:$0xff]
          %v4941 = vld [vmem:[#allocation3 + $0x78] sm:$0xff]
          %v4942 = vrcp.pop %v4926
          %v4943 = vrcp.pop %v4927
          %v4944 = vrcp.pop %v4928
          %v4945 = vrcp.pop %v4929
          %v4946 = vrcp.pop %v4930
          %v4947 = vrcp.pop %v4931
          %v4948 = vrcp.pop %v4932
          %v4949 = vrcp.pop %v4933
          %v4950 = vrcp.pop %v4934
          %v4951 = vrcp.pop %v4935
          %v4952 = vrcp.pop %v4936
          %v4953 = vrcp.pop %v4937
          %v4954 = vrcp.pop %v4938
          %v4955 = vrcp.pop %v4939
          %v4956 = vrcp.pop %v4940
          %v4957 = vrcp.pop %v4941
          %v4958 = vld [vmem:[#allocation4] sm:$0xff]
          %v4959 = vld [vmem:[#allocation4 + $0x8] sm:$0xff]
          %v4960 = vld [vmem:[#allocation4 + $0x10] sm:$0xff]
          %v4961 = vld [vmem:[#allocation4 + $0x18] sm:$0xff]
          %v4962 = vld [vmem:[#allocation4 + $0x20] sm:$0xff]
          %v4963 = vld [vmem:[#allocation4 + $0x28] sm:$0xff]
          %v4964 = vld [vmem:[#allocation4 + $0x30] sm:$0xff]
          %v4965 = vld [vmem:[#allocation4 + $0x38] sm:$0xff]
          %v4966 = vld [vmem:[#allocation4 + $0x40] sm:$0xff]
          %v4967 = vld [vmem:[#allocation4 + $0x48] sm:$0xff]
          %v4968 = vld [vmem:[#allocation4 + $0x50] sm:$0xff]
          %v4969 = vld [vmem:[#allocation4 + $0x58] sm:$0xff]
          %v4970 = vld [vmem:[#allocation4 + $0x60] sm:$0xff]
          %v4971 = vld [vmem:[#allocation4 + $0x68] sm:$0xff]
          %v4972 = vld [vmem:[#allocation4 + $0x70] sm:$0xff]
          %v4973 = vld [vmem:[#allocation4 + $0x78] sm:$0xff]
          %4975 = vset.pattern.permute.xlu0 0
          %4976 = vperm.xlu0 %4975, %v4942
          %v4977 = vpop.permute.xlu0 %4976
          %4980 = vset.pattern.permute.xlu0 0
          %4981 = vperm.xlu0 %4980, %v4943
          %v4982 = vpop.permute.xlu0 %4981
          %4985 = vset.pattern.permute.xlu0 0
          %4986 = vperm.xlu0 %4985, %v4944
          %v4987 = vpop.permute.xlu0 %4986
          %4990 = vset.pattern.permute.xlu0 0
          %4991 = vperm.xlu0 %4990, %v4945
          %v4992 = vpop.permute.xlu0 %4991
          %4995 = vset.pattern.permute.xlu0 0
          %4996 = vperm.xlu0 %4995, %v4946
          %v4997 = vpop.permute.xlu0 %4996
          %5000 = vset.pattern.permute.xlu0 0
          %5001 = vperm.xlu0 %5000, %v4947
          %v5002 = vpop.permute.xlu0 %5001
          %5005 = vset.pattern.permute.xlu0 0
          %5006 = vperm.xlu0 %5005, %v4948
          %v5007 = vpop.permute.xlu0 %5006
          %5010 = vset.pattern.permute.xlu0 0
          %5011 = vperm.xlu0 %5010, %v4949
          %v5012 = vpop.permute.xlu0 %5011
          %5015 = vset.pattern.permute.xlu0 0
          %5016 = vperm.xlu0 %5015, %v4950
          %v5017 = vpop.permute.xlu0 %5016
          %5020 = vset.pattern.permute.xlu0 0
          %5021 = vperm.xlu0 %5020, %v4951
          %v5022 = vpop.permute.xlu0 %5021
          %5025 = vset.pattern.permute.xlu0 0
          %5026 = vperm.xlu0 %5025, %v4952
          %v5027 = vpop.permute.xlu0 %5026
          %5030 = vset.pattern.permute.xlu0 0
          %5031 = vperm.xlu0 %5030, %v4953
          %v5032 = vpop.permute.xlu0 %5031
          %5035 = vset.pattern.permute.xlu0 0
          %5036 = vperm.xlu0 %5035, %v4954
          %v5037 = vpop.permute.xlu0 %5036
          %5040 = vset.pattern.permute.xlu0 0
          %5041 = vperm.xlu0 %5040, %v4955
          %v5042 = vpop.permute.xlu0 %5041
          %5045 = vset.pattern.permute.xlu0 0
          %5046 = vperm.xlu0 %5045, %v4956
          %v5047 = vpop.permute.xlu0 %5046
          %5050 = vset.pattern.permute.xlu0 0
          %5051 = vperm.xlu0 %5050, %v4957
          %v5052 = vpop.permute.xlu0 %5051
          %v5054 = vmul.f32 %v4958, %v4977
          %v5055 = vmul.f32 %v4959, %v4982
          %v5056 = vmul.f32 %v4960, %v4987
          %v5057 = vmul.f32 %v4961, %v4992
          %v5058 = vmul.f32 %v4962, %v4997
          %v5059 = vmul.f32 %v4963, %v5002
          %v5060 = vmul.f32 %v4964, %v5007
          %v5061 = vmul.f32 %v4965, %v5012
          %v5062 = vmul.f32 %v4966, %v5017
          %v5063 = vmul.f32 %v4967, %v5022
          %v5064 = vmul.f32 %v4968, %v5027
          %v5065 = vmul.f32 %v4969, %v5032
          %v5066 = vmul.f32 %v4970, %v5037
          %v5067 = vmul.f32 %v4971, %v5042
          %v5068 = vmul.f32 %v4972, %v5047
          %v5069 = vmul.f32 %v4973, %v5052
          %5070 = vst.msk [vmem:[%s544] sm:$0xff] %vm808, %v5054
          %5071 = vst.msk [vmem:[%s544 + $0x8] sm:$0xff] %vm808, %v5055
          %5072 = vst.msk [vmem:[%s544 + $0x10] sm:$0xff] %vm808, %v5056
          %5073 = vst.msk [vmem:[%s544 + $0x18] sm:$0xff] %vm808, %v5057
          %5074 = vst.msk [vmem:[%s544 + $0x20] sm:$0xff] %vm808, %v5058
          %5075 = vst.msk [vmem:[%s544 + $0x28] sm:$0xff] %vm808, %v5059
          %5076 = vst.msk [vmem:[%s544 + $0x30] sm:$0xff] %vm808, %v5060
          %5077 = vst.msk [vmem:[%s544 + $0x38] sm:$0xff] %vm808, %v5061
          %5078 = vst.msk [vmem:[%s544 + $0x40] sm:$0xff] %vm808, %v5062
          %5079 = vst.msk [vmem:[%s544 + $0x48] sm:$0xff] %vm808, %v5063
          %5080 = vst.msk [vmem:[%s544 + $0x50] sm:$0xff] %vm808, %v5064
          %5081 = vst.msk [vmem:[%s544 + $0x58] sm:$0xff] %vm808, %v5065
          %5082 = vst.msk [vmem:[%s544 + $0x60] sm:$0xff] %vm808, %v5066
          %5083 = vst.msk [vmem:[%s544 + $0x68] sm:$0xff] %vm808, %v5067
          %5084 = vst.msk [vmem:[%s544 + $0x70] sm:$0xff] %vm808, %v5068
          %5085 = vst.msk [vmem:[%s544 + $0x78] sm:$0xff] %vm808, %v5069
          %v5086 = vld [vmem:[%s2302] sm:$0xff]
          %v5087 = vld [vmem:[%s2302 + $0x8] sm:$0xff]
          %v5088 = vld [vmem:[%s2302 + $0x10] sm:$0xff]
          %v5089 = vld [vmem:[%s2302 + $0x18] sm:$0xff]
          %v5090 = vld [vmem:[%s2302 + $0x20] sm:$0xff]
          %v5091 = vld [vmem:[%s2302 + $0x28] sm:$0xff]
          %v5092 = vld [vmem:[%s2302 + $0x30] sm:$0xff]
          %v5093 = vld [vmem:[%s2302 + $0x38] sm:$0xff]
          %v5094 = vld [vmem:[%s2302 + $0x40] sm:$0xff]
          %v5095 = vld [vmem:[%s2302 + $0x48] sm:$0xff]
          %v5096 = vld [vmem:[%s2302 + $0x50] sm:$0xff]
          %v5097 = vld [vmem:[%s2302 + $0x58] sm:$0xff]
          %v5098 = vld [vmem:[%s2302 + $0x60] sm:$0xff]
          %v5099 = vld [vmem:[%s2302 + $0x68] sm:$0xff]
          %v5100 = vld [vmem:[%s2302 + $0x70] sm:$0xff]
          %v5101 = vld [vmem:[%s2302 + $0x78] sm:$0xff]
          %v5102 = vrcp.pop %v5086
          %v5103 = vrcp.pop %v5087
          %v5104 = vrcp.pop %v5088
          %v5105 = vrcp.pop %v5089
          %v5106 = vrcp.pop %v5090
          %v5107 = vrcp.pop %v5091
          %v5108 = vrcp.pop %v5092
          %v5109 = vrcp.pop %v5093
          %v5110 = vrcp.pop %v5094
          %v5111 = vrcp.pop %v5095
          %v5112 = vrcp.pop %v5096
          %v5113 = vrcp.pop %v5097
          %v5114 = vrcp.pop %v5098
          %v5115 = vrcp.pop %v5099
          %v5116 = vrcp.pop %v5100
          %v5117 = vrcp.pop %v5101
          %v5118 = vld [vmem:[%s2399] sm:$0xff]
          %v5119 = vld [vmem:[%s2399 + $0x8] sm:$0xff]
          %v5120 = vld [vmem:[%s2399 + $0x10] sm:$0xff]
          %v5121 = vld [vmem:[%s2399 + $0x18] sm:$0xff]
          %v5122 = vld [vmem:[%s2399 + $0x20] sm:$0xff]
          %v5123 = vld [vmem:[%s2399 + $0x28] sm:$0xff]
          %v5124 = vld [vmem:[%s2399 + $0x30] sm:$0xff]
          %v5125 = vld [vmem:[%s2399 + $0x38] sm:$0xff]
          %v5126 = vld [vmem:[%s2399 + $0x40] sm:$0xff]
          %v5127 = vld [vmem:[%s2399 + $0x48] sm:$0xff]
          %v5128 = vld [vmem:[%s2399 + $0x50] sm:$0xff]
          %v5129 = vld [vmem:[%s2399 + $0x58] sm:$0xff]
          %v5130 = vld [vmem:[%s2399 + $0x60] sm:$0xff]
          %v5131 = vld [vmem:[%s2399 + $0x68] sm:$0xff]
          %v5132 = vld [vmem:[%s2399 + $0x70] sm:$0xff]
          %v5133 = vld [vmem:[%s2399 + $0x78] sm:$0xff]
          %5135 = vset.pattern.permute.xlu0 0
          %5136 = vperm.xlu0 %5135, %v5102
          %v5137 = vpop.permute.xlu0 %5136
          %5140 = vset.pattern.permute.xlu0 0
          %5141 = vperm.xlu0 %5140, %v5103
          %v5142 = vpop.permute.xlu0 %5141
          %5145 = vset.pattern.permute.xlu0 0
          %5146 = vperm.xlu0 %5145, %v5104
          %v5147 = vpop.permute.xlu0 %5146
          %5150 = vset.pattern.permute.xlu0 0
          %5151 = vperm.xlu0 %5150, %v5105
          %v5152 = vpop.permute.xlu0 %5151
          %5155 = vset.pattern.permute.xlu0 0
          %5156 = vperm.xlu0 %5155, %v5106
          %v5157 = vpop.permute.xlu0 %5156
          %5160 = vset.pattern.permute.xlu0 0
          %5161 = vperm.xlu0 %5160, %v5107
          %v5162 = vpop.permute.xlu0 %5161
          %5165 = vset.pattern.permute.xlu0 0
          %5166 = vperm.xlu0 %5165, %v5108
          %v5167 = vpop.permute.xlu0 %5166
          %5170 = vset.pattern.permute.xlu0 0
          %5171 = vperm.xlu0 %5170, %v5109
          %v5172 = vpop.permute.xlu0 %5171
          %5175 = vset.pattern.permute.xlu0 0
          %5176 = vperm.xlu0 %5175, %v5110
          %v5177 = vpop.permute.xlu0 %5176
          %5180 = vset.pattern.permute.xlu0 0
          %5181 = vperm.xlu0 %5180, %v5111
          %v5182 = vpop.permute.xlu0 %5181
          %5185 = vset.pattern.permute.xlu0 0
          %5186 = vperm.xlu0 %5185, %v5112
          %v5187 = vpop.permute.xlu0 %5186
          %5190 = vset.pattern.permute.xlu0 0
          %5191 = vperm.xlu0 %5190, %v5113
          %v5192 = vpop.permute.xlu0 %5191
          %5195 = vset.pattern.permute.xlu0 0
          %5196 = vperm.xlu0 %5195, %v5114
          %v5197 = vpop.permute.xlu0 %5196
          %5200 = vset.pattern.permute.xlu0 0
          %5201 = vperm.xlu0 %5200, %v5115
          %v5202 = vpop.permute.xlu0 %5201
          %5205 = vset.pattern.permute.xlu0 0
          %5206 = vperm.xlu0 %5205, %v5116
          %v5207 = vpop.permute.xlu0 %5206
          %5210 = vset.pattern.permute.xlu0 0
          %5211 = vperm.xlu0 %5210, %v5117
          %v5212 = vpop.permute.xlu0 %5211
          %v5214 = vmul.f32 %v5118, %v5137
          %v5215 = vmul.f32 %v5119, %v5142
          %v5216 = vmul.f32 %v5120, %v5147
          %v5217 = vmul.f32 %v5121, %v5152
          %v5218 = vmul.f32 %v5122, %v5157
          %v5219 = vmul.f32 %v5123, %v5162
          %v5220 = vmul.f32 %v5124, %v5167
          %v5221 = vmul.f32 %v5125, %v5172
          %v5222 = vmul.f32 %v5126, %v5177
          %v5223 = vmul.f32 %v5127, %v5182
          %v5224 = vmul.f32 %v5128, %v5187
          %v5225 = vmul.f32 %v5129, %v5192
          %v5226 = vmul.f32 %v5130, %v5197
          %v5227 = vmul.f32 %v5131, %v5202
          %v5228 = vmul.f32 %v5132, %v5207
          %v5229 = vmul.f32 %v5133, %v5212
          %5246 = vrot.lane.b32.xlu0 %v5214, 32
          %v5247 = vpop.permute.xlu0 %5246
          %5248 = vrot.lane.b32.xlu0 %v5215, 32
          %v5249 = vpop.permute.xlu0 %5248
          %5250 = vrot.lane.b32.xlu0 %v5216, 32
          %v5251 = vpop.permute.xlu0 %5250
          %5252 = vrot.lane.b32.xlu0 %v5217, 32
          %v5253 = vpop.permute.xlu0 %5252
          %5254 = vrot.lane.b32.xlu0 %v5218, 32
          %v5255 = vpop.permute.xlu0 %5254
          %5256 = vrot.lane.b32.xlu0 %v5219, 32
          %v5257 = vpop.permute.xlu0 %5256
          %5258 = vrot.lane.b32.xlu0 %v5220, 32
          %v5259 = vpop.permute.xlu0 %5258
          %5260 = vrot.lane.b32.xlu0 %v5221, 32
          %v5261 = vpop.permute.xlu0 %5260
          %5262 = vrot.lane.b32.xlu0 %v5222, 32
          %v5263 = vpop.permute.xlu0 %5262
          %5264 = vrot.lane.b32.xlu0 %v5223, 32
          %v5265 = vpop.permute.xlu0 %5264
          %5266 = vrot.lane.b32.xlu0 %v5224, 32
          %v5267 = vpop.permute.xlu0 %5266
          %5268 = vrot.lane.b32.xlu0 %v5225, 32
          %v5269 = vpop.permute.xlu0 %5268
          %5270 = vrot.lane.b32.xlu0 %v5226, 32
          %v5271 = vpop.permute.xlu0 %5270
          %5272 = vrot.lane.b32.xlu0 %v5227, 32
          %v5273 = vpop.permute.xlu0 %5272
          %5274 = vrot.lane.b32.xlu0 %v5228, 32
          %v5275 = vpop.permute.xlu0 %5274
          %5276 = vrot.lane.b32.xlu0 %v5229, 32
          %v5277 = vpop.permute.xlu0 %5276
          %vm5294 = vcmask 523520
          %5295 = vst.msk [vmem:[%s544] sm:$0xff] %vm5294, %v5247
          %5296 = vst.msk [vmem:[%s544 + $0x8] sm:$0xff] %vm5294, %v5249
          %5297 = vst.msk [vmem:[%s544 + $0x10] sm:$0xff] %vm5294, %v5251
          %5298 = vst.msk [vmem:[%s544 + $0x18] sm:$0xff] %vm5294, %v5253
          %5299 = vst.msk [vmem:[%s544 + $0x20] sm:$0xff] %vm5294, %v5255
          %5300 = vst.msk [vmem:[%s544 + $0x28] sm:$0xff] %vm5294, %v5257
          %5301 = vst.msk [vmem:[%s544 + $0x30] sm:$0xff] %vm5294, %v5259
          %5302 = vst.msk [vmem:[%s544 + $0x38] sm:$0xff] %vm5294, %v5261
          %5303 = vst.msk [vmem:[%s544 + $0x40] sm:$0xff] %vm5294, %v5263
          %5304 = vst.msk [vmem:[%s544 + $0x48] sm:$0xff] %vm5294, %v5265
          %5305 = vst.msk [vmem:[%s544 + $0x50] sm:$0xff] %vm5294, %v5267
          %5306 = vst.msk [vmem:[%s544 + $0x58] sm:$0xff] %vm5294, %v5269
          %5307 = vst.msk [vmem:[%s544 + $0x60] sm:$0xff] %vm5294, %v5271
          %5308 = vst.msk [vmem:[%s544 + $0x68] sm:$0xff] %vm5294, %v5273
          %5309 = vst.msk [vmem:[%s544 + $0x70] sm:$0xff] %vm5294, %v5275
          %5310 = vst.msk [vmem:[%s544 + $0x78] sm:$0xff] %vm5294, %v5277
          %v5311 = vld [vmem:[%s3379] sm:$0xff]
          %v5312 = vld [vmem:[%s3379 + $0x8] sm:$0xff]
          %v5313 = vld [vmem:[%s3379 + $0x10] sm:$0xff]
          %v5314 = vld [vmem:[%s3379 + $0x18] sm:$0xff]
          %v5315 = vld [vmem:[%s3379 + $0x20] sm:$0xff]
          %v5316 = vld [vmem:[%s3379 + $0x28] sm:$0xff]
          %v5317 = vld [vmem:[%s3379 + $0x30] sm:$0xff]
          %v5318 = vld [vmem:[%s3379 + $0x38] sm:$0xff]
          %v5319 = vld [vmem:[%s3379 + $0x40] sm:$0xff]
          %v5320 = vld [vmem:[%s3379 + $0x48] sm:$0xff]
          %v5321 = vld [vmem:[%s3379 + $0x50] sm:$0xff]
          %v5322 = vld [vmem:[%s3379 + $0x58] sm:$0xff]
          %v5323 = vld [vmem:[%s3379 + $0x60] sm:$0xff]
          %v5324 = vld [vmem:[%s3379 + $0x68] sm:$0xff]
          %v5325 = vld [vmem:[%s3379 + $0x70] sm:$0xff]
          %v5326 = vld [vmem:[%s3379 + $0x78] sm:$0xff]
          %v5327 = vrcp.pop %v5311
          %v5328 = vrcp.pop %v5312
          %v5329 = vrcp.pop %v5313
          %v5330 = vrcp.pop %v5314
          %v5331 = vrcp.pop %v5315
          %v5332 = vrcp.pop %v5316
          %v5333 = vrcp.pop %v5317
          %v5334 = vrcp.pop %v5318
          %v5335 = vrcp.pop %v5319
          %v5336 = vrcp.pop %v5320
          %v5337 = vrcp.pop %v5321
          %v5338 = vrcp.pop %v5322
          %v5339 = vrcp.pop %v5323
          %v5340 = vrcp.pop %v5324
          %v5341 = vrcp.pop %v5325
          %v5342 = vrcp.pop %v5326
          %v5343 = vld [vmem:[%s3476] sm:$0xff]
          %v5344 = vld [vmem:[%s3476 + $0x8] sm:$0xff]
          %v5345 = vld [vmem:[%s3476 + $0x10] sm:$0xff]
          %v5346 = vld [vmem:[%s3476 + $0x18] sm:$0xff]
          %v5347 = vld [vmem:[%s3476 + $0x20] sm:$0xff]
          %v5348 = vld [vmem:[%s3476 + $0x28] sm:$0xff]
          %v5349 = vld [vmem:[%s3476 + $0x30] sm:$0xff]
          %v5350 = vld [vmem:[%s3476 + $0x38] sm:$0xff]
          %v5351 = vld [vmem:[%s3476 + $0x40] sm:$0xff]
          %v5352 = vld [vmem:[%s3476 + $0x48] sm:$0xff]
          %v5353 = vld [vmem:[%s3476 + $0x50] sm:$0xff]
          %v5354 = vld [vmem:[%s3476 + $0x58] sm:$0xff]
          %v5355 = vld [vmem:[%s3476 + $0x60] sm:$0xff]
          %v5356 = vld [vmem:[%s3476 + $0x68] sm:$0xff]
          %v5357 = vld [vmem:[%s3476 + $0x70] sm:$0xff]
          %v5358 = vld [vmem:[%s3476 + $0x78] sm:$0xff]
          %5360 = vset.pattern.permute.xlu0 0
          %5361 = vperm.xlu0 %5360, %v5327
          %v5362 = vpop.permute.xlu0 %5361
          %5365 = vset.pattern.permute.xlu0 0
          %5366 = vperm.xlu0 %5365, %v5328
          %v5367 = vpop.permute.xlu0 %5366
          %5370 = vset.pattern.permute.xlu0 0
          %5371 = vperm.xlu0 %5370, %v5329
          %v5372 = vpop.permute.xlu0 %5371
          %5375 = vset.pattern.permute.xlu0 0
          %5376 = vperm.xlu0 %5375, %v5330
          %v5377 = vpop.permute.xlu0 %5376
          %5380 = vset.pattern.permute.xlu0 0
          %5381 = vperm.xlu0 %5380, %v5331
          %v5382 = vpop.permute.xlu0 %5381
          %5385 = vset.pattern.permute.xlu0 0
          %5386 = vperm.xlu0 %5385, %v5332
          %v5387 = vpop.permute.xlu0 %5386
          %5390 = vset.pattern.permute.xlu0 0
          %5391 = vperm.xlu0 %5390, %v5333
          %v5392 = vpop.permute.xlu0 %5391
          %5395 = vset.pattern.permute.xlu0 0
          %5396 = vperm.xlu0 %5395, %v5334
          %v5397 = vpop.permute.xlu0 %5396
          %5400 = vset.pattern.permute.xlu0 0
          %5401 = vperm.xlu0 %5400, %v5335
          %v5402 = vpop.permute.xlu0 %5401
          %5405 = vset.pattern.permute.xlu0 0
          %5406 = vperm.xlu0 %5405, %v5336
          %v5407 = vpop.permute.xlu0 %5406
          %5410 = vset.pattern.permute.xlu0 0
          %5411 = vperm.xlu0 %5410, %v5337
          %v5412 = vpop.permute.xlu0 %5411
          %5415 = vset.pattern.permute.xlu0 0
          %5416 = vperm.xlu0 %5415, %v5338
          %v5417 = vpop.permute.xlu0 %5416
          %5420 = vset.pattern.permute.xlu0 0
          %5421 = vperm.xlu0 %5420, %v5339
          %v5422 = vpop.permute.xlu0 %5421
          %5425 = vset.pattern.permute.xlu0 0
          %5426 = vperm.xlu0 %5425, %v5340
          %v5427 = vpop.permute.xlu0 %5426
          %5430 = vset.pattern.permute.xlu0 0
          %5431 = vperm.xlu0 %5430, %v5341
          %v5432 = vpop.permute.xlu0 %5431
          %5435 = vset.pattern.permute.xlu0 0
          %5436 = vperm.xlu0 %5435, %v5342
          %v5437 = vpop.permute.xlu0 %5436
          %v5439 = vmul.f32 %v5343, %v5362
          %v5440 = vmul.f32 %v5344, %v5367
          %v5441 = vmul.f32 %v5345, %v5372
          %v5442 = vmul.f32 %v5346, %v5377
          %v5443 = vmul.f32 %v5347, %v5382
          %v5444 = vmul.f32 %v5348, %v5387
          %v5445 = vmul.f32 %v5349, %v5392
          %v5446 = vmul.f32 %v5350, %v5397
          %v5447 = vmul.f32 %v5351, %v5402
          %v5448 = vmul.f32 %v5352, %v5407
          %v5449 = vmul.f32 %v5353, %v5412
          %v5450 = vmul.f32 %v5354, %v5417
          %v5451 = vmul.f32 %v5355, %v5422
          %v5452 = vmul.f32 %v5356, %v5427
          %v5453 = vmul.f32 %v5357, %v5432
          %v5454 = vmul.f32 %v5358, %v5437
          %5471 = vrot.lane.b32.xlu0 %v5439, 64
          %v5472 = vpop.permute.xlu0 %5471
          %5473 = vrot.lane.b32.xlu0 %v5440, 64
          %v5474 = vpop.permute.xlu0 %5473
          %5475 = vrot.lane.b32.xlu0 %v5441, 64
          %v5476 = vpop.permute.xlu0 %5475
          %5477 = vrot.lane.b32.xlu0 %v5442, 64
          %v5478 = vpop.permute.xlu0 %5477
          %5479 = vrot.lane.b32.xlu0 %v5443, 64
          %v5480 = vpop.permute.xlu0 %5479
          %5481 = vrot.lane.b32.xlu0 %v5444, 64
          %v5482 = vpop.permute.xlu0 %5481
          %5483 = vrot.lane.b32.xlu0 %v5445, 64
          %v5484 = vpop.permute.xlu0 %5483
          %5485 = vrot.lane.b32.xlu0 %v5446, 64
          %v5486 = vpop.permute.xlu0 %5485
          %5487 = vrot.lane.b32.xlu0 %v5447, 64
          %v5488 = vpop.permute.xlu0 %5487
          %5489 = vrot.lane.b32.xlu0 %v5448, 64
          %v5490 = vpop.permute.xlu0 %5489
          %5491 = vrot.lane.b32.xlu0 %v5449, 64
          %v5492 = vpop.permute.xlu0 %5491
          %5493 = vrot.lane.b32.xlu0 %v5450, 64
          %v5494 = vpop.permute.xlu0 %5493
          %5495 = vrot.lane.b32.xlu0 %v5451, 64
          %v5496 = vpop.permute.xlu0 %5495
          %5497 = vrot.lane.b32.xlu0 %v5452, 64
          %v5498 = vpop.permute.xlu0 %5497
          %5499 = vrot.lane.b32.xlu0 %v5453, 64
          %v5500 = vpop.permute.xlu0 %5499
          %5501 = vrot.lane.b32.xlu0 %v5454, 64
          %v5502 = vpop.permute.xlu0 %5501
          %vm5519 = vcmask 785920
          %5520 = vst.msk [vmem:[%s544] sm:$0xff] %vm5519, %v5472
          %5521 = vst.msk [vmem:[%s544 + $0x8] sm:$0xff] %vm5519, %v5474
          %5522 = vst.msk [vmem:[%s544 + $0x10] sm:$0xff] %vm5519, %v5476
          %5523 = vst.msk [vmem:[%s544 + $0x18] sm:$0xff] %vm5519, %v5478
          %5524 = vst.msk [vmem:[%s544 + $0x20] sm:$0xff] %vm5519, %v5480
          %5525 = vst.msk [vmem:[%s544 + $0x28] sm:$0xff] %vm5519, %v5482
          %5526 = vst.msk [vmem:[%s544 + $0x30] sm:$0xff] %vm5519, %v5484
          %5527 = vst.msk [vmem:[%s544 + $0x38] sm:$0xff] %vm5519, %v5486
          %5528 = vst.msk [vmem:[%s544 + $0x40] sm:$0xff] %vm5519, %v5488
          %5529 = vst.msk [vmem:[%s544 + $0x48] sm:$0xff] %vm5519, %v5490
          %5530 = vst.msk [vmem:[%s544 + $0x50] sm:$0xff] %vm5519, %v5492
          %5531 = vst.msk [vmem:[%s544 + $0x58] sm:$0xff] %vm5519, %v5494
          %5532 = vst.msk [vmem:[%s544 + $0x60] sm:$0xff] %vm5519, %v5496
          %5533 = vst.msk [vmem:[%s544 + $0x68] sm:$0xff] %vm5519, %v5498
          %5534 = vst.msk [vmem:[%s544 + $0x70] sm:$0xff] %vm5519, %v5500
          %5535 = vst.msk [vmem:[%s544 + $0x78] sm:$0xff] %vm5519, %v5502
          %v5536 = vld [vmem:[%s4456] sm:$0xff]
          %v5537 = vld [vmem:[%s4456 + $0x8] sm:$0xff]
          %v5538 = vld [vmem:[%s4456 + $0x10] sm:$0xff]
          %v5539 = vld [vmem:[%s4456 + $0x18] sm:$0xff]
          %v5540 = vld [vmem:[%s4456 + $0x20] sm:$0xff]
          %v5541 = vld [vmem:[%s4456 + $0x28] sm:$0xff]
          %v5542 = vld [vmem:[%s4456 + $0x30] sm:$0xff]
          %v5543 = vld [vmem:[%s4456 + $0x38] sm:$0xff]
          %v5544 = vld [vmem:[%s4456 + $0x40] sm:$0xff]
          %v5545 = vld [vmem:[%s4456 + $0x48] sm:$0xff]
          %v5546 = vld [vmem:[%s4456 + $0x50] sm:$0xff]
          %v5547 = vld [vmem:[%s4456 + $0x58] sm:$0xff]
          %v5548 = vld [vmem:[%s4456 + $0x60] sm:$0xff]
          %v5549 = vld [vmem:[%s4456 + $0x68] sm:$0xff]
          %v5550 = vld [vmem:[%s4456 + $0x70] sm:$0xff]
          %v5551 = vld [vmem:[%s4456 + $0x78] sm:$0xff]
          %v5552 = vrcp.pop %v5536
          %v5553 = vrcp.pop %v5537
          %v5554 = vrcp.pop %v5538
          %v5555 = vrcp.pop %v5539
          %v5556 = vrcp.pop %v5540
          %v5557 = vrcp.pop %v5541
          %v5558 = vrcp.pop %v5542
          %v5559 = vrcp.pop %v5543
          %v5560 = vrcp.pop %v5544
          %v5561 = vrcp.pop %v5545
          %v5562 = vrcp.pop %v5546
          %v5563 = vrcp.pop %v5547
          %v5564 = vrcp.pop %v5548
          %v5565 = vrcp.pop %v5549
          %v5566 = vrcp.pop %v5550
          %v5567 = vrcp.pop %v5551
          %v5568 = vld [vmem:[%s4553] sm:$0xff]
          %v5569 = vld [vmem:[%s4553 + $0x8] sm:$0xff]
          %v5570 = vld [vmem:[%s4553 + $0x10] sm:$0xff]
          %v5571 = vld [vmem:[%s4553 + $0x18] sm:$0xff]
          %v5572 = vld [vmem:[%s4553 + $0x20] sm:$0xff]
          %v5573 = vld [vmem:[%s4553 + $0x28] sm:$0xff]
          %v5574 = vld [vmem:[%s4553 + $0x30] sm:$0xff]
          %v5575 = vld [vmem:[%s4553 + $0x38] sm:$0xff]
          %v5576 = vld [vmem:[%s4553 + $0x40] sm:$0xff]
          %v5577 = vld [vmem:[%s4553 + $0x48] sm:$0xff]
          %v5578 = vld [vmem:[%s4553 + $0x50] sm:$0xff]
          %v5579 = vld [vmem:[%s4553 + $0x58] sm:$0xff]
          %v5580 = vld [vmem:[%s4553 + $0x60] sm:$0xff]
          %v5581 = vld [vmem:[%s4553 + $0x68] sm:$0xff]
          %v5582 = vld [vmem:[%s4553 + $0x70] sm:$0xff]
          %v5583 = vld [vmem:[%s4553 + $0x78] sm:$0xff]
          %5585 = vset.pattern.permute.xlu0 0
          %5586 = vperm.xlu0 %5585, %v5552
          %v5587 = vpop.permute.xlu0 %5586
          %5590 = vset.pattern.permute.xlu0 0
          %5591 = vperm.xlu0 %5590, %v5553
          %v5592 = vpop.permute.xlu0 %5591
          %5595 = vset.pattern.permute.xlu0 0
          %5596 = vperm.xlu0 %5595, %v5554
          %v5597 = vpop.permute.xlu0 %5596
          %5600 = vset.pattern.permute.xlu0 0
          %5601 = vperm.xlu0 %5600, %v5555
          %v5602 = vpop.permute.xlu0 %5601
          %5605 = vset.pattern.permute.xlu0 0
          %5606 = vperm.xlu0 %5605, %v5556
          %v5607 = vpop.permute.xlu0 %5606
          %5610 = vset.pattern.permute.xlu0 0
          %5611 = vperm.xlu0 %5610, %v5557
          %v5612 = vpop.permute.xlu0 %5611
          %5615 = vset.pattern.permute.xlu0 0
          %5616 = vperm.xlu0 %5615, %v5558
          %v5617 = vpop.permute.xlu0 %5616
          %5620 = vset.pattern.permute.xlu0 0
          %5621 = vperm.xlu0 %5620, %v5559
          %v5622 = vpop.permute.xlu0 %5621
          %5625 = vset.pattern.permute.xlu0 0
          %5626 = vperm.xlu0 %5625, %v5560
          %v5627 = vpop.permute.xlu0 %5626
          %5630 = vset.pattern.permute.xlu0 0
          %5631 = vperm.xlu0 %5630, %v5561
          %v5632 = vpop.permute.xlu0 %5631
          %5635 = vset.pattern.permute.xlu0 0
          %5636 = vperm.xlu0 %5635, %v5562
          %v5637 = vpop.permute.xlu0 %5636
          %5640 = vset.pattern.permute.xlu0 0
          %5641 = vperm.xlu0 %5640, %v5563
          %v5642 = vpop.permute.xlu0 %5641
          %5645 = vset.pattern.permute.xlu0 0
          %5646 = vperm.xlu0 %5645, %v5564
          %v5647 = vpop.permute.xlu0 %5646
          %5650 = vset.pattern.permute.xlu0 0
          %5651 = vperm.xlu0 %5650, %v5565
          %v5652 = vpop.permute.xlu0 %5651
          %5655 = vset.pattern.permute.xlu0 0
          %5656 = vperm.xlu0 %5655, %v5566
          %v5657 = vpop.permute.xlu0 %5656
          %5660 = vset.pattern.permute.xlu0 0
          %5661 = vperm.xlu0 %5660, %v5567
          %v5662 = vpop.permute.xlu0 %5661
          %v5664 = vmul.f32 %v5568, %v5587
          %v5665 = vmul.f32 %v5569, %v5592
          %v5666 = vmul.f32 %v5570, %v5597
          %v5667 = vmul.f32 %v5571, %v5602
          %v5668 = vmul.f32 %v5572, %v5607
          %v5669 = vmul.f32 %v5573, %v5612
          %v5670 = vmul.f32 %v5574, %v5617
          %v5671 = vmul.f32 %v5575, %v5622
          %v5672 = vmul.f32 %v5576, %v5627
          %v5673 = vmul.f32 %v5577, %v5632
          %v5674 = vmul.f32 %v5578, %v5637
          %v5675 = vmul.f32 %v5579, %v5642
          %v5676 = vmul.f32 %v5580, %v5647
          %v5677 = vmul.f32 %v5581, %v5652
          %v5678 = vmul.f32 %v5582, %v5657
          %v5679 = vmul.f32 %v5583, %v5662
          %5696 = vrot.lane.b32.xlu0 %v5664, 96
          %v5697 = vpop.permute.xlu0 %5696
          %5698 = vrot.lane.b32.xlu0 %v5665, 96
          %v5699 = vpop.permute.xlu0 %5698
          %5700 = vrot.lane.b32.xlu0 %v5666, 96
          %v5701 = vpop.permute.xlu0 %5700
          %5702 = vrot.lane.b32.xlu0 %v5667, 96
          %v5703 = vpop.permute.xlu0 %5702
          %5704 = vrot.lane.b32.xlu0 %v5668, 96
          %v5705 = vpop.permute.xlu0 %5704
          %5706 = vrot.lane.b32.xlu0 %v5669, 96
          %v5707 = vpop.permute.xlu0 %5706
          %5708 = vrot.lane.b32.xlu0 %v5670, 96
          %v5709 = vpop.permute.xlu0 %5708
          %5710 = vrot.lane.b32.xlu0 %v5671, 96
          %v5711 = vpop.permute.xlu0 %5710
          %5712 = vrot.lane.b32.xlu0 %v5672, 96
          %v5713 = vpop.permute.xlu0 %5712
          %5714 = vrot.lane.b32.xlu0 %v5673, 96
          %v5715 = vpop.permute.xlu0 %5714
          %5716 = vrot.lane.b32.xlu0 %v5674, 96
          %v5717 = vpop.permute.xlu0 %5716
          %5718 = vrot.lane.b32.xlu0 %v5675, 96
          %v5719 = vpop.permute.xlu0 %5718
          %5720 = vrot.lane.b32.xlu0 %v5676, 96
          %v5721 = vpop.permute.xlu0 %5720
          %5722 = vrot.lane.b32.xlu0 %v5677, 96
          %v5723 = vpop.permute.xlu0 %5722
          %5724 = vrot.lane.b32.xlu0 %v5678, 96
          %v5725 = vpop.permute.xlu0 %5724
          %5726 = vrot.lane.b32.xlu0 %v5679, 96
          %v5727 = vpop.permute.xlu0 %5726
          %vm5744 = vcmask 1048320
          %5745 = vst.msk [vmem:[%s544] sm:$0xff] %vm5744, %v5697
          %5746 = vst.msk [vmem:[%s544 + $0x8] sm:$0xff] %vm5744, %v5699
          %5747 = vst.msk [vmem:[%s544 + $0x10] sm:$0xff] %vm5744, %v5701
          %5748 = vst.msk [vmem:[%s544 + $0x18] sm:$0xff] %vm5744, %v5703
          %5749 = vst.msk [vmem:[%s544 + $0x20] sm:$0xff] %vm5744, %v5705
          %5750 = vst.msk [vmem:[%s544 + $0x28] sm:$0xff] %vm5744, %v5707
          %5751 = vst.msk [vmem:[%s544 + $0x30] sm:$0xff] %vm5744, %v5709
          %5752 = vst.msk [vmem:[%s544 + $0x38] sm:$0xff] %vm5744, %v5711
          %5753 = vst.msk [vmem:[%s544 + $0x40] sm:$0xff] %vm5744, %v5713
          %5754 = vst.msk [vmem:[%s544 + $0x48] sm:$0xff] %vm5744, %v5715
          %5755 = vst.msk [vmem:[%s544 + $0x50] sm:$0xff] %vm5744, %v5717
          %5756 = vst.msk [vmem:[%s544 + $0x58] sm:$0xff] %vm5744, %v5719
          %5757 = vst.msk [vmem:[%s544 + $0x60] sm:$0xff] %vm5744, %v5721
          %5758 = vst.msk [vmem:[%s544 + $0x68] sm:$0xff] %vm5744, %v5723
          %5759 = vst.msk [vmem:[%s544 + $0x70] sm:$0xff] %vm5744, %v5725
          %5760 = vst.msk [vmem:[%s544 + $0x78] sm:$0xff] %vm5744, %v5727
        $region154: #{attention_forward.4} parent=133 // pred_fallthru
          _
        %s5761 = smul.u32 16, %s20
        %p5762 = scmp.lt.s32.totalorder %s19, 1
        %s5763 = scalar_select %p5762, %s19, 1
        %p5764 = scmp.lt.s32.totalorder %s5761, 15
        %s5765 = scalar_select %p5764, %s5761, 15
        %s5766 = smul.addr %s5763, 16
        %s5767 = sadd.s32 %s5765, %s5766
        %s5768 = smul.addr %s5767, 8
        %s5769 = scalar_lea.vmem %s3, %s5768
        // Predicated region
        $region155: #{attention_forward.4} parent=133 // pred_check
          %p5770 = pneg %p137
        $region156: #{attention_forward.4} parent=133 // pred_check_branch
          %5772 = sbr.rel (%p5770) target = $region158
        $region157: #{attention_forward.4} parent=133 // pred_region
          %s5773 = smul.u32 16, %s20
        $region158: #{attention_forward.4} parent=133 // pred_fallthru
          _
      $region134: #{attention_forward.4} parent=5 // pred_fallthru
        _
      %p5774 = scmp.le.s32.totalorder 2, %s9
      // Predicated region
      $region159: #{attention_forward.4} parent=5 // pred_check
        %p5775 = pneg %p5774
      $region160: #{attention_forward.4} parent=5 // pred_check_branch
        %5777 = sbr.rel (%p5775) target = $region162
      $region161: #{attention_forward.4} parent=5 // pred_region
        %s5778 = ssub.s32 %s9, 2
        // Predicated region
        $region163: #{attention_forward.4} parent=161 // pred_check
          %p5779 = pneg %p143
        $region164: #{attention_forward.4} parent=161 // pred_check_branch
          %5781 = sbr.rel (%p5779) target = $region166
        $region165: #{attention_forward.4} parent=161 // pred_region
          %s5782 = smul.u32 16, %s23
          %p5783 = scmp.lt.s32.totalorder %s22, 1
          %s5784 = scalar_select %p5783, %s22, 1
          %p5785 = scmp.lt.s32.totalorder %s5782, 15
          %s5786 = scalar_select %p5785, %s5782, 15
          %s5787 = smul.addr %s5784, 16
          %s5788 = sadd.s32 %s5786, %s5787
          %s5789 = smul.addr %s5788, 8
          %s5790 = scalar_lea.vmem %s3, %s5789
        $region166: #{attention_forward.4} parent=161 // pred_fallthru
          _
      $region162: #{attention_forward.4} parent=5 // pred_fallthru
        _
    $region6: #{attention_forward.4} parent=1 // loop_footer
      %s13 = sadd.s32 1, %s9
    $region7: #{attention_forward.4} parent=1 // loop_footer_branch
      %8 = sbr.rel target = $region3
    $region8: #{attention_forward.4} parent=1 // loop_exit
      _

</llo_original>
